<compile_context>
chip_gen: v5e
topology: v5e:2x2
jax: 0.10.0
libtpu: 0.0.40
codegen_flags: <defaults>
</compile_context>

<pallas_src>
import functools

import numpy as np
import jax
import jax.numpy as jnp
from jax import lax
from jax.experimental import pallas as pl
from jax.experimental.pallas import tpu as pltpu


# ============================================================================
# Fused Pallas kernel (one batch element per grid step)
# ============================================================================

def _fused_kernel(fdm_ref, kron_ref, pix_ref, x_ref,
                  w0_ref, p0_ref, w1_ref, p1_ref, w2_ref, p2_ref,
                  w3_ref, p3_ref, w4_ref, p4_ref,
                  wf1_ref, pf1_ref, wf2_ref, pf2_ref, wfu_ref, pfu_ref,
                  wsup_ref, bsup_ref,
                  x0_ref, sup_ref,
                  col_ref, cat_ref,
                  *, feat, H, W, Wfp, ds):
    HW = H * W

    def shift_read(v, off):
        """out[..., p] = v[..., (p + off) mod n]   (np.roll by -off)."""
        n = v.shape[-1]
        off = off % n
        if off == 0:
            return v
        return pltpu.roll(v, shift=n - off, axis=v.ndim - 1)

    # host-precomputed flat pixel coordinates (avoids in-kernel int div/mod)
    pcol = pix_ref[0:1, :]       # (1, HW) int32 : p %  W
    prow = pix_ref[1:2, :]       # (1, HW) int32 : p // W

    def conv_gn_relu(x_val, w_ref, p_ref, d, cin, cout):
        """Dilated 3x3 conv + GroupNorm(1) + ReLU.

        x_val : (cin, HW) value          w_ref : (cout, 9*cin)  [K = (ky, kx, ci)]
        p_ref : (3*cout, 1) = [bias ; gamma ; beta]      returns (cout, HW).
        """
        # ---- im2col via rolls + boundary masks into VMEM scratch ----
        t = 0
        for ky in range(3):
            for kx in range(3):
                dy = (ky - 1) * d
                dx = (kx - 1) * d
                if dy == 0 and dx == 0:
                    sh = x_val
                else:
                    sh = shift_read(x_val, dy * W + dx)
                    ok = ((pcol + dx >= 0) & (pcol + dx < W) &
                          (prow + dy >= 0) & (prow + dy < H))
                    sh = jnp.where(ok, sh, 0.0)
                col_ref[t * cin:(t + 1) * cin, :] = sh
                t += 1

        # ---- one wide contraction (128-aligned K chunks keep vregs bounded) ----
        kdim = 9 * cin
        acc = jnp.zeros((cout, HW), jnp.float32)
        for k0 in range(0, kdim, 128):
            kw = min(128, kdim - k0)
            acc = acc + jnp.dot(w_ref[:, k0:k0 + kw], col_ref[k0:k0 + kw, :],
                                preferred_element_type=jnp.float32)

        bias = p_ref[0:cout, :]
        gamma = p_ref[cout:2 * cout, :]
        beta = p_ref[2 * cout:3 * cout, :]
        acc = acc + bias

        # ---- GroupNorm(num_groups=1): one-pass stats over (cout, HW), eps=1e-5
        n = float(cout * HW)
        s1 = jnp.sum(acc, keepdims=True)            # (1, 1)
        s2 = jnp.sum(acc * acc, keepdims=True)      # (1, 1)
        mean = s1 / n
        var = s2 / n - mean * mean
        y = (acc - mean) * lax.rsqrt(var + 1e-5)
        y = y * gamma + beta
        return jnp.maximum(y, 0.0)                  # ReLU

    # ------------------------------------------------------------------
    # 1) 13x13 / stride-1 / pad-6 max pool on the (-1e30)-padded flattened fdm
    #    (separable running maxima; wrapped-in garbage never reaches a used
    #     position and is multiplied by zero Kronecker rows below).
    # ------------------------------------------------------------------
    flat = fdm_ref[0]                               # (1, PADF), row pitch = Wfp
    rmax = flat
    for k in range(1, 13):
        rmax = jnp.maximum(rmax, shift_read(flat, k * Wfp))
    pooled = rmax
    for k in range(1, 13):
        pooled = jnp.maximum(pooled, shift_read(rmax, k))

    # ------------------------------------------------------------------
    # 2) bilinear resize to (H, W), emitted directly as a lane-dense (1, HW)
    #    row:  resized = pooled_flat @ kron(Rh, Rw)^T   (padding rows are zero)
    # ------------------------------------------------------------------
    padf = kron_ref.shape[0]
    fdm_rs = jnp.zeros((1, HW), jnp.float32)
    for k0 in range(0, padf, 128):
        fdm_rs = fdm_rs + jnp.dot(pooled[:, k0:k0 + 128], kron_ref[k0:k0 + 128, :],
                                  preferred_element_type=jnp.float32)

    # ------------------------------------------------------------------
    # 3) conv stack -- everything stays in VMEM / vregs in (C, HW) layout
    # ------------------------------------------------------------------
    f0 = conv_gn_relu(fdm_rs, w0_ref, p0_ref, 1, 1, feat)

    cat_ref[0 * feat:1 * feat, :] = conv_gn_relu(f0, w1_ref, p1_ref, ds[0], feat, feat)
    cat_ref[1 * feat:2 * feat, :] = conv_gn_relu(f0, w2_ref, p2_ref, ds[1], feat, feat)
    cat_ref[2 * feat:3 * feat, :] = conv_gn_relu(f0, w3_ref, p3_ref, ds[2], feat, feat)
    cat_ref[3 * feat:4 * feat, :] = conv_gn_relu(f0, w4_ref, p4_ref, ds[3], feat, feat)

    xf = conv_gn_relu(cat_ref[...], wf1_ref, pf1_ref, 1, 4 * feat, feat)
    xf = conv_gn_relu(xf, wf2_ref, pf2_ref, 1, feat, feat)

    # sup = 1x1 conv (feat -> 1): sublane reduction, lane-dense (1, HW) store
    sup_ref[0] = jnp.sum(xf * wsup_ref[...], axis=0, keepdims=True) + bsup_ref[...]

    # x0 = fuse(cat(xf * x, x))  -- multiply + concat done in VMEM
    xin = x_ref[0]                                  # (feat, HW)
    cat_ref[0:feat, :] = xf * xin
    cat_ref[feat:2 * feat, :] = xin
    x0_ref[0] = conv_gn_relu(cat_ref[0:2 * feat, :], wfu_ref, pfu_ref, 1,
                             2 * feat, feat)


# ============================================================================
# Host-side helpers
# ============================================================================

def _bilinear_matrix(in_size, out_size):
    """PyTorch bilinear (align_corners=False) resampling matrix (out, in)."""
    scale = in_size / out_size
    dst = np.arange(out_size)
    src = np.maximum((dst + 0.5) * scale - 0.5, 0.0)
    i0 = np.minimum(np.floor(src).astype(np.int64), in_size - 1)
    lam = (src - i0).astype(np.float32)
    i1 = np.minimum(i0 + 1, in_size - 1)
    m = np.zeros((out_size, in_size), np.float32)
    m[dst, i0] += (1.0 - lam)
    m[dst, i1] += lam
    return m


def _kron_resize_matrix(Hf, Wf, Wfp, padf, H, W):
    """(padf, H*W) matrix K with K[r*Wfp + c, u*W + v] = Rh[u, r] * Rw[v, c] for
    r < Hf, c < Wf and zero elsewhere, so that (in flat layout)
    resized_flat = pooled_flat @ K  ==  vec_row(Rh @ pooled @ Rw^T)."""
    Rh = _bilinear_matrix(Hf, H)          # (H, Hf)
    Rw = _bilinear_matrix(Wf, W)          # (W, Wf)
    K = np.zeros((padf, H * W), np.float32)
    for r in range(Hf):
        for c in range(Wf):
            K[r * Wfp + c, :] = np.outer(Rh[:, r], Rw[:, c]).reshape(-1)
    return K


def _pack_conv(w, b, g, be):
    """PyTorch OIHW conv weight -> (Cout, 9*Cin) with K ordered (ky, kx, ci);
    bias/gamma/beta packed along sublanes as (3*Cout, 1)."""
    co, ci = w.shape[0], w.shape[1]
    wmat = jnp.transpose(w, (0, 2, 3, 1)).reshape(co, 9 * ci)
    pvec = jnp.concatenate([b, g, be], axis=0).reshape(3 * co, 1)
    return wmat, pvec


# ============================================================================
# Forward pass (matches fdm_expand_block.forward)
# ============================================================================

def fdm_expand_block_forward(fdm, x, params, ds=(7, 5, 3, 1)):
    """fdm: (B,1,Hf,Wf) NCHW; x: (B,feat,H,W) NCHW.  Returns (x0, sup) NCHW."""
    B, _, Hf, Wf = fdm.shape
    _, feat, H, W = x.shape
    HW = H * W
    assert HW % 128 == 0, "H*W must be a multiple of 128 for the flat lane layout"

    # -- max-pool input: pad by 6 with a very negative finite value (stands in
    #    for -inf; every 13x13 window contains a real element so the result is
    #    identical) and flatten with row pitch Wf+12, lane-padded to 128*k.
    NEG = -1e30
    Hfp, Wfp = Hf + 12, Wf + 12
    padf = int(np.ceil(Hfp * Wfp / 128.0) * 128)
    fdm_p = jnp.pad(fdm[:, 0].astype(jnp.float32), ((0, 0), (6, 6), (6, 6)),
                    constant_values=NEG)
    fdm_flat = jnp.pad(fdm_p.reshape(B, 1, Hfp * Wfp),
                       ((0, 0), (0, 0), (0, padf - Hfp * Wfp)),
                       constant_values=NEG)

    kron = jnp.asarray(_kron_resize_matrix(Hf, Wf, Wfp, padf, H, W))

    # flat pixel coordinates (col, row) used for the conv boundary masks
    cols = np.tile(np.arange(W, dtype=np.int32), H)
    rows = np.repeat(np.arange(H, dtype=np.int32), W)
    pix = jnp.asarray(np.stack([cols, rows], axis=0))          # (2, HW) int32

    x_flat = x.astype(jnp.float32).reshape(B, feat, HW)         # NCHW -> flat view

    w0, p0 = _pack_conv(*params["conv0"])
    w1, p1 = _pack_conv(*params["conv1"])
    w2, p2 = _pack_conv(*params["conv2"])
    w3, p3 = _pack_conv(*params["conv3"])
    w4, p4 = _pack_conv(*params["conv4"])
    wf1, pf1 = _pack_conv(*params["fuse_conv1"])
    wf2, pf2 = _pack_conv(*params["fuse_conv2"])
    wfu, pfu = _pack_conv(*params["fuse"])
    wsup = params["sup"][0].reshape(feat, 1)
    bsup = params["sup"][1].reshape(1, 1)

    const = lambda *shape: pl.BlockSpec(shape, lambda b, _s=len(shape): (0,) * _s)
    perb3 = lambda c, n: pl.BlockSpec((1, c, n), lambda b: (b, 0, 0))

    kern = functools.partial(_fused_kernel, feat=feat, H=H, W=W, Wfp=Wfp,
                             ds=tuple(ds))

    x0_flat, sup_flat = pl.pallas_call(
        kern,
        out_shape=(jax.ShapeDtypeStruct((B, feat, HW), jnp.float32),
                   jax.ShapeDtypeStruct((B, 1, HW), jnp.float32)),
        grid=(B,),
        in_specs=[
            perb3(1, padf),                       # flattened padded fdm
            const(padf, HW),                      # Kronecker resize matrix
            const(2, HW),                         # pixel (col,row) indices
            perb3(feat, HW),                      # x (NCHW flattened)
            const(*w0.shape), const(*p0.shape),
            const(*w1.shape), const(*p1.shape),
            const(*w2.shape), const(*p2.shape),
            const(*w3.shape), const(*p3.shape),
            const(*w4.shape), const(*p4.shape),
            const(*wf1.shape), const(*pf1.shape),
            const(*wf2.shape), const(*pf2.shape),
            const(*wfu.shape), const(*pfu.shape),
            const(feat, 1), const(1, 1),
        ],
        out_specs=(perb3(feat, HW), perb3(1, HW)),
        scratch_shapes=[
            pltpu.VMEM((9 * 4 * feat, HW), jnp.float32),   # im2col scratch
            pltpu.VMEM((4 * feat, HW), jnp.float32),       # channel-concat buffer
        ],
        compiler_params=pltpu.CompilerParams(
            dimension_semantics=("parallel",),             # v7x: 2 TensorCores
        ),
    )(fdm_flat, kron, pix, x_flat,
      w0, p0, w1, p1, w2, p2, w3, p3, w4, p4,
      wf1, pf1, wf2, pf2, wfu, pfu, wsup, bsup)

    return x0_flat.reshape(B, feat, H, W), sup_flat.reshape(B, 1, H, W)


# ============================================================================
# Parameters (deterministic synthetic init, PyTorch OIHW layout)
# ============================================================================

def _init_conv_gn(key, cin, cout):
    k1, k2, k3, k4 = jax.random.split(key, 4)
    w = jax.random.normal(k1, (cout, cin, 3, 3), jnp.float32) / np.sqrt(9.0 * cin)
    b = 0.05 * jax.random.normal(k2, (cout,), jnp.float32)
    g = 1.0 + 0.1 * jax.random.normal(k3, (cout,), jnp.float32)
    be = 0.1 * jax.random.normal(k4, (cout,), jnp.float32)
    return (w, b, g, be)


def make_params(feat, seed=42):
    keys = jax.random.split(jax.random.PRNGKey(seed), 10)
    return {
        "conv0": _init_conv_gn(keys[0], 1, feat),
        "conv1": _init_conv_gn(keys[1], feat, feat),
        "conv2": _init_conv_gn(keys[2], feat, feat),
        "conv3": _init_conv_gn(keys[3], feat, feat),
        "conv4": _init_conv_gn(keys[4], feat, feat),
        "fuse_conv1": _init_conv_gn(keys[5], 4 * feat, feat),
        "fuse_conv2": _init_conv_gn(keys[6], feat, feat),
        "fuse": _init_conv_gn(keys[7], 2 * feat, feat),
        "sup": (jax.random.normal(keys[8], (1, feat), jnp.float32) / np.sqrt(feat),
                0.05 * jax.random.normal(keys[9], (1,), jnp.float32)),
    }


# ============================================================================
# Pure-JAX (XLA) reference, used for a correctness check in __main__
# ============================================================================

def _ref_conv_gn_relu(z, p, d):
    w, b, g, be = p
    y = lax.conv_general_dilated(z, w, window_strides=(1, 1),
                                 padding=[(d, d), (d, d)], rhs_dilation=(d, d),
                                 dimension_numbers=("NCHW", "OIHW", "NCHW"),
                                 precision=lax.Precision.HIGHEST)
    y = y + b[None, :, None, None]
    mean = jnp.mean(y, axis=(1, 2, 3), keepdims=True)
    var = jnp.mean((y - mean) ** 2, axis=(1, 2, 3), keepdims=True)
    y = (y - mean) * lax.rsqrt(var + 1e-5)
    y = y * g[None, :, None, None] + be[None, :, None, None]
    return jnp.maximum(y, 0.0)


def _ref_forward(fdm, x, params, ds=(7, 5, 3, 1)):
    B, _, Hf, Wf = fdm.shape
    _, feat, H, W = x.shape
    f = lax.reduce_window(fdm, -jnp.inf, lax.max, (1, 1, 13, 13), (1, 1, 1, 1),
                          [(0, 0), (0, 0), (6, 6), (6, 6)])
    Rh = jnp.asarray(_bilinear_matrix(Hf, H))
    Rw = jnp.asarray(_bilinear_matrix(Wf, W))
    f = jnp.einsum("ui,bcij,vj->bcuv", Rh, f, Rw, precision=lax.Precision.HIGHEST)
    f0 = _ref_conv_gn_relu(f, params["conv0"], 1)
    x1 = _ref_conv_gn_relu(f0, params["conv1"], ds[0])
    x2 = _ref_conv_gn_relu(f0, params["conv2"], ds[1])
    x3 = _ref_conv_gn_relu(f0, params["conv3"], ds[2])
    x4 = _ref_conv_gn_relu(f0, params["conv4"], ds[3])
    xf = jnp.concatenate([x1, x2, x3, x4], axis=1)
    xf = _ref_conv_gn_relu(xf, params["fuse_conv1"], 1)
    xf = _ref_conv_gn_relu(xf, params["fuse_conv2"], 1)
    wsup, bsup = params["sup"]
    sup = jnp.einsum("oc,bchw->bohw", wsup, xf,
                     precision=lax.Precision.HIGHEST) + bsup.reshape(1, 1, 1, 1)
    x0 = _ref_conv_gn_relu(jnp.concatenate([xf * x, x], axis=1), params["fuse"], 1)
    return x0, sup


# ============================================================================

if __name__ == "__main__":
    B, feat = 2, 8
    Hf = Wf = 8      # fdm spatial size
    H = W = 16       # x spatial size (H*W must be a multiple of 128)

    key = jax.random.PRNGKey(0)
    kf, kx = jax.random.split(key)
    fdm = jax.random.normal(kf, (B, 1, Hf, Wf), jnp.float32)
    x = jax.random.normal(kx, (B, feat, H, W), jnp.float32)

    params = make_params(feat)

    fwd = jax.jit(fdm_expand_block_forward)
    x0, sup = fwd(fdm, x, params)
    jax.block_until_ready((x0, sup))

    assert x0.shape == (B, feat, H, W), x0.shape
    assert sup.shape == (B, 1, H, W), sup.shape
    assert bool(jnp.all(jnp.isfinite(x0))) and bool(jnp.all(jnp.isfinite(sup)))

    # Correctness check against a pure-XLA reference.  Tolerance is loose
    # enough to absorb MXU f32 multi-pass vs XLA HIGHEST differences; any
    # structural / layout bug would produce O(1) errors.
    x0_r, sup_r = _ref_forward(fdm, x, params)
    err0 = float(jnp.max(jnp.abs(x0 - x0_r)))
    errs = float(jnp.max(jnp.abs(sup - sup_r)))
    assert err0 < 5e-2 and errs < 5e-2, (err0, errs)

    print("KERNEL_OK")
</pallas_src>

<mosaic_0001>
module attributes {stable_mosaic.version = 11 : i64} {
  func.func @_fused_kernel(%arg0: i32, %arg1: memref<1x1x512xf32, #tpu.memory_space<vmem>>, %arg2: memref<512x256xf32, #tpu.memory_space<vmem>>, %arg3: memref<2x256xi32, #tpu.memory_space<vmem>>, %arg4: memref<1x8x256xf32, #tpu.memory_space<vmem>>, %arg5: memref<8x9xf32, #tpu.memory_space<vmem>>, %arg6: memref<24x1xf32, #tpu.memory_space<vmem>>, %arg7: memref<8x72xf32, #tpu.memory_space<vmem>>, %arg8: memref<24x1xf32, #tpu.memory_space<vmem>>, %arg9: memref<8x72xf32, #tpu.memory_space<vmem>>, %arg10: memref<24x1xf32, #tpu.memory_space<vmem>>, %arg11: memref<8x72xf32, #tpu.memory_space<vmem>>, %arg12: memref<24x1xf32, #tpu.memory_space<vmem>>, %arg13: memref<8x72xf32, #tpu.memory_space<vmem>>, %arg14: memref<24x1xf32, #tpu.memory_space<vmem>>, %arg15: memref<8x288xf32, #tpu.memory_space<vmem>>, %arg16: memref<24x1xf32, #tpu.memory_space<vmem>>, %arg17: memref<8x72xf32, #tpu.memory_space<vmem>>, %arg18: memref<24x1xf32, #tpu.memory_space<vmem>>, %arg19: memref<8x144xf32, #tpu.memory_space<vmem>>, %arg20: memref<24x1xf32, #tpu.memory_space<vmem>>, %arg21: memref<8x1xf32, #tpu.memory_space<vmem>>, %arg22: memref<1x1xf32, #tpu.memory_space<vmem>>, %arg23: memref<1x8x256xf32, #tpu.memory_space<vmem>>, %arg24: memref<1x1x256xf32, #tpu.memory_space<vmem>>, %arg25: memref<288x256xf32, #tpu.memory_space<vmem>>, %arg26: memref<32x256xf32, #tpu.memory_space<vmem>>) attributes {dimension_semantics = [#tpu.dimension_semantics<parallel>], iteration_bounds = array<i64: 2>, scalar_prefetch = 0 : i64, scratch_operands = 2 : i64, tpu.core_type = #tpu.core_type<tc>, window_params = [{transform_indices = @transform_0, window_bounds = array<i64: 1, 1, 512>}, {pipeline_mode = #tpu.pipeline_mode<synchronous>, transform_indices = @transform_1, window_bounds = array<i64: 512, 256>}, {pipeline_mode = #tpu.pipeline_mode<synchronous>, transform_indices = @transform_2, window_bounds = array<i64: 2, 256>}, {transform_indices = @transform_3, window_bounds = array<i64: 1, 8, 256>}, {pipeline_mode = #tpu.pipeline_mode<synchronous>, transform_indices = @transform_4, window_bounds = array<i64: 8, 9>}, {pipeline_mode = #tpu.pipeline_mode<synchronous>, transform_indices = @transform_5, window_bounds = array<i64: 24, 1>}, {pipeline_mode = #tpu.pipeline_mode<synchronous>, transform_indices = @transform_6, window_bounds = array<i64: 8, 72>}, {pipeline_mode = #tpu.pipeline_mode<synchronous>, transform_indices = @transform_7, window_bounds = array<i64: 24, 1>}, {pipeline_mode = #tpu.pipeline_mode<synchronous>, transform_indices = @transform_8, window_bounds = array<i64: 8, 72>}, {pipeline_mode = #tpu.pipeline_mode<synchronous>, transform_indices = @transform_9, window_bounds = array<i64: 24, 1>}, {pipeline_mode = #tpu.pipeline_mode<synchronous>, transform_indices = @transform_10, window_bounds = array<i64: 8, 72>}, {pipeline_mode = #tpu.pipeline_mode<synchronous>, transform_indices = @transform_11, window_bounds = array<i64: 24, 1>}, {pipeline_mode = #tpu.pipeline_mode<synchronous>, transform_indices = @transform_12, window_bounds = array<i64: 8, 72>}, {pipeline_mode = #tpu.pipeline_mode<synchronous>, transform_indices = @transform_13, window_bounds = array<i64: 24, 1>}, {pipeline_mode = #tpu.pipeline_mode<synchronous>, transform_indices = @transform_14, window_bounds = array<i64: 8, 288>}, {pipeline_mode = #tpu.pipeline_mode<synchronous>, transform_indices = @transform_15, window_bounds = array<i64: 24, 1>}, {pipeline_mode = #tpu.pipeline_mode<synchronous>, transform_indices = @transform_16, window_bounds = array<i64: 8, 72>}, {pipeline_mode = #tpu.pipeline_mode<synchronous>, transform_indices = @transform_17, window_bounds = array<i64: 24, 1>}, {pipeline_mode = #tpu.pipeline_mode<synchronous>, transform_indices = @transform_18, window_bounds = array<i64: 8, 144>}, {pipeline_mode = #tpu.pipeline_mode<synchronous>, transform_indices = @transform_19, window_bounds = array<i64: 24, 1>}, {pipeline_mode = #tpu.pipeline_mode<synchronous>, transform_indices = @transform_20, window_bounds = array<i64: 8, 1>}, {pipeline_mode = #tpu.pipeline_mode<synchronous>, transform_indices = @transform_21, window_bounds = array<i64: 1, 1>}, {transform_indices = @transform_22, window_bounds = array<i64: 1, 8, 256>}, {transform_indices = @transform_23, window_bounds = array<i64: 1, 1, 256>}]} {
    %c0 = arith.constant 0 : index
    %c0_0 = arith.constant 0 : index
    %0 = vector.load %arg3[%c0, %c0_0] : memref<2x256xi32, #tpu.memory_space<vmem>>, vector<1x256xi32>
    %c1 = arith.constant 1 : index
    %c0_1 = arith.constant 0 : index
    %1 = vector.load %arg3[%c1, %c0_1] : memref<2x256xi32, #tpu.memory_space<vmem>>, vector<1x256xi32>
    %c0_2 = arith.constant 0 : index
    %c0_3 = arith.constant 0 : index
    %c0_4 = arith.constant 0 : index
    %2 = vector.load %arg1[%c0_2, %c0_3, %c0_4] : memref<1x1x512xf32, #tpu.memory_space<vmem>>, vector<1x1x512xf32>
    %3 = vector.shape_cast %2 : vector<1x1x512xf32> to vector<1x512xf32>
    %c492_i32 = arith.constant 492 : i32
    %4 = tpu.dynamic_rotate %3 by %c492_i32 dim 1 : vector<1x512xf32>, i32 -> vector<1x512xf32>
    %5 = arith.maximumf %3, %4 : vector<1x512xf32>
    %c472_i32 = arith.constant 472 : i32
    %6 = tpu.dynamic_rotate %3 by %c472_i32 dim 1 : vector<1x512xf32>, i32 -> vector<1x512xf32>
    %7 = arith.maximumf %5, %6 : vector<1x512xf32>
    %c452_i32 = arith.constant 452 : i32
    %8 = tpu.dynamic_rotate %3 by %c452_i32 dim 1 : vector<1x512xf32>, i32 -> vector<1x512xf32>
    %9 = arith.maximumf %7, %8 : vector<1x512xf32>
    %c432_i32 = arith.constant 432 : i32
    %10 = tpu.dynamic_rotate %3 by %c432_i32 dim 1 : vector<1x512xf32>, i32 -> vector<1x512xf32>
    %11 = arith.maximumf %9, %10 : vector<1x512xf32>
    %c412_i32 = arith.constant 412 : i32
    %12 = tpu.dynamic_rotate %3 by %c412_i32 dim 1 : vector<1x512xf32>, i32 -> vector<1x512xf32>
    %13 = arith.maximumf %11, %12 : vector<1x512xf32>
    %c392_i32 = arith.constant 392 : i32
    %14 = tpu.dynamic_rotate %3 by %c392_i32 dim 1 : vector<1x512xf32>, i32 -> vector<1x512xf32>
    %15 = arith.maximumf %13, %14 : vector<1x512xf32>
    %c372_i32 = arith.constant 372 : i32
    %16 = tpu.dynamic_rotate %3 by %c372_i32 dim 1 : vector<1x512xf32>, i32 -> vector<1x512xf32>
    %17 = arith.maximumf %15, %16 : vector<1x512xf32>
    %c352_i32 = arith.constant 352 : i32
    %18 = tpu.dynamic_rotate %3 by %c352_i32 dim 1 : vector<1x512xf32>, i32 -> vector<1x512xf32>
    %19 = arith.maximumf %17, %18 : vector<1x512xf32>
    %c332_i32 = arith.constant 332 : i32
    %20 = tpu.dynamic_rotate %3 by %c332_i32 dim 1 : vector<1x512xf32>, i32 -> vector<1x512xf32>
    %21 = arith.maximumf %19, %20 : vector<1x512xf32>
    %c312_i32 = arith.constant 312 : i32
    %22 = tpu.dynamic_rotate %3 by %c312_i32 dim 1 : vector<1x512xf32>, i32 -> vector<1x512xf32>
    %23 = arith.maximumf %21, %22 : vector<1x512xf32>
    %c292_i32 = arith.constant 292 : i32
    %24 = tpu.dynamic_rotate %3 by %c292_i32 dim 1 : vector<1x512xf32>, i32 -> vector<1x512xf32>
    %25 = arith.maximumf %23, %24 : vector<1x512xf32>
    %c272_i32 = arith.constant 272 : i32
    %26 = tpu.dynamic_rotate %3 by %c272_i32 dim 1 : vector<1x512xf32>, i32 -> vector<1x512xf32>
    %27 = arith.maximumf %25, %26 : vector<1x512xf32>
    %c511_i32 = arith.constant 511 : i32
    %28 = tpu.dynamic_rotate %27 by %c511_i32 dim 1 : vector<1x512xf32>, i32 -> vector<1x512xf32>
    %29 = arith.maximumf %27, %28 : vector<1x512xf32>
    %c510_i32 = arith.constant 510 : i32
    %30 = tpu.dynamic_rotate %27 by %c510_i32 dim 1 : vector<1x512xf32>, i32 -> vector<1x512xf32>
    %31 = arith.maximumf %29, %30 : vector<1x512xf32>
    %c509_i32 = arith.constant 509 : i32
    %32 = tpu.dynamic_rotate %27 by %c509_i32 dim 1 : vector<1x512xf32>, i32 -> vector<1x512xf32>
    %33 = arith.maximumf %31, %32 : vector<1x512xf32>
    %c508_i32 = arith.constant 508 : i32
    %34 = tpu.dynamic_rotate %27 by %c508_i32 dim 1 : vector<1x512xf32>, i32 -> vector<1x512xf32>
    %35 = arith.maximumf %33, %34 : vector<1x512xf32>
    %c507_i32 = arith.constant 507 : i32
    %36 = tpu.dynamic_rotate %27 by %c507_i32 dim 1 : vector<1x512xf32>, i32 -> vector<1x512xf32>
    %37 = arith.maximumf %35, %36 : vector<1x512xf32>
    %c506_i32 = arith.constant 506 : i32
    %38 = tpu.dynamic_rotate %27 by %c506_i32 dim 1 : vector<1x512xf32>, i32 -> vector<1x512xf32>
    %39 = arith.maximumf %37, %38 : vector<1x512xf32>
    %c505_i32 = arith.constant 505 : i32
    %40 = tpu.dynamic_rotate %27 by %c505_i32 dim 1 : vector<1x512xf32>, i32 -> vector<1x512xf32>
    %41 = arith.maximumf %39, %40 : vector<1x512xf32>
    %c504_i32 = arith.constant 504 : i32
    %42 = tpu.dynamic_rotate %27 by %c504_i32 dim 1 : vector<1x512xf32>, i32 -> vector<1x512xf32>
    %43 = arith.maximumf %41, %42 : vector<1x512xf32>
    %c503_i32 = arith.constant 503 : i32
    %44 = tpu.dynamic_rotate %27 by %c503_i32 dim 1 : vector<1x512xf32>, i32 -> vector<1x512xf32>
    %45 = arith.maximumf %43, %44 : vector<1x512xf32>
    %c502_i32 = arith.constant 502 : i32
    %46 = tpu.dynamic_rotate %27 by %c502_i32 dim 1 : vector<1x512xf32>, i32 -> vector<1x512xf32>
    %47 = arith.maximumf %45, %46 : vector<1x512xf32>
    %c501_i32 = arith.constant 501 : i32
    %48 = tpu.dynamic_rotate %27 by %c501_i32 dim 1 : vector<1x512xf32>, i32 -> vector<1x512xf32>
    %49 = arith.maximumf %47, %48 : vector<1x512xf32>
    %c500_i32 = arith.constant 500 : i32
    %50 = tpu.dynamic_rotate %27 by %c500_i32 dim 1 : vector<1x512xf32>, i32 -> vector<1x512xf32>
    %51 = arith.maximumf %49, %50 : vector<1x512xf32>
    %cst = arith.constant 0.000000e+00 : f32
    %52 = vector.broadcast %cst : f32 to vector<1x256xf32>
    %53 = vector.extract_strided_slice %51 {offsets = [0, 0], sizes = [1, 128], strides = [1, 1]} : vector<1x512xf32> to vector<1x128xf32>
    %c0_5 = arith.constant 0 : index
    %c0_6 = arith.constant 0 : index
    %54 = vector.load %arg2[%c0_5, %c0_6] : memref<512x256xf32, #tpu.memory_space<vmem>>, vector<128x256xf32>
    %cst_7 = arith.constant dense<0.000000e+00> : vector<1x256xf32>
    %55 = tpu.matmul %53, %54, %cst_7 {dimension_numbers = #tpu.dot_dimension_numbers<[1], [0], [0], [1], [0, 0, 1, 1], [], []>} : vector<1x128xf32>, vector<128x256xf32>, vector<1x256xf32> -> vector<1x256xf32>
    %56 = arith.addf %52, %55 : vector<1x256xf32>
    %57 = vector.extract_strided_slice %51 {offsets = [0, 128], sizes = [1, 128], strides = [1, 1]} : vector<1x512xf32> to vector<1x128xf32>
    %c128 = arith.constant 128 : index
    %c0_8 = arith.constant 0 : index
    %58 = vector.load %arg2[%c128, %c0_8] : memref<512x256xf32, #tpu.memory_space<vmem>>, vector<128x256xf32>
    %cst_9 = arith.constant dense<0.000000e+00> : vector<1x256xf32>
    %59 = tpu.matmul %57, %58, %cst_9 {dimension_numbers = #tpu.dot_dimension_numbers<[1], [0], [0], [1], [0, 0, 1, 1], [], []>} : vector<1x128xf32>, vector<128x256xf32>, vector<1x256xf32> -> vector<1x256xf32>
    %60 = arith.addf %56, %59 : vector<1x256xf32>
    %61 = vector.extract_strided_slice %51 {offsets = [0, 256], sizes = [1, 128], strides = [1, 1]} : vector<1x512xf32> to vector<1x128xf32>
    %c256 = arith.constant 256 : index
    %c0_10 = arith.constant 0 : index
    %62 = vector.load %arg2[%c256, %c0_10] : memref<512x256xf32, #tpu.memory_space<vmem>>, vector<128x256xf32>
    %cst_11 = arith.constant dense<0.000000e+00> : vector<1x256xf32>
    %63 = tpu.matmul %61, %62, %cst_11 {dimension_numbers = #tpu.dot_dimension_numbers<[1], [0], [0], [1], [0, 0, 1, 1], [], []>} : vector<1x128xf32>, vector<128x256xf32>, vector<1x256xf32> -> vector<1x256xf32>
    %64 = arith.addf %60, %63 : vector<1x256xf32>
    %65 = vector.extract_strided_slice %51 {offsets = [0, 384], sizes = [1, 128], strides = [1, 1]} : vector<1x512xf32> to vector<1x128xf32>
    %c384 = arith.constant 384 : index
    %c0_12 = arith.constant 0 : index
    %66 = vector.load %arg2[%c384, %c0_12] : memref<512x256xf32, #tpu.memory_space<vmem>>, vector<128x256xf32>
    %cst_13 = arith.constant dense<0.000000e+00> : vector<1x256xf32>
    %67 = tpu.matmul %65, %66, %cst_13 {dimension_numbers = #tpu.dot_dimension_numbers<[1], [0], [0], [1], [0, 0, 1, 1], [], []>} : vector<1x128xf32>, vector<128x256xf32>, vector<1x256xf32> -> vector<1x256xf32>
    %68 = arith.addf %64, %67 : vector<1x256xf32>
    %c17_i32 = arith.constant 17 : i32
    %69 = tpu.dynamic_rotate %68 by %c17_i32 dim 1 : vector<1x256xf32>, i32 -> vector<1x256xf32>
    %c-1_i32 = arith.constant -1 : i32
    %70 = vector.broadcast %c-1_i32 : i32 to vector<1x256xi32>
    %71 = arith.addi %0, %70 : vector<1x256xi32>
    %c0_i32 = arith.constant 0 : i32
    %72 = vector.broadcast %c0_i32 : i32 to vector<1x256xi32>
    %73 = arith.cmpi sge, %71, %72 : vector<1x256xi32>
    %c-1_i32_14 = arith.constant -1 : i32
    %74 = vector.broadcast %c-1_i32_14 : i32 to vector<1x256xi32>
    %75 = arith.addi %0, %74 : vector<1x256xi32>
    %c16_i32 = arith.constant 16 : i32
    %76 = vector.broadcast %c16_i32 : i32 to vector<1x256xi32>
    %77 = arith.cmpi slt, %75, %76 : vector<1x256xi32>
    %78 = arith.andi %73, %77 : vector<1x256xi1>
    %c-1_i32_15 = arith.constant -1 : i32
    %79 = vector.broadcast %c-1_i32_15 : i32 to vector<1x256xi32>
    %80 = arith.addi %1, %79 : vector<1x256xi32>
    %c0_i32_16 = arith.constant 0 : i32
    %81 = vector.broadcast %c0_i32_16 : i32 to vector<1x256xi32>
    %82 = arith.cmpi sge, %80, %81 : vector<1x256xi32>
    %83 = arith.andi %78, %82 : vector<1x256xi1>
    %c-1_i32_17 = arith.constant -1 : i32
    %84 = vector.broadcast %c-1_i32_17 : i32 to vector<1x256xi32>
    %85 = arith.addi %1, %84 : vector<1x256xi32>
    %c16_i32_18 = arith.constant 16 : i32
    %86 = vector.broadcast %c16_i32_18 : i32 to vector<1x256xi32>
    %87 = arith.cmpi slt, %85, %86 : vector<1x256xi32>
    %88 = arith.andi %83, %87 : vector<1x256xi1>
    %cst_19 = arith.constant 0.000000e+00 : f32
    %89 = vector.broadcast %cst_19 : f32 to vector<1x256xf32>
    %90 = arith.select %88, %69, %89 : vector<1x256xi1>, vector<1x256xf32>
    %c0_20 = arith.constant 0 : index
    %c0_21 = arith.constant 0 : index
    %91 = vector.load %arg25[%c0_20, %c0_21] : memref<288x256xf32, #tpu.memory_space<vmem>>, vector<1x256xf32>
    tpu.vector_store %arg25[%c0_20, %c0_21], %90 {strides = array<i32>} : memref<288x256xf32, #tpu.memory_space<vmem>>, vector<1x256xf32>,
    %c16_i32_22 = arith.constant 16 : i32
    %92 = tpu.dynamic_rotate %68 by %c16_i32_22 dim 1 : vector<1x256xf32>, i32 -> vector<1x256xf32>
    %c0_i32_23 = arith.constant 0 : i32
    %93 = vector.broadcast %c0_i32_23 : i32 to vector<1x256xi32>
    %94 = arith.addi %0, %93 : vector<1x256xi32>
    %c0_i32_24 = arith.constant 0 : i32
    %95 = vector.broadcast %c0_i32_24 : i32 to vector<1x256xi32>
    %96 = arith.cmpi sge, %94, %95 : vector<1x256xi32>
    %c0_i32_25 = arith.constant 0 : i32
    %97 = vector.broadcast %c0_i32_25 : i32 to vector<1x256xi32>
    %98 = arith.addi %0, %97 : vector<1x256xi32>
    %c16_i32_26 = arith.constant 16 : i32
    %99 = vector.broadcast %c16_i32_26 : i32 to vector<1x256xi32>
    %100 = arith.cmpi slt, %98, %99 : vector<1x256xi32>
    %101 = arith.andi %96, %100 : vector<1x256xi1>
    %c-1_i32_27 = arith.constant -1 : i32
    %102 = vector.broadcast %c-1_i32_27 : i32 to vector<1x256xi32>
    %103 = arith.addi %1, %102 : vector<1x256xi32>
    %c0_i32_28 = arith.constant 0 : i32
    %104 = vector.broadcast %c0_i32_28 : i32 to vector<1x256xi32>
    %105 = arith.cmpi sge, %103, %104 : vector<1x256xi32>
    %106 = arith.andi %101, %105 : vector<1x256xi1>
    %c-1_i32_29 = arith.constant -1 : i32
    %107 = vector.broadcast %c-1_i32_29 : i32 to vector<1x256xi32>
    %108 = arith.addi %1, %107 : vector<1x256xi32>
    %c16_i32_30 = arith.constant 16 : i32
    %109 = vector.broadcast %c16_i32_30 : i32 to vector<1x256xi32>
    %110 = arith.cmpi slt, %108, %109 : vector<1x256xi32>
    %111 = arith.andi %106, %110 : vector<1x256xi1>
    %cst_31 = arith.constant 0.000000e+00 : f32
    %112 = vector.broadcast %cst_31 : f32 to vector<1x256xf32>
    %113 = arith.select %111, %92, %112 : vector<1x256xi1>, vector<1x256xf32>
    %c1_32 = arith.constant 1 : index
    %c0_33 = arith.constant 0 : index
    %114 = vector.load %arg25[%c1_32, %c0_33] : memref<288x256xf32, #tpu.memory_space<vmem>>, vector<1x256xf32>
    tpu.vector_store %arg25[%c1_32, %c0_33], %113 {strides = array<i32>} : memref<288x256xf32, #tpu.memory_space<vmem>>, vector<1x256xf32>,
    %c15_i32 = arith.constant 15 : i32
    %115 = tpu.dynamic_rotate %68 by %c15_i32 dim 1 : vector<1x256xf32>, i32 -> vector<1x256xf32>
    %c1_i32 = arith.constant 1 : i32
    %116 = vector.broadcast %c1_i32 : i32 to vector<1x256xi32>
    %117 = arith.addi %0, %116 : vector<1x256xi32>
    %c0_i32_34 = arith.constant 0 : i32
    %118 = vector.broadcast %c0_i32_34 : i32 to vector<1x256xi32>
    %119 = arith.cmpi sge, %117, %118 : vector<1x256xi32>
    %c1_i32_35 = arith.constant 1 : i32
    %120 = vector.broadcast %c1_i32_35 : i32 to vector<1x256xi32>
    %121 = arith.addi %0, %120 : vector<1x256xi32>
    %c16_i32_36 = arith.constant 16 : i32
    %122 = vector.broadcast %c16_i32_36 : i32 to vector<1x256xi32>
    %123 = arith.cmpi slt, %121, %122 : vector<1x256xi32>
    %124 = arith.andi %119, %123 : vector<1x256xi1>
    %c-1_i32_37 = arith.constant -1 : i32
    %125 = vector.broadcast %c-1_i32_37 : i32 to vector<1x256xi32>
    %126 = arith.addi %1, %125 : vector<1x256xi32>
    %c0_i32_38 = arith.constant 0 : i32
    %127 = vector.broadcast %c0_i32_38 : i32 to vector<1x256xi32>
    %128 = arith.cmpi sge, %126, %127 : vector<1x256xi32>
    %129 = arith.andi %124, %128 : vector<1x256xi1>
    %c-1_i32_39 = arith.constant -1 : i32
    %130 = vector.broadcast %c-1_i32_39 : i32 to vector<1x256xi32>
    %131 = arith.addi %1, %130 : vector<1x256xi32>
    %c16_i32_40 = arith.constant 16 : i32
    %132 = vector.broadcast %c16_i32_40 : i32 to vector<1x256xi32>
    %133 = arith.cmpi slt, %131, %132 : vector<1x256xi32>
    %134 = arith.andi %129, %133 : vector<1x256xi1>
    %cst_41 = arith.constant 0.000000e+00 : f32
    %135 = vector.broadcast %cst_41 : f32 to vector<1x256xf32>
    %136 = arith.select %134, %115, %135 : vector<1x256xi1>, vector<1x256xf32>
    %c2 = arith.constant 2 : index
    %c0_42 = arith.constant 0 : index
    %137 = vector.load %arg25[%c2, %c0_42] : memref<288x256xf32, #tpu.memory_space<vmem>>, vector<1x256xf32>
    tpu.vector_store %arg25[%c2, %c0_42], %136 {strides = array<i32>} : memref<288x256xf32, #tpu.memory_space<vmem>>, vector<1x256xf32>,
    %c1_i32_43 = arith.constant 1 : i32
    %138 = tpu.dynamic_rotate %68 by %c1_i32_43 dim 1 : vector<1x256xf32>, i32 -> vector<1x256xf32>
    %c-1_i32_44 = arith.constant -1 : i32
    %139 = vector.broadcast %c-1_i32_44 : i32 to vector<1x256xi32>
    %140 = arith.addi %0, %139 : vector<1x256xi32>
    %c0_i32_45 = arith.constant 0 : i32
    %141 = vector.broadcast %c0_i32_45 : i32 to vector<1x256xi32>
    %142 = arith.cmpi sge, %140, %141 : vector<1x256xi32>
    %c-1_i32_46 = arith.constant -1 : i32
    %143 = vector.broadcast %c-1_i32_46 : i32 to vector<1x256xi32>
    %144 = arith.addi %0, %143 : vector<1x256xi32>
    %c16_i32_47 = arith.constant 16 : i32
    %145 = vector.broadcast %c16_i32_47 : i32 to vector<1x256xi32>
    %146 = arith.cmpi slt, %144, %145 : vector<1x256xi32>
    %147 = arith.andi %142, %146 : vector<1x256xi1>
    %c0_i32_48 = arith.constant 0 : i32
    %148 = vector.broadcast %c0_i32_48 : i32 to vector<1x256xi32>
    %149 = arith.addi %1, %148 : vector<1x256xi32>
    %c0_i32_49 = arith.constant 0 : i32
    %150 = vector.broadcast %c0_i32_49 : i32 to vector<1x256xi32>
    %151 = arith.cmpi sge, %149, %150 : vector<1x256xi32>
    %152 = arith.andi %147, %151 : vector<1x256xi1>
    %c0_i32_50 = arith.constant 0 : i32
    %153 = vector.broadcast %c0_i32_50 : i32 to vector<1x256xi32>
    %154 = arith.addi %1, %153 : vector<1x256xi32>
    %c16_i32_51 = arith.constant 16 : i32
    %155 = vector.broadcast %c16_i32_51 : i32 to vector<1x256xi32>
    %156 = arith.cmpi slt, %154, %155 : vector<1x256xi32>
    %157 = arith.andi %152, %156 : vector<1x256xi1>
    %cst_52 = arith.constant 0.000000e+00 : f32
    %158 = vector.broadcast %cst_52 : f32 to vector<1x256xf32>
    %159 = arith.select %157, %138, %158 : vector<1x256xi1>, vector<1x256xf32>
    %c3 = arith.constant 3 : index
    %c0_53 = arith.constant 0 : index
    %160 = vector.load %arg25[%c3, %c0_53] : memref<288x256xf32, #tpu.memory_space<vmem>>, vector<1x256xf32>
    tpu.vector_store %arg25[%c3, %c0_53], %159 {strides = array<i32>} : memref<288x256xf32, #tpu.memory_space<vmem>>, vector<1x256xf32>,
    %c4 = arith.constant 4 : index
    %c0_54 = arith.constant 0 : index
    %161 = vector.load %arg25[%c4, %c0_54] : memref<288x256xf32, #tpu.memory_space<vmem>>, vector<1x256xf32>
    tpu.vector_store %arg25[%c4, %c0_54], %68 {strides = array<i32>} : memref<288x256xf32, #tpu.memory_space<vmem>>, vector<1x256xf32>,
    %c255_i32 = arith.constant 255 : i32
    %162 = tpu.dynamic_rotate %68 by %c255_i32 dim 1 : vector<1x256xf32>, i32 -> vector<1x256xf32>
    %c1_i32_55 = arith.constant 1 : i32
    %163 = vector.broadcast %c1_i32_55 : i32 to vector<1x256xi32>
    %164 = arith.addi %0, %163 : vector<1x256xi32>
    %c0_i32_56 = arith.constant 0 : i32
    %165 = vector.broadcast %c0_i32_56 : i32 to vector<1x256xi32>
    %166 = arith.cmpi sge, %164, %165 : vector<1x256xi32>
    %c1_i32_57 = arith.constant 1 : i32
    %167 = vector.broadcast %c1_i32_57 : i32 to vector<1x256xi32>
    %168 = arith.addi %0, %167 : vector<1x256xi32>
    %c16_i32_58 = arith.constant 16 : i32
    %169 = vector.broadcast %c16_i32_58 : i32 to vector<1x256xi32>
    %170 = arith.cmpi slt, %168, %169 : vector<1x256xi32>
    %171 = arith.andi %166, %170 : vector<1x256xi1>
    %c0_i32_59 = arith.constant 0 : i32
    %172 = vector.broadcast %c0_i32_59 : i32 to vector<1x256xi32>
    %173 = arith.addi %1, %172 : vector<1x256xi32>
    %c0_i32_60 = arith.constant 0 : i32
    %174 = vector.broadcast %c0_i32_60 : i32 to vector<1x256xi32>
    %175 = arith.cmpi sge, %173, %174 : vector<1x256xi32>
    %176 = arith.andi %171, %175 : vector<1x256xi1>
    %c0_i32_61 = arith.constant 0 : i32
    %177 = vector.broadcast %c0_i32_61 : i32 to vector<1x256xi32>
    %178 = arith.addi %1, %177 : vector<1x256xi32>
    %c16_i32_62 = arith.constant 16 : i32
    %179 = vector.broadcast %c16_i32_62 : i32 to vector<1x256xi32>
    %180 = arith.cmpi slt, %178, %179 : vector<1x256xi32>
    %181 = arith.andi %176, %180 : vector<1x256xi1>
    %cst_63 = arith.constant 0.000000e+00 : f32
    %182 = vector.broadcast %cst_63 : f32 to vector<1x256xf32>
    %183 = arith.select %181, %162, %182 : vector<1x256xi1>, vector<1x256xf32>
    %c5 = arith.constant 5 : index
    %c0_64 = arith.constant 0 : index
    %184 = vector.load %arg25[%c5, %c0_64] : memref<288x256xf32, #tpu.memory_space<vmem>>, vector<1x256xf32>
    tpu.vector_store %arg25[%c5, %c0_64], %183 {strides = array<i32>} : memref<288x256xf32, #tpu.memory_space<vmem>>, vector<1x256xf32>,
    %c241_i32 = arith.constant 241 : i32
    %185 = tpu.dynamic_rotate %68 by %c241_i32 dim 1 : vector<1x256xf32>, i32 -> vector<1x256xf32>
    %c-1_i32_65 = arith.constant -1 : i32
    %186 = vector.broadcast %c-1_i32_65 : i32 to vector<1x256xi32>
    %187 = arith.addi %0, %186 : vector<1x256xi32>
    %c0_i32_66 = arith.constant 0 : i32
    %188 = vector.broadcast %c0_i32_66 : i32 to vector<1x256xi32>
    %189 = arith.cmpi sge, %187, %188 : vector<1x256xi32>
    %c-1_i32_67 = arith.constant -1 : i32
    %190 = vector.broadcast %c-1_i32_67 : i32 to vector<1x256xi32>
    %191 = arith.addi %0, %190 : vector<1x256xi32>
    %c16_i32_68 = arith.constant 16 : i32
    %192 = vector.broadcast %c16_i32_68 : i32 to vector<1x256xi32>
    %193 = arith.cmpi slt, %191, %192 : vector<1x256xi32>
    %194 = arith.andi %189, %193 : vector<1x256xi1>
    %c1_i32_69 = arith.constant 1 : i32
    %195 = vector.broadcast %c1_i32_69 : i32 to vector<1x256xi32>
    %196 = arith.addi %1, %195 : vector<1x256xi32>
    %c0_i32_70 = arith.constant 0 : i32
    %197 = vector.broadcast %c0_i32_70 : i32 to vector<1x256xi32>
    %198 = arith.cmpi sge, %196, %197 : vector<1x256xi32>
    %199 = arith.andi %194, %198 : vector<1x256xi1>
    %c1_i32_71 = arith.constant 1 : i32
    %200 = vector.broadcast %c1_i32_71 : i32 to vector<1x256xi32>
    %201 = arith.addi %1, %200 : vector<1x256xi32>
    %c16_i32_72 = arith.constant 16 : i32
    %202 = vector.broadcast %c16_i32_72 : i32 to vector<1x256xi32>
    %203 = arith.cmpi slt, %201, %202 : vector<1x256xi32>
    %204 = arith.andi %199, %203 : vector<1x256xi1>
    %cst_73 = arith.constant 0.000000e+00 : f32
    %205 = vector.broadcast %cst_73 : f32 to vector<1x256xf32>
    %206 = arith.select %204, %185, %205 : vector<1x256xi1>, vector<1x256xf32>
    %c6 = arith.constant 6 : index
    %c0_74 = arith.constant 0 : index
    %207 = vector.load %arg25[%c6, %c0_74] : memref<288x256xf32, #tpu.memory_space<vmem>>, vector<1x256xf32>
    tpu.vector_store %arg25[%c6, %c0_74], %206 {strides = array<i32>} : memref<288x256xf32, #tpu.memory_space<vmem>>, vector<1x256xf32>,
    %c240_i32 = arith.constant 240 : i32
    %208 = tpu.dynamic_rotate %68 by %c240_i32 dim 1 : vector<1x256xf32>, i32 -> vector<1x256xf32>
    %c0_i32_75 = arith.constant 0 : i32
    %209 = vector.broadcast %c0_i32_75 : i32 to vector<1x256xi32>
    %210 = arith.addi %0, %209 : vector<1x256xi32>
    %c0_i32_76 = arith.constant 0 : i32
    %211 = vector.broadcast %c0_i32_76 : i32 to vector<1x256xi32>
    %212 = arith.cmpi sge, %210, %211 : vector<1x256xi32>
    %c0_i32_77 = arith.constant 0 : i32
    %213 = vector.broadcast %c0_i32_77 : i32 to vector<1x256xi32>
    %214 = arith.addi %0, %213 : vector<1x256xi32>
    %c16_i32_78 = arith.constant 16 : i32
    %215 = vector.broadcast %c16_i32_78 : i32 to vector<1x256xi32>
    %216 = arith.cmpi slt, %214, %215 : vector<1x256xi32>
    %217 = arith.andi %212, %216 : vector<1x256xi1>
    %c1_i32_79 = arith.constant 1 : i32
    %218 = vector.broadcast %c1_i32_79 : i32 to vector<1x256xi32>
    %219 = arith.addi %1, %218 : vector<1x256xi32>
    %c0_i32_80 = arith.constant 0 : i32
    %220 = vector.broadcast %c0_i32_80 : i32 to vector<1x256xi32>
    %221 = arith.cmpi sge, %219, %220 : vector<1x256xi32>
    %222 = arith.andi %217, %221 : vector<1x256xi1>
    %c1_i32_81 = arith.constant 1 : i32
    %223 = vector.broadcast %c1_i32_81 : i32 to vector<1x256xi32>
    %224 = arith.addi %1, %223 : vector<1x256xi32>
    %c16_i32_82 = arith.constant 16 : i32
    %225 = vector.broadcast %c16_i32_82 : i32 to vector<1x256xi32>
    %226 = arith.cmpi slt, %224, %225 : vector<1x256xi32>
    %227 = arith.andi %222, %226 : vector<1x256xi1>
    %cst_83 = arith.constant 0.000000e+00 : f32
    %228 = vector.broadcast %cst_83 : f32 to vector<1x256xf32>
    %229 = arith.select %227, %208, %228 : vector<1x256xi1>, vector<1x256xf32>
    %c7 = arith.constant 7 : index
    %c0_84 = arith.constant 0 : index
    %230 = vector.load %arg25[%c7, %c0_84] : memref<288x256xf32, #tpu.memory_space<vmem>>, vector<1x256xf32>
    tpu.vector_store %arg25[%c7, %c0_84], %229 {strides = array<i32>} : memref<288x256xf32, #tpu.memory_space<vmem>>, vector<1x256xf32>,
    %c239_i32 = arith.constant 239 : i32
    %231 = tpu.dynamic_rotate %68 by %c239_i32 dim 1 : vector<1x256xf32>, i32 -> vector<1x256xf32>
    %c1_i32_85 = arith.constant 1 : i32
    %232 = vector.broadcast %c1_i32_85 : i32 to vector<1x256xi32>
    %233 = arith.addi %0, %232 : vector<1x256xi32>
    %c0_i32_86 = arith.constant 0 : i32
    %234 = vector.broadcast %c0_i32_86 : i32 to vector<1x256xi32>
    %235 = arith.cmpi sge, %233, %234 : vector<1x256xi32>
    %c1_i32_87 = arith.constant 1 : i32
    %236 = vector.broadcast %c1_i32_87 : i32 to vector<1x256xi32>
    %237 = arith.addi %0, %236 : vector<1x256xi32>
    %c16_i32_88 = arith.constant 16 : i32
    %238 = vector.broadcast %c16_i32_88 : i32 to vector<1x256xi32>
    %239 = arith.cmpi slt, %237, %238 : vector<1x256xi32>
    %240 = arith.andi %235, %239 : vector<1x256xi1>
    %c1_i32_89 = arith.constant 1 : i32
    %241 = vector.broadcast %c1_i32_89 : i32 to vector<1x256xi32>
    %242 = arith.addi %1, %241 : vector<1x256xi32>
    %c0_i32_90 = arith.constant 0 : i32
    %243 = vector.broadcast %c0_i32_90 : i32 to vector<1x256xi32>
    %244 = arith.cmpi sge, %242, %243 : vector<1x256xi32>
    %245 = arith.andi %240, %244 : vector<1x256xi1>
    %c1_i32_91 = arith.constant 1 : i32
    %246 = vector.broadcast %c1_i32_91 : i32 to vector<1x256xi32>
    %247 = arith.addi %1, %246 : vector<1x256xi32>
    %c16_i32_92 = arith.constant 16 : i32
    %248 = vector.broadcast %c16_i32_92 : i32 to vector<1x256xi32>
    %249 = arith.cmpi slt, %247, %248 : vector<1x256xi32>
    %250 = arith.andi %245, %249 : vector<1x256xi1>
    %cst_93 = arith.constant 0.000000e+00 : f32
    %251 = vector.broadcast %cst_93 : f32 to vector<1x256xf32>
    %252 = arith.select %250, %231, %251 : vector<1x256xi1>, vector<1x256xf32>
    %c8 = arith.constant 8 : index
    %c0_94 = arith.constant 0 : index
    %253 = vector.load %arg25[%c8, %c0_94] : memref<288x256xf32, #tpu.memory_space<vmem>>, vector<1x256xf32>
    tpu.vector_store %arg25[%c8, %c0_94], %252 {strides = array<i32>} : memref<288x256xf32, #tpu.memory_space<vmem>>, vector<1x256xf32>,
    %cst_95 = arith.constant 0.000000e+00 : f32
    %254 = vector.broadcast %cst_95 : f32 to vector<8x256xf32>
    %c0_96 = arith.constant 0 : index
    %c0_97 = arith.constant 0 : index
    %255 = vector.load %arg5[%c0_96, %c0_97] : memref<8x9xf32, #tpu.memory_space<vmem>>, vector<8x9xf32>
    %c0_98 = arith.constant 0 : index
    %c0_99 = arith.constant 0 : index
    %256 = vector.load %arg25[%c0_98, %c0_99] : memref<288x256xf32, #tpu.memory_space<vmem>>, vector<9x256xf32>
    %cst_100 = arith.constant dense<0.000000e+00> : vector<8x256xf32>
    %257 = tpu.matmul %255, %256, %cst_100 {dimension_numbers = #tpu.dot_dimension_numbers<[1], [0], [0], [1], [0, 0, 1, 1], [], []>} : vector<8x9xf32>, vector<9x256xf32>, vector<8x256xf32> -> vector<8x256xf32>
    %258 = arith.addf %254, %257 : vector<8x256xf32>
    %c0_101 = arith.constant 0 : index
    %c0_102 = arith.constant 0 : index
    %259 = vector.load %arg6[%c0_101, %c0_102] : memref<24x1xf32, #tpu.memory_space<vmem>>, vector<8x1xf32>
    %c8_103 = arith.constant 8 : index
    %c0_104 = arith.constant 0 : index
    %260 = vector.load %arg6[%c8_103, %c0_104] : memref<24x1xf32, #tpu.memory_space<vmem>>, vector<8x1xf32>
    %c16 = arith.constant 16 : index
    %c0_105 = arith.constant 0 : index
    %261 = vector.load %arg6[%c16, %c0_105] : memref<24x1xf32, #tpu.memory_space<vmem>>, vector<8x1xf32>
    %262 = vector.broadcast %259 : vector<8x1xf32> to vector<8x256xf32>
    %263 = arith.addf %258, %262 : vector<8x256xf32>
    %264 = vector.shape_cast %263 : vector<8x256xf32> to vector<1x8x256xf32>
    %cst_106 = arith.constant dense<0.000000e+00> : vector<1xf32>
    %265 = vector.multi_reduction <add>, %264, %cst_106 [1, 2] : vector<1x8x256xf32> to vector<1xf32>
    %266 = vector.shape_cast %265 : vector<1xf32> to vector<1x1x1xf32>
    %267 = vector.extract %266[0, 0, 0] : f32 from vector<1x1x1xf32>
    %268 = vector.broadcast %267 : f32 to vector<1x1xf32>
    %269 = arith.mulf %263, %263 : vector<8x256xf32>
    %270 = vector.shape_cast %269 : vector<8x256xf32> to vector<1x8x256xf32>
    %cst_107 = arith.constant dense<0.000000e+00> : vector<1xf32>
    %271 = vector.multi_reduction <add>, %270, %cst_107 [1, 2] : vector<1x8x256xf32> to vector<1xf32>
    %272 = vector.shape_cast %271 : vector<1xf32> to vector<1x1x1xf32>
    %273 = vector.extract %272[0, 0, 0] : f32 from vector<1x1x1xf32>
    %274 = vector.broadcast %273 : f32 to vector<1x1xf32>
    %cst_108 = arith.constant 2.048000e+03 : f32
    %275 = vector.broadcast %cst_108 : f32 to vector<1x1xf32>
    %276 = arith.divf %268, %275 : vector<1x1xf32>
    %cst_109 = arith.constant 2.048000e+03 : f32
    %277 = vector.broadcast %cst_109 : f32 to vector<1x1xf32>
    %278 = arith.divf %274, %277 : vector<1x1xf32>
    %279 = arith.mulf %276, %276 : vector<1x1xf32>
    %280 = arith.subf %278, %279 : vector<1x1xf32>
    %281 = vector.broadcast %276 : vector<1x1xf32> to vector<8x256xf32>
    %282 = arith.subf %263, %281 : vector<8x256xf32>
    %cst_110 = arith.constant 9.99999974E-6 : f32
    %283 = vector.broadcast %cst_110 : f32 to vector<1x1xf32>
    %284 = arith.addf %280, %283 : vector<1x1xf32>
    %285 = math.rsqrt %284 : vector<1x1xf32>
    %286 = vector.broadcast %285 : vector<1x1xf32> to vector<8x256xf32>
    %287 = arith.mulf %282, %286 : vector<8x256xf32>
    %288 = vector.broadcast %260 : vector<8x1xf32> to vector<8x256xf32>
    %289 = arith.mulf %287, %288 : vector<8x256xf32>
    %290 = vector.broadcast %261 : vector<8x1xf32> to vector<8x256xf32>
    %291 = arith.addf %289, %290 : vector<8x256xf32>
    %cst_111 = arith.constant 0.000000e+00 : f32
    %292 = vector.broadcast %cst_111 : f32 to vector<8x256xf32>
    %293 = arith.maximumf %291, %292 : vector<8x256xf32>
    %c119_i32 = arith.constant 119 : i32
    %294 = tpu.dynamic_rotate %293 by %c119_i32 dim 1 : vector<8x256xf32>, i32 -> vector<8x256xf32>
    %c-7_i32 = arith.constant -7 : i32
    %295 = vector.broadcast %c-7_i32 : i32 to vector<1x256xi32>
    %296 = arith.addi %0, %295 : vector<1x256xi32>
    %c0_i32_112 = arith.constant 0 : i32
    %297 = vector.broadcast %c0_i32_112 : i32 to vector<1x256xi32>
    %298 = arith.cmpi sge, %296, %297 : vector<1x256xi32>
    %c-7_i32_113 = arith.constant -7 : i32
    %299 = vector.broadcast %c-7_i32_113 : i32 to vector<1x256xi32>
    %300 = arith.addi %0, %299 : vector<1x256xi32>
    %c16_i32_114 = arith.constant 16 : i32
    %301 = vector.broadcast %c16_i32_114 : i32 to vector<1x256xi32>
    %302 = arith.cmpi slt, %300, %301 : vector<1x256xi32>
    %303 = arith.andi %298, %302 : vector<1x256xi1>
    %c-7_i32_115 = arith.constant -7 : i32
    %304 = vector.broadcast %c-7_i32_115 : i32 to vector<1x256xi32>
    %305 = arith.addi %1, %304 : vector<1x256xi32>
    %c0_i32_116 = arith.constant 0 : i32
    %306 = vector.broadcast %c0_i32_116 : i32 to vector<1x256xi32>
    %307 = arith.cmpi sge, %305, %306 : vector<1x256xi32>
    %308 = arith.andi %303, %307 : vector<1x256xi1>
    %c-7_i32_117 = arith.constant -7 : i32
    %309 = vector.broadcast %c-7_i32_117 : i32 to vector<1x256xi32>
    %310 = arith.addi %1, %309 : vector<1x256xi32>
    %c16_i32_118 = arith.constant 16 : i32
    %311 = vector.broadcast %c16_i32_118 : i32 to vector<1x256xi32>
    %312 = arith.cmpi slt, %310, %311 : vector<1x256xi32>
    %313 = arith.andi %308, %312 : vector<1x256xi1>
    %cst_119 = arith.constant 0.000000e+00 : f32
    %314 = vector.shape_cast %313 : vector<1x256xi1> to vector<1x256xi1>
    %315 = vector.broadcast %314 : vector<1x256xi1> to vector<8x256xi1>
    %316 = vector.broadcast %cst_119 : f32 to vector<8x256xf32>
    %317 = arith.select %315, %294, %316 : vector<8x256xi1>, vector<8x256xf32>
    %c0_120 = arith.constant 0 : index
    %c0_121 = arith.constant 0 : index
    %318 = vector.load %arg25[%c0_120, %c0_121] : memref<288x256xf32, #tpu.memory_space<vmem>>, vector<8x256xf32>
    tpu.vector_store %arg25[%c0_120, %c0_121], %317 {strides = array<i32>} : memref<288x256xf32, #tpu.memory_space<vmem>>, vector<8x256xf32>,
    %c112_i32 = arith.constant 112 : i32
    %319 = tpu.dynamic_rotate %293 by %c112_i32 dim 1 : vector<8x256xf32>, i32 -> vector<8x256xf32>
    %c0_i32_122 = arith.constant 0 : i32
    %320 = vector.broadcast %c0_i32_122 : i32 to vector<1x256xi32>
    %321 = arith.addi %0, %320 : vector<1x256xi32>
    %c0_i32_123 = arith.constant 0 : i32
    %322 = vector.broadcast %c0_i32_123 : i32 to vector<1x256xi32>
    %323 = arith.cmpi sge, %321, %322 : vector<1x256xi32>
    %c0_i32_124 = arith.constant 0 : i32
    %324 = vector.broadcast %c0_i32_124 : i32 to vector<1x256xi32>
    %325 = arith.addi %0, %324 : vector<1x256xi32>
    %c16_i32_125 = arith.constant 16 : i32
    %326 = vector.broadcast %c16_i32_125 : i32 to vector<1x256xi32>
    %327 = arith.cmpi slt, %325, %326 : vector<1x256xi32>
    %328 = arith.andi %323, %327 : vector<1x256xi1>
    %c-7_i32_126 = arith.constant -7 : i32
    %329 = vector.broadcast %c-7_i32_126 : i32 to vector<1x256xi32>
    %330 = arith.addi %1, %329 : vector<1x256xi32>
    %c0_i32_127 = arith.constant 0 : i32
    %331 = vector.broadcast %c0_i32_127 : i32 to vector<1x256xi32>
    %332 = arith.cmpi sge, %330, %331 : vector<1x256xi32>
    %333 = arith.andi %328, %332 : vector<1x256xi1>
    %c-7_i32_128 = arith.constant -7 : i32
    %334 = vector.broadcast %c-7_i32_128 : i32 to vector<1x256xi32>
    %335 = arith.addi %1, %334 : vector<1x256xi32>
    %c16_i32_129 = arith.constant 16 : i32
    %336 = vector.broadcast %c16_i32_129 : i32 to vector<1x256xi32>
    %337 = arith.cmpi slt, %335, %336 : vector<1x256xi32>
    %338 = arith.andi %333, %337 : vector<1x256xi1>
    %cst_130 = arith.constant 0.000000e+00 : f32
    %339 = vector.shape_cast %338 : vector<1x256xi1> to vector<1x256xi1>
    %340 = vector.broadcast %339 : vector<1x256xi1> to vector<8x256xi1>
    %341 = vector.broadcast %cst_130 : f32 to vector<8x256xf32>
    %342 = arith.select %340, %319, %341 : vector<8x256xi1>, vector<8x256xf32>
    %c8_131 = arith.constant 8 : index
    %c0_132 = arith.constant 0 : index
    %343 = vector.load %arg25[%c8_131, %c0_132] : memref<288x256xf32, #tpu.memory_space<vmem>>, vector<8x256xf32>
    tpu.vector_store %arg25[%c8_131, %c0_132], %342 {strides = array<i32>} : memref<288x256xf32, #tpu.memory_space<vmem>>, vector<8x256xf32>,
    %c105_i32 = arith.constant 105 : i32
    %344 = tpu.dynamic_rotate %293 by %c105_i32 dim 1 : vector<8x256xf32>, i32 -> vector<8x256xf32>
    %c7_i32 = arith.constant 7 : i32
    %345 = vector.broadcast %c7_i32 : i32 to vector<1x256xi32>
    %346 = arith.addi %0, %345 : vector<1x256xi32>
    %c0_i32_133 = arith.constant 0 : i32
    %347 = vector.broadcast %c0_i32_133 : i32 to vector<1x256xi32>
    %348 = arith.cmpi sge, %346, %347 : vector<1x256xi32>
    %c7_i32_134 = arith.constant 7 : i32
    %349 = vector.broadcast %c7_i32_134 : i32 to vector<1x256xi32>
    %350 = arith.addi %0, %349 : vector<1x256xi32>
    %c16_i32_135 = arith.constant 16 : i32
    %351 = vector.broadcast %c16_i32_135 : i32 to vector<1x256xi32>
    %352 = arith.cmpi slt, %350, %351 : vector<1x256xi32>
    %353 = arith.andi %348, %352 : vector<1x256xi1>
    %c-7_i32_136 = arith.constant -7 : i32
    %354 = vector.broadcast %c-7_i32_136 : i32 to vector<1x256xi32>
    %355 = arith.addi %1, %354 : vector<1x256xi32>
    %c0_i32_137 = arith.constant 0 : i32
    %356 = vector.broadcast %c0_i32_137 : i32 to vector<1x256xi32>
    %357 = arith.cmpi sge, %355, %356 : vector<1x256xi32>
    %358 = arith.andi %353, %357 : vector<1x256xi1>
    %c-7_i32_138 = arith.constant -7 : i32
    %359 = vector.broadcast %c-7_i32_138 : i32 to vector<1x256xi32>
    %360 = arith.addi %1, %359 : vector<1x256xi32>
    %c16_i32_139 = arith.constant 16 : i32
    %361 = vector.broadcast %c16_i32_139 : i32 to vector<1x256xi32>
    %362 = arith.cmpi slt, %360, %361 : vector<1x256xi32>
    %363 = arith.andi %358, %362 : vector<1x256xi1>
    %cst_140 = arith.constant 0.000000e+00 : f32
    %364 = vector.shape_cast %363 : vector<1x256xi1> to vector<1x256xi1>
    %365 = vector.broadcast %364 : vector<1x256xi1> to vector<8x256xi1>
    %366 = vector.broadcast %cst_140 : f32 to vector<8x256xf32>
    %367 = arith.select %365, %344, %366 : vector<8x256xi1>, vector<8x256xf32>
    %c16_141 = arith.constant 16 : index
    %c0_142 = arith.constant 0 : index
    %368 = vector.load %arg25[%c16_141, %c0_142] : memref<288x256xf32, #tpu.memory_space<vmem>>, vector<8x256xf32>
    tpu.vector_store %arg25[%c16_141, %c0_142], %367 {strides = array<i32>} : memref<288x256xf32, #tpu.memory_space<vmem>>, vector<8x256xf32>,
    %c7_i32_143 = arith.constant 7 : i32
    %369 = tpu.dynamic_rotate %293 by %c7_i32_143 dim 1 : vector<8x256xf32>, i32 -> vector<8x256xf32>
    %c-7_i32_144 = arith.constant -7 : i32
    %370 = vector.broadcast %c-7_i32_144 : i32 to vector<1x256xi32>
    %371 = arith.addi %0, %370 : vector<1x256xi32>
    %c0_i32_145 = arith.constant 0 : i32
    %372 = vector.broadcast %c0_i32_145 : i32 to vector<1x256xi32>
    %373 = arith.cmpi sge, %371, %372 : vector<1x256xi32>
    %c-7_i32_146 = arith.constant -7 : i32
    %374 = vector.broadcast %c-7_i32_146 : i32 to vector<1x256xi32>
    %375 = arith.addi %0, %374 : vector<1x256xi32>
    %c16_i32_147 = arith.constant 16 : i32
    %376 = vector.broadcast %c16_i32_147 : i32 to vector<1x256xi32>
    %377 = arith.cmpi slt, %375, %376 : vector<1x256xi32>
    %378 = arith.andi %373, %377 : vector<1x256xi1>
    %c0_i32_148 = arith.constant 0 : i32
    %379 = vector.broadcast %c0_i32_148 : i32 to vector<1x256xi32>
    %380 = arith.addi %1, %379 : vector<1x256xi32>
    %c0_i32_149 = arith.constant 0 : i32
    %381 = vector.broadcast %c0_i32_149 : i32 to vector<1x256xi32>
    %382 = arith.cmpi sge, %380, %381 : vector<1x256xi32>
    %383 = arith.andi %378, %382 : vector<1x256xi1>
    %c0_i32_150 = arith.constant 0 : i32
    %384 = vector.broadcast %c0_i32_150 : i32 to vector<1x256xi32>
    %385 = arith.addi %1, %384 : vector<1x256xi32>
    %c16_i32_151 = arith.constant 16 : i32
    %386 = vector.broadcast %c16_i32_151 : i32 to vector<1x256xi32>
    %387 = arith.cmpi slt, %385, %386 : vector<1x256xi32>
    %388 = arith.andi %383, %387 : vector<1x256xi1>
    %cst_152 = arith.constant 0.000000e+00 : f32
    %389 = vector.shape_cast %388 : vector<1x256xi1> to vector<1x256xi1>
    %390 = vector.broadcast %389 : vector<1x256xi1> to vector<8x256xi1>
    %391 = vector.broadcast %cst_152 : f32 to vector<8x256xf32>
    %392 = arith.select %390, %369, %391 : vector<8x256xi1>, vector<8x256xf32>
    %c24 = arith.constant 24 : index
    %c0_153 = arith.constant 0 : index
    %393 = vector.load %arg25[%c24, %c0_153] : memref<288x256xf32, #tpu.memory_space<vmem>>, vector<8x256xf32>
    tpu.vector_store %arg25[%c24, %c0_153], %392 {strides = array<i32>} : memref<288x256xf32, #tpu.memory_space<vmem>>, vector<8x256xf32>,
    %c32 = arith.constant 32 : index
    %c0_154 = arith.constant 0 : index
    %394 = vector.load %arg25[%c32, %c0_154] : memref<288x256xf32, #tpu.memory_space<vmem>>, vector<8x256xf32>
    tpu.vector_store %arg25[%c32, %c0_154], %293 {strides = array<i32>} : memref<288x256xf32, #tpu.memory_space<vmem>>, vector<8x256xf32>,
    %c249_i32 = arith.constant 249 : i32
    %395 = tpu.dynamic_rotate %293 by %c249_i32 dim 1 : vector<8x256xf32>, i32 -> vector<8x256xf32>
    %c7_i32_155 = arith.constant 7 : i32
    %396 = vector.broadcast %c7_i32_155 : i32 to vector<1x256xi32>
    %397 = arith.addi %0, %396 : vector<1x256xi32>
    %c0_i32_156 = arith.constant 0 : i32
    %398 = vector.broadcast %c0_i32_156 : i32 to vector<1x256xi32>
    %399 = arith.cmpi sge, %397, %398 : vector<1x256xi32>
    %c7_i32_157 = arith.constant 7 : i32
    %400 = vector.broadcast %c7_i32_157 : i32 to vector<1x256xi32>
    %401 = arith.addi %0, %400 : vector<1x256xi32>
    %c16_i32_158 = arith.constant 16 : i32
    %402 = vector.broadcast %c16_i32_158 : i32 to vector<1x256xi32>
    %403 = arith.cmpi slt, %401, %402 : vector<1x256xi32>
    %404 = arith.andi %399, %403 : vector<1x256xi1>
    %c0_i32_159 = arith.constant 0 : i32
    %405 = vector.broadcast %c0_i32_159 : i32 to vector<1x256xi32>
    %406 = arith.addi %1, %405 : vector<1x256xi32>
    %c0_i32_160 = arith.constant 0 : i32
    %407 = vector.broadcast %c0_i32_160 : i32 to vector<1x256xi32>
    %408 = arith.cmpi sge, %406, %407 : vector<1x256xi32>
    %409 = arith.andi %404, %408 : vector<1x256xi1>
    %c0_i32_161 = arith.constant 0 : i32
    %410 = vector.broadcast %c0_i32_161 : i32 to vector<1x256xi32>
    %411 = arith.addi %1, %410 : vector<1x256xi32>
    %c16_i32_162 = arith.constant 16 : i32
    %412 = vector.broadcast %c16_i32_162 : i32 to vector<1x256xi32>
    %413 = arith.cmpi slt, %411, %412 : vector<1x256xi32>
    %414 = arith.andi %409, %413 : vector<1x256xi1>
    %cst_163 = arith.constant 0.000000e+00 : f32
    %415 = vector.shape_cast %414 : vector<1x256xi1> to vector<1x256xi1>
    %416 = vector.broadcast %415 : vector<1x256xi1> to vector<8x256xi1>
    %417 = vector.broadcast %cst_163 : f32 to vector<8x256xf32>
    %418 = arith.select %416, %395, %417 : vector<8x256xi1>, vector<8x256xf32>
    %c40 = arith.constant 40 : index
    %c0_164 = arith.constant 0 : index
    %419 = vector.load %arg25[%c40, %c0_164] : memref<288x256xf32, #tpu.memory_space<vmem>>, vector<8x256xf32>
    tpu.vector_store %arg25[%c40, %c0_164], %418 {strides = array<i32>} : memref<288x256xf32, #tpu.memory_space<vmem>>, vector<8x256xf32>,
    %c151_i32 = arith.constant 151 : i32
    %420 = tpu.dynamic_rotate %293 by %c151_i32 dim 1 : vector<8x256xf32>, i32 -> vector<8x256xf32>
    %c-7_i32_165 = arith.constant -7 : i32
    %421 = vector.broadcast %c-7_i32_165 : i32 to vector<1x256xi32>
    %422 = arith.addi %0, %421 : vector<1x256xi32>
    %c0_i32_166 = arith.constant 0 : i32
    %423 = vector.broadcast %c0_i32_166 : i32 to vector<1x256xi32>
    %424 = arith.cmpi sge, %422, %423 : vector<1x256xi32>
    %c-7_i32_167 = arith.constant -7 : i32
    %425 = vector.broadcast %c-7_i32_167 : i32 to vector<1x256xi32>
    %426 = arith.addi %0, %425 : vector<1x256xi32>
    %c16_i32_168 = arith.constant 16 : i32
    %427 = vector.broadcast %c16_i32_168 : i32 to vector<1x256xi32>
    %428 = arith.cmpi slt, %426, %427 : vector<1x256xi32>
    %429 = arith.andi %424, %428 : vector<1x256xi1>
    %c7_i32_169 = arith.constant 7 : i32
    %430 = vector.broadcast %c7_i32_169 : i32 to vector<1x256xi32>
    %431 = arith.addi %1, %430 : vector<1x256xi32>
    %c0_i32_170 = arith.constant 0 : i32
    %432 = vector.broadcast %c0_i32_170 : i32 to vector<1x256xi32>
    %433 = arith.cmpi sge, %431, %432 : vector<1x256xi32>
    %434 = arith.andi %429, %433 : vector<1x256xi1>
    %c7_i32_171 = arith.constant 7 : i32
    %435 = vector.broadcast %c7_i32_171 : i32 to vector<1x256xi32>
    %436 = arith.addi %1, %435 : vector<1x256xi32>
    %c16_i32_172 = arith.constant 16 : i32
    %437 = vector.broadcast %c16_i32_172 : i32 to vector<1x256xi32>
    %438 = arith.cmpi slt, %436, %437 : vector<1x256xi32>
    %439 = arith.andi %434, %438 : vector<1x256xi1>
    %cst_173 = arith.constant 0.000000e+00 : f32
    %440 = vector.shape_cast %439 : vector<1x256xi1> to vector<1x256xi1>
    %441 = vector.broadcast %440 : vector<1x256xi1> to vector<8x256xi1>
    %442 = vector.broadcast %cst_173 : f32 to vector<8x256xf32>
    %443 = arith.select %441, %420, %442 : vector<8x256xi1>, vector<8x256xf32>
    %c48 = arith.constant 48 : index
    %c0_174 = arith.constant 0 : index
    %444 = vector.load %arg25[%c48, %c0_174] : memref<288x256xf32, #tpu.memory_space<vmem>>, vector<8x256xf32>
    tpu.vector_store %arg25[%c48, %c0_174], %443 {strides = array<i32>} : memref<288x256xf32, #tpu.memory_space<vmem>>, vector<8x256xf32>,
    %c144_i32 = arith.constant 144 : i32
    %445 = tpu.dynamic_rotate %293 by %c144_i32 dim 1 : vector<8x256xf32>, i32 -> vector<8x256xf32>
    %c0_i32_175 = arith.constant 0 : i32
    %446 = vector.broadcast %c0_i32_175 : i32 to vector<1x256xi32>
    %447 = arith.addi %0, %446 : vector<1x256xi32>
    %c0_i32_176 = arith.constant 0 : i32
    %448 = vector.broadcast %c0_i32_176 : i32 to vector<1x256xi32>
    %449 = arith.cmpi sge, %447, %448 : vector<1x256xi32>
    %c0_i32_177 = arith.constant 0 : i32
    %450 = vector.broadcast %c0_i32_177 : i32 to vector<1x256xi32>
    %451 = arith.addi %0, %450 : vector<1x256xi32>
    %c16_i32_178 = arith.constant 16 : i32
    %452 = vector.broadcast %c16_i32_178 : i32 to vector<1x256xi32>
    %453 = arith.cmpi slt, %451, %452 : vector<1x256xi32>
    %454 = arith.andi %449, %453 : vector<1x256xi1>
    %c7_i32_179 = arith.constant 7 : i32
    %455 = vector.broadcast %c7_i32_179 : i32 to vector<1x256xi32>
    %456 = arith.addi %1, %455 : vector<1x256xi32>
    %c0_i32_180 = arith.constant 0 : i32
    %457 = vector.broadcast %c0_i32_180 : i32 to vector<1x256xi32>
    %458 = arith.cmpi sge, %456, %457 : vector<1x256xi32>
    %459 = arith.andi %454, %458 : vector<1x256xi1>
    %c7_i32_181 = arith.constant 7 : i32
    %460 = vector.broadcast %c7_i32_181 : i32 to vector<1x256xi32>
    %461 = arith.addi %1, %460 : vector<1x256xi32>
    %c16_i32_182 = arith.constant 16 : i32
    %462 = vector.broadcast %c16_i32_182 : i32 to vector<1x256xi32>
    %463 = arith.cmpi slt, %461, %462 : vector<1x256xi32>
    %464 = arith.andi %459, %463 : vector<1x256xi1>
    %cst_183 = arith.constant 0.000000e+00 : f32
    %465 = vector.shape_cast %464 : vector<1x256xi1> to vector<1x256xi1>
    %466 = vector.broadcast %465 : vector<1x256xi1> to vector<8x256xi1>
    %467 = vector.broadcast %cst_183 : f32 to vector<8x256xf32>
    %468 = arith.select %466, %445, %467 : vector<8x256xi1>, vector<8x256xf32>
    %c56 = arith.constant 56 : index
    %c0_184 = arith.constant 0 : index
    %469 = vector.load %arg25[%c56, %c0_184] : memref<288x256xf32, #tpu.memory_space<vmem>>, vector<8x256xf32>
    tpu.vector_store %arg25[%c56, %c0_184], %468 {strides = array<i32>} : memref<288x256xf32, #tpu.memory_space<vmem>>, vector<8x256xf32>,
    %c137_i32 = arith.constant 137 : i32
    %470 = tpu.dynamic_rotate %293 by %c137_i32 dim 1 : vector<8x256xf32>, i32 -> vector<8x256xf32>
    %c7_i32_185 = arith.constant 7 : i32
    %471 = vector.broadcast %c7_i32_185 : i32 to vector<1x256xi32>
    %472 = arith.addi %0, %471 : vector<1x256xi32>
    %c0_i32_186 = arith.constant 0 : i32
    %473 = vector.broadcast %c0_i32_186 : i32 to vector<1x256xi32>
    %474 = arith.cmpi sge, %472, %473 : vector<1x256xi32>
    %c7_i32_187 = arith.constant 7 : i32
    %475 = vector.broadcast %c7_i32_187 : i32 to vector<1x256xi32>
    %476 = arith.addi %0, %475 : vector<1x256xi32>
    %c16_i32_188 = arith.constant 16 : i32
    %477 = vector.broadcast %c16_i32_188 : i32 to vector<1x256xi32>
    %478 = arith.cmpi slt, %476, %477 : vector<1x256xi32>
    %479 = arith.andi %474, %478 : vector<1x256xi1>
    %c7_i32_189 = arith.constant 7 : i32
    %480 = vector.broadcast %c7_i32_189 : i32 to vector<1x256xi32>
    %481 = arith.addi %1, %480 : vector<1x256xi32>
    %c0_i32_190 = arith.constant 0 : i32
    %482 = vector.broadcast %c0_i32_190 : i32 to vector<1x256xi32>
    %483 = arith.cmpi sge, %481, %482 : vector<1x256xi32>
    %484 = arith.andi %479, %483 : vector<1x256xi1>
    %c7_i32_191 = arith.constant 7 : i32
    %485 = vector.broadcast %c7_i32_191 : i32 to vector<1x256xi32>
    %486 = arith.addi %1, %485 : vector<1x256xi32>
    %c16_i32_192 = arith.constant 16 : i32
    %487 = vector.broadcast %c16_i32_192 : i32 to vector<1x256xi32>
    %488 = arith.cmpi slt, %486, %487 : vector<1x256xi32>
    %489 = arith.andi %484, %488 : vector<1x256xi1>
    %cst_193 = arith.constant 0.000000e+00 : f32
    %490 = vector.shape_cast %489 : vector<1x256xi1> to vector<1x256xi1>
    %491 = vector.broadcast %490 : vector<1x256xi1> to vector<8x256xi1>
    %492 = vector.broadcast %cst_193 : f32 to vector<8x256xf32>
    %493 = arith.select %491, %470, %492 : vector<8x256xi1>, vector<8x256xf32>
    %c64 = arith.constant 64 : index
    %c0_194 = arith.constant 0 : index
    %494 = vector.load %arg25[%c64, %c0_194] : memref<288x256xf32, #tpu.memory_space<vmem>>, vector<8x256xf32>
    tpu.vector_store %arg25[%c64, %c0_194], %493 {strides = array<i32>} : memref<288x256xf32, #tpu.memory_space<vmem>>, vector<8x256xf32>,
    %cst_195 = arith.constant 0.000000e+00 : f32
    %495 = vector.broadcast %cst_195 : f32 to vector<8x256xf32>
    %c0_196 = arith.constant 0 : index
    %c0_197 = arith.constant 0 : index
    %496 = vector.load %arg7[%c0_196, %c0_197] : memref<8x72xf32, #tpu.memory_space<vmem>>, vector<8x72xf32>
    %c0_198 = arith.constant 0 : index
    %c0_199 = arith.constant 0 : index
    %497 = vector.load %arg25[%c0_198, %c0_199] : memref<288x256xf32, #tpu.memory_space<vmem>>, vector<72x256xf32>
    %cst_200 = arith.constant dense<0.000000e+00> : vector<8x256xf32>
    %498 = tpu.matmul %496, %497, %cst_200 {dimension_numbers = #tpu.dot_dimension_numbers<[1], [0], [0], [1], [0, 0, 1, 1], [], []>} : vector<8x72xf32>, vector<72x256xf32>, vector<8x256xf32> -> vector<8x256xf32>
    %499 = arith.addf %495, %498 : vector<8x256xf32>
    %c0_201 = arith.constant 0 : index
    %c0_202 = arith.constant 0 : index
    %500 = vector.load %arg8[%c0_201, %c0_202] : memref<24x1xf32, #tpu.memory_space<vmem>>, vector<8x1xf32>
    %c8_203 = arith.constant 8 : index
    %c0_204 = arith.constant 0 : index
    %501 = vector.load %arg8[%c8_203, %c0_204] : memref<24x1xf32, #tpu.memory_space<vmem>>, vector<8x1xf32>
    %c16_205 = arith.constant 16 : index
    %c0_206 = arith.constant 0 : index
    %502 = vector.load %arg8[%c16_205, %c0_206] : memref<24x1xf32, #tpu.memory_space<vmem>>, vector<8x1xf32>
    %503 = vector.broadcast %500 : vector<8x1xf32> to vector<8x256xf32>
    %504 = arith.addf %499, %503 : vector<8x256xf32>
    %505 = vector.shape_cast %504 : vector<8x256xf32> to vector<1x8x256xf32>
    %cst_207 = arith.constant dense<0.000000e+00> : vector<1xf32>
    %506 = vector.multi_reduction <add>, %505, %cst_207 [1, 2] : vector<1x8x256xf32> to vector<1xf32>
    %507 = vector.shape_cast %506 : vector<1xf32> to vector<1x1x1xf32>
    %508 = vector.extract %507[0, 0, 0] : f32 from vector<1x1x1xf32>
    %509 = vector.broadcast %508 : f32 to vector<1x1xf32>
    %510 = arith.mulf %504, %504 : vector<8x256xf32>
    %511 = vector.shape_cast %510 : vector<8x256xf32> to vector<1x8x256xf32>
    %cst_208 = arith.constant dense<0.000000e+00> : vector<1xf32>
    %512 = vector.multi_reduction <add>, %511, %cst_208 [1, 2] : vector<1x8x256xf32> to vector<1xf32>
    %513 = vector.shape_cast %512 : vector<1xf32> to vector<1x1x1xf32>
    %514 = vector.extract %513[0, 0, 0] : f32 from vector<1x1x1xf32>
    %515 = vector.broadcast %514 : f32 to vector<1x1xf32>
    %cst_209 = arith.constant 2.048000e+03 : f32
    %516 = vector.broadcast %cst_209 : f32 to vector<1x1xf32>
    %517 = arith.divf %509, %516 : vector<1x1xf32>
    %cst_210 = arith.constant 2.048000e+03 : f32
    %518 = vector.broadcast %cst_210 : f32 to vector<1x1xf32>
    %519 = arith.divf %515, %518 : vector<1x1xf32>
    %520 = arith.mulf %517, %517 : vector<1x1xf32>
    %521 = arith.subf %519, %520 : vector<1x1xf32>
    %522 = vector.broadcast %517 : vector<1x1xf32> to vector<8x256xf32>
    %523 = arith.subf %504, %522 : vector<8x256xf32>
    %cst_211 = arith.constant 9.99999974E-6 : f32
    %524 = vector.broadcast %cst_211 : f32 to vector<1x1xf32>
    %525 = arith.addf %521, %524 : vector<1x1xf32>
    %526 = math.rsqrt %525 : vector<1x1xf32>
    %527 = vector.broadcast %526 : vector<1x1xf32> to vector<8x256xf32>
    %528 = arith.mulf %523, %527 : vector<8x256xf32>
    %529 = vector.broadcast %501 : vector<8x1xf32> to vector<8x256xf32>
    %530 = arith.mulf %528, %529 : vector<8x256xf32>
    %531 = vector.broadcast %502 : vector<8x1xf32> to vector<8x256xf32>
    %532 = arith.addf %530, %531 : vector<8x256xf32>
    %cst_212 = arith.constant 0.000000e+00 : f32
    %533 = vector.broadcast %cst_212 : f32 to vector<8x256xf32>
    %534 = arith.maximumf %532, %533 : vector<8x256xf32>
    %c0_213 = arith.constant 0 : index
    %c0_214 = arith.constant 0 : index
    %535 = vector.load %arg26[%c0_213, %c0_214] : memref<32x256xf32, #tpu.memory_space<vmem>>, vector<8x256xf32>
    tpu.vector_store %arg26[%c0_213, %c0_214], %534 {strides = array<i32>} : memref<32x256xf32, #tpu.memory_space<vmem>>, vector<8x256xf32>,
    %c85_i32 = arith.constant 85 : i32
    %536 = tpu.dynamic_rotate %293 by %c85_i32 dim 1 : vector<8x256xf32>, i32 -> vector<8x256xf32>
    %c-5_i32 = arith.constant -5 : i32
    %537 = vector.broadcast %c-5_i32 : i32 to vector<1x256xi32>
    %538 = arith.addi %0, %537 : vector<1x256xi32>
    %c0_i32_215 = arith.constant 0 : i32
    %539 = vector.broadcast %c0_i32_215 : i32 to vector<1x256xi32>
    %540 = arith.cmpi sge, %538, %539 : vector<1x256xi32>
    %c-5_i32_216 = arith.constant -5 : i32
    %541 = vector.broadcast %c-5_i32_216 : i32 to vector<1x256xi32>
    %542 = arith.addi %0, %541 : vector<1x256xi32>
    %c16_i32_217 = arith.constant 16 : i32
    %543 = vector.broadcast %c16_i32_217 : i32 to vector<1x256xi32>
    %544 = arith.cmpi slt, %542, %543 : vector<1x256xi32>
    %545 = arith.andi %540, %544 : vector<1x256xi1>
    %c-5_i32_218 = arith.constant -5 : i32
    %546 = vector.broadcast %c-5_i32_218 : i32 to vector<1x256xi32>
    %547 = arith.addi %1, %546 : vector<1x256xi32>
    %c0_i32_219 = arith.constant 0 : i32
    %548 = vector.broadcast %c0_i32_219 : i32 to vector<1x256xi32>
    %549 = arith.cmpi sge, %547, %548 : vector<1x256xi32>
    %550 = arith.andi %545, %549 : vector<1x256xi1>
    %c-5_i32_220 = arith.constant -5 : i32
    %551 = vector.broadcast %c-5_i32_220 : i32 to vector<1x256xi32>
    %552 = arith.addi %1, %551 : vector<1x256xi32>
    %c16_i32_221 = arith.constant 16 : i32
    %553 = vector.broadcast %c16_i32_221 : i32 to vector<1x256xi32>
    %554 = arith.cmpi slt, %552, %553 : vector<1x256xi32>
    %555 = arith.andi %550, %554 : vector<1x256xi1>
    %cst_222 = arith.constant 0.000000e+00 : f32
    %556 = vector.shape_cast %555 : vector<1x256xi1> to vector<1x256xi1>
    %557 = vector.broadcast %556 : vector<1x256xi1> to vector<8x256xi1>
    %558 = vector.broadcast %cst_222 : f32 to vector<8x256xf32>
    %559 = arith.select %557, %536, %558 : vector<8x256xi1>, vector<8x256xf32>
    %c0_223 = arith.constant 0 : index
    %c0_224 = arith.constant 0 : index
    %560 = vector.load %arg25[%c0_223, %c0_224] : memref<288x256xf32, #tpu.memory_space<vmem>>, vector<8x256xf32>
    tpu.vector_store %arg25[%c0_223, %c0_224], %559 {strides = array<i32>} : memref<288x256xf32, #tpu.memory_space<vmem>>, vector<8x256xf32>,
    %c80_i32 = arith.constant 80 : i32
    %561 = tpu.dynamic_rotate %293 by %c80_i32 dim 1 : vector<8x256xf32>, i32 -> vector<8x256xf32>
    %c0_i32_225 = arith.constant 0 : i32
    %562 = vector.broadcast %c0_i32_225 : i32 to vector<1x256xi32>
    %563 = arith.addi %0, %562 : vector<1x256xi32>
    %c0_i32_226 = arith.constant 0 : i32
    %564 = vector.broadcast %c0_i32_226 : i32 to vector<1x256xi32>
    %565 = arith.cmpi sge, %563, %564 : vector<1x256xi32>
    %c0_i32_227 = arith.constant 0 : i32
    %566 = vector.broadcast %c0_i32_227 : i32 to vector<1x256xi32>
    %567 = arith.addi %0, %566 : vector<1x256xi32>
    %c16_i32_228 = arith.constant 16 : i32
    %568 = vector.broadcast %c16_i32_228 : i32 to vector<1x256xi32>
    %569 = arith.cmpi slt, %567, %568 : vector<1x256xi32>
    %570 = arith.andi %565, %569 : vector<1x256xi1>
    %c-5_i32_229 = arith.constant -5 : i32
    %571 = vector.broadcast %c-5_i32_229 : i32 to vector<1x256xi32>
    %572 = arith.addi %1, %571 : vector<1x256xi32>
    %c0_i32_230 = arith.constant 0 : i32
    %573 = vector.broadcast %c0_i32_230 : i32 to vector<1x256xi32>
    %574 = arith.cmpi sge, %572, %573 : vector<1x256xi32>
    %575 = arith.andi %570, %574 : vector<1x256xi1>
    %c-5_i32_231 = arith.constant -5 : i32
    %576 = vector.broadcast %c-5_i32_231 : i32 to vector<1x256xi32>
    %577 = arith.addi %1, %576 : vector<1x256xi32>
    %c16_i32_232 = arith.constant 16 : i32
    %578 = vector.broadcast %c16_i32_232 : i32 to vector<1x256xi32>
    %579 = arith.cmpi slt, %577, %578 : vector<1x256xi32>
    %580 = arith.andi %575, %579 : vector<1x256xi1>
    %cst_233 = arith.constant 0.000000e+00 : f32
    %581 = vector.shape_cast %580 : vector<1x256xi1> to vector<1x256xi1>
    %582 = vector.broadcast %581 : vector<1x256xi1> to vector<8x256xi1>
    %583 = vector.broadcast %cst_233 : f32 to vector<8x256xf32>
    %584 = arith.select %582, %561, %583 : vector<8x256xi1>, vector<8x256xf32>
    %c8_234 = arith.constant 8 : index
    %c0_235 = arith.constant 0 : index
    %585 = vector.load %arg25[%c8_234, %c0_235] : memref<288x256xf32, #tpu.memory_space<vmem>>, vector<8x256xf32>
    tpu.vector_store %arg25[%c8_234, %c0_235], %584 {strides = array<i32>} : memref<288x256xf32, #tpu.memory_space<vmem>>, vector<8x256xf32>,
    %c75_i32 = arith.constant 75 : i32
    %586 = tpu.dynamic_rotate %293 by %c75_i32 dim 1 : vector<8x256xf32>, i32 -> vector<8x256xf32>
    %c5_i32 = arith.constant 5 : i32
    %587 = vector.broadcast %c5_i32 : i32 to vector<1x256xi32>
    %588 = arith.addi %0, %587 : vector<1x256xi32>
    %c0_i32_236 = arith.constant 0 : i32
    %589 = vector.broadcast %c0_i32_236 : i32 to vector<1x256xi32>
    %590 = arith.cmpi sge, %588, %589 : vector<1x256xi32>
    %c5_i32_237 = arith.constant 5 : i32
    %591 = vector.broadcast %c5_i32_237 : i32 to vector<1x256xi32>
    %592 = arith.addi %0, %591 : vector<1x256xi32>
    %c16_i32_238 = arith.constant 16 : i32
    %593 = vector.broadcast %c16_i32_238 : i32 to vector<1x256xi32>
    %594 = arith.cmpi slt, %592, %593 : vector<1x256xi32>
    %595 = arith.andi %590, %594 : vector<1x256xi1>
    %c-5_i32_239 = arith.constant -5 : i32
    %596 = vector.broadcast %c-5_i32_239 : i32 to vector<1x256xi32>
    %597 = arith.addi %1, %596 : vector<1x256xi32>
    %c0_i32_240 = arith.constant 0 : i32
    %598 = vector.broadcast %c0_i32_240 : i32 to vector<1x256xi32>
    %599 = arith.cmpi sge, %597, %598 : vector<1x256xi32>
    %600 = arith.andi %595, %599 : vector<1x256xi1>
    %c-5_i32_241 = arith.constant -5 : i32
    %601 = vector.broadcast %c-5_i32_241 : i32 to vector<1x256xi32>
    %602 = arith.addi %1, %601 : vector<1x256xi32>
    %c16_i32_242 = arith.constant 16 : i32
    %603 = vector.broadcast %c16_i32_242 : i32 to vector<1x256xi32>
    %604 = arith.cmpi slt, %602, %603 : vector<1x256xi32>
    %605 = arith.andi %600, %604 : vector<1x256xi1>
    %cst_243 = arith.constant 0.000000e+00 : f32
    %606 = vector.shape_cast %605 : vector<1x256xi1> to vector<1x256xi1>
    %607 = vector.broadcast %606 : vector<1x256xi1> to vector<8x256xi1>
    %608 = vector.broadcast %cst_243 : f32 to vector<8x256xf32>
    %609 = arith.select %607, %586, %608 : vector<8x256xi1>, vector<8x256xf32>
    %c16_244 = arith.constant 16 : index
    %c0_245 = arith.constant 0 : index
    %610 = vector.load %arg25[%c16_244, %c0_245] : memref<288x256xf32, #tpu.memory_space<vmem>>, vector<8x256xf32>
    tpu.vector_store %arg25[%c16_244, %c0_245], %609 {strides = array<i32>} : memref<288x256xf32, #tpu.memory_space<vmem>>, vector<8x256xf32>,
    %c5_i32_246 = arith.constant 5 : i32
    %611 = tpu.dynamic_rotate %293 by %c5_i32_246 dim 1 : vector<8x256xf32>, i32 -> vector<8x256xf32>
    %c-5_i32_247 = arith.constant -5 : i32
    %612 = vector.broadcast %c-5_i32_247 : i32 to vector<1x256xi32>
    %613 = arith.addi %0, %612 : vector<1x256xi32>
    %c0_i32_248 = arith.constant 0 : i32
    %614 = vector.broadcast %c0_i32_248 : i32 to vector<1x256xi32>
    %615 = arith.cmpi sge, %613, %614 : vector<1x256xi32>
    %c-5_i32_249 = arith.constant -5 : i32
    %616 = vector.broadcast %c-5_i32_249 : i32 to vector<1x256xi32>
    %617 = arith.addi %0, %616 : vector<1x256xi32>
    %c16_i32_250 = arith.constant 16 : i32
    %618 = vector.broadcast %c16_i32_250 : i32 to vector<1x256xi32>
    %619 = arith.cmpi slt, %617, %618 : vector<1x256xi32>
    %620 = arith.andi %615, %619 : vector<1x256xi1>
    %c0_i32_251 = arith.constant 0 : i32
    %621 = vector.broadcast %c0_i32_251 : i32 to vector<1x256xi32>
    %622 = arith.addi %1, %621 : vector<1x256xi32>
    %c0_i32_252 = arith.constant 0 : i32
    %623 = vector.broadcast %c0_i32_252 : i32 to vector<1x256xi32>
    %624 = arith.cmpi sge, %622, %623 : vector<1x256xi32>
    %625 = arith.andi %620, %624 : vector<1x256xi1>
    %c0_i32_253 = arith.constant 0 : i32
    %626 = vector.broadcast %c0_i32_253 : i32 to vector<1x256xi32>
    %627 = arith.addi %1, %626 : vector<1x256xi32>
    %c16_i32_254 = arith.constant 16 : i32
    %628 = vector.broadcast %c16_i32_254 : i32 to vector<1x256xi32>
    %629 = arith.cmpi slt, %627, %628 : vector<1x256xi32>
    %630 = arith.andi %625, %629 : vector<1x256xi1>
    %cst_255 = arith.constant 0.000000e+00 : f32
    %631 = vector.shape_cast %630 : vector<1x256xi1> to vector<1x256xi1>
    %632 = vector.broadcast %631 : vector<1x256xi1> to vector<8x256xi1>
    %633 = vector.broadcast %cst_255 : f32 to vector<8x256xf32>
    %634 = arith.select %632, %611, %633 : vector<8x256xi1>, vector<8x256xf32>
    %c24_256 = arith.constant 24 : index
    %c0_257 = arith.constant 0 : index
    %635 = vector.load %arg25[%c24_256, %c0_257] : memref<288x256xf32, #tpu.memory_space<vmem>>, vector<8x256xf32>
    tpu.vector_store %arg25[%c24_256, %c0_257], %634 {strides = array<i32>} : memref<288x256xf32, #tpu.memory_space<vmem>>, vector<8x256xf32>,
    %c32_258 = arith.constant 32 : index
    %c0_259 = arith.constant 0 : index
    %636 = vector.load %arg25[%c32_258, %c0_259] : memref<288x256xf32, #tpu.memory_space<vmem>>, vector<8x256xf32>
    tpu.vector_store %arg25[%c32_258, %c0_259], %293 {strides = array<i32>} : memref<288x256xf32, #tpu.memory_space<vmem>>, vector<8x256xf32>,
    %c251_i32 = arith.constant 251 : i32
    %637 = tpu.dynamic_rotate %293 by %c251_i32 dim 1 : vector<8x256xf32>, i32 -> vector<8x256xf32>
    %c5_i32_260 = arith.constant 5 : i32
    %638 = vector.broadcast %c5_i32_260 : i32 to vector<1x256xi32>
    %639 = arith.addi %0, %638 : vector<1x256xi32>
    %c0_i32_261 = arith.constant 0 : i32
    %640 = vector.broadcast %c0_i32_261 : i32 to vector<1x256xi32>
    %641 = arith.cmpi sge, %639, %640 : vector<1x256xi32>
    %c5_i32_262 = arith.constant 5 : i32
    %642 = vector.broadcast %c5_i32_262 : i32 to vector<1x256xi32>
    %643 = arith.addi %0, %642 : vector<1x256xi32>
    %c16_i32_263 = arith.constant 16 : i32
    %644 = vector.broadcast %c16_i32_263 : i32 to vector<1x256xi32>
    %645 = arith.cmpi slt, %643, %644 : vector<1x256xi32>
    %646 = arith.andi %641, %645 : vector<1x256xi1>
    %c0_i32_264 = arith.constant 0 : i32
    %647 = vector.broadcast %c0_i32_264 : i32 to vector<1x256xi32>
    %648 = arith.addi %1, %647 : vector<1x256xi32>
    %c0_i32_265 = arith.constant 0 : i32
    %649 = vector.broadcast %c0_i32_265 : i32 to vector<1x256xi32>
    %650 = arith.cmpi sge, %648, %649 : vector<1x256xi32>
    %651 = arith.andi %646, %650 : vector<1x256xi1>
    %c0_i32_266 = arith.constant 0 : i32
    %652 = vector.broadcast %c0_i32_266 : i32 to vector<1x256xi32>
    %653 = arith.addi %1, %652 : vector<1x256xi32>
    %c16_i32_267 = arith.constant 16 : i32
    %654 = vector.broadcast %c16_i32_267 : i32 to vector<1x256xi32>
    %655 = arith.cmpi slt, %653, %654 : vector<1x256xi32>
    %656 = arith.andi %651, %655 : vector<1x256xi1>
    %cst_268 = arith.constant 0.000000e+00 : f32
    %657 = vector.shape_cast %656 : vector<1x256xi1> to vector<1x256xi1>
    %658 = vector.broadcast %657 : vector<1x256xi1> to vector<8x256xi1>
    %659 = vector.broadcast %cst_268 : f32 to vector<8x256xf32>
    %660 = arith.select %658, %637, %659 : vector<8x256xi1>, vector<8x256xf32>
    %c40_269 = arith.constant 40 : index
    %c0_270 = arith.constant 0 : index
    %661 = vector.load %arg25[%c40_269, %c0_270] : memref<288x256xf32, #tpu.memory_space<vmem>>, vector<8x256xf32>
    tpu.vector_store %arg25[%c40_269, %c0_270], %660 {strides = array<i32>} : memref<288x256xf32, #tpu.memory_space<vmem>>, vector<8x256xf32>,
    %c181_i32 = arith.constant 181 : i32
    %662 = tpu.dynamic_rotate %293 by %c181_i32 dim 1 : vector<8x256xf32>, i32 -> vector<8x256xf32>
    %c-5_i32_271 = arith.constant -5 : i32
    %663 = vector.broadcast %c-5_i32_271 : i32 to vector<1x256xi32>
    %664 = arith.addi %0, %663 : vector<1x256xi32>
    %c0_i32_272 = arith.constant 0 : i32
    %665 = vector.broadcast %c0_i32_272 : i32 to vector<1x256xi32>
    %666 = arith.cmpi sge, %664, %665 : vector<1x256xi32>
    %c-5_i32_273 = arith.constant -5 : i32
    %667 = vector.broadcast %c-5_i32_273 : i32 to vector<1x256xi32>
    %668 = arith.addi %0, %667 : vector<1x256xi32>
    %c16_i32_274 = arith.constant 16 : i32
    %669 = vector.broadcast %c16_i32_274 : i32 to vector<1x256xi32>
    %670 = arith.cmpi slt, %668, %669 : vector<1x256xi32>
    %671 = arith.andi %666, %670 : vector<1x256xi1>
    %c5_i32_275 = arith.constant 5 : i32
    %672 = vector.broadcast %c5_i32_275 : i32 to vector<1x256xi32>
    %673 = arith.addi %1, %672 : vector<1x256xi32>
    %c0_i32_276 = arith.constant 0 : i32
    %674 = vector.broadcast %c0_i32_276 : i32 to vector<1x256xi32>
    %675 = arith.cmpi sge, %673, %674 : vector<1x256xi32>
    %676 = arith.andi %671, %675 : vector<1x256xi1>
    %c5_i32_277 = arith.constant 5 : i32
    %677 = vector.broadcast %c5_i32_277 : i32 to vector<1x256xi32>
    %678 = arith.addi %1, %677 : vector<1x256xi32>
    %c16_i32_278 = arith.constant 16 : i32
    %679 = vector.broadcast %c16_i32_278 : i32 to vector<1x256xi32>
    %680 = arith.cmpi slt, %678, %679 : vector<1x256xi32>
    %681 = arith.andi %676, %680 : vector<1x256xi1>
    %cst_279 = arith.constant 0.000000e+00 : f32
    %682 = vector.shape_cast %681 : vector<1x256xi1> to vector<1x256xi1>
    %683 = vector.broadcast %682 : vector<1x256xi1> to vector<8x256xi1>
    %684 = vector.broadcast %cst_279 : f32 to vector<8x256xf32>
    %685 = arith.select %683, %662, %684 : vector<8x256xi1>, vector<8x256xf32>
    %c48_280 = arith.constant 48 : index
    %c0_281 = arith.constant 0 : index
    %686 = vector.load %arg25[%c48_280, %c0_281] : memref<288x256xf32, #tpu.memory_space<vmem>>, vector<8x256xf32>
    tpu.vector_store %arg25[%c48_280, %c0_281], %685 {strides = array<i32>} : memref<288x256xf32, #tpu.memory_space<vmem>>, vector<8x256xf32>,
    %c176_i32 = arith.constant 176 : i32
    %687 = tpu.dynamic_rotate %293 by %c176_i32 dim 1 : vector<8x256xf32>, i32 -> vector<8x256xf32>
    %c0_i32_282 = arith.constant 0 : i32
    %688 = vector.broadcast %c0_i32_282 : i32 to vector<1x256xi32>
    %689 = arith.addi %0, %688 : vector<1x256xi32>
    %c0_i32_283 = arith.constant 0 : i32
    %690 = vector.broadcast %c0_i32_283 : i32 to vector<1x256xi32>
    %691 = arith.cmpi sge, %689, %690 : vector<1x256xi32>
    %c0_i32_284 = arith.constant 0 : i32
    %692 = vector.broadcast %c0_i32_284 : i32 to vector<1x256xi32>
    %693 = arith.addi %0, %692 : vector<1x256xi32>
    %c16_i32_285 = arith.constant 16 : i32
    %694 = vector.broadcast %c16_i32_285 : i32 to vector<1x256xi32>
    %695 = arith.cmpi slt, %693, %694 : vector<1x256xi32>
    %696 = arith.andi %691, %695 : vector<1x256xi1>
    %c5_i32_286 = arith.constant 5 : i32
    %697 = vector.broadcast %c5_i32_286 : i32 to vector<1x256xi32>
    %698 = arith.addi %1, %697 : vector<1x256xi32>
    %c0_i32_287 = arith.constant 0 : i32
    %699 = vector.broadcast %c0_i32_287 : i32 to vector<1x256xi32>
    %700 = arith.cmpi sge, %698, %699 : vector<1x256xi32>
    %701 = arith.andi %696, %700 : vector<1x256xi1>
    %c5_i32_288 = arith.constant 5 : i32
    %702 = vector.broadcast %c5_i32_288 : i32 to vector<1x256xi32>
    %703 = arith.addi %1, %702 : vector<1x256xi32>
    %c16_i32_289 = arith.constant 16 : i32
    %704 = vector.broadcast %c16_i32_289 : i32 to vector<1x256xi32>
    %705 = arith.cmpi slt, %703, %704 : vector<1x256xi32>
    %706 = arith.andi %701, %705 : vector<1x256xi1>
    %cst_290 = arith.constant 0.000000e+00 : f32
    %707 = vector.shape_cast %706 : vector<1x256xi1> to vector<1x256xi1>
    %708 = vector.broadcast %707 : vector<1x256xi1> to vector<8x256xi1>
    %709 = vector.broadcast %cst_290 : f32 to vector<8x256xf32>
    %710 = arith.select %708, %687, %709 : vector<8x256xi1>, vector<8x256xf32>
    %c56_291 = arith.constant 56 : index
    %c0_292 = arith.constant 0 : index
    %711 = vector.load %arg25[%c56_291, %c0_292] : memref<288x256xf32, #tpu.memory_space<vmem>>, vector<8x256xf32>
    tpu.vector_store %arg25[%c56_291, %c0_292], %710 {strides = array<i32>} : memref<288x256xf32, #tpu.memory_space<vmem>>, vector<8x256xf32>,
    %c171_i32 = arith.constant 171 : i32
    %712 = tpu.dynamic_rotate %293 by %c171_i32 dim 1 : vector<8x256xf32>, i32 -> vector<8x256xf32>
    %c5_i32_293 = arith.constant 5 : i32
    %713 = vector.broadcast %c5_i32_293 : i32 to vector<1x256xi32>
    %714 = arith.addi %0, %713 : vector<1x256xi32>
    %c0_i32_294 = arith.constant 0 : i32
    %715 = vector.broadcast %c0_i32_294 : i32 to vector<1x256xi32>
    %716 = arith.cmpi sge, %714, %715 : vector<1x256xi32>
    %c5_i32_295 = arith.constant 5 : i32
    %717 = vector.broadcast %c5_i32_295 : i32 to vector<1x256xi32>
    %718 = arith.addi %0, %717 : vector<1x256xi32>
    %c16_i32_296 = arith.constant 16 : i32
    %719 = vector.broadcast %c16_i32_296 : i32 to vector<1x256xi32>
    %720 = arith.cmpi slt, %718, %719 : vector<1x256xi32>
    %721 = arith.andi %716, %720 : vector<1x256xi1>
    %c5_i32_297 = arith.constant 5 : i32
    %722 = vector.broadcast %c5_i32_297 : i32 to vector<1x256xi32>
    %723 = arith.addi %1, %722 : vector<1x256xi32>
    %c0_i32_298 = arith.constant 0 : i32
    %724 = vector.broadcast %c0_i32_298 : i32 to vector<1x256xi32>
    %725 = arith.cmpi sge, %723, %724 : vector<1x256xi32>
    %726 = arith.andi %721, %725 : vector<1x256xi1>
    %c5_i32_299 = arith.constant 5 : i32
    %727 = vector.broadcast %c5_i32_299 : i32 to vector<1x256xi32>
    %728 = arith.addi %1, %727 : vector<1x256xi32>
    %c16_i32_300 = arith.constant 16 : i32
    %729 = vector.broadcast %c16_i32_300 : i32 to vector<1x256xi32>
    %730 = arith.cmpi slt, %728, %729 : vector<1x256xi32>
    %731 = arith.andi %726, %730 : vector<1x256xi1>
    %cst_301 = arith.constant 0.000000e+00 : f32
    %732 = vector.shape_cast %731 : vector<1x256xi1> to vector<1x256xi1>
    %733 = vector.broadcast %732 : vector<1x256xi1> to vector<8x256xi1>
    %734 = vector.broadcast %cst_301 : f32 to vector<8x256xf32>
    %735 = arith.select %733, %712, %734 : vector<8x256xi1>, vector<8x256xf32>
    %c64_302 = arith.constant 64 : index
    %c0_303 = arith.constant 0 : index
    %736 = vector.load %arg25[%c64_302, %c0_303] : memref<288x256xf32, #tpu.memory_space<vmem>>, vector<8x256xf32>
    tpu.vector_store %arg25[%c64_302, %c0_303], %735 {strides = array<i32>} : memref<288x256xf32, #tpu.memory_space<vmem>>, vector<8x256xf32>,
    %cst_304 = arith.constant 0.000000e+00 : f32
    %737 = vector.broadcast %cst_304 : f32 to vector<8x256xf32>
    %c0_305 = arith.constant 0 : index
    %c0_306 = arith.constant 0 : index
    %738 = vector.load %arg9[%c0_305, %c0_306] : memref<8x72xf32, #tpu.memory_space<vmem>>, vector<8x72xf32>
    %c0_307 = arith.constant 0 : index
    %c0_308 = arith.constant 0 : index
    %739 = vector.load %arg25[%c0_307, %c0_308] : memref<288x256xf32, #tpu.memory_space<vmem>>, vector<72x256xf32>
    %cst_309 = arith.constant dense<0.000000e+00> : vector<8x256xf32>
    %740 = tpu.matmul %738, %739, %cst_309 {dimension_numbers = #tpu.dot_dimension_numbers<[1], [0], [0], [1], [0, 0, 1, 1], [], []>} : vector<8x72xf32>, vector<72x256xf32>, vector<8x256xf32> -> vector<8x256xf32>
    %741 = arith.addf %737, %740 : vector<8x256xf32>
    %c0_310 = arith.constant 0 : index
    %c0_311 = arith.constant 0 : index
    %742 = vector.load %arg10[%c0_310, %c0_311] : memref<24x1xf32, #tpu.memory_space<vmem>>, vector<8x1xf32>
    %c8_312 = arith.constant 8 : index
    %c0_313 = arith.constant 0 : index
    %743 = vector.load %arg10[%c8_312, %c0_313] : memref<24x1xf32, #tpu.memory_space<vmem>>, vector<8x1xf32>
    %c16_314 = arith.constant 16 : index
    %c0_315 = arith.constant 0 : index
    %744 = vector.load %arg10[%c16_314, %c0_315] : memref<24x1xf32, #tpu.memory_space<vmem>>, vector<8x1xf32>
    %745 = vector.broadcast %742 : vector<8x1xf32> to vector<8x256xf32>
    %746 = arith.addf %741, %745 : vector<8x256xf32>
    %747 = vector.shape_cast %746 : vector<8x256xf32> to vector<1x8x256xf32>
    %cst_316 = arith.constant dense<0.000000e+00> : vector<1xf32>
    %748 = vector.multi_reduction <add>, %747, %cst_316 [1, 2] : vector<1x8x256xf32> to vector<1xf32>
    %749 = vector.shape_cast %748 : vector<1xf32> to vector<1x1x1xf32>
    %750 = vector.extract %749[0, 0, 0] : f32 from vector<1x1x1xf32>
    %751 = vector.broadcast %750 : f32 to vector<1x1xf32>
    %752 = arith.mulf %746, %746 : vector<8x256xf32>
    %753 = vector.shape_cast %752 : vector<8x256xf32> to vector<1x8x256xf32>
    %cst_317 = arith.constant dense<0.000000e+00> : vector<1xf32>
    %754 = vector.multi_reduction <add>, %753, %cst_317 [1, 2] : vector<1x8x256xf32> to vector<1xf32>
    %755 = vector.shape_cast %754 : vector<1xf32> to vector<1x1x1xf32>
    %756 = vector.extract %755[0, 0, 0] : f32 from vector<1x1x1xf32>
    %757 = vector.broadcast %756 : f32 to vector<1x1xf32>
    %cst_318 = arith.constant 2.048000e+03 : f32
    %758 = vector.broadcast %cst_318 : f32 to vector<1x1xf32>
    %759 = arith.divf %751, %758 : vector<1x1xf32>
    %cst_319 = arith.constant 2.048000e+03 : f32
    %760 = vector.broadcast %cst_319 : f32 to vector<1x1xf32>
    %761 = arith.divf %757, %760 : vector<1x1xf32>
    %762 = arith.mulf %759, %759 : vector<1x1xf32>
    %763 = arith.subf %761, %762 : vector<1x1xf32>
    %764 = vector.broadcast %759 : vector<1x1xf32> to vector<8x256xf32>
    %765 = arith.subf %746, %764 : vector<8x256xf32>
    %cst_320 = arith.constant 9.99999974E-6 : f32
    %766 = vector.broadcast %cst_320 : f32 to vector<1x1xf32>
    %767 = arith.addf %763, %766 : vector<1x1xf32>
    %768 = math.rsqrt %767 : vector<1x1xf32>
    %769 = vector.broadcast %768 : vector<1x1xf32> to vector<8x256xf32>
    %770 = arith.mulf %765, %769 : vector<8x256xf32>
    %771 = vector.broadcast %743 : vector<8x1xf32> to vector<8x256xf32>
    %772 = arith.mulf %770, %771 : vector<8x256xf32>
    %773 = vector.broadcast %744 : vector<8x1xf32> to vector<8x256xf32>
    %774 = arith.addf %772, %773 : vector<8x256xf32>
    %cst_321 = arith.constant 0.000000e+00 : f32
    %775 = vector.broadcast %cst_321 : f32 to vector<8x256xf32>
    %776 = arith.maximumf %774, %775 : vector<8x256xf32>
    %c8_322 = arith.constant 8 : index
    %c0_323 = arith.constant 0 : index
    %777 = vector.load %arg26[%c8_322, %c0_323] : memref<32x256xf32, #tpu.memory_space<vmem>>, vector<8x256xf32>
    tpu.vector_store %arg26[%c8_322, %c0_323], %776 {strides = array<i32>} : memref<32x256xf32, #tpu.memory_space<vmem>>, vector<8x256xf32>,
    %c51_i32 = arith.constant 51 : i32
    %778 = tpu.dynamic_rotate %293 by %c51_i32 dim 1 : vector<8x256xf32>, i32 -> vector<8x256xf32>
    %c-3_i32 = arith.constant -3 : i32
    %779 = vector.broadcast %c-3_i32 : i32 to vector<1x256xi32>
    %780 = arith.addi %0, %779 : vector<1x256xi32>
    %c0_i32_324 = arith.constant 0 : i32
    %781 = vector.broadcast %c0_i32_324 : i32 to vector<1x256xi32>
    %782 = arith.cmpi sge, %780, %781 : vector<1x256xi32>
    %c-3_i32_325 = arith.constant -3 : i32
    %783 = vector.broadcast %c-3_i32_325 : i32 to vector<1x256xi32>
    %784 = arith.addi %0, %783 : vector<1x256xi32>
    %c16_i32_326 = arith.constant 16 : i32
    %785 = vector.broadcast %c16_i32_326 : i32 to vector<1x256xi32>
    %786 = arith.cmpi slt, %784, %785 : vector<1x256xi32>
    %787 = arith.andi %782, %786 : vector<1x256xi1>
    %c-3_i32_327 = arith.constant -3 : i32
    %788 = vector.broadcast %c-3_i32_327 : i32 to vector<1x256xi32>
    %789 = arith.addi %1, %788 : vector<1x256xi32>
    %c0_i32_328 = arith.constant 0 : i32
    %790 = vector.broadcast %c0_i32_328 : i32 to vector<1x256xi32>
    %791 = arith.cmpi sge, %789, %790 : vector<1x256xi32>
    %792 = arith.andi %787, %791 : vector<1x256xi1>
    %c-3_i32_329 = arith.constant -3 : i32
    %793 = vector.broadcast %c-3_i32_329 : i32 to vector<1x256xi32>
    %794 = arith.addi %1, %793 : vector<1x256xi32>
    %c16_i32_330 = arith.constant 16 : i32
    %795 = vector.broadcast %c16_i32_330 : i32 to vector<1x256xi32>
    %796 = arith.cmpi slt, %794, %795 : vector<1x256xi32>
    %797 = arith.andi %792, %796 : vector<1x256xi1>
    %cst_331 = arith.constant 0.000000e+00 : f32
    %798 = vector.shape_cast %797 : vector<1x256xi1> to vector<1x256xi1>
    %799 = vector.broadcast %798 : vector<1x256xi1> to vector<8x256xi1>
    %800 = vector.broadcast %cst_331 : f32 to vector<8x256xf32>
    %801 = arith.select %799, %778, %800 : vector<8x256xi1>, vector<8x256xf32>
    %c0_332 = arith.constant 0 : index
    %c0_333 = arith.constant 0 : index
    %802 = vector.load %arg25[%c0_332, %c0_333] : memref<288x256xf32, #tpu.memory_space<vmem>>, vector<8x256xf32>
    tpu.vector_store %arg25[%c0_332, %c0_333], %801 {strides = array<i32>} : memref<288x256xf32, #tpu.memory_space<vmem>>, vector<8x256xf32>,
    %c48_i32 = arith.constant 48 : i32
    %803 = tpu.dynamic_rotate %293 by %c48_i32 dim 1 : vector<8x256xf32>, i32 -> vector<8x256xf32>
    %c0_i32_334 = arith.constant 0 : i32
    %804 = vector.broadcast %c0_i32_334 : i32 to vector<1x256xi32>
    %805 = arith.addi %0, %804 : vector<1x256xi32>
    %c0_i32_335 = arith.constant 0 : i32
    %806 = vector.broadcast %c0_i32_335 : i32 to vector<1x256xi32>
    %807 = arith.cmpi sge, %805, %806 : vector<1x256xi32>
    %c0_i32_336 = arith.constant 0 : i32
    %808 = vector.broadcast %c0_i32_336 : i32 to vector<1x256xi32>
    %809 = arith.addi %0, %808 : vector<1x256xi32>
    %c16_i32_337 = arith.constant 16 : i32
    %810 = vector.broadcast %c16_i32_337 : i32 to vector<1x256xi32>
    %811 = arith.cmpi slt, %809, %810 : vector<1x256xi32>
    %812 = arith.andi %807, %811 : vector<1x256xi1>
    %c-3_i32_338 = arith.constant -3 : i32
    %813 = vector.broadcast %c-3_i32_338 : i32 to vector<1x256xi32>
    %814 = arith.addi %1, %813 : vector<1x256xi32>
    %c0_i32_339 = arith.constant 0 : i32
    %815 = vector.broadcast %c0_i32_339 : i32 to vector<1x256xi32>
    %816 = arith.cmpi sge, %814, %815 : vector<1x256xi32>
    %817 = arith.andi %812, %816 : vector<1x256xi1>
    %c-3_i32_340 = arith.constant -3 : i32
    %818 = vector.broadcast %c-3_i32_340 : i32 to vector<1x256xi32>
    %819 = arith.addi %1, %818 : vector<1x256xi32>
    %c16_i32_341 = arith.constant 16 : i32
    %820 = vector.broadcast %c16_i32_341 : i32 to vector<1x256xi32>
    %821 = arith.cmpi slt, %819, %820 : vector<1x256xi32>
    %822 = arith.andi %817, %821 : vector<1x256xi1>
    %cst_342 = arith.constant 0.000000e+00 : f32
    %823 = vector.shape_cast %822 : vector<1x256xi1> to vector<1x256xi1>
    %824 = vector.broadcast %823 : vector<1x256xi1> to vector<8x256xi1>
    %825 = vector.broadcast %cst_342 : f32 to vector<8x256xf32>
    %826 = arith.select %824, %803, %825 : vector<8x256xi1>, vector<8x256xf32>
    %c8_343 = arith.constant 8 : index
    %c0_344 = arith.constant 0 : index
    %827 = vector.load %arg25[%c8_343, %c0_344] : memref<288x256xf32, #tpu.memory_space<vmem>>, vector<8x256xf32>
    tpu.vector_store %arg25[%c8_343, %c0_344], %826 {strides = array<i32>} : memref<288x256xf32, #tpu.memory_space<vmem>>, vector<8x256xf32>,
    %c45_i32 = arith.constant 45 : i32
    %828 = tpu.dynamic_rotate %293 by %c45_i32 dim 1 : vector<8x256xf32>, i32 -> vector<8x256xf32>
    %c3_i32 = arith.constant 3 : i32
    %829 = vector.broadcast %c3_i32 : i32 to vector<1x256xi32>
    %830 = arith.addi %0, %829 : vector<1x256xi32>
    %c0_i32_345 = arith.constant 0 : i32
    %831 = vector.broadcast %c0_i32_345 : i32 to vector<1x256xi32>
    %832 = arith.cmpi sge, %830, %831 : vector<1x256xi32>
    %c3_i32_346 = arith.constant 3 : i32
    %833 = vector.broadcast %c3_i32_346 : i32 to vector<1x256xi32>
    %834 = arith.addi %0, %833 : vector<1x256xi32>
    %c16_i32_347 = arith.constant 16 : i32
    %835 = vector.broadcast %c16_i32_347 : i32 to vector<1x256xi32>
    %836 = arith.cmpi slt, %834, %835 : vector<1x256xi32>
    %837 = arith.andi %832, %836 : vector<1x256xi1>
    %c-3_i32_348 = arith.constant -3 : i32
    %838 = vector.broadcast %c-3_i32_348 : i32 to vector<1x256xi32>
    %839 = arith.addi %1, %838 : vector<1x256xi32>
    %c0_i32_349 = arith.constant 0 : i32
    %840 = vector.broadcast %c0_i32_349 : i32 to vector<1x256xi32>
    %841 = arith.cmpi sge, %839, %840 : vector<1x256xi32>
    %842 = arith.andi %837, %841 : vector<1x256xi1>
    %c-3_i32_350 = arith.constant -3 : i32
    %843 = vector.broadcast %c-3_i32_350 : i32 to vector<1x256xi32>
    %844 = arith.addi %1, %843 : vector<1x256xi32>
    %c16_i32_351 = arith.constant 16 : i32
    %845 = vector.broadcast %c16_i32_351 : i32 to vector<1x256xi32>
    %846 = arith.cmpi slt, %844, %845 : vector<1x256xi32>
    %847 = arith.andi %842, %846 : vector<1x256xi1>
    %cst_352 = arith.constant 0.000000e+00 : f32
    %848 = vector.shape_cast %847 : vector<1x256xi1> to vector<1x256xi1>
    %849 = vector.broadcast %848 : vector<1x256xi1> to vector<8x256xi1>
    %850 = vector.broadcast %cst_352 : f32 to vector<8x256xf32>
    %851 = arith.select %849, %828, %850 : vector<8x256xi1>, vector<8x256xf32>
    %c16_353 = arith.constant 16 : index
    %c0_354 = arith.constant 0 : index
    %852 = vector.load %arg25[%c16_353, %c0_354] : memref<288x256xf32, #tpu.memory_space<vmem>>, vector<8x256xf32>
    tpu.vector_store %arg25[%c16_353, %c0_354], %851 {strides = array<i32>} : memref<288x256xf32, #tpu.memory_space<vmem>>, vector<8x256xf32>,
    %c3_i32_355 = arith.constant 3 : i32
    %853 = tpu.dynamic_rotate %293 by %c3_i32_355 dim 1 : vector<8x256xf32>, i32 -> vector<8x256xf32>
    %c-3_i32_356 = arith.constant -3 : i32
    %854 = vector.broadcast %c-3_i32_356 : i32 to vector<1x256xi32>
    %855 = arith.addi %0, %854 : vector<1x256xi32>
    %c0_i32_357 = arith.constant 0 : i32
    %856 = vector.broadcast %c0_i32_357 : i32 to vector<1x256xi32>
    %857 = arith.cmpi sge, %855, %856 : vector<1x256xi32>
    %c-3_i32_358 = arith.constant -3 : i32
    %858 = vector.broadcast %c-3_i32_358 : i32 to vector<1x256xi32>
    %859 = arith.addi %0, %858 : vector<1x256xi32>
    %c16_i32_359 = arith.constant 16 : i32
    %860 = vector.broadcast %c16_i32_359 : i32 to vector<1x256xi32>
    %861 = arith.cmpi slt, %859, %860 : vector<1x256xi32>
    %862 = arith.andi %857, %861 : vector<1x256xi1>
    %c0_i32_360 = arith.constant 0 : i32
    %863 = vector.broadcast %c0_i32_360 : i32 to vector<1x256xi32>
    %864 = arith.addi %1, %863 : vector<1x256xi32>
    %c0_i32_361 = arith.constant 0 : i32
    %865 = vector.broadcast %c0_i32_361 : i32 to vector<1x256xi32>
    %866 = arith.cmpi sge, %864, %865 : vector<1x256xi32>
    %867 = arith.andi %862, %866 : vector<1x256xi1>
    %c0_i32_362 = arith.constant 0 : i32
    %868 = vector.broadcast %c0_i32_362 : i32 to vector<1x256xi32>
    %869 = arith.addi %1, %868 : vector<1x256xi32>
    %c16_i32_363 = arith.constant 16 : i32
    %870 = vector.broadcast %c16_i32_363 : i32 to vector<1x256xi32>
    %871 = arith.cmpi slt, %869, %870 : vector<1x256xi32>
    %872 = arith.andi %867, %871 : vector<1x256xi1>
    %cst_364 = arith.constant 0.000000e+00 : f32
    %873 = vector.shape_cast %872 : vector<1x256xi1> to vector<1x256xi1>
    %874 = vector.broadcast %873 : vector<1x256xi1> to vector<8x256xi1>
    %875 = vector.broadcast %cst_364 : f32 to vector<8x256xf32>
    %876 = arith.select %874, %853, %875 : vector<8x256xi1>, vector<8x256xf32>
    %c24_365 = arith.constant 24 : index
    %c0_366 = arith.constant 0 : index
    %877 = vector.load %arg25[%c24_365, %c0_366] : memref<288x256xf32, #tpu.memory_space<vmem>>, vector<8x256xf32>
    tpu.vector_store %arg25[%c24_365, %c0_366], %876 {strides = array<i32>} : memref<288x256xf32, #tpu.memory_space<vmem>>, vector<8x256xf32>,
    %c32_367 = arith.constant 32 : index
    %c0_368 = arith.constant 0 : index
    %878 = vector.load %arg25[%c32_367, %c0_368] : memref<288x256xf32, #tpu.memory_space<vmem>>, vector<8x256xf32>
    tpu.vector_store %arg25[%c32_367, %c0_368], %293 {strides = array<i32>} : memref<288x256xf32, #tpu.memory_space<vmem>>, vector<8x256xf32>,
    %c253_i32 = arith.constant 253 : i32
    %879 = tpu.dynamic_rotate %293 by %c253_i32 dim 1 : vector<8x256xf32>, i32 -> vector<8x256xf32>
    %c3_i32_369 = arith.constant 3 : i32
    %880 = vector.broadcast %c3_i32_369 : i32 to vector<1x256xi32>
    %881 = arith.addi %0, %880 : vector<1x256xi32>
    %c0_i32_370 = arith.constant 0 : i32
    %882 = vector.broadcast %c0_i32_370 : i32 to vector<1x256xi32>
    %883 = arith.cmpi sge, %881, %882 : vector<1x256xi32>
    %c3_i32_371 = arith.constant 3 : i32
    %884 = vector.broadcast %c3_i32_371 : i32 to vector<1x256xi32>
    %885 = arith.addi %0, %884 : vector<1x256xi32>
    %c16_i32_372 = arith.constant 16 : i32
    %886 = vector.broadcast %c16_i32_372 : i32 to vector<1x256xi32>
    %887 = arith.cmpi slt, %885, %886 : vector<1x256xi32>
    %888 = arith.andi %883, %887 : vector<1x256xi1>
    %c0_i32_373 = arith.constant 0 : i32
    %889 = vector.broadcast %c0_i32_373 : i32 to vector<1x256xi32>
    %890 = arith.addi %1, %889 : vector<1x256xi32>
    %c0_i32_374 = arith.constant 0 : i32
    %891 = vector.broadcast %c0_i32_374 : i32 to vector<1x256xi32>
    %892 = arith.cmpi sge, %890, %891 : vector<1x256xi32>
    %893 = arith.andi %888, %892 : vector<1x256xi1>
    %c0_i32_375 = arith.constant 0 : i32
    %894 = vector.broadcast %c0_i32_375 : i32 to vector<1x256xi32>
    %895 = arith.addi %1, %894 : vector<1x256xi32>
    %c16_i32_376 = arith.constant 16 : i32
    %896 = vector.broadcast %c16_i32_376 : i32 to vector<1x256xi32>
    %897 = arith.cmpi slt, %895, %896 : vector<1x256xi32>
    %898 = arith.andi %893, %897 : vector<1x256xi1>
    %cst_377 = arith.constant 0.000000e+00 : f32
    %899 = vector.shape_cast %898 : vector<1x256xi1> to vector<1x256xi1>
    %900 = vector.broadcast %899 : vector<1x256xi1> to vector<8x256xi1>
    %901 = vector.broadcast %cst_377 : f32 to vector<8x256xf32>
    %902 = arith.select %900, %879, %901 : vector<8x256xi1>, vector<8x256xf32>
    %c40_378 = arith.constant 40 : index
    %c0_379 = arith.constant 0 : index
    %903 = vector.load %arg25[%c40_378, %c0_379] : memref<288x256xf32, #tpu.memory_space<vmem>>, vector<8x256xf32>
    tpu.vector_store %arg25[%c40_378, %c0_379], %902 {strides = array<i32>} : memref<288x256xf32, #tpu.memory_space<vmem>>, vector<8x256xf32>,
    %c211_i32 = arith.constant 211 : i32
    %904 = tpu.dynamic_rotate %293 by %c211_i32 dim 1 : vector<8x256xf32>, i32 -> vector<8x256xf32>
    %c-3_i32_380 = arith.constant -3 : i32
    %905 = vector.broadcast %c-3_i32_380 : i32 to vector<1x256xi32>
    %906 = arith.addi %0, %905 : vector<1x256xi32>
    %c0_i32_381 = arith.constant 0 : i32
    %907 = vector.broadcast %c0_i32_381 : i32 to vector<1x256xi32>
    %908 = arith.cmpi sge, %906, %907 : vector<1x256xi32>
    %c-3_i32_382 = arith.constant -3 : i32
    %909 = vector.broadcast %c-3_i32_382 : i32 to vector<1x256xi32>
    %910 = arith.addi %0, %909 : vector<1x256xi32>
    %c16_i32_383 = arith.constant 16 : i32
    %911 = vector.broadcast %c16_i32_383 : i32 to vector<1x256xi32>
    %912 = arith.cmpi slt, %910, %911 : vector<1x256xi32>
    %913 = arith.andi %908, %912 : vector<1x256xi1>
    %c3_i32_384 = arith.constant 3 : i32
    %914 = vector.broadcast %c3_i32_384 : i32 to vector<1x256xi32>
    %915 = arith.addi %1, %914 : vector<1x256xi32>
    %c0_i32_385 = arith.constant 0 : i32
    %916 = vector.broadcast %c0_i32_385 : i32 to vector<1x256xi32>
    %917 = arith.cmpi sge, %915, %916 : vector<1x256xi32>
    %918 = arith.andi %913, %917 : vector<1x256xi1>
    %c3_i32_386 = arith.constant 3 : i32
    %919 = vector.broadcast %c3_i32_386 : i32 to vector<1x256xi32>
    %920 = arith.addi %1, %919 : vector<1x256xi32>
    %c16_i32_387 = arith.constant 16 : i32
    %921 = vector.broadcast %c16_i32_387 : i32 to vector<1x256xi32>
    %922 = arith.cmpi slt, %920, %921 : vector<1x256xi32>
    %923 = arith.andi %918, %922 : vector<1x256xi1>
    %cst_388 = arith.constant 0.000000e+00 : f32
    %924 = vector.shape_cast %923 : vector<1x256xi1> to vector<1x256xi1>
    %925 = vector.broadcast %924 : vector<1x256xi1> to vector<8x256xi1>
    %926 = vector.broadcast %cst_388 : f32 to vector<8x256xf32>
    %927 = arith.select %925, %904, %926 : vector<8x256xi1>, vector<8x256xf32>
    %c48_389 = arith.constant 48 : index
    %c0_390 = arith.constant 0 : index
    %928 = vector.load %arg25[%c48_389, %c0_390] : memref<288x256xf32, #tpu.memory_space<vmem>>, vector<8x256xf32>
    tpu.vector_store %arg25[%c48_389, %c0_390], %927 {strides = array<i32>} : memref<288x256xf32, #tpu.memory_space<vmem>>, vector<8x256xf32>,
    %c208_i32 = arith.constant 208 : i32
    %929 = tpu.dynamic_rotate %293 by %c208_i32 dim 1 : vector<8x256xf32>, i32 -> vector<8x256xf32>
    %c0_i32_391 = arith.constant 0 : i32
    %930 = vector.broadcast %c0_i32_391 : i32 to vector<1x256xi32>
    %931 = arith.addi %0, %930 : vector<1x256xi32>
    %c0_i32_392 = arith.constant 0 : i32
    %932 = vector.broadcast %c0_i32_392 : i32 to vector<1x256xi32>
    %933 = arith.cmpi sge, %931, %932 : vector<1x256xi32>
    %c0_i32_393 = arith.constant 0 : i32
    %934 = vector.broadcast %c0_i32_393 : i32 to vector<1x256xi32>
    %935 = arith.addi %0, %934 : vector<1x256xi32>
    %c16_i32_394 = arith.constant 16 : i32
    %936 = vector.broadcast %c16_i32_394 : i32 to vector<1x256xi32>
    %937 = arith.cmpi slt, %935, %936 : vector<1x256xi32>
    %938 = arith.andi %933, %937 : vector<1x256xi1>
    %c3_i32_395 = arith.constant 3 : i32
    %939 = vector.broadcast %c3_i32_395 : i32 to vector<1x256xi32>
    %940 = arith.addi %1, %939 : vector<1x256xi32>
    %c0_i32_396 = arith.constant 0 : i32
    %941 = vector.broadcast %c0_i32_396 : i32 to vector<1x256xi32>
    %942 = arith.cmpi sge, %940, %941 : vector<1x256xi32>
    %943 = arith.andi %938, %942 : vector<1x256xi1>
    %c3_i32_397 = arith.constant 3 : i32
    %944 = vector.broadcast %c3_i32_397 : i32 to vector<1x256xi32>
    %945 = arith.addi %1, %944 : vector<1x256xi32>
    %c16_i32_398 = arith.constant 16 : i32
    %946 = vector.broadcast %c16_i32_398 : i32 to vector<1x256xi32>
    %947 = arith.cmpi slt, %945, %946 : vector<1x256xi32>
    %948 = arith.andi %943, %947 : vector<1x256xi1>
    %cst_399 = arith.constant 0.000000e+00 : f32
    %949 = vector.shape_cast %948 : vector<1x256xi1> to vector<1x256xi1>
    %950 = vector.broadcast %949 : vector<1x256xi1> to vector<8x256xi1>
    %951 = vector.broadcast %cst_399 : f32 to vector<8x256xf32>
    %952 = arith.select %950, %929, %951 : vector<8x256xi1>, vector<8x256xf32>
    %c56_400 = arith.constant 56 : index
    %c0_401 = arith.constant 0 : index
    %953 = vector.load %arg25[%c56_400, %c0_401] : memref<288x256xf32, #tpu.memory_space<vmem>>, vector<8x256xf32>
    tpu.vector_store %arg25[%c56_400, %c0_401], %952 {strides = array<i32>} : memref<288x256xf32, #tpu.memory_space<vmem>>, vector<8x256xf32>,
    %c205_i32 = arith.constant 205 : i32
    %954 = tpu.dynamic_rotate %293 by %c205_i32 dim 1 : vector<8x256xf32>, i32 -> vector<8x256xf32>
    %c3_i32_402 = arith.constant 3 : i32
    %955 = vector.broadcast %c3_i32_402 : i32 to vector<1x256xi32>
    %956 = arith.addi %0, %955 : vector<1x256xi32>
    %c0_i32_403 = arith.constant 0 : i32
    %957 = vector.broadcast %c0_i32_403 : i32 to vector<1x256xi32>
    %958 = arith.cmpi sge, %956, %957 : vector<1x256xi32>
    %c3_i32_404 = arith.constant 3 : i32
    %959 = vector.broadcast %c3_i32_404 : i32 to vector<1x256xi32>
    %960 = arith.addi %0, %959 : vector<1x256xi32>
    %c16_i32_405 = arith.constant 16 : i32
    %961 = vector.broadcast %c16_i32_405 : i32 to vector<1x256xi32>
    %962 = arith.cmpi slt, %960, %961 : vector<1x256xi32>
    %963 = arith.andi %958, %962 : vector<1x256xi1>
    %c3_i32_406 = arith.constant 3 : i32
    %964 = vector.broadcast %c3_i32_406 : i32 to vector<1x256xi32>
    %965 = arith.addi %1, %964 : vector<1x256xi32>
    %c0_i32_407 = arith.constant 0 : i32
    %966 = vector.broadcast %c0_i32_407 : i32 to vector<1x256xi32>
    %967 = arith.cmpi sge, %965, %966 : vector<1x256xi32>
    %968 = arith.andi %963, %967 : vector<1x256xi1>
    %c3_i32_408 = arith.constant 3 : i32
    %969 = vector.broadcast %c3_i32_408 : i32 to vector<1x256xi32>
    %970 = arith.addi %1, %969 : vector<1x256xi32>
    %c16_i32_409 = arith.constant 16 : i32
    %971 = vector.broadcast %c16_i32_409 : i32 to vector<1x256xi32>
    %972 = arith.cmpi slt, %970, %971 : vector<1x256xi32>
    %973 = arith.andi %968, %972 : vector<1x256xi1>
    %cst_410 = arith.constant 0.000000e+00 : f32
    %974 = vector.shape_cast %973 : vector<1x256xi1> to vector<1x256xi1>
    %975 = vector.broadcast %974 : vector<1x256xi1> to vector<8x256xi1>
    %976 = vector.broadcast %cst_410 : f32 to vector<8x256xf32>
    %977 = arith.select %975, %954, %976 : vector<8x256xi1>, vector<8x256xf32>
    %c64_411 = arith.constant 64 : index
    %c0_412 = arith.constant 0 : index
    %978 = vector.load %arg25[%c64_411, %c0_412] : memref<288x256xf32, #tpu.memory_space<vmem>>, vector<8x256xf32>
    tpu.vector_store %arg25[%c64_411, %c0_412], %977 {strides = array<i32>} : memref<288x256xf32, #tpu.memory_space<vmem>>, vector<8x256xf32>,
    %cst_413 = arith.constant 0.000000e+00 : f32
    %979 = vector.broadcast %cst_413 : f32 to vector<8x256xf32>
    %c0_414 = arith.constant 0 : index
    %c0_415 = arith.constant 0 : index
    %980 = vector.load %arg11[%c0_414, %c0_415] : memref<8x72xf32, #tpu.memory_space<vmem>>, vector<8x72xf32>
    %c0_416 = arith.constant 0 : index
    %c0_417 = arith.constant 0 : index
    %981 = vector.load %arg25[%c0_416, %c0_417] : memref<288x256xf32, #tpu.memory_space<vmem>>, vector<72x256xf32>
    %cst_418 = arith.constant dense<0.000000e+00> : vector<8x256xf32>
    %982 = tpu.matmul %980, %981, %cst_418 {dimension_numbers = #tpu.dot_dimension_numbers<[1], [0], [0], [1], [0, 0, 1, 1], [], []>} : vector<8x72xf32>, vector<72x256xf32>, vector<8x256xf32> -> vector<8x256xf32>
    %983 = arith.addf %979, %982 : vector<8x256xf32>
    %c0_419 = arith.constant 0 : index
    %c0_420 = arith.constant 0 : index
    %984 = vector.load %arg12[%c0_419, %c0_420] : memref<24x1xf32, #tpu.memory_space<vmem>>, vector<8x1xf32>
    %c8_421 = arith.constant 8 : index
    %c0_422 = arith.constant 0 : index
    %985 = vector.load %arg12[%c8_421, %c0_422] : memref<24x1xf32, #tpu.memory_space<vmem>>, vector<8x1xf32>
    %c16_423 = arith.constant 16 : index
    %c0_424 = arith.constant 0 : index
    %986 = vector.load %arg12[%c16_423, %c0_424] : memref<24x1xf32, #tpu.memory_space<vmem>>, vector<8x1xf32>
    %987 = vector.broadcast %984 : vector<8x1xf32> to vector<8x256xf32>
    %988 = arith.addf %983, %987 : vector<8x256xf32>
    %989 = vector.shape_cast %988 : vector<8x256xf32> to vector<1x8x256xf32>
    %cst_425 = arith.constant dense<0.000000e+00> : vector<1xf32>
    %990 = vector.multi_reduction <add>, %989, %cst_425 [1, 2] : vector<1x8x256xf32> to vector<1xf32>
    %991 = vector.shape_cast %990 : vector<1xf32> to vector<1x1x1xf32>
    %992 = vector.extract %991[0, 0, 0] : f32 from vector<1x1x1xf32>
    %993 = vector.broadcast %992 : f32 to vector<1x1xf32>
    %994 = arith.mulf %988, %988 : vector<8x256xf32>
    %995 = vector.shape_cast %994 : vector<8x256xf32> to vector<1x8x256xf32>
    %cst_426 = arith.constant dense<0.000000e+00> : vector<1xf32>
    %996 = vector.multi_reduction <add>, %995, %cst_426 [1, 2] : vector<1x8x256xf32> to vector<1xf32>
    %997 = vector.shape_cast %996 : vector<1xf32> to vector<1x1x1xf32>
    %998 = vector.extract %997[0, 0, 0] : f32 from vector<1x1x1xf32>
    %999 = vector.broadcast %998 : f32 to vector<1x1xf32>
    %cst_427 = arith.constant 2.048000e+03 : f32
    %1000 = vector.broadcast %cst_427 : f32 to vector<1x1xf32>
    %1001 = arith.divf %993, %1000 : vector<1x1xf32>
    %cst_428 = arith.constant 2.048000e+03 : f32
    %1002 = vector.broadcast %cst_428 : f32 to vector<1x1xf32>
    %1003 = arith.divf %999, %1002 : vector<1x1xf32>
    %1004 = arith.mulf %1001, %1001 : vector<1x1xf32>
    %1005 = arith.subf %1003, %1004 : vector<1x1xf32>
    %1006 = vector.broadcast %1001 : vector<1x1xf32> to vector<8x256xf32>
    %1007 = arith.subf %988, %1006 : vector<8x256xf32>
    %cst_429 = arith.constant 9.99999974E-6 : f32
    %1008 = vector.broadcast %cst_429 : f32 to vector<1x1xf32>
    %1009 = arith.addf %1005, %1008 : vector<1x1xf32>
    %1010 = math.rsqrt %1009 : vector<1x1xf32>
    %1011 = vector.broadcast %1010 : vector<1x1xf32> to vector<8x256xf32>
    %1012 = arith.mulf %1007, %1011 : vector<8x256xf32>
    %1013 = vector.broadcast %985 : vector<8x1xf32> to vector<8x256xf32>
    %1014 = arith.mulf %1012, %1013 : vector<8x256xf32>
    %1015 = vector.broadcast %986 : vector<8x1xf32> to vector<8x256xf32>
    %1016 = arith.addf %1014, %1015 : vector<8x256xf32>
    %cst_430 = arith.constant 0.000000e+00 : f32
    %1017 = vector.broadcast %cst_430 : f32 to vector<8x256xf32>
    %1018 = arith.maximumf %1016, %1017 : vector<8x256xf32>
    %c16_431 = arith.constant 16 : index
    %c0_432 = arith.constant 0 : index
    %1019 = vector.load %arg26[%c16_431, %c0_432] : memref<32x256xf32, #tpu.memory_space<vmem>>, vector<8x256xf32>
    tpu.vector_store %arg26[%c16_431, %c0_432], %1018 {strides = array<i32>} : memref<32x256xf32, #tpu.memory_space<vmem>>, vector<8x256xf32>,
    %c17_i32_433 = arith.constant 17 : i32
    %1020 = tpu.dynamic_rotate %293 by %c17_i32_433 dim 1 : vector<8x256xf32>, i32 -> vector<8x256xf32>
    %c-1_i32_434 = arith.constant -1 : i32
    %1021 = vector.broadcast %c-1_i32_434 : i32 to vector<1x256xi32>
    %1022 = arith.addi %0, %1021 : vector<1x256xi32>
    %c0_i32_435 = arith.constant 0 : i32
    %1023 = vector.broadcast %c0_i32_435 : i32 to vector<1x256xi32>
    %1024 = arith.cmpi sge, %1022, %1023 : vector<1x256xi32>
    %c-1_i32_436 = arith.constant -1 : i32
    %1025 = vector.broadcast %c-1_i32_436 : i32 to vector<1x256xi32>
    %1026 = arith.addi %0, %1025 : vector<1x256xi32>
    %c16_i32_437 = arith.constant 16 : i32
    %1027 = vector.broadcast %c16_i32_437 : i32 to vector<1x256xi32>
    %1028 = arith.cmpi slt, %1026, %1027 : vector<1x256xi32>
    %1029 = arith.andi %1024, %1028 : vector<1x256xi1>
    %c-1_i32_438 = arith.constant -1 : i32
    %1030 = vector.broadcast %c-1_i32_438 : i32 to vector<1x256xi32>
    %1031 = arith.addi %1, %1030 : vector<1x256xi32>
    %c0_i32_439 = arith.constant 0 : i32
    %1032 = vector.broadcast %c0_i32_439 : i32 to vector<1x256xi32>
    %1033 = arith.cmpi sge, %1031, %1032 : vector<1x256xi32>
    %1034 = arith.andi %1029, %1033 : vector<1x256xi1>
    %c-1_i32_440 = arith.constant -1 : i32
    %1035 = vector.broadcast %c-1_i32_440 : i32 to vector<1x256xi32>
    %1036 = arith.addi %1, %1035 : vector<1x256xi32>
    %c16_i32_441 = arith.constant 16 : i32
    %1037 = vector.broadcast %c16_i32_441 : i32 to vector<1x256xi32>
    %1038 = arith.cmpi slt, %1036, %1037 : vector<1x256xi32>
    %1039 = arith.andi %1034, %1038 : vector<1x256xi1>
    %cst_442 = arith.constant 0.000000e+00 : f32
    %1040 = vector.shape_cast %1039 : vector<1x256xi1> to vector<1x256xi1>
    %1041 = vector.broadcast %1040 : vector<1x256xi1> to vector<8x256xi1>
    %1042 = vector.broadcast %cst_442 : f32 to vector<8x256xf32>
    %1043 = arith.select %1041, %1020, %1042 : vector<8x256xi1>, vector<8x256xf32>
    %c0_443 = arith.constant 0 : index
    %c0_444 = arith.constant 0 : index
    %1044 = vector.load %arg25[%c0_443, %c0_444] : memref<288x256xf32, #tpu.memory_space<vmem>>, vector<8x256xf32>
    tpu.vector_store %arg25[%c0_443, %c0_444], %1043 {strides = array<i32>} : memref<288x256xf32, #tpu.memory_space<vmem>>, vector<8x256xf32>,
    %c16_i32_445 = arith.constant 16 : i32
    %1045 = tpu.dynamic_rotate %293 by %c16_i32_445 dim 1 : vector<8x256xf32>, i32 -> vector<8x256xf32>
    %c0_i32_446 = arith.constant 0 : i32
    %1046 = vector.broadcast %c0_i32_446 : i32 to vector<1x256xi32>
    %1047 = arith.addi %0, %1046 : vector<1x256xi32>
    %c0_i32_447 = arith.constant 0 : i32
    %1048 = vector.broadcast %c0_i32_447 : i32 to vector<1x256xi32>
    %1049 = arith.cmpi sge, %1047, %1048 : vector<1x256xi32>
    %c0_i32_448 = arith.constant 0 : i32
    %1050 = vector.broadcast %c0_i32_448 : i32 to vector<1x256xi32>
    %1051 = arith.addi %0, %1050 : vector<1x256xi32>
    %c16_i32_449 = arith.constant 16 : i32
    %1052 = vector.broadcast %c16_i32_449 : i32 to vector<1x256xi32>
    %1053 = arith.cmpi slt, %1051, %1052 : vector<1x256xi32>
    %1054 = arith.andi %1049, %1053 : vector<1x256xi1>
    %c-1_i32_450 = arith.constant -1 : i32
    %1055 = vector.broadcast %c-1_i32_450 : i32 to vector<1x256xi32>
    %1056 = arith.addi %1, %1055 : vector<1x256xi32>
    %c0_i32_451 = arith.constant 0 : i32
    %1057 = vector.broadcast %c0_i32_451 : i32 to vector<1x256xi32>
    %1058 = arith.cmpi sge, %1056, %1057 : vector<1x256xi32>
    %1059 = arith.andi %1054, %1058 : vector<1x256xi1>
    %c-1_i32_452 = arith.constant -1 : i32
    %1060 = vector.broadcast %c-1_i32_452 : i32 to vector<1x256xi32>
    %1061 = arith.addi %1, %1060 : vector<1x256xi32>
    %c16_i32_453 = arith.constant 16 : i32
    %1062 = vector.broadcast %c16_i32_453 : i32 to vector<1x256xi32>
    %1063 = arith.cmpi slt, %1061, %1062 : vector<1x256xi32>
    %1064 = arith.andi %1059, %1063 : vector<1x256xi1>
    %cst_454 = arith.constant 0.000000e+00 : f32
    %1065 = vector.shape_cast %1064 : vector<1x256xi1> to vector<1x256xi1>
    %1066 = vector.broadcast %1065 : vector<1x256xi1> to vector<8x256xi1>
    %1067 = vector.broadcast %cst_454 : f32 to vector<8x256xf32>
    %1068 = arith.select %1066, %1045, %1067 : vector<8x256xi1>, vector<8x256xf32>
    %c8_455 = arith.constant 8 : index
    %c0_456 = arith.constant 0 : index
    %1069 = vector.load %arg25[%c8_455, %c0_456] : memref<288x256xf32, #tpu.memory_space<vmem>>, vector<8x256xf32>
    tpu.vector_store %arg25[%c8_455, %c0_456], %1068 {strides = array<i32>} : memref<288x256xf32, #tpu.memory_space<vmem>>, vector<8x256xf32>,
    %c15_i32_457 = arith.constant 15 : i32
    %1070 = tpu.dynamic_rotate %293 by %c15_i32_457 dim 1 : vector<8x256xf32>, i32 -> vector<8x256xf32>
    %c1_i32_458 = arith.constant 1 : i32
    %1071 = vector.broadcast %c1_i32_458 : i32 to vector<1x256xi32>
    %1072 = arith.addi %0, %1071 : vector<1x256xi32>
    %c0_i32_459 = arith.constant 0 : i32
    %1073 = vector.broadcast %c0_i32_459 : i32 to vector<1x256xi32>
    %1074 = arith.cmpi sge, %1072, %1073 : vector<1x256xi32>
    %c1_i32_460 = arith.constant 1 : i32
    %1075 = vector.broadcast %c1_i32_460 : i32 to vector<1x256xi32>
    %1076 = arith.addi %0, %1075 : vector<1x256xi32>
    %c16_i32_461 = arith.constant 16 : i32
    %1077 = vector.broadcast %c16_i32_461 : i32 to vector<1x256xi32>
    %1078 = arith.cmpi slt, %1076, %1077 : vector<1x256xi32>
    %1079 = arith.andi %1074, %1078 : vector<1x256xi1>
    %c-1_i32_462 = arith.constant -1 : i32
    %1080 = vector.broadcast %c-1_i32_462 : i32 to vector<1x256xi32>
    %1081 = arith.addi %1, %1080 : vector<1x256xi32>
    %c0_i32_463 = arith.constant 0 : i32
    %1082 = vector.broadcast %c0_i32_463 : i32 to vector<1x256xi32>
    %1083 = arith.cmpi sge, %1081, %1082 : vector<1x256xi32>
    %1084 = arith.andi %1079, %1083 : vector<1x256xi1>
    %c-1_i32_464 = arith.constant -1 : i32
    %1085 = vector.broadcast %c-1_i32_464 : i32 to vector<1x256xi32>
    %1086 = arith.addi %1, %1085 : vector<1x256xi32>
    %c16_i32_465 = arith.constant 16 : i32
    %1087 = vector.broadcast %c16_i32_465 : i32 to vector<1x256xi32>
    %1088 = arith.cmpi slt, %1086, %1087 : vector<1x256xi32>
    %1089 = arith.andi %1084, %1088 : vector<1x256xi1>
    %cst_466 = arith.constant 0.000000e+00 : f32
    %1090 = vector.shape_cast %1089 : vector<1x256xi1> to vector<1x256xi1>
    %1091 = vector.broadcast %1090 : vector<1x256xi1> to vector<8x256xi1>
    %1092 = vector.broadcast %cst_466 : f32 to vector<8x256xf32>
    %1093 = arith.select %1091, %1070, %1092 : vector<8x256xi1>, vector<8x256xf32>
    %c16_467 = arith.constant 16 : index
    %c0_468 = arith.constant 0 : index
    %1094 = vector.load %arg25[%c16_467, %c0_468] : memref<288x256xf32, #tpu.memory_space<vmem>>, vector<8x256xf32>
    tpu.vector_store %arg25[%c16_467, %c0_468], %1093 {strides = array<i32>} : memref<288x256xf32, #tpu.memory_space<vmem>>, vector<8x256xf32>,
    %c1_i32_469 = arith.constant 1 : i32
    %1095 = tpu.dynamic_rotate %293 by %c1_i32_469 dim 1 : vector<8x256xf32>, i32 -> vector<8x256xf32>
    %c-1_i32_470 = arith.constant -1 : i32
    %1096 = vector.broadcast %c-1_i32_470 : i32 to vector<1x256xi32>
    %1097 = arith.addi %0, %1096 : vector<1x256xi32>
    %c0_i32_471 = arith.constant 0 : i32
    %1098 = vector.broadcast %c0_i32_471 : i32 to vector<1x256xi32>
    %1099 = arith.cmpi sge, %1097, %1098 : vector<1x256xi32>
    %c-1_i32_472 = arith.constant -1 : i32
    %1100 = vector.broadcast %c-1_i32_472 : i32 to vector<1x256xi32>
    %1101 = arith.addi %0, %1100 : vector<1x256xi32>
    %c16_i32_473 = arith.constant 16 : i32
    %1102 = vector.broadcast %c16_i32_473 : i32 to vector<1x256xi32>
    %1103 = arith.cmpi slt, %1101, %1102 : vector<1x256xi32>
    %1104 = arith.andi %1099, %1103 : vector<1x256xi1>
    %c0_i32_474 = arith.constant 0 : i32
    %1105 = vector.broadcast %c0_i32_474 : i32 to vector<1x256xi32>
    %1106 = arith.addi %1, %1105 : vector<1x256xi32>
    %c0_i32_475 = arith.constant 0 : i32
    %1107 = vector.broadcast %c0_i32_475 : i32 to vector<1x256xi32>
    %1108 = arith.cmpi sge, %1106, %1107 : vector<1x256xi32>
    %1109 = arith.andi %1104, %1108 : vector<1x256xi1>
    %c0_i32_476 = arith.constant 0 : i32
    %1110 = vector.broadcast %c0_i32_476 : i32 to vector<1x256xi32>
    %1111 = arith.addi %1, %1110 : vector<1x256xi32>
    %c16_i32_477 = arith.constant 16 : i32
    %1112 = vector.broadcast %c16_i32_477 : i32 to vector<1x256xi32>
    %1113 = arith.cmpi slt, %1111, %1112 : vector<1x256xi32>
    %1114 = arith.andi %1109, %1113 : vector<1x256xi1>
    %cst_478 = arith.constant 0.000000e+00 : f32
    %1115 = vector.shape_cast %1114 : vector<1x256xi1> to vector<1x256xi1>
    %1116 = vector.broadcast %1115 : vector<1x256xi1> to vector<8x256xi1>
    %1117 = vector.broadcast %cst_478 : f32 to vector<8x256xf32>
    %1118 = arith.select %1116, %1095, %1117 : vector<8x256xi1>, vector<8x256xf32>
    %c24_479 = arith.constant 24 : index
    %c0_480 = arith.constant 0 : index
    %1119 = vector.load %arg25[%c24_479, %c0_480] : memref<288x256xf32, #tpu.memory_space<vmem>>, vector<8x256xf32>
    tpu.vector_store %arg25[%c24_479, %c0_480], %1118 {strides = array<i32>} : memref<288x256xf32, #tpu.memory_space<vmem>>, vector<8x256xf32>,
    %c32_481 = arith.constant 32 : index
    %c0_482 = arith.constant 0 : index
    %1120 = vector.load %arg25[%c32_481, %c0_482] : memref<288x256xf32, #tpu.memory_space<vmem>>, vector<8x256xf32>
    tpu.vector_store %arg25[%c32_481, %c0_482], %293 {strides = array<i32>} : memref<288x256xf32, #tpu.memory_space<vmem>>, vector<8x256xf32>,
    %c255_i32_483 = arith.constant 255 : i32
    %1121 = tpu.dynamic_rotate %293 by %c255_i32_483 dim 1 : vector<8x256xf32>, i32 -> vector<8x256xf32>
    %c1_i32_484 = arith.constant 1 : i32
    %1122 = vector.broadcast %c1_i32_484 : i32 to vector<1x256xi32>
    %1123 = arith.addi %0, %1122 : vector<1x256xi32>
    %c0_i32_485 = arith.constant 0 : i32
    %1124 = vector.broadcast %c0_i32_485 : i32 to vector<1x256xi32>
    %1125 = arith.cmpi sge, %1123, %1124 : vector<1x256xi32>
    %c1_i32_486 = arith.constant 1 : i32
    %1126 = vector.broadcast %c1_i32_486 : i32 to vector<1x256xi32>
    %1127 = arith.addi %0, %1126 : vector<1x256xi32>
    %c16_i32_487 = arith.constant 16 : i32
    %1128 = vector.broadcast %c16_i32_487 : i32 to vector<1x256xi32>
    %1129 = arith.cmpi slt, %1127, %1128 : vector<1x256xi32>
    %1130 = arith.andi %1125, %1129 : vector<1x256xi1>
    %c0_i32_488 = arith.constant 0 : i32
    %1131 = vector.broadcast %c0_i32_488 : i32 to vector<1x256xi32>
    %1132 = arith.addi %1, %1131 : vector<1x256xi32>
    %c0_i32_489 = arith.constant 0 : i32
    %1133 = vector.broadcast %c0_i32_489 : i32 to vector<1x256xi32>
    %1134 = arith.cmpi sge, %1132, %1133 : vector<1x256xi32>
    %1135 = arith.andi %1130, %1134 : vector<1x256xi1>
    %c0_i32_490 = arith.constant 0 : i32
    %1136 = vector.broadcast %c0_i32_490 : i32 to vector<1x256xi32>
    %1137 = arith.addi %1, %1136 : vector<1x256xi32>
    %c16_i32_491 = arith.constant 16 : i32
    %1138 = vector.broadcast %c16_i32_491 : i32 to vector<1x256xi32>
    %1139 = arith.cmpi slt, %1137, %1138 : vector<1x256xi32>
    %1140 = arith.andi %1135, %1139 : vector<1x256xi1>
    %cst_492 = arith.constant 0.000000e+00 : f32
    %1141 = vector.shape_cast %1140 : vector<1x256xi1> to vector<1x256xi1>
    %1142 = vector.broadcast %1141 : vector<1x256xi1> to vector<8x256xi1>
    %1143 = vector.broadcast %cst_492 : f32 to vector<8x256xf32>
    %1144 = arith.select %1142, %1121, %1143 : vector<8x256xi1>, vector<8x256xf32>
    %c40_493 = arith.constant 40 : index
    %c0_494 = arith.constant 0 : index
    %1145 = vector.load %arg25[%c40_493, %c0_494] : memref<288x256xf32, #tpu.memory_space<vmem>>, vector<8x256xf32>
    tpu.vector_store %arg25[%c40_493, %c0_494], %1144 {strides = array<i32>} : memref<288x256xf32, #tpu.memory_space<vmem>>, vector<8x256xf32>,
    %c241_i32_495 = arith.constant 241 : i32
    %1146 = tpu.dynamic_rotate %293 by %c241_i32_495 dim 1 : vector<8x256xf32>, i32 -> vector<8x256xf32>
    %c-1_i32_496 = arith.constant -1 : i32
    %1147 = vector.broadcast %c-1_i32_496 : i32 to vector<1x256xi32>
    %1148 = arith.addi %0, %1147 : vector<1x256xi32>
    %c0_i32_497 = arith.constant 0 : i32
    %1149 = vector.broadcast %c0_i32_497 : i32 to vector<1x256xi32>
    %1150 = arith.cmpi sge, %1148, %1149 : vector<1x256xi32>
    %c-1_i32_498 = arith.constant -1 : i32
    %1151 = vector.broadcast %c-1_i32_498 : i32 to vector<1x256xi32>
    %1152 = arith.addi %0, %1151 : vector<1x256xi32>
    %c16_i32_499 = arith.constant 16 : i32
    %1153 = vector.broadcast %c16_i32_499 : i32 to vector<1x256xi32>
    %1154 = arith.cmpi slt, %1152, %1153 : vector<1x256xi32>
    %1155 = arith.andi %1150, %1154 : vector<1x256xi1>
    %c1_i32_500 = arith.constant 1 : i32
    %1156 = vector.broadcast %c1_i32_500 : i32 to vector<1x256xi32>
    %1157 = arith.addi %1, %1156 : vector<1x256xi32>
    %c0_i32_501 = arith.constant 0 : i32
    %1158 = vector.broadcast %c0_i32_501 : i32 to vector<1x256xi32>
    %1159 = arith.cmpi sge, %1157, %1158 : vector<1x256xi32>
    %1160 = arith.andi %1155, %1159 : vector<1x256xi1>
    %c1_i32_502 = arith.constant 1 : i32
    %1161 = vector.broadcast %c1_i32_502 : i32 to vector<1x256xi32>
    %1162 = arith.addi %1, %1161 : vector<1x256xi32>
    %c16_i32_503 = arith.constant 16 : i32
    %1163 = vector.broadcast %c16_i32_503 : i32 to vector<1x256xi32>
    %1164 = arith.cmpi slt, %1162, %1163 : vector<1x256xi32>
    %1165 = arith.andi %1160, %1164 : vector<1x256xi1>
    %cst_504 = arith.constant 0.000000e+00 : f32
    %1166 = vector.shape_cast %1165 : vector<1x256xi1> to vector<1x256xi1>
    %1167 = vector.broadcast %1166 : vector<1x256xi1> to vector<8x256xi1>
    %1168 = vector.broadcast %cst_504 : f32 to vector<8x256xf32>
    %1169 = arith.select %1167, %1146, %1168 : vector<8x256xi1>, vector<8x256xf32>
    %c48_505 = arith.constant 48 : index
    %c0_506 = arith.constant 0 : index
    %1170 = vector.load %arg25[%c48_505, %c0_506] : memref<288x256xf32, #tpu.memory_space<vmem>>, vector<8x256xf32>
    tpu.vector_store %arg25[%c48_505, %c0_506], %1169 {strides = array<i32>} : memref<288x256xf32, #tpu.memory_space<vmem>>, vector<8x256xf32>,
    %c240_i32_507 = arith.constant 240 : i32
    %1171 = tpu.dynamic_rotate %293 by %c240_i32_507 dim 1 : vector<8x256xf32>, i32 -> vector<8x256xf32>
    %c0_i32_508 = arith.constant 0 : i32
    %1172 = vector.broadcast %c0_i32_508 : i32 to vector<1x256xi32>
    %1173 = arith.addi %0, %1172 : vector<1x256xi32>
    %c0_i32_509 = arith.constant 0 : i32
    %1174 = vector.broadcast %c0_i32_509 : i32 to vector<1x256xi32>
    %1175 = arith.cmpi sge, %1173, %1174 : vector<1x256xi32>
    %c0_i32_510 = arith.constant 0 : i32
    %1176 = vector.broadcast %c0_i32_510 : i32 to vector<1x256xi32>
    %1177 = arith.addi %0, %1176 : vector<1x256xi32>
    %c16_i32_511 = arith.constant 16 : i32
    %1178 = vector.broadcast %c16_i32_511 : i32 to vector<1x256xi32>
    %1179 = arith.cmpi slt, %1177, %1178 : vector<1x256xi32>
    %1180 = arith.andi %1175, %1179 : vector<1x256xi1>
    %c1_i32_512 = arith.constant 1 : i32
    %1181 = vector.broadcast %c1_i32_512 : i32 to vector<1x256xi32>
    %1182 = arith.addi %1, %1181 : vector<1x256xi32>
    %c0_i32_513 = arith.constant 0 : i32
    %1183 = vector.broadcast %c0_i32_513 : i32 to vector<1x256xi32>
    %1184 = arith.cmpi sge, %1182, %1183 : vector<1x256xi32>
    %1185 = arith.andi %1180, %1184 : vector<1x256xi1>
    %c1_i32_514 = arith.constant 1 : i32
    %1186 = vector.broadcast %c1_i32_514 : i32 to vector<1x256xi32>
    %1187 = arith.addi %1, %1186 : vector<1x256xi32>
    %c16_i32_515 = arith.constant 16 : i32
    %1188 = vector.broadcast %c16_i32_515 : i32 to vector<1x256xi32>
    %1189 = arith.cmpi slt, %1187, %1188 : vector<1x256xi32>
    %1190 = arith.andi %1185, %1189 : vector<1x256xi1>
    %cst_516 = arith.constant 0.000000e+00 : f32
    %1191 = vector.shape_cast %1190 : vector<1x256xi1> to vector<1x256xi1>
    %1192 = vector.broadcast %1191 : vector<1x256xi1> to vector<8x256xi1>
    %1193 = vector.broadcast %cst_516 : f32 to vector<8x256xf32>
    %1194 = arith.select %1192, %1171, %1193 : vector<8x256xi1>, vector<8x256xf32>
    %c56_517 = arith.constant 56 : index
    %c0_518 = arith.constant 0 : index
    %1195 = vector.load %arg25[%c56_517, %c0_518] : memref<288x256xf32, #tpu.memory_space<vmem>>, vector<8x256xf32>
    tpu.vector_store %arg25[%c56_517, %c0_518], %1194 {strides = array<i32>} : memref<288x256xf32, #tpu.memory_space<vmem>>, vector<8x256xf32>,
    %c239_i32_519 = arith.constant 239 : i32
    %1196 = tpu.dynamic_rotate %293 by %c239_i32_519 dim 1 : vector<8x256xf32>, i32 -> vector<8x256xf32>
    %c1_i32_520 = arith.constant 1 : i32
    %1197 = vector.broadcast %c1_i32_520 : i32 to vector<1x256xi32>
    %1198 = arith.addi %0, %1197 : vector<1x256xi32>
    %c0_i32_521 = arith.constant 0 : i32
    %1199 = vector.broadcast %c0_i32_521 : i32 to vector<1x256xi32>
    %1200 = arith.cmpi sge, %1198, %1199 : vector<1x256xi32>
    %c1_i32_522 = arith.constant 1 : i32
    %1201 = vector.broadcast %c1_i32_522 : i32 to vector<1x256xi32>
    %1202 = arith.addi %0, %1201 : vector<1x256xi32>
    %c16_i32_523 = arith.constant 16 : i32
    %1203 = vector.broadcast %c16_i32_523 : i32 to vector<1x256xi32>
    %1204 = arith.cmpi slt, %1202, %1203 : vector<1x256xi32>
    %1205 = arith.andi %1200, %1204 : vector<1x256xi1>
    %c1_i32_524 = arith.constant 1 : i32
    %1206 = vector.broadcast %c1_i32_524 : i32 to vector<1x256xi32>
    %1207 = arith.addi %1, %1206 : vector<1x256xi32>
    %c0_i32_525 = arith.constant 0 : i32
    %1208 = vector.broadcast %c0_i32_525 : i32 to vector<1x256xi32>
    %1209 = arith.cmpi sge, %1207, %1208 : vector<1x256xi32>
    %1210 = arith.andi %1205, %1209 : vector<1x256xi1>
    %c1_i32_526 = arith.constant 1 : i32
    %1211 = vector.broadcast %c1_i32_526 : i32 to vector<1x256xi32>
    %1212 = arith.addi %1, %1211 : vector<1x256xi32>
    %c16_i32_527 = arith.constant 16 : i32
    %1213 = vector.broadcast %c16_i32_527 : i32 to vector<1x256xi32>
    %1214 = arith.cmpi slt, %1212, %1213 : vector<1x256xi32>
    %1215 = arith.andi %1210, %1214 : vector<1x256xi1>
    %cst_528 = arith.constant 0.000000e+00 : f32
    %1216 = vector.shape_cast %1215 : vector<1x256xi1> to vector<1x256xi1>
    %1217 = vector.broadcast %1216 : vector<1x256xi1> to vector<8x256xi1>
    %1218 = vector.broadcast %cst_528 : f32 to vector<8x256xf32>
    %1219 = arith.select %1217, %1196, %1218 : vector<8x256xi1>, vector<8x256xf32>
    %c64_529 = arith.constant 64 : index
    %c0_530 = arith.constant 0 : index
    %1220 = vector.load %arg25[%c64_529, %c0_530] : memref<288x256xf32, #tpu.memory_space<vmem>>, vector<8x256xf32>
    tpu.vector_store %arg25[%c64_529, %c0_530], %1219 {strides = array<i32>} : memref<288x256xf32, #tpu.memory_space<vmem>>, vector<8x256xf32>,
    %cst_531 = arith.constant 0.000000e+00 : f32
    %1221 = vector.broadcast %cst_531 : f32 to vector<8x256xf32>
    %c0_532 = arith.constant 0 : index
    %c0_533 = arith.constant 0 : index
    %1222 = vector.load %arg13[%c0_532, %c0_533] : memref<8x72xf32, #tpu.memory_space<vmem>>, vector<8x72xf32>
    %c0_534 = arith.constant 0 : index
    %c0_535 = arith.constant 0 : index
    %1223 = vector.load %arg25[%c0_534, %c0_535] : memref<288x256xf32, #tpu.memory_space<vmem>>, vector<72x256xf32>
    %cst_536 = arith.constant dense<0.000000e+00> : vector<8x256xf32>
    %1224 = tpu.matmul %1222, %1223, %cst_536 {dimension_numbers = #tpu.dot_dimension_numbers<[1], [0], [0], [1], [0, 0, 1, 1], [], []>} : vector<8x72xf32>, vector<72x256xf32>, vector<8x256xf32> -> vector<8x256xf32>
    %1225 = arith.addf %1221, %1224 : vector<8x256xf32>
    %c0_537 = arith.constant 0 : index
    %c0_538 = arith.constant 0 : index
    %1226 = vector.load %arg14[%c0_537, %c0_538] : memref<24x1xf32, #tpu.memory_space<vmem>>, vector<8x1xf32>
    %c8_539 = arith.constant 8 : index
    %c0_540 = arith.constant 0 : index
    %1227 = vector.load %arg14[%c8_539, %c0_540] : memref<24x1xf32, #tpu.memory_space<vmem>>, vector<8x1xf32>
    %c16_541 = arith.constant 16 : index
    %c0_542 = arith.constant 0 : index
    %1228 = vector.load %arg14[%c16_541, %c0_542] : memref<24x1xf32, #tpu.memory_space<vmem>>, vector<8x1xf32>
    %1229 = vector.broadcast %1226 : vector<8x1xf32> to vector<8x256xf32>
    %1230 = arith.addf %1225, %1229 : vector<8x256xf32>
    %1231 = vector.shape_cast %1230 : vector<8x256xf32> to vector<1x8x256xf32>
    %cst_543 = arith.constant dense<0.000000e+00> : vector<1xf32>
    %1232 = vector.multi_reduction <add>, %1231, %cst_543 [1, 2] : vector<1x8x256xf32> to vector<1xf32>
    %1233 = vector.shape_cast %1232 : vector<1xf32> to vector<1x1x1xf32>
    %1234 = vector.extract %1233[0, 0, 0] : f32 from vector<1x1x1xf32>
    %1235 = vector.broadcast %1234 : f32 to vector<1x1xf32>
    %1236 = arith.mulf %1230, %1230 : vector<8x256xf32>
    %1237 = vector.shape_cast %1236 : vector<8x256xf32> to vector<1x8x256xf32>
    %cst_544 = arith.constant dense<0.000000e+00> : vector<1xf32>
    %1238 = vector.multi_reduction <add>, %1237, %cst_544 [1, 2] : vector<1x8x256xf32> to vector<1xf32>
    %1239 = vector.shape_cast %1238 : vector<1xf32> to vector<1x1x1xf32>
    %1240 = vector.extract %1239[0, 0, 0] : f32 from vector<1x1x1xf32>
    %1241 = vector.broadcast %1240 : f32 to vector<1x1xf32>
    %cst_545 = arith.constant 2.048000e+03 : f32
    %1242 = vector.broadcast %cst_545 : f32 to vector<1x1xf32>
    %1243 = arith.divf %1235, %1242 : vector<1x1xf32>
    %cst_546 = arith.constant 2.048000e+03 : f32
    %1244 = vector.broadcast %cst_546 : f32 to vector<1x1xf32>
    %1245 = arith.divf %1241, %1244 : vector<1x1xf32>
    %1246 = arith.mulf %1243, %1243 : vector<1x1xf32>
    %1247 = arith.subf %1245, %1246 : vector<1x1xf32>
    %1248 = vector.broadcast %1243 : vector<1x1xf32> to vector<8x256xf32>
    %1249 = arith.subf %1230, %1248 : vector<8x256xf32>
    %cst_547 = arith.constant 9.99999974E-6 : f32
    %1250 = vector.broadcast %cst_547 : f32 to vector<1x1xf32>
    %1251 = arith.addf %1247, %1250 : vector<1x1xf32>
    %1252 = math.rsqrt %1251 : vector<1x1xf32>
    %1253 = vector.broadcast %1252 : vector<1x1xf32> to vector<8x256xf32>
    %1254 = arith.mulf %1249, %1253 : vector<8x256xf32>
    %1255 = vector.broadcast %1227 : vector<8x1xf32> to vector<8x256xf32>
    %1256 = arith.mulf %1254, %1255 : vector<8x256xf32>
    %1257 = vector.broadcast %1228 : vector<8x1xf32> to vector<8x256xf32>
    %1258 = arith.addf %1256, %1257 : vector<8x256xf32>
    %cst_548 = arith.constant 0.000000e+00 : f32
    %1259 = vector.broadcast %cst_548 : f32 to vector<8x256xf32>
    %1260 = arith.maximumf %1258, %1259 : vector<8x256xf32>
    %c24_549 = arith.constant 24 : index
    %c0_550 = arith.constant 0 : index
    %1261 = vector.load %arg26[%c24_549, %c0_550] : memref<32x256xf32, #tpu.memory_space<vmem>>, vector<8x256xf32>
    tpu.vector_store %arg26[%c24_549, %c0_550], %1260 {strides = array<i32>} : memref<32x256xf32, #tpu.memory_space<vmem>>, vector<8x256xf32>,
    %c0_551 = arith.constant 0 : index
    %c0_552 = arith.constant 0 : index
    %1262 = vector.load %arg26[%c0_551, %c0_552] : memref<32x256xf32, #tpu.memory_space<vmem>>, vector<32x256xf32>
    %c17_i32_553 = arith.constant 17 : i32
    %1263 = tpu.dynamic_rotate %1262 by %c17_i32_553 dim 1 : vector<32x256xf32>, i32 -> vector<32x256xf32>
    %c-1_i32_554 = arith.constant -1 : i32
    %1264 = vector.broadcast %c-1_i32_554 : i32 to vector<1x256xi32>
    %1265 = arith.addi %0, %1264 : vector<1x256xi32>
    %c0_i32_555 = arith.constant 0 : i32
    %1266 = vector.broadcast %c0_i32_555 : i32 to vector<1x256xi32>
    %1267 = arith.cmpi sge, %1265, %1266 : vector<1x256xi32>
    %c-1_i32_556 = arith.constant -1 : i32
    %1268 = vector.broadcast %c-1_i32_556 : i32 to vector<1x256xi32>
    %1269 = arith.addi %0, %1268 : vector<1x256xi32>
    %c16_i32_557 = arith.constant 16 : i32
    %1270 = vector.broadcast %c16_i32_557 : i32 to vector<1x256xi32>
    %1271 = arith.cmpi slt, %1269, %1270 : vector<1x256xi32>
    %1272 = arith.andi %1267, %1271 : vector<1x256xi1>
    %c-1_i32_558 = arith.constant -1 : i32
    %1273 = vector.broadcast %c-1_i32_558 : i32 to vector<1x256xi32>
    %1274 = arith.addi %1, %1273 : vector<1x256xi32>
    %c0_i32_559 = arith.constant 0 : i32
    %1275 = vector.broadcast %c0_i32_559 : i32 to vector<1x256xi32>
    %1276 = arith.cmpi sge, %1274, %1275 : vector<1x256xi32>
    %1277 = arith.andi %1272, %1276 : vector<1x256xi1>
    %c-1_i32_560 = arith.constant -1 : i32
    %1278 = vector.broadcast %c-1_i32_560 : i32 to vector<1x256xi32>
    %1279 = arith.addi %1, %1278 : vector<1x256xi32>
    %c16_i32_561 = arith.constant 16 : i32
    %1280 = vector.broadcast %c16_i32_561 : i32 to vector<1x256xi32>
    %1281 = arith.cmpi slt, %1279, %1280 : vector<1x256xi32>
    %1282 = arith.andi %1277, %1281 : vector<1x256xi1>
    %cst_562 = arith.constant 0.000000e+00 : f32
    %1283 = vector.shape_cast %1282 : vector<1x256xi1> to vector<1x256xi1>
    %1284 = vector.broadcast %1283 : vector<1x256xi1> to vector<32x256xi1>
    %1285 = vector.broadcast %cst_562 : f32 to vector<32x256xf32>
    %1286 = arith.select %1284, %1263, %1285 : vector<32x256xi1>, vector<32x256xf32>
    %c0_563 = arith.constant 0 : index
    %c0_564 = arith.constant 0 : index
    %1287 = vector.load %arg25[%c0_563, %c0_564] : memref<288x256xf32, #tpu.memory_space<vmem>>, vector<32x256xf32>
    tpu.vector_store %arg25[%c0_563, %c0_564], %1286 {strides = array<i32>} : memref<288x256xf32, #tpu.memory_space<vmem>>, vector<32x256xf32>,
    %c16_i32_565 = arith.constant 16 : i32
    %1288 = tpu.dynamic_rotate %1262 by %c16_i32_565 dim 1 : vector<32x256xf32>, i32 -> vector<32x256xf32>
    %c0_i32_566 = arith.constant 0 : i32
    %1289 = vector.broadcast %c0_i32_566 : i32 to vector<1x256xi32>
    %1290 = arith.addi %0, %1289 : vector<1x256xi32>
    %c0_i32_567 = arith.constant 0 : i32
    %1291 = vector.broadcast %c0_i32_567 : i32 to vector<1x256xi32>
    %1292 = arith.cmpi sge, %1290, %1291 : vector<1x256xi32>
    %c0_i32_568 = arith.constant 0 : i32
    %1293 = vector.broadcast %c0_i32_568 : i32 to vector<1x256xi32>
    %1294 = arith.addi %0, %1293 : vector<1x256xi32>
    %c16_i32_569 = arith.constant 16 : i32
    %1295 = vector.broadcast %c16_i32_569 : i32 to vector<1x256xi32>
    %1296 = arith.cmpi slt, %1294, %1295 : vector<1x256xi32>
    %1297 = arith.andi %1292, %1296 : vector<1x256xi1>
    %c-1_i32_570 = arith.constant -1 : i32
    %1298 = vector.broadcast %c-1_i32_570 : i32 to vector<1x256xi32>
    %1299 = arith.addi %1, %1298 : vector<1x256xi32>
    %c0_i32_571 = arith.constant 0 : i32
    %1300 = vector.broadcast %c0_i32_571 : i32 to vector<1x256xi32>
    %1301 = arith.cmpi sge, %1299, %1300 : vector<1x256xi32>
    %1302 = arith.andi %1297, %1301 : vector<1x256xi1>
    %c-1_i32_572 = arith.constant -1 : i32
    %1303 = vector.broadcast %c-1_i32_572 : i32 to vector<1x256xi32>
    %1304 = arith.addi %1, %1303 : vector<1x256xi32>
    %c16_i32_573 = arith.constant 16 : i32
    %1305 = vector.broadcast %c16_i32_573 : i32 to vector<1x256xi32>
    %1306 = arith.cmpi slt, %1304, %1305 : vector<1x256xi32>
    %1307 = arith.andi %1302, %1306 : vector<1x256xi1>
    %cst_574 = arith.constant 0.000000e+00 : f32
    %1308 = vector.shape_cast %1307 : vector<1x256xi1> to vector<1x256xi1>
    %1309 = vector.broadcast %1308 : vector<1x256xi1> to vector<32x256xi1>
    %1310 = vector.broadcast %cst_574 : f32 to vector<32x256xf32>
    %1311 = arith.select %1309, %1288, %1310 : vector<32x256xi1>, vector<32x256xf32>
    %c32_575 = arith.constant 32 : index
    %c0_576 = arith.constant 0 : index
    %1312 = vector.load %arg25[%c32_575, %c0_576] : memref<288x256xf32, #tpu.memory_space<vmem>>, vector<32x256xf32>
    tpu.vector_store %arg25[%c32_575, %c0_576], %1311 {strides = array<i32>} : memref<288x256xf32, #tpu.memory_space<vmem>>, vector<32x256xf32>,
    %c15_i32_577 = arith.constant 15 : i32
    %1313 = tpu.dynamic_rotate %1262 by %c15_i32_577 dim 1 : vector<32x256xf32>, i32 -> vector<32x256xf32>
    %c1_i32_578 = arith.constant 1 : i32
    %1314 = vector.broadcast %c1_i32_578 : i32 to vector<1x256xi32>
    %1315 = arith.addi %0, %1314 : vector<1x256xi32>
    %c0_i32_579 = arith.constant 0 : i32
    %1316 = vector.broadcast %c0_i32_579 : i32 to vector<1x256xi32>
    %1317 = arith.cmpi sge, %1315, %1316 : vector<1x256xi32>
    %c1_i32_580 = arith.constant 1 : i32
    %1318 = vector.broadcast %c1_i32_580 : i32 to vector<1x256xi32>
    %1319 = arith.addi %0, %1318 : vector<1x256xi32>
    %c16_i32_581 = arith.constant 16 : i32
    %1320 = vector.broadcast %c16_i32_581 : i32 to vector<1x256xi32>
    %1321 = arith.cmpi slt, %1319, %1320 : vector<1x256xi32>
    %1322 = arith.andi %1317, %1321 : vector<1x256xi1>
    %c-1_i32_582 = arith.constant -1 : i32
    %1323 = vector.broadcast %c-1_i32_582 : i32 to vector<1x256xi32>
    %1324 = arith.addi %1, %1323 : vector<1x256xi32>
    %c0_i32_583 = arith.constant 0 : i32
    %1325 = vector.broadcast %c0_i32_583 : i32 to vector<1x256xi32>
    %1326 = arith.cmpi sge, %1324, %1325 : vector<1x256xi32>
    %1327 = arith.andi %1322, %1326 : vector<1x256xi1>
    %c-1_i32_584 = arith.constant -1 : i32
    %1328 = vector.broadcast %c-1_i32_584 : i32 to vector<1x256xi32>
    %1329 = arith.addi %1, %1328 : vector<1x256xi32>
    %c16_i32_585 = arith.constant 16 : i32
    %1330 = vector.broadcast %c16_i32_585 : i32 to vector<1x256xi32>
    %1331 = arith.cmpi slt, %1329, %1330 : vector<1x256xi32>
    %1332 = arith.andi %1327, %1331 : vector<1x256xi1>
    %cst_586 = arith.constant 0.000000e+00 : f32
    %1333 = vector.shape_cast %1332 : vector<1x256xi1> to vector<1x256xi1>
    %1334 = vector.broadcast %1333 : vector<1x256xi1> to vector<32x256xi1>
    %1335 = vector.broadcast %cst_586 : f32 to vector<32x256xf32>
    %1336 = arith.select %1334, %1313, %1335 : vector<32x256xi1>, vector<32x256xf32>
    %c64_587 = arith.constant 64 : index
    %c0_588 = arith.constant 0 : index
    %1337 = vector.load %arg25[%c64_587, %c0_588] : memref<288x256xf32, #tpu.memory_space<vmem>>, vector<32x256xf32>
    tpu.vector_store %arg25[%c64_587, %c0_588], %1336 {strides = array<i32>} : memref<288x256xf32, #tpu.memory_space<vmem>>, vector<32x256xf32>,
    %c1_i32_589 = arith.constant 1 : i32
    %1338 = tpu.dynamic_rotate %1262 by %c1_i32_589 dim 1 : vector<32x256xf32>, i32 -> vector<32x256xf32>
    %c-1_i32_590 = arith.constant -1 : i32
    %1339 = vector.broadcast %c-1_i32_590 : i32 to vector<1x256xi32>
    %1340 = arith.addi %0, %1339 : vector<1x256xi32>
    %c0_i32_591 = arith.constant 0 : i32
    %1341 = vector.broadcast %c0_i32_591 : i32 to vector<1x256xi32>
    %1342 = arith.cmpi sge, %1340, %1341 : vector<1x256xi32>
    %c-1_i32_592 = arith.constant -1 : i32
    %1343 = vector.broadcast %c-1_i32_592 : i32 to vector<1x256xi32>
    %1344 = arith.addi %0, %1343 : vector<1x256xi32>
    %c16_i32_593 = arith.constant 16 : i32
    %1345 = vector.broadcast %c16_i32_593 : i32 to vector<1x256xi32>
    %1346 = arith.cmpi slt, %1344, %1345 : vector<1x256xi32>
    %1347 = arith.andi %1342, %1346 : vector<1x256xi1>
    %c0_i32_594 = arith.constant 0 : i32
    %1348 = vector.broadcast %c0_i32_594 : i32 to vector<1x256xi32>
    %1349 = arith.addi %1, %1348 : vector<1x256xi32>
    %c0_i32_595 = arith.constant 0 : i32
    %1350 = vector.broadcast %c0_i32_595 : i32 to vector<1x256xi32>
    %1351 = arith.cmpi sge, %1349, %1350 : vector<1x256xi32>
    %1352 = arith.andi %1347, %1351 : vector<1x256xi1>
    %c0_i32_596 = arith.constant 0 : i32
    %1353 = vector.broadcast %c0_i32_596 : i32 to vector<1x256xi32>
    %1354 = arith.addi %1, %1353 : vector<1x256xi32>
    %c16_i32_597 = arith.constant 16 : i32
    %1355 = vector.broadcast %c16_i32_597 : i32 to vector<1x256xi32>
    %1356 = arith.cmpi slt, %1354, %1355 : vector<1x256xi32>
    %1357 = arith.andi %1352, %1356 : vector<1x256xi1>
    %cst_598 = arith.constant 0.000000e+00 : f32
    %1358 = vector.shape_cast %1357 : vector<1x256xi1> to vector<1x256xi1>
    %1359 = vector.broadcast %1358 : vector<1x256xi1> to vector<32x256xi1>
    %1360 = vector.broadcast %cst_598 : f32 to vector<32x256xf32>
    %1361 = arith.select %1359, %1338, %1360 : vector<32x256xi1>, vector<32x256xf32>
    %c96 = arith.constant 96 : index
    %c0_599 = arith.constant 0 : index
    %1362 = vector.load %arg25[%c96, %c0_599] : memref<288x256xf32, #tpu.memory_space<vmem>>, vector<32x256xf32>
    tpu.vector_store %arg25[%c96, %c0_599], %1361 {strides = array<i32>} : memref<288x256xf32, #tpu.memory_space<vmem>>, vector<32x256xf32>,
    %c128_600 = arith.constant 128 : index
    %c0_601 = arith.constant 0 : index
    %1363 = vector.load %arg25[%c128_600, %c0_601] : memref<288x256xf32, #tpu.memory_space<vmem>>, vector<32x256xf32>
    tpu.vector_store %arg25[%c128_600, %c0_601], %1262 {strides = array<i32>} : memref<288x256xf32, #tpu.memory_space<vmem>>, vector<32x256xf32>,
    %c255_i32_602 = arith.constant 255 : i32
    %1364 = tpu.dynamic_rotate %1262 by %c255_i32_602 dim 1 : vector<32x256xf32>, i32 -> vector<32x256xf32>
    %c1_i32_603 = arith.constant 1 : i32
    %1365 = vector.broadcast %c1_i32_603 : i32 to vector<1x256xi32>
    %1366 = arith.addi %0, %1365 : vector<1x256xi32>
    %c0_i32_604 = arith.constant 0 : i32
    %1367 = vector.broadcast %c0_i32_604 : i32 to vector<1x256xi32>
    %1368 = arith.cmpi sge, %1366, %1367 : vector<1x256xi32>
    %c1_i32_605 = arith.constant 1 : i32
    %1369 = vector.broadcast %c1_i32_605 : i32 to vector<1x256xi32>
    %1370 = arith.addi %0, %1369 : vector<1x256xi32>
    %c16_i32_606 = arith.constant 16 : i32
    %1371 = vector.broadcast %c16_i32_606 : i32 to vector<1x256xi32>
    %1372 = arith.cmpi slt, %1370, %1371 : vector<1x256xi32>
    %1373 = arith.andi %1368, %1372 : vector<1x256xi1>
    %c0_i32_607 = arith.constant 0 : i32
    %1374 = vector.broadcast %c0_i32_607 : i32 to vector<1x256xi32>
    %1375 = arith.addi %1, %1374 : vector<1x256xi32>
    %c0_i32_608 = arith.constant 0 : i32
    %1376 = vector.broadcast %c0_i32_608 : i32 to vector<1x256xi32>
    %1377 = arith.cmpi sge, %1375, %1376 : vector<1x256xi32>
    %1378 = arith.andi %1373, %1377 : vector<1x256xi1>
    %c0_i32_609 = arith.constant 0 : i32
    %1379 = vector.broadcast %c0_i32_609 : i32 to vector<1x256xi32>
    %1380 = arith.addi %1, %1379 : vector<1x256xi32>
    %c16_i32_610 = arith.constant 16 : i32
    %1381 = vector.broadcast %c16_i32_610 : i32 to vector<1x256xi32>
    %1382 = arith.cmpi slt, %1380, %1381 : vector<1x256xi32>
    %1383 = arith.andi %1378, %1382 : vector<1x256xi1>
    %cst_611 = arith.constant 0.000000e+00 : f32
    %1384 = vector.shape_cast %1383 : vector<1x256xi1> to vector<1x256xi1>
    %1385 = vector.broadcast %1384 : vector<1x256xi1> to vector<32x256xi1>
    %1386 = vector.broadcast %cst_611 : f32 to vector<32x256xf32>
    %1387 = arith.select %1385, %1364, %1386 : vector<32x256xi1>, vector<32x256xf32>
    %c160 = arith.constant 160 : index
    %c0_612 = arith.constant 0 : index
    %1388 = vector.load %arg25[%c160, %c0_612] : memref<288x256xf32, #tpu.memory_space<vmem>>, vector<32x256xf32>
    tpu.vector_store %arg25[%c160, %c0_612], %1387 {strides = array<i32>} : memref<288x256xf32, #tpu.memory_space<vmem>>, vector<32x256xf32>,
    %c241_i32_613 = arith.constant 241 : i32
    %1389 = tpu.dynamic_rotate %1262 by %c241_i32_613 dim 1 : vector<32x256xf32>, i32 -> vector<32x256xf32>
    %c-1_i32_614 = arith.constant -1 : i32
    %1390 = vector.broadcast %c-1_i32_614 : i32 to vector<1x256xi32>
    %1391 = arith.addi %0, %1390 : vector<1x256xi32>
    %c0_i32_615 = arith.constant 0 : i32
    %1392 = vector.broadcast %c0_i32_615 : i32 to vector<1x256xi32>
    %1393 = arith.cmpi sge, %1391, %1392 : vector<1x256xi32>
    %c-1_i32_616 = arith.constant -1 : i32
    %1394 = vector.broadcast %c-1_i32_616 : i32 to vector<1x256xi32>
    %1395 = arith.addi %0, %1394 : vector<1x256xi32>
    %c16_i32_617 = arith.constant 16 : i32
    %1396 = vector.broadcast %c16_i32_617 : i32 to vector<1x256xi32>
    %1397 = arith.cmpi slt, %1395, %1396 : vector<1x256xi32>
    %1398 = arith.andi %1393, %1397 : vector<1x256xi1>
    %c1_i32_618 = arith.constant 1 : i32
    %1399 = vector.broadcast %c1_i32_618 : i32 to vector<1x256xi32>
    %1400 = arith.addi %1, %1399 : vector<1x256xi32>
    %c0_i32_619 = arith.constant 0 : i32
    %1401 = vector.broadcast %c0_i32_619 : i32 to vector<1x256xi32>
    %1402 = arith.cmpi sge, %1400, %1401 : vector<1x256xi32>
    %1403 = arith.andi %1398, %1402 : vector<1x256xi1>
    %c1_i32_620 = arith.constant 1 : i32
    %1404 = vector.broadcast %c1_i32_620 : i32 to vector<1x256xi32>
    %1405 = arith.addi %1, %1404 : vector<1x256xi32>
    %c16_i32_621 = arith.constant 16 : i32
    %1406 = vector.broadcast %c16_i32_621 : i32 to vector<1x256xi32>
    %1407 = arith.cmpi slt, %1405, %1406 : vector<1x256xi32>
    %1408 = arith.andi %1403, %1407 : vector<1x256xi1>
    %cst_622 = arith.constant 0.000000e+00 : f32
    %1409 = vector.shape_cast %1408 : vector<1x256xi1> to vector<1x256xi1>
    %1410 = vector.broadcast %1409 : vector<1x256xi1> to vector<32x256xi1>
    %1411 = vector.broadcast %cst_622 : f32 to vector<32x256xf32>
    %1412 = arith.select %1410, %1389, %1411 : vector<32x256xi1>, vector<32x256xf32>
    %c192 = arith.constant 192 : index
    %c0_623 = arith.constant 0 : index
    %1413 = vector.load %arg25[%c192, %c0_623] : memref<288x256xf32, #tpu.memory_space<vmem>>, vector<32x256xf32>
    tpu.vector_store %arg25[%c192, %c0_623], %1412 {strides = array<i32>} : memref<288x256xf32, #tpu.memory_space<vmem>>, vector<32x256xf32>,
    %c240_i32_624 = arith.constant 240 : i32
    %1414 = tpu.dynamic_rotate %1262 by %c240_i32_624 dim 1 : vector<32x256xf32>, i32 -> vector<32x256xf32>
    %c0_i32_625 = arith.constant 0 : i32
    %1415 = vector.broadcast %c0_i32_625 : i32 to vector<1x256xi32>
    %1416 = arith.addi %0, %1415 : vector<1x256xi32>
    %c0_i32_626 = arith.constant 0 : i32
    %1417 = vector.broadcast %c0_i32_626 : i32 to vector<1x256xi32>
    %1418 = arith.cmpi sge, %1416, %1417 : vector<1x256xi32>
    %c0_i32_627 = arith.constant 0 : i32
    %1419 = vector.broadcast %c0_i32_627 : i32 to vector<1x256xi32>
    %1420 = arith.addi %0, %1419 : vector<1x256xi32>
    %c16_i32_628 = arith.constant 16 : i32
    %1421 = vector.broadcast %c16_i32_628 : i32 to vector<1x256xi32>
    %1422 = arith.cmpi slt, %1420, %1421 : vector<1x256xi32>
    %1423 = arith.andi %1418, %1422 : vector<1x256xi1>
    %c1_i32_629 = arith.constant 1 : i32
    %1424 = vector.broadcast %c1_i32_629 : i32 to vector<1x256xi32>
    %1425 = arith.addi %1, %1424 : vector<1x256xi32>
    %c0_i32_630 = arith.constant 0 : i32
    %1426 = vector.broadcast %c0_i32_630 : i32 to vector<1x256xi32>
    %1427 = arith.cmpi sge, %1425, %1426 : vector<1x256xi32>
    %1428 = arith.andi %1423, %1427 : vector<1x256xi1>
    %c1_i32_631 = arith.constant 1 : i32
    %1429 = vector.broadcast %c1_i32_631 : i32 to vector<1x256xi32>
    %1430 = arith.addi %1, %1429 : vector<1x256xi32>
    %c16_i32_632 = arith.constant 16 : i32
    %1431 = vector.broadcast %c16_i32_632 : i32 to vector<1x256xi32>
    %1432 = arith.cmpi slt, %1430, %1431 : vector<1x256xi32>
    %1433 = arith.andi %1428, %1432 : vector<1x256xi1>
    %cst_633 = arith.constant 0.000000e+00 : f32
    %1434 = vector.shape_cast %1433 : vector<1x256xi1> to vector<1x256xi1>
    %1435 = vector.broadcast %1434 : vector<1x256xi1> to vector<32x256xi1>
    %1436 = vector.broadcast %cst_633 : f32 to vector<32x256xf32>
    %1437 = arith.select %1435, %1414, %1436 : vector<32x256xi1>, vector<32x256xf32>
    %c224 = arith.constant 224 : index
    %c0_634 = arith.constant 0 : index
    %1438 = vector.load %arg25[%c224, %c0_634] : memref<288x256xf32, #tpu.memory_space<vmem>>, vector<32x256xf32>
    tpu.vector_store %arg25[%c224, %c0_634], %1437 {strides = array<i32>} : memref<288x256xf32, #tpu.memory_space<vmem>>, vector<32x256xf32>,
    %c239_i32_635 = arith.constant 239 : i32
    %1439 = tpu.dynamic_rotate %1262 by %c239_i32_635 dim 1 : vector<32x256xf32>, i32 -> vector<32x256xf32>
    %c1_i32_636 = arith.constant 1 : i32
    %1440 = vector.broadcast %c1_i32_636 : i32 to vector<1x256xi32>
    %1441 = arith.addi %0, %1440 : vector<1x256xi32>
    %c0_i32_637 = arith.constant 0 : i32
    %1442 = vector.broadcast %c0_i32_637 : i32 to vector<1x256xi32>
    %1443 = arith.cmpi sge, %1441, %1442 : vector<1x256xi32>
    %c1_i32_638 = arith.constant 1 : i32
    %1444 = vector.broadcast %c1_i32_638 : i32 to vector<1x256xi32>
    %1445 = arith.addi %0, %1444 : vector<1x256xi32>
    %c16_i32_639 = arith.constant 16 : i32
    %1446 = vector.broadcast %c16_i32_639 : i32 to vector<1x256xi32>
    %1447 = arith.cmpi slt, %1445, %1446 : vector<1x256xi32>
    %1448 = arith.andi %1443, %1447 : vector<1x256xi1>
    %c1_i32_640 = arith.constant 1 : i32
    %1449 = vector.broadcast %c1_i32_640 : i32 to vector<1x256xi32>
    %1450 = arith.addi %1, %1449 : vector<1x256xi32>
    %c0_i32_641 = arith.constant 0 : i32
    %1451 = vector.broadcast %c0_i32_641 : i32 to vector<1x256xi32>
    %1452 = arith.cmpi sge, %1450, %1451 : vector<1x256xi32>
    %1453 = arith.andi %1448, %1452 : vector<1x256xi1>
    %c1_i32_642 = arith.constant 1 : i32
    %1454 = vector.broadcast %c1_i32_642 : i32 to vector<1x256xi32>
    %1455 = arith.addi %1, %1454 : vector<1x256xi32>
    %c16_i32_643 = arith.constant 16 : i32
    %1456 = vector.broadcast %c16_i32_643 : i32 to vector<1x256xi32>
    %1457 = arith.cmpi slt, %1455, %1456 : vector<1x256xi32>
    %1458 = arith.andi %1453, %1457 : vector<1x256xi1>
    %cst_644 = arith.constant 0.000000e+00 : f32
    %1459 = vector.shape_cast %1458 : vector<1x256xi1> to vector<1x256xi1>
    %1460 = vector.broadcast %1459 : vector<1x256xi1> to vector<32x256xi1>
    %1461 = vector.broadcast %cst_644 : f32 to vector<32x256xf32>
    %1462 = arith.select %1460, %1439, %1461 : vector<32x256xi1>, vector<32x256xf32>
    %c256_645 = arith.constant 256 : index
    %c0_646 = arith.constant 0 : index
    %1463 = vector.load %arg25[%c256_645, %c0_646] : memref<288x256xf32, #tpu.memory_space<vmem>>, vector<32x256xf32>
    tpu.vector_store %arg25[%c256_645, %c0_646], %1462 {strides = array<i32>} : memref<288x256xf32, #tpu.memory_space<vmem>>, vector<32x256xf32>,
    %cst_647 = arith.constant 0.000000e+00 : f32
    %1464 = vector.broadcast %cst_647 : f32 to vector<8x256xf32>
    %c0_648 = arith.constant 0 : index
    %c0_649 = arith.constant 0 : index
    %1465 = vector.load %arg15[%c0_648, %c0_649] : memref<8x288xf32, #tpu.memory_space<vmem>>, vector<8x128xf32>
    %c0_650 = arith.constant 0 : index
    %c0_651 = arith.constant 0 : index
    %1466 = vector.load %arg25[%c0_650, %c0_651] : memref<288x256xf32, #tpu.memory_space<vmem>>, vector<128x256xf32>
    %cst_652 = arith.constant dense<0.000000e+00> : vector<8x256xf32>
    %1467 = tpu.matmul %1465, %1466, %cst_652 {dimension_numbers = #tpu.dot_dimension_numbers<[1], [0], [0], [1], [0, 0, 1, 1], [], []>} : vector<8x128xf32>, vector<128x256xf32>, vector<8x256xf32> -> vector<8x256xf32>
    %1468 = arith.addf %1464, %1467 : vector<8x256xf32>
    %c0_653 = arith.constant 0 : index
    %c128_654 = arith.constant 128 : index
    %1469 = vector.load %arg15[%c0_653, %c128_654] : memref<8x288xf32, #tpu.memory_space<vmem>>, vector<8x128xf32>
    %c128_655 = arith.constant 128 : index
    %c0_656 = arith.constant 0 : index
    %1470 = vector.load %arg25[%c128_655, %c0_656] : memref<288x256xf32, #tpu.memory_space<vmem>>, vector<128x256xf32>
    %cst_657 = arith.constant dense<0.000000e+00> : vector<8x256xf32>
    %1471 = tpu.matmul %1469, %1470, %cst_657 {dimension_numbers = #tpu.dot_dimension_numbers<[1], [0], [0], [1], [0, 0, 1, 1], [], []>} : vector<8x128xf32>, vector<128x256xf32>, vector<8x256xf32> -> vector<8x256xf32>
    %1472 = arith.addf %1468, %1471 : vector<8x256xf32>
    %c0_658 = arith.constant 0 : index
    %c256_659 = arith.constant 256 : index
    %1473 = vector.load %arg15[%c0_658, %c256_659] : memref<8x288xf32, #tpu.memory_space<vmem>>, vector<8x32xf32>
    %c256_660 = arith.constant 256 : index
    %c0_661 = arith.constant 0 : index
    %1474 = vector.load %arg25[%c256_660, %c0_661] : memref<288x256xf32, #tpu.memory_space<vmem>>, vector<32x256xf32>
    %cst_662 = arith.constant dense<0.000000e+00> : vector<8x256xf32>
    %1475 = tpu.matmul %1473, %1474, %cst_662 {dimension_numbers = #tpu.dot_dimension_numbers<[1], [0], [0], [1], [0, 0, 1, 1], [], []>} : vector<8x32xf32>, vector<32x256xf32>, vector<8x256xf32> -> vector<8x256xf32>
    %1476 = arith.addf %1472, %1475 : vector<8x256xf32>
    %c0_663 = arith.constant 0 : index
    %c0_664 = arith.constant 0 : index
    %1477 = vector.load %arg16[%c0_663, %c0_664] : memref<24x1xf32, #tpu.memory_space<vmem>>, vector<8x1xf32>
    %c8_665 = arith.constant 8 : index
    %c0_666 = arith.constant 0 : index
    %1478 = vector.load %arg16[%c8_665, %c0_666] : memref<24x1xf32, #tpu.memory_space<vmem>>, vector<8x1xf32>
    %c16_667 = arith.constant 16 : index
    %c0_668 = arith.constant 0 : index
    %1479 = vector.load %arg16[%c16_667, %c0_668] : memref<24x1xf32, #tpu.memory_space<vmem>>, vector<8x1xf32>
    %1480 = vector.broadcast %1477 : vector<8x1xf32> to vector<8x256xf32>
    %1481 = arith.addf %1476, %1480 : vector<8x256xf32>
    %1482 = vector.shape_cast %1481 : vector<8x256xf32> to vector<1x8x256xf32>
    %cst_669 = arith.constant dense<0.000000e+00> : vector<1xf32>
    %1483 = vector.multi_reduction <add>, %1482, %cst_669 [1, 2] : vector<1x8x256xf32> to vector<1xf32>
    %1484 = vector.shape_cast %1483 : vector<1xf32> to vector<1x1x1xf32>
    %1485 = vector.extract %1484[0, 0, 0] : f32 from vector<1x1x1xf32>
    %1486 = vector.broadcast %1485 : f32 to vector<1x1xf32>
    %1487 = arith.mulf %1481, %1481 : vector<8x256xf32>
    %1488 = vector.shape_cast %1487 : vector<8x256xf32> to vector<1x8x256xf32>
    %cst_670 = arith.constant dense<0.000000e+00> : vector<1xf32>
    %1489 = vector.multi_reduction <add>, %1488, %cst_670 [1, 2] : vector<1x8x256xf32> to vector<1xf32>
    %1490 = vector.shape_cast %1489 : vector<1xf32> to vector<1x1x1xf32>
    %1491 = vector.extract %1490[0, 0, 0] : f32 from vector<1x1x1xf32>
    %1492 = vector.broadcast %1491 : f32 to vector<1x1xf32>
    %cst_671 = arith.constant 2.048000e+03 : f32
    %1493 = vector.broadcast %cst_671 : f32 to vector<1x1xf32>
    %1494 = arith.divf %1486, %1493 : vector<1x1xf32>
    %cst_672 = arith.constant 2.048000e+03 : f32
    %1495 = vector.broadcast %cst_672 : f32 to vector<1x1xf32>
    %1496 = arith.divf %1492, %1495 : vector<1x1xf32>
    %1497 = arith.mulf %1494, %1494 : vector<1x1xf32>
    %1498 = arith.subf %1496, %1497 : vector<1x1xf32>
    %1499 = vector.broadcast %1494 : vector<1x1xf32> to vector<8x256xf32>
    %1500 = arith.subf %1481, %1499 : vector<8x256xf32>
    %cst_673 = arith.constant 9.99999974E-6 : f32
    %1501 = vector.broadcast %cst_673 : f32 to vector<1x1xf32>
    %1502 = arith.addf %1498, %1501 : vector<1x1xf32>
    %1503 = math.rsqrt %1502 : vector<1x1xf32>
    %1504 = vector.broadcast %1503 : vector<1x1xf32> to vector<8x256xf32>
    %1505 = arith.mulf %1500, %1504 : vector<8x256xf32>
    %1506 = vector.broadcast %1478 : vector<8x1xf32> to vector<8x256xf32>
    %1507 = arith.mulf %1505, %1506 : vector<8x256xf32>
    %1508 = vector.broadcast %1479 : vector<8x1xf32> to vector<8x256xf32>
    %1509 = arith.addf %1507, %1508 : vector<8x256xf32>
    %cst_674 = arith.constant 0.000000e+00 : f32
    %1510 = vector.broadcast %cst_674 : f32 to vector<8x256xf32>
    %1511 = arith.maximumf %1509, %1510 : vector<8x256xf32>
    %c17_i32_675 = arith.constant 17 : i32
    %1512 = tpu.dynamic_rotate %1511 by %c17_i32_675 dim 1 : vector<8x256xf32>, i32 -> vector<8x256xf32>
    %c-1_i32_676 = arith.constant -1 : i32
    %1513 = vector.broadcast %c-1_i32_676 : i32 to vector<1x256xi32>
    %1514 = arith.addi %0, %1513 : vector<1x256xi32>
    %c0_i32_677 = arith.constant 0 : i32
    %1515 = vector.broadcast %c0_i32_677 : i32 to vector<1x256xi32>
    %1516 = arith.cmpi sge, %1514, %1515 : vector<1x256xi32>
    %c-1_i32_678 = arith.constant -1 : i32
    %1517 = vector.broadcast %c-1_i32_678 : i32 to vector<1x256xi32>
    %1518 = arith.addi %0, %1517 : vector<1x256xi32>
    %c16_i32_679 = arith.constant 16 : i32
    %1519 = vector.broadcast %c16_i32_679 : i32 to vector<1x256xi32>
    %1520 = arith.cmpi slt, %1518, %1519 : vector<1x256xi32>
    %1521 = arith.andi %1516, %1520 : vector<1x256xi1>
    %c-1_i32_680 = arith.constant -1 : i32
    %1522 = vector.broadcast %c-1_i32_680 : i32 to vector<1x256xi32>
    %1523 = arith.addi %1, %1522 : vector<1x256xi32>
    %c0_i32_681 = arith.constant 0 : i32
    %1524 = vector.broadcast %c0_i32_681 : i32 to vector<1x256xi32>
    %1525 = arith.cmpi sge, %1523, %1524 : vector<1x256xi32>
    %1526 = arith.andi %1521, %1525 : vector<1x256xi1>
    %c-1_i32_682 = arith.constant -1 : i32
    %1527 = vector.broadcast %c-1_i32_682 : i32 to vector<1x256xi32>
    %1528 = arith.addi %1, %1527 : vector<1x256xi32>
    %c16_i32_683 = arith.constant 16 : i32
    %1529 = vector.broadcast %c16_i32_683 : i32 to vector<1x256xi32>
    %1530 = arith.cmpi slt, %1528, %1529 : vector<1x256xi32>
    %1531 = arith.andi %1526, %1530 : vector<1x256xi1>
    %cst_684 = arith.constant 0.000000e+00 : f32
    %1532 = vector.shape_cast %1531 : vector<1x256xi1> to vector<1x256xi1>
    %1533 = vector.broadcast %1532 : vector<1x256xi1> to vector<8x256xi1>
    %1534 = vector.broadcast %cst_684 : f32 to vector<8x256xf32>
    %1535 = arith.select %1533, %1512, %1534 : vector<8x256xi1>, vector<8x256xf32>
    %c0_685 = arith.constant 0 : index
    %c0_686 = arith.constant 0 : index
    %1536 = vector.load %arg25[%c0_685, %c0_686] : memref<288x256xf32, #tpu.memory_space<vmem>>, vector<8x256xf32>
    tpu.vector_store %arg25[%c0_685, %c0_686], %1535 {strides = array<i32>} : memref<288x256xf32, #tpu.memory_space<vmem>>, vector<8x256xf32>,
    %c16_i32_687 = arith.constant 16 : i32
    %1537 = tpu.dynamic_rotate %1511 by %c16_i32_687 dim 1 : vector<8x256xf32>, i32 -> vector<8x256xf32>
    %c0_i32_688 = arith.constant 0 : i32
    %1538 = vector.broadcast %c0_i32_688 : i32 to vector<1x256xi32>
    %1539 = arith.addi %0, %1538 : vector<1x256xi32>
    %c0_i32_689 = arith.constant 0 : i32
    %1540 = vector.broadcast %c0_i32_689 : i32 to vector<1x256xi32>
    %1541 = arith.cmpi sge, %1539, %1540 : vector<1x256xi32>
    %c0_i32_690 = arith.constant 0 : i32
    %1542 = vector.broadcast %c0_i32_690 : i32 to vector<1x256xi32>
    %1543 = arith.addi %0, %1542 : vector<1x256xi32>
    %c16_i32_691 = arith.constant 16 : i32
    %1544 = vector.broadcast %c16_i32_691 : i32 to vector<1x256xi32>
    %1545 = arith.cmpi slt, %1543, %1544 : vector<1x256xi32>
    %1546 = arith.andi %1541, %1545 : vector<1x256xi1>
    %c-1_i32_692 = arith.constant -1 : i32
    %1547 = vector.broadcast %c-1_i32_692 : i32 to vector<1x256xi32>
    %1548 = arith.addi %1, %1547 : vector<1x256xi32>
    %c0_i32_693 = arith.constant 0 : i32
    %1549 = vector.broadcast %c0_i32_693 : i32 to vector<1x256xi32>
    %1550 = arith.cmpi sge, %1548, %1549 : vector<1x256xi32>
    %1551 = arith.andi %1546, %1550 : vector<1x256xi1>
    %c-1_i32_694 = arith.constant -1 : i32
    %1552 = vector.broadcast %c-1_i32_694 : i32 to vector<1x256xi32>
    %1553 = arith.addi %1, %1552 : vector<1x256xi32>
    %c16_i32_695 = arith.constant 16 : i32
    %1554 = vector.broadcast %c16_i32_695 : i32 to vector<1x256xi32>
    %1555 = arith.cmpi slt, %1553, %1554 : vector<1x256xi32>
    %1556 = arith.andi %1551, %1555 : vector<1x256xi1>
    %cst_696 = arith.constant 0.000000e+00 : f32
    %1557 = vector.shape_cast %1556 : vector<1x256xi1> to vector<1x256xi1>
    %1558 = vector.broadcast %1557 : vector<1x256xi1> to vector<8x256xi1>
    %1559 = vector.broadcast %cst_696 : f32 to vector<8x256xf32>
    %1560 = arith.select %1558, %1537, %1559 : vector<8x256xi1>, vector<8x256xf32>
    %c8_697 = arith.constant 8 : index
    %c0_698 = arith.constant 0 : index
    %1561 = vector.load %arg25[%c8_697, %c0_698] : memref<288x256xf32, #tpu.memory_space<vmem>>, vector<8x256xf32>
    tpu.vector_store %arg25[%c8_697, %c0_698], %1560 {strides = array<i32>} : memref<288x256xf32, #tpu.memory_space<vmem>>, vector<8x256xf32>,
    %c15_i32_699 = arith.constant 15 : i32
    %1562 = tpu.dynamic_rotate %1511 by %c15_i32_699 dim 1 : vector<8x256xf32>, i32 -> vector<8x256xf32>
    %c1_i32_700 = arith.constant 1 : i32
    %1563 = vector.broadcast %c1_i32_700 : i32 to vector<1x256xi32>
    %1564 = arith.addi %0, %1563 : vector<1x256xi32>
    %c0_i32_701 = arith.constant 0 : i32
    %1565 = vector.broadcast %c0_i32_701 : i32 to vector<1x256xi32>
    %1566 = arith.cmpi sge, %1564, %1565 : vector<1x256xi32>
    %c1_i32_702 = arith.constant 1 : i32
    %1567 = vector.broadcast %c1_i32_702 : i32 to vector<1x256xi32>
    %1568 = arith.addi %0, %1567 : vector<1x256xi32>
    %c16_i32_703 = arith.constant 16 : i32
    %1569 = vector.broadcast %c16_i32_703 : i32 to vector<1x256xi32>
    %1570 = arith.cmpi slt, %1568, %1569 : vector<1x256xi32>
    %1571 = arith.andi %1566, %1570 : vector<1x256xi1>
    %c-1_i32_704 = arith.constant -1 : i32
    %1572 = vector.broadcast %c-1_i32_704 : i32 to vector<1x256xi32>
    %1573 = arith.addi %1, %1572 : vector<1x256xi32>
    %c0_i32_705 = arith.constant 0 : i32
    %1574 = vector.broadcast %c0_i32_705 : i32 to vector<1x256xi32>
    %1575 = arith.cmpi sge, %1573, %1574 : vector<1x256xi32>
    %1576 = arith.andi %1571, %1575 : vector<1x256xi1>
    %c-1_i32_706 = arith.constant -1 : i32
    %1577 = vector.broadcast %c-1_i32_706 : i32 to vector<1x256xi32>
    %1578 = arith.addi %1, %1577 : vector<1x256xi32>
    %c16_i32_707 = arith.constant 16 : i32
    %1579 = vector.broadcast %c16_i32_707 : i32 to vector<1x256xi32>
    %1580 = arith.cmpi slt, %1578, %1579 : vector<1x256xi32>
    %1581 = arith.andi %1576, %1580 : vector<1x256xi1>
    %cst_708 = arith.constant 0.000000e+00 : f32
    %1582 = vector.shape_cast %1581 : vector<1x256xi1> to vector<1x256xi1>
    %1583 = vector.broadcast %1582 : vector<1x256xi1> to vector<8x256xi1>
    %1584 = vector.broadcast %cst_708 : f32 to vector<8x256xf32>
    %1585 = arith.select %1583, %1562, %1584 : vector<8x256xi1>, vector<8x256xf32>
    %c16_709 = arith.constant 16 : index
    %c0_710 = arith.constant 0 : index
    %1586 = vector.load %arg25[%c16_709, %c0_710] : memref<288x256xf32, #tpu.memory_space<vmem>>, vector<8x256xf32>
    tpu.vector_store %arg25[%c16_709, %c0_710], %1585 {strides = array<i32>} : memref<288x256xf32, #tpu.memory_space<vmem>>, vector<8x256xf32>,
    %c1_i32_711 = arith.constant 1 : i32
    %1587 = tpu.dynamic_rotate %1511 by %c1_i32_711 dim 1 : vector<8x256xf32>, i32 -> vector<8x256xf32>
    %c-1_i32_712 = arith.constant -1 : i32
    %1588 = vector.broadcast %c-1_i32_712 : i32 to vector<1x256xi32>
    %1589 = arith.addi %0, %1588 : vector<1x256xi32>
    %c0_i32_713 = arith.constant 0 : i32
    %1590 = vector.broadcast %c0_i32_713 : i32 to vector<1x256xi32>
    %1591 = arith.cmpi sge, %1589, %1590 : vector<1x256xi32>
    %c-1_i32_714 = arith.constant -1 : i32
    %1592 = vector.broadcast %c-1_i32_714 : i32 to vector<1x256xi32>
    %1593 = arith.addi %0, %1592 : vector<1x256xi32>
    %c16_i32_715 = arith.constant 16 : i32
    %1594 = vector.broadcast %c16_i32_715 : i32 to vector<1x256xi32>
    %1595 = arith.cmpi slt, %1593, %1594 : vector<1x256xi32>
    %1596 = arith.andi %1591, %1595 : vector<1x256xi1>
    %c0_i32_716 = arith.constant 0 : i32
    %1597 = vector.broadcast %c0_i32_716 : i32 to vector<1x256xi32>
    %1598 = arith.addi %1, %1597 : vector<1x256xi32>
    %c0_i32_717 = arith.constant 0 : i32
    %1599 = vector.broadcast %c0_i32_717 : i32 to vector<1x256xi32>
    %1600 = arith.cmpi sge, %1598, %1599 : vector<1x256xi32>
    %1601 = arith.andi %1596, %1600 : vector<1x256xi1>
    %c0_i32_718 = arith.constant 0 : i32
    %1602 = vector.broadcast %c0_i32_718 : i32 to vector<1x256xi32>
    %1603 = arith.addi %1, %1602 : vector<1x256xi32>
    %c16_i32_719 = arith.constant 16 : i32
    %1604 = vector.broadcast %c16_i32_719 : i32 to vector<1x256xi32>
    %1605 = arith.cmpi slt, %1603, %1604 : vector<1x256xi32>
    %1606 = arith.andi %1601, %1605 : vector<1x256xi1>
    %cst_720 = arith.constant 0.000000e+00 : f32
    %1607 = vector.shape_cast %1606 : vector<1x256xi1> to vector<1x256xi1>
    %1608 = vector.broadcast %1607 : vector<1x256xi1> to vector<8x256xi1>
    %1609 = vector.broadcast %cst_720 : f32 to vector<8x256xf32>
    %1610 = arith.select %1608, %1587, %1609 : vector<8x256xi1>, vector<8x256xf32>
    %c24_721 = arith.constant 24 : index
    %c0_722 = arith.constant 0 : index
    %1611 = vector.load %arg25[%c24_721, %c0_722] : memref<288x256xf32, #tpu.memory_space<vmem>>, vector<8x256xf32>
    tpu.vector_store %arg25[%c24_721, %c0_722], %1610 {strides = array<i32>} : memref<288x256xf32, #tpu.memory_space<vmem>>, vector<8x256xf32>,
    %c32_723 = arith.constant 32 : index
    %c0_724 = arith.constant 0 : index
    %1612 = vector.load %arg25[%c32_723, %c0_724] : memref<288x256xf32, #tpu.memory_space<vmem>>, vector<8x256xf32>
    tpu.vector_store %arg25[%c32_723, %c0_724], %1511 {strides = array<i32>} : memref<288x256xf32, #tpu.memory_space<vmem>>, vector<8x256xf32>,
    %c255_i32_725 = arith.constant 255 : i32
    %1613 = tpu.dynamic_rotate %1511 by %c255_i32_725 dim 1 : vector<8x256xf32>, i32 -> vector<8x256xf32>
    %c1_i32_726 = arith.constant 1 : i32
    %1614 = vector.broadcast %c1_i32_726 : i32 to vector<1x256xi32>
    %1615 = arith.addi %0, %1614 : vector<1x256xi32>
    %c0_i32_727 = arith.constant 0 : i32
    %1616 = vector.broadcast %c0_i32_727 : i32 to vector<1x256xi32>
    %1617 = arith.cmpi sge, %1615, %1616 : vector<1x256xi32>
    %c1_i32_728 = arith.constant 1 : i32
    %1618 = vector.broadcast %c1_i32_728 : i32 to vector<1x256xi32>
    %1619 = arith.addi %0, %1618 : vector<1x256xi32>
    %c16_i32_729 = arith.constant 16 : i32
    %1620 = vector.broadcast %c16_i32_729 : i32 to vector<1x256xi32>
    %1621 = arith.cmpi slt, %1619, %1620 : vector<1x256xi32>
    %1622 = arith.andi %1617, %1621 : vector<1x256xi1>
    %c0_i32_730 = arith.constant 0 : i32
    %1623 = vector.broadcast %c0_i32_730 : i32 to vector<1x256xi32>
    %1624 = arith.addi %1, %1623 : vector<1x256xi32>
    %c0_i32_731 = arith.constant 0 : i32
    %1625 = vector.broadcast %c0_i32_731 : i32 to vector<1x256xi32>
    %1626 = arith.cmpi sge, %1624, %1625 : vector<1x256xi32>
    %1627 = arith.andi %1622, %1626 : vector<1x256xi1>
    %c0_i32_732 = arith.constant 0 : i32
    %1628 = vector.broadcast %c0_i32_732 : i32 to vector<1x256xi32>
    %1629 = arith.addi %1, %1628 : vector<1x256xi32>
    %c16_i32_733 = arith.constant 16 : i32
    %1630 = vector.broadcast %c16_i32_733 : i32 to vector<1x256xi32>
    %1631 = arith.cmpi slt, %1629, %1630 : vector<1x256xi32>
    %1632 = arith.andi %1627, %1631 : vector<1x256xi1>
    %cst_734 = arith.constant 0.000000e+00 : f32
    %1633 = vector.shape_cast %1632 : vector<1x256xi1> to vector<1x256xi1>
    %1634 = vector.broadcast %1633 : vector<1x256xi1> to vector<8x256xi1>
    %1635 = vector.broadcast %cst_734 : f32 to vector<8x256xf32>
    %1636 = arith.select %1634, %1613, %1635 : vector<8x256xi1>, vector<8x256xf32>
    %c40_735 = arith.constant 40 : index
    %c0_736 = arith.constant 0 : index
    %1637 = vector.load %arg25[%c40_735, %c0_736] : memref<288x256xf32, #tpu.memory_space<vmem>>, vector<8x256xf32>
    tpu.vector_store %arg25[%c40_735, %c0_736], %1636 {strides = array<i32>} : memref<288x256xf32, #tpu.memory_space<vmem>>, vector<8x256xf32>,
    %c241_i32_737 = arith.constant 241 : i32
    %1638 = tpu.dynamic_rotate %1511 by %c241_i32_737 dim 1 : vector<8x256xf32>, i32 -> vector<8x256xf32>
    %c-1_i32_738 = arith.constant -1 : i32
    %1639 = vector.broadcast %c-1_i32_738 : i32 to vector<1x256xi32>
    %1640 = arith.addi %0, %1639 : vector<1x256xi32>
    %c0_i32_739 = arith.constant 0 : i32
    %1641 = vector.broadcast %c0_i32_739 : i32 to vector<1x256xi32>
    %1642 = arith.cmpi sge, %1640, %1641 : vector<1x256xi32>
    %c-1_i32_740 = arith.constant -1 : i32
    %1643 = vector.broadcast %c-1_i32_740 : i32 to vector<1x256xi32>
    %1644 = arith.addi %0, %1643 : vector<1x256xi32>
    %c16_i32_741 = arith.constant 16 : i32
    %1645 = vector.broadcast %c16_i32_741 : i32 to vector<1x256xi32>
    %1646 = arith.cmpi slt, %1644, %1645 : vector<1x256xi32>
    %1647 = arith.andi %1642, %1646 : vector<1x256xi1>
    %c1_i32_742 = arith.constant 1 : i32
    %1648 = vector.broadcast %c1_i32_742 : i32 to vector<1x256xi32>
    %1649 = arith.addi %1, %1648 : vector<1x256xi32>
    %c0_i32_743 = arith.constant 0 : i32
    %1650 = vector.broadcast %c0_i32_743 : i32 to vector<1x256xi32>
    %1651 = arith.cmpi sge, %1649, %1650 : vector<1x256xi32>
    %1652 = arith.andi %1647, %1651 : vector<1x256xi1>
    %c1_i32_744 = arith.constant 1 : i32
    %1653 = vector.broadcast %c1_i32_744 : i32 to vector<1x256xi32>
    %1654 = arith.addi %1, %1653 : vector<1x256xi32>
    %c16_i32_745 = arith.constant 16 : i32
    %1655 = vector.broadcast %c16_i32_745 : i32 to vector<1x256xi32>
    %1656 = arith.cmpi slt, %1654, %1655 : vector<1x256xi32>
    %1657 = arith.andi %1652, %1656 : vector<1x256xi1>
    %cst_746 = arith.constant 0.000000e+00 : f32
    %1658 = vector.shape_cast %1657 : vector<1x256xi1> to vector<1x256xi1>
    %1659 = vector.broadcast %1658 : vector<1x256xi1> to vector<8x256xi1>
    %1660 = vector.broadcast %cst_746 : f32 to vector<8x256xf32>
    %1661 = arith.select %1659, %1638, %1660 : vector<8x256xi1>, vector<8x256xf32>
    %c48_747 = arith.constant 48 : index
    %c0_748 = arith.constant 0 : index
    %1662 = vector.load %arg25[%c48_747, %c0_748] : memref<288x256xf32, #tpu.memory_space<vmem>>, vector<8x256xf32>
    tpu.vector_store %arg25[%c48_747, %c0_748], %1661 {strides = array<i32>} : memref<288x256xf32, #tpu.memory_space<vmem>>, vector<8x256xf32>,
    %c240_i32_749 = arith.constant 240 : i32
    %1663 = tpu.dynamic_rotate %1511 by %c240_i32_749 dim 1 : vector<8x256xf32>, i32 -> vector<8x256xf32>
    %c0_i32_750 = arith.constant 0 : i32
    %1664 = vector.broadcast %c0_i32_750 : i32 to vector<1x256xi32>
    %1665 = arith.addi %0, %1664 : vector<1x256xi32>
    %c0_i32_751 = arith.constant 0 : i32
    %1666 = vector.broadcast %c0_i32_751 : i32 to vector<1x256xi32>
    %1667 = arith.cmpi sge, %1665, %1666 : vector<1x256xi32>
    %c0_i32_752 = arith.constant 0 : i32
    %1668 = vector.broadcast %c0_i32_752 : i32 to vector<1x256xi32>
    %1669 = arith.addi %0, %1668 : vector<1x256xi32>
    %c16_i32_753 = arith.constant 16 : i32
    %1670 = vector.broadcast %c16_i32_753 : i32 to vector<1x256xi32>
    %1671 = arith.cmpi slt, %1669, %1670 : vector<1x256xi32>
    %1672 = arith.andi %1667, %1671 : vector<1x256xi1>
    %c1_i32_754 = arith.constant 1 : i32
    %1673 = vector.broadcast %c1_i32_754 : i32 to vector<1x256xi32>
    %1674 = arith.addi %1, %1673 : vector<1x256xi32>
    %c0_i32_755 = arith.constant 0 : i32
    %1675 = vector.broadcast %c0_i32_755 : i32 to vector<1x256xi32>
    %1676 = arith.cmpi sge, %1674, %1675 : vector<1x256xi32>
    %1677 = arith.andi %1672, %1676 : vector<1x256xi1>
    %c1_i32_756 = arith.constant 1 : i32
    %1678 = vector.broadcast %c1_i32_756 : i32 to vector<1x256xi32>
    %1679 = arith.addi %1, %1678 : vector<1x256xi32>
    %c16_i32_757 = arith.constant 16 : i32
    %1680 = vector.broadcast %c16_i32_757 : i32 to vector<1x256xi32>
    %1681 = arith.cmpi slt, %1679, %1680 : vector<1x256xi32>
    %1682 = arith.andi %1677, %1681 : vector<1x256xi1>
    %cst_758 = arith.constant 0.000000e+00 : f32
    %1683 = vector.shape_cast %1682 : vector<1x256xi1> to vector<1x256xi1>
    %1684 = vector.broadcast %1683 : vector<1x256xi1> to vector<8x256xi1>
    %1685 = vector.broadcast %cst_758 : f32 to vector<8x256xf32>
    %1686 = arith.select %1684, %1663, %1685 : vector<8x256xi1>, vector<8x256xf32>
    %c56_759 = arith.constant 56 : index
    %c0_760 = arith.constant 0 : index
    %1687 = vector.load %arg25[%c56_759, %c0_760] : memref<288x256xf32, #tpu.memory_space<vmem>>, vector<8x256xf32>
    tpu.vector_store %arg25[%c56_759, %c0_760], %1686 {strides = array<i32>} : memref<288x256xf32, #tpu.memory_space<vmem>>, vector<8x256xf32>,
    %c239_i32_761 = arith.constant 239 : i32
    %1688 = tpu.dynamic_rotate %1511 by %c239_i32_761 dim 1 : vector<8x256xf32>, i32 -> vector<8x256xf32>
    %c1_i32_762 = arith.constant 1 : i32
    %1689 = vector.broadcast %c1_i32_762 : i32 to vector<1x256xi32>
    %1690 = arith.addi %0, %1689 : vector<1x256xi32>
    %c0_i32_763 = arith.constant 0 : i32
    %1691 = vector.broadcast %c0_i32_763 : i32 to vector<1x256xi32>
    %1692 = arith.cmpi sge, %1690, %1691 : vector<1x256xi32>
    %c1_i32_764 = arith.constant 1 : i32
    %1693 = vector.broadcast %c1_i32_764 : i32 to vector<1x256xi32>
    %1694 = arith.addi %0, %1693 : vector<1x256xi32>
    %c16_i32_765 = arith.constant 16 : i32
    %1695 = vector.broadcast %c16_i32_765 : i32 to vector<1x256xi32>
    %1696 = arith.cmpi slt, %1694, %1695 : vector<1x256xi32>
    %1697 = arith.andi %1692, %1696 : vector<1x256xi1>
    %c1_i32_766 = arith.constant 1 : i32
    %1698 = vector.broadcast %c1_i32_766 : i32 to vector<1x256xi32>
    %1699 = arith.addi %1, %1698 : vector<1x256xi32>
    %c0_i32_767 = arith.constant 0 : i32
    %1700 = vector.broadcast %c0_i32_767 : i32 to vector<1x256xi32>
    %1701 = arith.cmpi sge, %1699, %1700 : vector<1x256xi32>
    %1702 = arith.andi %1697, %1701 : vector<1x256xi1>
    %c1_i32_768 = arith.constant 1 : i32
    %1703 = vector.broadcast %c1_i32_768 : i32 to vector<1x256xi32>
    %1704 = arith.addi %1, %1703 : vector<1x256xi32>
    %c16_i32_769 = arith.constant 16 : i32
    %1705 = vector.broadcast %c16_i32_769 : i32 to vector<1x256xi32>
    %1706 = arith.cmpi slt, %1704, %1705 : vector<1x256xi32>
    %1707 = arith.andi %1702, %1706 : vector<1x256xi1>
    %cst_770 = arith.constant 0.000000e+00 : f32
    %1708 = vector.shape_cast %1707 : vector<1x256xi1> to vector<1x256xi1>
    %1709 = vector.broadcast %1708 : vector<1x256xi1> to vector<8x256xi1>
    %1710 = vector.broadcast %cst_770 : f32 to vector<8x256xf32>
    %1711 = arith.select %1709, %1688, %1710 : vector<8x256xi1>, vector<8x256xf32>
    %c64_771 = arith.constant 64 : index
    %c0_772 = arith.constant 0 : index
    %1712 = vector.load %arg25[%c64_771, %c0_772] : memref<288x256xf32, #tpu.memory_space<vmem>>, vector<8x256xf32>
    tpu.vector_store %arg25[%c64_771, %c0_772], %1711 {strides = array<i32>} : memref<288x256xf32, #tpu.memory_space<vmem>>, vector<8x256xf32>,
    %cst_773 = arith.constant 0.000000e+00 : f32
    %1713 = vector.broadcast %cst_773 : f32 to vector<8x256xf32>
    %c0_774 = arith.constant 0 : index
    %c0_775 = arith.constant 0 : index
    %1714 = vector.load %arg17[%c0_774, %c0_775] : memref<8x72xf32, #tpu.memory_space<vmem>>, vector<8x72xf32>
    %c0_776 = arith.constant 0 : index
    %c0_777 = arith.constant 0 : index
    %1715 = vector.load %arg25[%c0_776, %c0_777] : memref<288x256xf32, #tpu.memory_space<vmem>>, vector<72x256xf32>
    %cst_778 = arith.constant dense<0.000000e+00> : vector<8x256xf32>
    %1716 = tpu.matmul %1714, %1715, %cst_778 {dimension_numbers = #tpu.dot_dimension_numbers<[1], [0], [0], [1], [0, 0, 1, 1], [], []>} : vector<8x72xf32>, vector<72x256xf32>, vector<8x256xf32> -> vector<8x256xf32>
    %1717 = arith.addf %1713, %1716 : vector<8x256xf32>
    %c0_779 = arith.constant 0 : index
    %c0_780 = arith.constant 0 : index
    %1718 = vector.load %arg18[%c0_779, %c0_780] : memref<24x1xf32, #tpu.memory_space<vmem>>, vector<8x1xf32>
    %c8_781 = arith.constant 8 : index
    %c0_782 = arith.constant 0 : index
    %1719 = vector.load %arg18[%c8_781, %c0_782] : memref<24x1xf32, #tpu.memory_space<vmem>>, vector<8x1xf32>
    %c16_783 = arith.constant 16 : index
    %c0_784 = arith.constant 0 : index
    %1720 = vector.load %arg18[%c16_783, %c0_784] : memref<24x1xf32, #tpu.memory_space<vmem>>, vector<8x1xf32>
    %1721 = vector.broadcast %1718 : vector<8x1xf32> to vector<8x256xf32>
    %1722 = arith.addf %1717, %1721 : vector<8x256xf32>
    %1723 = vector.shape_cast %1722 : vector<8x256xf32> to vector<1x8x256xf32>
    %cst_785 = arith.constant dense<0.000000e+00> : vector<1xf32>
    %1724 = vector.multi_reduction <add>, %1723, %cst_785 [1, 2] : vector<1x8x256xf32> to vector<1xf32>
    %1725 = vector.shape_cast %1724 : vector<1xf32> to vector<1x1x1xf32>
    %1726 = vector.extract %1725[0, 0, 0] : f32 from vector<1x1x1xf32>
    %1727 = vector.broadcast %1726 : f32 to vector<1x1xf32>
    %1728 = arith.mulf %1722, %1722 : vector<8x256xf32>
    %1729 = vector.shape_cast %1728 : vector<8x256xf32> to vector<1x8x256xf32>
    %cst_786 = arith.constant dense<0.000000e+00> : vector<1xf32>
    %1730 = vector.multi_reduction <add>, %1729, %cst_786 [1, 2] : vector<1x8x256xf32> to vector<1xf32>
    %1731 = vector.shape_cast %1730 : vector<1xf32> to vector<1x1x1xf32>
    %1732 = vector.extract %1731[0, 0, 0] : f32 from vector<1x1x1xf32>
    %1733 = vector.broadcast %1732 : f32 to vector<1x1xf32>
    %cst_787 = arith.constant 2.048000e+03 : f32
    %1734 = vector.broadcast %cst_787 : f32 to vector<1x1xf32>
    %1735 = arith.divf %1727, %1734 : vector<1x1xf32>
    %cst_788 = arith.constant 2.048000e+03 : f32
    %1736 = vector.broadcast %cst_788 : f32 to vector<1x1xf32>
    %1737 = arith.divf %1733, %1736 : vector<1x1xf32>
    %1738 = arith.mulf %1735, %1735 : vector<1x1xf32>
    %1739 = arith.subf %1737, %1738 : vector<1x1xf32>
    %1740 = vector.broadcast %1735 : vector<1x1xf32> to vector<8x256xf32>
    %1741 = arith.subf %1722, %1740 : vector<8x256xf32>
    %cst_789 = arith.constant 9.99999974E-6 : f32
    %1742 = vector.broadcast %cst_789 : f32 to vector<1x1xf32>
    %1743 = arith.addf %1739, %1742 : vector<1x1xf32>
    %1744 = math.rsqrt %1743 : vector<1x1xf32>
    %1745 = vector.broadcast %1744 : vector<1x1xf32> to vector<8x256xf32>
    %1746 = arith.mulf %1741, %1745 : vector<8x256xf32>
    %1747 = vector.broadcast %1719 : vector<8x1xf32> to vector<8x256xf32>
    %1748 = arith.mulf %1746, %1747 : vector<8x256xf32>
    %1749 = vector.broadcast %1720 : vector<8x1xf32> to vector<8x256xf32>
    %1750 = arith.addf %1748, %1749 : vector<8x256xf32>
    %cst_790 = arith.constant 0.000000e+00 : f32
    %1751 = vector.broadcast %cst_790 : f32 to vector<8x256xf32>
    %1752 = arith.maximumf %1750, %1751 : vector<8x256xf32>
    %c0_791 = arith.constant 0 : index
    %c0_792 = arith.constant 0 : index
    %1753 = vector.load %arg21[%c0_791, %c0_792] : memref<8x1xf32, #tpu.memory_space<vmem>>, vector<8x1xf32>
    %1754 = vector.broadcast %1753 : vector<8x1xf32> to vector<8x256xf32>
    %1755 = arith.mulf %1752, %1754 : vector<8x256xf32>
    %cst_793 = arith.constant dense<0.000000e+00> : vector<256xf32>
    %1756 = vector.multi_reduction <add>, %1755, %cst_793 [0] : vector<8x256xf32> to vector<256xf32>
    %1757 = vector.shape_cast %1756 : vector<256xf32> to vector<1x256xf32>
    %c0_794 = arith.constant 0 : index
    %c0_795 = arith.constant 0 : index
    %1758 = vector.load %arg22[%c0_794, %c0_795] : memref<1x1xf32, #tpu.memory_space<vmem>>, vector<1x1xf32>
    %1759 = vector.broadcast %1758 : vector<1x1xf32> to vector<1x256xf32>
    %1760 = arith.addf %1757, %1759 : vector<1x256xf32>
    %c0_796 = arith.constant 0 : index
    %c0_797 = arith.constant 0 : index
    %c0_798 = arith.constant 0 : index
    %1761 = vector.load %arg24[%c0_796, %c0_797, %c0_798] : memref<1x1x256xf32, #tpu.memory_space<vmem>>, vector<1x1x256xf32>
    %1762 = vector.shape_cast %1761 : vector<1x1x256xf32> to vector<1x256xf32>
    %1763 = vector.shape_cast %1760 : vector<1x256xf32> to vector<1x1x256xf32>
    tpu.vector_store %arg24[%c0_796, %c0_797, %c0_798], %1763 {strides = array<i32>} : memref<1x1x256xf32, #tpu.memory_space<vmem>>, vector<1x1x256xf32>,
    %c0_799 = arith.constant 0 : index
    %c0_800 = arith.constant 0 : index
    %c0_801 = arith.constant 0 : index
    %1764 = vector.load %arg4[%c0_799, %c0_800, %c0_801] : memref<1x8x256xf32, #tpu.memory_space<vmem>>, vector<1x8x256xf32>
    %1765 = vector.shape_cast %1764 : vector<1x8x256xf32> to vector<8x256xf32>
    %1766 = arith.mulf %1752, %1765 : vector<8x256xf32>
    %c0_802 = arith.constant 0 : index
    %c0_803 = arith.constant 0 : index
    %1767 = vector.load %arg26[%c0_802, %c0_803] : memref<32x256xf32, #tpu.memory_space<vmem>>, vector<8x256xf32>
    tpu.vector_store %arg26[%c0_802, %c0_803], %1766 {strides = array<i32>} : memref<32x256xf32, #tpu.memory_space<vmem>>, vector<8x256xf32>,
    %c8_804 = arith.constant 8 : index
    %c0_805 = arith.constant 0 : index
    %1768 = vector.load %arg26[%c8_804, %c0_805] : memref<32x256xf32, #tpu.memory_space<vmem>>, vector<8x256xf32>
    tpu.vector_store %arg26[%c8_804, %c0_805], %1765 {strides = array<i32>} : memref<32x256xf32, #tpu.memory_space<vmem>>, vector<8x256xf32>,
    %c0_806 = arith.constant 0 : index
    %c0_807 = arith.constant 0 : index
    %1769 = vector.load %arg26[%c0_806, %c0_807] : memref<32x256xf32, #tpu.memory_space<vmem>>, vector<16x256xf32>
    %c17_i32_808 = arith.constant 17 : i32
    %1770 = tpu.dynamic_rotate %1769 by %c17_i32_808 dim 1 : vector<16x256xf32>, i32 -> vector<16x256xf32>
    %c-1_i32_809 = arith.constant -1 : i32
    %1771 = vector.broadcast %c-1_i32_809 : i32 to vector<1x256xi32>
    %1772 = arith.addi %0, %1771 : vector<1x256xi32>
    %c0_i32_810 = arith.constant 0 : i32
    %1773 = vector.broadcast %c0_i32_810 : i32 to vector<1x256xi32>
    %1774 = arith.cmpi sge, %1772, %1773 : vector<1x256xi32>
    %c-1_i32_811 = arith.constant -1 : i32
    %1775 = vector.broadcast %c-1_i32_811 : i32 to vector<1x256xi32>
    %1776 = arith.addi %0, %1775 : vector<1x256xi32>
    %c16_i32_812 = arith.constant 16 : i32
    %1777 = vector.broadcast %c16_i32_812 : i32 to vector<1x256xi32>
    %1778 = arith.cmpi slt, %1776, %1777 : vector<1x256xi32>
    %1779 = arith.andi %1774, %1778 : vector<1x256xi1>
    %c-1_i32_813 = arith.constant -1 : i32
    %1780 = vector.broadcast %c-1_i32_813 : i32 to vector<1x256xi32>
    %1781 = arith.addi %1, %1780 : vector<1x256xi32>
    %c0_i32_814 = arith.constant 0 : i32
    %1782 = vector.broadcast %c0_i32_814 : i32 to vector<1x256xi32>
    %1783 = arith.cmpi sge, %1781, %1782 : vector<1x256xi32>
    %1784 = arith.andi %1779, %1783 : vector<1x256xi1>
    %c-1_i32_815 = arith.constant -1 : i32
    %1785 = vector.broadcast %c-1_i32_815 : i32 to vector<1x256xi32>
    %1786 = arith.addi %1, %1785 : vector<1x256xi32>
    %c16_i32_816 = arith.constant 16 : i32
    %1787 = vector.broadcast %c16_i32_816 : i32 to vector<1x256xi32>
    %1788 = arith.cmpi slt, %1786, %1787 : vector<1x256xi32>
    %1789 = arith.andi %1784, %1788 : vector<1x256xi1>
    %cst_817 = arith.constant 0.000000e+00 : f32
    %1790 = vector.shape_cast %1789 : vector<1x256xi1> to vector<1x256xi1>
    %1791 = vector.broadcast %1790 : vector<1x256xi1> to vector<16x256xi1>
    %1792 = vector.broadcast %cst_817 : f32 to vector<16x256xf32>
    %1793 = arith.select %1791, %1770, %1792 : vector<16x256xi1>, vector<16x256xf32>
    %c0_818 = arith.constant 0 : index
    %c0_819 = arith.constant 0 : index
    %1794 = vector.load %arg25[%c0_818, %c0_819] : memref<288x256xf32, #tpu.memory_space<vmem>>, vector<16x256xf32>
    tpu.vector_store %arg25[%c0_818, %c0_819], %1793 {strides = array<i32>} : memref<288x256xf32, #tpu.memory_space<vmem>>, vector<16x256xf32>,
    %c16_i32_820 = arith.constant 16 : i32
    %1795 = tpu.dynamic_rotate %1769 by %c16_i32_820 dim 1 : vector<16x256xf32>, i32 -> vector<16x256xf32>
    %c0_i32_821 = arith.constant 0 : i32
    %1796 = vector.broadcast %c0_i32_821 : i32 to vector<1x256xi32>
    %1797 = arith.addi %0, %1796 : vector<1x256xi32>
    %c0_i32_822 = arith.constant 0 : i32
    %1798 = vector.broadcast %c0_i32_822 : i32 to vector<1x256xi32>
    %1799 = arith.cmpi sge, %1797, %1798 : vector<1x256xi32>
    %c0_i32_823 = arith.constant 0 : i32
    %1800 = vector.broadcast %c0_i32_823 : i32 to vector<1x256xi32>
    %1801 = arith.addi %0, %1800 : vector<1x256xi32>
    %c16_i32_824 = arith.constant 16 : i32
    %1802 = vector.broadcast %c16_i32_824 : i32 to vector<1x256xi32>
    %1803 = arith.cmpi slt, %1801, %1802 : vector<1x256xi32>
    %1804 = arith.andi %1799, %1803 : vector<1x256xi1>
    %c-1_i32_825 = arith.constant -1 : i32
    %1805 = vector.broadcast %c-1_i32_825 : i32 to vector<1x256xi32>
    %1806 = arith.addi %1, %1805 : vector<1x256xi32>
    %c0_i32_826 = arith.constant 0 : i32
    %1807 = vector.broadcast %c0_i32_826 : i32 to vector<1x256xi32>
    %1808 = arith.cmpi sge, %1806, %1807 : vector<1x256xi32>
    %1809 = arith.andi %1804, %1808 : vector<1x256xi1>
    %c-1_i32_827 = arith.constant -1 : i32
    %1810 = vector.broadcast %c-1_i32_827 : i32 to vector<1x256xi32>
    %1811 = arith.addi %1, %1810 : vector<1x256xi32>
    %c16_i32_828 = arith.constant 16 : i32
    %1812 = vector.broadcast %c16_i32_828 : i32 to vector<1x256xi32>
    %1813 = arith.cmpi slt, %1811, %1812 : vector<1x256xi32>
    %1814 = arith.andi %1809, %1813 : vector<1x256xi1>
    %cst_829 = arith.constant 0.000000e+00 : f32
    %1815 = vector.shape_cast %1814 : vector<1x256xi1> to vector<1x256xi1>
    %1816 = vector.broadcast %1815 : vector<1x256xi1> to vector<16x256xi1>
    %1817 = vector.broadcast %cst_829 : f32 to vector<16x256xf32>
    %1818 = arith.select %1816, %1795, %1817 : vector<16x256xi1>, vector<16x256xf32>
    %c16_830 = arith.constant 16 : index
    %c0_831 = arith.constant 0 : index
    %1819 = vector.load %arg25[%c16_830, %c0_831] : memref<288x256xf32, #tpu.memory_space<vmem>>, vector<16x256xf32>
    tpu.vector_store %arg25[%c16_830, %c0_831], %1818 {strides = array<i32>} : memref<288x256xf32, #tpu.memory_space<vmem>>, vector<16x256xf32>,
    %c15_i32_832 = arith.constant 15 : i32
    %1820 = tpu.dynamic_rotate %1769 by %c15_i32_832 dim 1 : vector<16x256xf32>, i32 -> vector<16x256xf32>
    %c1_i32_833 = arith.constant 1 : i32
    %1821 = vector.broadcast %c1_i32_833 : i32 to vector<1x256xi32>
    %1822 = arith.addi %0, %1821 : vector<1x256xi32>
    %c0_i32_834 = arith.constant 0 : i32
    %1823 = vector.broadcast %c0_i32_834 : i32 to vector<1x256xi32>
    %1824 = arith.cmpi sge, %1822, %1823 : vector<1x256xi32>
    %c1_i32_835 = arith.constant 1 : i32
    %1825 = vector.broadcast %c1_i32_835 : i32 to vector<1x256xi32>
    %1826 = arith.addi %0, %1825 : vector<1x256xi32>
    %c16_i32_836 = arith.constant 16 : i32
    %1827 = vector.broadcast %c16_i32_836 : i32 to vector<1x256xi32>
    %1828 = arith.cmpi slt, %1826, %1827 : vector<1x256xi32>
    %1829 = arith.andi %1824, %1828 : vector<1x256xi1>
    %c-1_i32_837 = arith.constant -1 : i32
    %1830 = vector.broadcast %c-1_i32_837 : i32 to vector<1x256xi32>
    %1831 = arith.addi %1, %1830 : vector<1x256xi32>
    %c0_i32_838 = arith.constant 0 : i32
    %1832 = vector.broadcast %c0_i32_838 : i32 to vector<1x256xi32>
    %1833 = arith.cmpi sge, %1831, %1832 : vector<1x256xi32>
    %1834 = arith.andi %1829, %1833 : vector<1x256xi1>
    %c-1_i32_839 = arith.constant -1 : i32
    %1835 = vector.broadcast %c-1_i32_839 : i32 to vector<1x256xi32>
    %1836 = arith.addi %1, %1835 : vector<1x256xi32>
    %c16_i32_840 = arith.constant 16 : i32
    %1837 = vector.broadcast %c16_i32_840 : i32 to vector<1x256xi32>
    %1838 = arith.cmpi slt, %1836, %1837 : vector<1x256xi32>
    %1839 = arith.andi %1834, %1838 : vector<1x256xi1>
    %cst_841 = arith.constant 0.000000e+00 : f32
    %1840 = vector.shape_cast %1839 : vector<1x256xi1> to vector<1x256xi1>
    %1841 = vector.broadcast %1840 : vector<1x256xi1> to vector<16x256xi1>
    %1842 = vector.broadcast %cst_841 : f32 to vector<16x256xf32>
    %1843 = arith.select %1841, %1820, %1842 : vector<16x256xi1>, vector<16x256xf32>
    %c32_842 = arith.constant 32 : index
    %c0_843 = arith.constant 0 : index
    %1844 = vector.load %arg25[%c32_842, %c0_843] : memref<288x256xf32, #tpu.memory_space<vmem>>, vector<16x256xf32>
    tpu.vector_store %arg25[%c32_842, %c0_843], %1843 {strides = array<i32>} : memref<288x256xf32, #tpu.memory_space<vmem>>, vector<16x256xf32>,
    %c1_i32_844 = arith.constant 1 : i32
    %1845 = tpu.dynamic_rotate %1769 by %c1_i32_844 dim 1 : vector<16x256xf32>, i32 -> vector<16x256xf32>
    %c-1_i32_845 = arith.constant -1 : i32
    %1846 = vector.broadcast %c-1_i32_845 : i32 to vector<1x256xi32>
    %1847 = arith.addi %0, %1846 : vector<1x256xi32>
    %c0_i32_846 = arith.constant 0 : i32
    %1848 = vector.broadcast %c0_i32_846 : i32 to vector<1x256xi32>
    %1849 = arith.cmpi sge, %1847, %1848 : vector<1x256xi32>
    %c-1_i32_847 = arith.constant -1 : i32
    %1850 = vector.broadcast %c-1_i32_847 : i32 to vector<1x256xi32>
    %1851 = arith.addi %0, %1850 : vector<1x256xi32>
    %c16_i32_848 = arith.constant 16 : i32
    %1852 = vector.broadcast %c16_i32_848 : i32 to vector<1x256xi32>
    %1853 = arith.cmpi slt, %1851, %1852 : vector<1x256xi32>
    %1854 = arith.andi %1849, %1853 : vector<1x256xi1>
    %c0_i32_849 = arith.constant 0 : i32
    %1855 = vector.broadcast %c0_i32_849 : i32 to vector<1x256xi32>
    %1856 = arith.addi %1, %1855 : vector<1x256xi32>
    %c0_i32_850 = arith.constant 0 : i32
    %1857 = vector.broadcast %c0_i32_850 : i32 to vector<1x256xi32>
    %1858 = arith.cmpi sge, %1856, %1857 : vector<1x256xi32>
    %1859 = arith.andi %1854, %1858 : vector<1x256xi1>
    %c0_i32_851 = arith.constant 0 : i32
    %1860 = vector.broadcast %c0_i32_851 : i32 to vector<1x256xi32>
    %1861 = arith.addi %1, %1860 : vector<1x256xi32>
    %c16_i32_852 = arith.constant 16 : i32
    %1862 = vector.broadcast %c16_i32_852 : i32 to vector<1x256xi32>
    %1863 = arith.cmpi slt, %1861, %1862 : vector<1x256xi32>
    %1864 = arith.andi %1859, %1863 : vector<1x256xi1>
    %cst_853 = arith.constant 0.000000e+00 : f32
    %1865 = vector.shape_cast %1864 : vector<1x256xi1> to vector<1x256xi1>
    %1866 = vector.broadcast %1865 : vector<1x256xi1> to vector<16x256xi1>
    %1867 = vector.broadcast %cst_853 : f32 to vector<16x256xf32>
    %1868 = arith.select %1866, %1845, %1867 : vector<16x256xi1>, vector<16x256xf32>
    %c48_854 = arith.constant 48 : index
    %c0_855 = arith.constant 0 : index
    %1869 = vector.load %arg25[%c48_854, %c0_855] : memref<288x256xf32, #tpu.memory_space<vmem>>, vector<16x256xf32>
    tpu.vector_store %arg25[%c48_854, %c0_855], %1868 {strides = array<i32>} : memref<288x256xf32, #tpu.memory_space<vmem>>, vector<16x256xf32>,
    %c64_856 = arith.constant 64 : index
    %c0_857 = arith.constant 0 : index
    %1870 = vector.load %arg25[%c64_856, %c0_857] : memref<288x256xf32, #tpu.memory_space<vmem>>, vector<16x256xf32>
    tpu.vector_store %arg25[%c64_856, %c0_857], %1769 {strides = array<i32>} : memref<288x256xf32, #tpu.memory_space<vmem>>, vector<16x256xf32>,
    %c255_i32_858 = arith.constant 255 : i32
    %1871 = tpu.dynamic_rotate %1769 by %c255_i32_858 dim 1 : vector<16x256xf32>, i32 -> vector<16x256xf32>
    %c1_i32_859 = arith.constant 1 : i32
    %1872 = vector.broadcast %c1_i32_859 : i32 to vector<1x256xi32>
    %1873 = arith.addi %0, %1872 : vector<1x256xi32>
    %c0_i32_860 = arith.constant 0 : i32
    %1874 = vector.broadcast %c0_i32_860 : i32 to vector<1x256xi32>
    %1875 = arith.cmpi sge, %1873, %1874 : vector<1x256xi32>
    %c1_i32_861 = arith.constant 1 : i32
    %1876 = vector.broadcast %c1_i32_861 : i32 to vector<1x256xi32>
    %1877 = arith.addi %0, %1876 : vector<1x256xi32>
    %c16_i32_862 = arith.constant 16 : i32
    %1878 = vector.broadcast %c16_i32_862 : i32 to vector<1x256xi32>
    %1879 = arith.cmpi slt, %1877, %1878 : vector<1x256xi32>
    %1880 = arith.andi %1875, %1879 : vector<1x256xi1>
    %c0_i32_863 = arith.constant 0 : i32
    %1881 = vector.broadcast %c0_i32_863 : i32 to vector<1x256xi32>
    %1882 = arith.addi %1, %1881 : vector<1x256xi32>
    %c0_i32_864 = arith.constant 0 : i32
    %1883 = vector.broadcast %c0_i32_864 : i32 to vector<1x256xi32>
    %1884 = arith.cmpi sge, %1882, %1883 : vector<1x256xi32>
    %1885 = arith.andi %1880, %1884 : vector<1x256xi1>
    %c0_i32_865 = arith.constant 0 : i32
    %1886 = vector.broadcast %c0_i32_865 : i32 to vector<1x256xi32>
    %1887 = arith.addi %1, %1886 : vector<1x256xi32>
    %c16_i32_866 = arith.constant 16 : i32
    %1888 = vector.broadcast %c16_i32_866 : i32 to vector<1x256xi32>
    %1889 = arith.cmpi slt, %1887, %1888 : vector<1x256xi32>
    %1890 = arith.andi %1885, %1889 : vector<1x256xi1>
    %cst_867 = arith.constant 0.000000e+00 : f32
    %1891 = vector.shape_cast %1890 : vector<1x256xi1> to vector<1x256xi1>
    %1892 = vector.broadcast %1891 : vector<1x256xi1> to vector<16x256xi1>
    %1893 = vector.broadcast %cst_867 : f32 to vector<16x256xf32>
    %1894 = arith.select %1892, %1871, %1893 : vector<16x256xi1>, vector<16x256xf32>
    %c80 = arith.constant 80 : index
    %c0_868 = arith.constant 0 : index
    %1895 = vector.load %arg25[%c80, %c0_868] : memref<288x256xf32, #tpu.memory_space<vmem>>, vector<16x256xf32>
    tpu.vector_store %arg25[%c80, %c0_868], %1894 {strides = array<i32>} : memref<288x256xf32, #tpu.memory_space<vmem>>, vector<16x256xf32>,
    %c241_i32_869 = arith.constant 241 : i32
    %1896 = tpu.dynamic_rotate %1769 by %c241_i32_869 dim 1 : vector<16x256xf32>, i32 -> vector<16x256xf32>
    %c-1_i32_870 = arith.constant -1 : i32
    %1897 = vector.broadcast %c-1_i32_870 : i32 to vector<1x256xi32>
    %1898 = arith.addi %0, %1897 : vector<1x256xi32>
    %c0_i32_871 = arith.constant 0 : i32
    %1899 = vector.broadcast %c0_i32_871 : i32 to vector<1x256xi32>
    %1900 = arith.cmpi sge, %1898, %1899 : vector<1x256xi32>
    %c-1_i32_872 = arith.constant -1 : i32
    %1901 = vector.broadcast %c-1_i32_872 : i32 to vector<1x256xi32>
    %1902 = arith.addi %0, %1901 : vector<1x256xi32>
    %c16_i32_873 = arith.constant 16 : i32
    %1903 = vector.broadcast %c16_i32_873 : i32 to vector<1x256xi32>
    %1904 = arith.cmpi slt, %1902, %1903 : vector<1x256xi32>
    %1905 = arith.andi %1900, %1904 : vector<1x256xi1>
    %c1_i32_874 = arith.constant 1 : i32
    %1906 = vector.broadcast %c1_i32_874 : i32 to vector<1x256xi32>
    %1907 = arith.addi %1, %1906 : vector<1x256xi32>
    %c0_i32_875 = arith.constant 0 : i32
    %1908 = vector.broadcast %c0_i32_875 : i32 to vector<1x256xi32>
    %1909 = arith.cmpi sge, %1907, %1908 : vector<1x256xi32>
    %1910 = arith.andi %1905, %1909 : vector<1x256xi1>
    %c1_i32_876 = arith.constant 1 : i32
    %1911 = vector.broadcast %c1_i32_876 : i32 to vector<1x256xi32>
    %1912 = arith.addi %1, %1911 : vector<1x256xi32>
    %c16_i32_877 = arith.constant 16 : i32
    %1913 = vector.broadcast %c16_i32_877 : i32 to vector<1x256xi32>
    %1914 = arith.cmpi slt, %1912, %1913 : vector<1x256xi32>
    %1915 = arith.andi %1910, %1914 : vector<1x256xi1>
    %cst_878 = arith.constant 0.000000e+00 : f32
    %1916 = vector.shape_cast %1915 : vector<1x256xi1> to vector<1x256xi1>
    %1917 = vector.broadcast %1916 : vector<1x256xi1> to vector<16x256xi1>
    %1918 = vector.broadcast %cst_878 : f32 to vector<16x256xf32>
    %1919 = arith.select %1917, %1896, %1918 : vector<16x256xi1>, vector<16x256xf32>
    %c96_879 = arith.constant 96 : index
    %c0_880 = arith.constant 0 : index
    %1920 = vector.load %arg25[%c96_879, %c0_880] : memref<288x256xf32, #tpu.memory_space<vmem>>, vector<16x256xf32>
    tpu.vector_store %arg25[%c96_879, %c0_880], %1919 {strides = array<i32>} : memref<288x256xf32, #tpu.memory_space<vmem>>, vector<16x256xf32>,
    %c240_i32_881 = arith.constant 240 : i32
    %1921 = tpu.dynamic_rotate %1769 by %c240_i32_881 dim 1 : vector<16x256xf32>, i32 -> vector<16x256xf32>
    %c0_i32_882 = arith.constant 0 : i32
    %1922 = vector.broadcast %c0_i32_882 : i32 to vector<1x256xi32>
    %1923 = arith.addi %0, %1922 : vector<1x256xi32>
    %c0_i32_883 = arith.constant 0 : i32
    %1924 = vector.broadcast %c0_i32_883 : i32 to vector<1x256xi32>
    %1925 = arith.cmpi sge, %1923, %1924 : vector<1x256xi32>
    %c0_i32_884 = arith.constant 0 : i32
    %1926 = vector.broadcast %c0_i32_884 : i32 to vector<1x256xi32>
    %1927 = arith.addi %0, %1926 : vector<1x256xi32>
    %c16_i32_885 = arith.constant 16 : i32
    %1928 = vector.broadcast %c16_i32_885 : i32 to vector<1x256xi32>
    %1929 = arith.cmpi slt, %1927, %1928 : vector<1x256xi32>
    %1930 = arith.andi %1925, %1929 : vector<1x256xi1>
    %c1_i32_886 = arith.constant 1 : i32
    %1931 = vector.broadcast %c1_i32_886 : i32 to vector<1x256xi32>
    %1932 = arith.addi %1, %1931 : vector<1x256xi32>
    %c0_i32_887 = arith.constant 0 : i32
    %1933 = vector.broadcast %c0_i32_887 : i32 to vector<1x256xi32>
    %1934 = arith.cmpi sge, %1932, %1933 : vector<1x256xi32>
    %1935 = arith.andi %1930, %1934 : vector<1x256xi1>
    %c1_i32_888 = arith.constant 1 : i32
    %1936 = vector.broadcast %c1_i32_888 : i32 to vector<1x256xi32>
    %1937 = arith.addi %1, %1936 : vector<1x256xi32>
    %c16_i32_889 = arith.constant 16 : i32
    %1938 = vector.broadcast %c16_i32_889 : i32 to vector<1x256xi32>
    %1939 = arith.cmpi slt, %1937, %1938 : vector<1x256xi32>
    %1940 = arith.andi %1935, %1939 : vector<1x256xi1>
    %cst_890 = arith.constant 0.000000e+00 : f32
    %1941 = vector.shape_cast %1940 : vector<1x256xi1> to vector<1x256xi1>
    %1942 = vector.broadcast %1941 : vector<1x256xi1> to vector<16x256xi1>
    %1943 = vector.broadcast %cst_890 : f32 to vector<16x256xf32>
    %1944 = arith.select %1942, %1921, %1943 : vector<16x256xi1>, vector<16x256xf32>
    %c112 = arith.constant 112 : index
    %c0_891 = arith.constant 0 : index
    %1945 = vector.load %arg25[%c112, %c0_891] : memref<288x256xf32, #tpu.memory_space<vmem>>, vector<16x256xf32>
    tpu.vector_store %arg25[%c112, %c0_891], %1944 {strides = array<i32>} : memref<288x256xf32, #tpu.memory_space<vmem>>, vector<16x256xf32>,
    %c239_i32_892 = arith.constant 239 : i32
    %1946 = tpu.dynamic_rotate %1769 by %c239_i32_892 dim 1 : vector<16x256xf32>, i32 -> vector<16x256xf32>
    %c1_i32_893 = arith.constant 1 : i32
    %1947 = vector.broadcast %c1_i32_893 : i32 to vector<1x256xi32>
    %1948 = arith.addi %0, %1947 : vector<1x256xi32>
    %c0_i32_894 = arith.constant 0 : i32
    %1949 = vector.broadcast %c0_i32_894 : i32 to vector<1x256xi32>
    %1950 = arith.cmpi sge, %1948, %1949 : vector<1x256xi32>
    %c1_i32_895 = arith.constant 1 : i32
    %1951 = vector.broadcast %c1_i32_895 : i32 to vector<1x256xi32>
    %1952 = arith.addi %0, %1951 : vector<1x256xi32>
    %c16_i32_896 = arith.constant 16 : i32
    %1953 = vector.broadcast %c16_i32_896 : i32 to vector<1x256xi32>
    %1954 = arith.cmpi slt, %1952, %1953 : vector<1x256xi32>
    %1955 = arith.andi %1950, %1954 : vector<1x256xi1>
    %c1_i32_897 = arith.constant 1 : i32
    %1956 = vector.broadcast %c1_i32_897 : i32 to vector<1x256xi32>
    %1957 = arith.addi %1, %1956 : vector<1x256xi32>
    %c0_i32_898 = arith.constant 0 : i32
    %1958 = vector.broadcast %c0_i32_898 : i32 to vector<1x256xi32>
    %1959 = arith.cmpi sge, %1957, %1958 : vector<1x256xi32>
    %1960 = arith.andi %1955, %1959 : vector<1x256xi1>
    %c1_i32_899 = arith.constant 1 : i32
    %1961 = vector.broadcast %c1_i32_899 : i32 to vector<1x256xi32>
    %1962 = arith.addi %1, %1961 : vector<1x256xi32>
    %c16_i32_900 = arith.constant 16 : i32
    %1963 = vector.broadcast %c16_i32_900 : i32 to vector<1x256xi32>
    %1964 = arith.cmpi slt, %1962, %1963 : vector<1x256xi32>
    %1965 = arith.andi %1960, %1964 : vector<1x256xi1>
    %cst_901 = arith.constant 0.000000e+00 : f32
    %1966 = vector.shape_cast %1965 : vector<1x256xi1> to vector<1x256xi1>
    %1967 = vector.broadcast %1966 : vector<1x256xi1> to vector<16x256xi1>
    %1968 = vector.broadcast %cst_901 : f32 to vector<16x256xf32>
    %1969 = arith.select %1967, %1946, %1968 : vector<16x256xi1>, vector<16x256xf32>
    %c128_902 = arith.constant 128 : index
    %c0_903 = arith.constant 0 : index
    %1970 = vector.load %arg25[%c128_902, %c0_903] : memref<288x256xf32, #tpu.memory_space<vmem>>, vector<16x256xf32>
    tpu.vector_store %arg25[%c128_902, %c0_903], %1969 {strides = array<i32>} : memref<288x256xf32, #tpu.memory_space<vmem>>, vector<16x256xf32>,
    %cst_904 = arith.constant 0.000000e+00 : f32
    %1971 = vector.broadcast %cst_904 : f32 to vector<8x256xf32>
    %c0_905 = arith.constant 0 : index
    %c0_906 = arith.constant 0 : index
    %1972 = vector.load %arg19[%c0_905, %c0_906] : memref<8x144xf32, #tpu.memory_space<vmem>>, vector<8x128xf32>
    %c0_907 = arith.constant 0 : index
    %c0_908 = arith.constant 0 : index
    %1973 = vector.load %arg25[%c0_907, %c0_908] : memref<288x256xf32, #tpu.memory_space<vmem>>, vector<128x256xf32>
    %cst_909 = arith.constant dense<0.000000e+00> : vector<8x256xf32>
    %1974 = tpu.matmul %1972, %1973, %cst_909 {dimension_numbers = #tpu.dot_dimension_numbers<[1], [0], [0], [1], [0, 0, 1, 1], [], []>} : vector<8x128xf32>, vector<128x256xf32>, vector<8x256xf32> -> vector<8x256xf32>
    %1975 = arith.addf %1971, %1974 : vector<8x256xf32>
    %c0_910 = arith.constant 0 : index
    %c128_911 = arith.constant 128 : index
    %1976 = vector.load %arg19[%c0_910, %c128_911] : memref<8x144xf32, #tpu.memory_space<vmem>>, vector<8x16xf32>
    %c128_912 = arith.constant 128 : index
    %c0_913 = arith.constant 0 : index
    %1977 = vector.load %arg25[%c128_912, %c0_913] : memref<288x256xf32, #tpu.memory_space<vmem>>, vector<16x256xf32>
    %cst_914 = arith.constant dense<0.000000e+00> : vector<8x256xf32>
    %1978 = tpu.matmul %1976, %1977, %cst_914 {dimension_numbers = #tpu.dot_dimension_numbers<[1], [0], [0], [1], [0, 0, 1, 1], [], []>} : vector<8x16xf32>, vector<16x256xf32>, vector<8x256xf32> -> vector<8x256xf32>
    %1979 = arith.addf %1975, %1978 : vector<8x256xf32>
    %c0_915 = arith.constant 0 : index
    %c0_916 = arith.constant 0 : index
    %1980 = vector.load %arg20[%c0_915, %c0_916] : memref<24x1xf32, #tpu.memory_space<vmem>>, vector<8x1xf32>
    %c8_917 = arith.constant 8 : index
    %c0_918 = arith.constant 0 : index
    %1981 = vector.load %arg20[%c8_917, %c0_918] : memref<24x1xf32, #tpu.memory_space<vmem>>, vector<8x1xf32>
    %c16_919 = arith.constant 16 : index
    %c0_920 = arith.constant 0 : index
    %1982 = vector.load %arg20[%c16_919, %c0_920] : memref<24x1xf32, #tpu.memory_space<vmem>>, vector<8x1xf32>
    %1983 = vector.broadcast %1980 : vector<8x1xf32> to vector<8x256xf32>
    %1984 = arith.addf %1979, %1983 : vector<8x256xf32>
    %1985 = vector.shape_cast %1984 : vector<8x256xf32> to vector<1x8x256xf32>
    %cst_921 = arith.constant dense<0.000000e+00> : vector<1xf32>
    %1986 = vector.multi_reduction <add>, %1985, %cst_921 [1, 2] : vector<1x8x256xf32> to vector<1xf32>
    %1987 = vector.shape_cast %1986 : vector<1xf32> to vector<1x1x1xf32>
    %1988 = vector.extract %1987[0, 0, 0] : f32 from vector<1x1x1xf32>
    %1989 = vector.broadcast %1988 : f32 to vector<1x1xf32>
    %1990 = arith.mulf %1984, %1984 : vector<8x256xf32>
    %1991 = vector.shape_cast %1990 : vector<8x256xf32> to vector<1x8x256xf32>
    %cst_922 = arith.constant dense<0.000000e+00> : vector<1xf32>
    %1992 = vector.multi_reduction <add>, %1991, %cst_922 [1, 2] : vector<1x8x256xf32> to vector<1xf32>
    %1993 = vector.shape_cast %1992 : vector<1xf32> to vector<1x1x1xf32>
    %1994 = vector.extract %1993[0, 0, 0] : f32 from vector<1x1x1xf32>
    %1995 = vector.broadcast %1994 : f32 to vector<1x1xf32>
    %cst_923 = arith.constant 2.048000e+03 : f32
    %1996 = vector.broadcast %cst_923 : f32 to vector<1x1xf32>
    %1997 = arith.divf %1989, %1996 : vector<1x1xf32>
    %cst_924 = arith.constant 2.048000e+03 : f32
    %1998 = vector.broadcast %cst_924 : f32 to vector<1x1xf32>
    %1999 = arith.divf %1995, %1998 : vector<1x1xf32>
    %2000 = arith.mulf %1997, %1997 : vector<1x1xf32>
    %2001 = arith.subf %1999, %2000 : vector<1x1xf32>
    %2002 = vector.broadcast %1997 : vector<1x1xf32> to vector<8x256xf32>
    %2003 = arith.subf %1984, %2002 : vector<8x256xf32>
    %cst_925 = arith.constant 9.99999974E-6 : f32
    %2004 = vector.broadcast %cst_925 : f32 to vector<1x1xf32>
    %2005 = arith.addf %2001, %2004 : vector<1x1xf32>
    %2006 = math.rsqrt %2005 : vector<1x1xf32>
    %2007 = vector.broadcast %2006 : vector<1x1xf32> to vector<8x256xf32>
    %2008 = arith.mulf %2003, %2007 : vector<8x256xf32>
    %2009 = vector.broadcast %1981 : vector<8x1xf32> to vector<8x256xf32>
    %2010 = arith.mulf %2008, %2009 : vector<8x256xf32>
    %2011 = vector.broadcast %1982 : vector<8x1xf32> to vector<8x256xf32>
    %2012 = arith.addf %2010, %2011 : vector<8x256xf32>
    %cst_926 = arith.constant 0.000000e+00 : f32
    %2013 = vector.broadcast %cst_926 : f32 to vector<8x256xf32>
    %2014 = arith.maximumf %2012, %2013 : vector<8x256xf32>
    %c0_927 = arith.constant 0 : index
    %c0_928 = arith.constant 0 : index
    %c0_929 = arith.constant 0 : index
    %2015 = vector.load %arg23[%c0_927, %c0_928, %c0_929] : memref<1x8x256xf32, #tpu.memory_space<vmem>>, vector<1x8x256xf32>
    %2016 = vector.shape_cast %2015 : vector<1x8x256xf32> to vector<8x256xf32>
    %2017 = vector.shape_cast %2014 : vector<8x256xf32> to vector<1x8x256xf32>
    tpu.vector_store %arg23[%c0_927, %c0_928, %c0_929], %2017 {strides = array<i32>} : memref<1x8x256xf32, #tpu.memory_space<vmem>>, vector<1x8x256xf32>,
    return
  }
  func.func @transform_0(%arg0: i32) -> (i32, i32, i32) {
    %c0_i32 = arith.constant 0 : i32
    %c0_i32_0 = arith.constant 0 : i32
    %c0_i32_1 = arith.constant 0 : i32
    return %arg0, %c0_i32, %c0_i32_0 : i32, i32, i32
  }
  func.func @transform_1(%arg0: i32) -> (i32, i32) {
    %c0_i32 = arith.constant 0 : i32
    %c0_i32_0 = arith.constant 0 : i32
    %c0_i32_1 = arith.constant 0 : i32
    return %c0_i32, %c0_i32_0 : i32, i32
  }
  func.func @transform_2(%arg0: i32) -> (i32, i32) {
    %c0_i32 = arith.constant 0 : i32
    %c0_i32_0 = arith.constant 0 : i32
    %c0_i32_1 = arith.constant 0 : i32
    return %c0_i32, %c0_i32_0 : i32, i32
  }
  func.func @transform_3(%arg0: i32) -> (i32, i32, i32) {
    %c0_i32 = arith.constant 0 : i32
    %c0_i32_0 = arith.constant 0 : i32
    %c0_i32_1 = arith.constant 0 : i32
    return %arg0, %c0_i32, %c0_i32_0 : i32, i32, i32
  }
  func.func @transform_4(%arg0: i32) -> (i32, i32) {
    %c0_i32 = arith.constant 0 : i32
    %c0_i32_0 = arith.constant 0 : i32
    %c0_i32_1 = arith.constant 0 : i32
    return %c0_i32, %c0_i32_0 : i32, i32
  }
  func.func @transform_5(%arg0: i32) -> (i32, i32) {
    %c0_i32 = arith.constant 0 : i32
    %c0_i32_0 = arith.constant 0 : i32
    %c0_i32_1 = arith.constant 0 : i32
    return %c0_i32, %c0_i32_0 : i32, i32
  }
  func.func @transform_6(%arg0: i32) -> (i32, i32) {
    %c0_i32 = arith.constant 0 : i32
    %c0_i32_0 = arith.constant 0 : i32
    %c0_i32_1 = arith.constant 0 : i32
    return %c0_i32, %c0_i32_0 : i32, i32
  }
  func.func @transform_7(%arg0: i32) -> (i32, i32) {
    %c0_i32 = arith.constant 0 : i32
    %c0_i32_0 = arith.constant 0 : i32
    %c0_i32_1 = arith.constant 0 : i32
    return %c0_i32, %c0_i32_0 : i32, i32
  }
  func.func @transform_8(%arg0: i32) -> (i32, i32) {
    %c0_i32 = arith.constant 0 : i32
    %c0_i32_0 = arith.constant 0 : i32
    %c0_i32_1 = arith.constant 0 : i32
    return %c0_i32, %c0_i32_0 : i32, i32
  }
  func.func @transform_9(%arg0: i32) -> (i32, i32) {
    %c0_i32 = arith.constant 0 : i32
    %c0_i32_0 = arith.constant 0 : i32
    %c0_i32_1 = arith.constant 0 : i32
    return %c0_i32, %c0_i32_0 : i32, i32
  }
  func.func @transform_10(%arg0: i32) -> (i32, i32) {
    %c0_i32 = arith.constant 0 : i32
    %c0_i32_0 = arith.constant 0 : i32
    %c0_i32_1 = arith.constant 0 : i32
    return %c0_i32, %c0_i32_0 : i32, i32
  }
  func.func @transform_11(%arg0: i32) -> (i32, i32) {
    %c0_i32 = arith.constant 0 : i32
    %c0_i32_0 = arith.constant 0 : i32
    %c0_i32_1 = arith.constant 0 : i32
    return %c0_i32, %c0_i32_0 : i32, i32
  }
  func.func @transform_12(%arg0: i32) -> (i32, i32) {
    %c0_i32 = arith.constant 0 : i32
    %c0_i32_0 = arith.constant 0 : i32
    %c0_i32_1 = arith.constant 0 : i32
    return %c0_i32, %c0_i32_0 : i32, i32
  }
  func.func @transform_13(%arg0: i32) -> (i32, i32) {
    %c0_i32 = arith.constant 0 : i32
    %c0_i32_0 = arith.constant 0 : i32
    %c0_i32_1 = arith.constant 0 : i32
    return %c0_i32, %c0_i32_0 : i32, i32
  }
  func.func @transform_14(%arg0: i32) -> (i32, i32) {
    %c0_i32 = arith.constant 0 : i32
    %c0_i32_0 = arith.constant 0 : i32
    %c0_i32_1 = arith.constant 0 : i32
    return %c0_i32, %c0_i32_0 : i32, i32
  }
  func.func @transform_15(%arg0: i32) -> (i32, i32) {
    %c0_i32 = arith.constant 0 : i32
    %c0_i32_0 = arith.constant 0 : i32
    %c0_i32_1 = arith.constant 0 : i32
    return %c0_i32, %c0_i32_0 : i32, i32
  }
  func.func @transform_16(%arg0: i32) -> (i32, i32) {
    %c0_i32 = arith.constant 0 : i32
    %c0_i32_0 = arith.constant 0 : i32
    %c0_i32_1 = arith.constant 0 : i32
    return %c0_i32, %c0_i32_0 : i32, i32
  }
  func.func @transform_17(%arg0: i32) -> (i32, i32) {
    %c0_i32 = arith.constant 0 : i32
    %c0_i32_0 = arith.constant 0 : i32
    %c0_i32_1 = arith.constant 0 : i32
    return %c0_i32, %c0_i32_0 : i32, i32
  }
  func.func @transform_18(%arg0: i32) -> (i32, i32) {
    %c0_i32 = arith.constant 0 : i32
    %c0_i32_0 = arith.constant 0 : i32
    %c0_i32_1 = arith.constant 0 : i32
    return %c0_i32, %c0_i32_0 : i32, i32
  }
  func.func @transform_19(%arg0: i32) -> (i32, i32) {
    %c0_i32 = arith.constant 0 : i32
    %c0_i32_0 = arith.constant 0 : i32
    %c0_i32_1 = arith.constant 0 : i32
    return %c0_i32, %c0_i32_0 : i32, i32
  }
  func.func @transform_20(%arg0: i32) -> (i32, i32) {
    %c0_i32 = arith.constant 0 : i32
    %c0_i32_0 = arith.constant 0 : i32
    %c0_i32_1 = arith.constant 0 : i32
    return %c0_i32, %c0_i32_0 : i32, i32
  }
  func.func @transform_21(%arg0: i32) -> (i32, i32) {
    %c0_i32 = arith.constant 0 : i32
    %c0_i32_0 = arith.constant 0 : i32
    %c0_i32_1 = arith.constant 0 : i32
    return %c0_i32, %c0_i32_0 : i32, i32
  }
  func.func @transform_22(%arg0: i32) -> (i32, i32, i32) {
    %c0_i32 = arith.constant 0 : i32
    %c0_i32_0 = arith.constant 0 : i32
    %c0_i32_1 = arith.constant 0 : i32
    return %arg0, %c0_i32, %c0_i32_0 : i32, i32, i32
  }
  func.func @transform_23(%arg0: i32) -> (i32, i32, i32) {
    %c0_i32 = arith.constant 0 : i32
    %c0_i32_0 = arith.constant 0 : i32
    %c0_i32_1 = arith.constant 0 : i32
    return %arg0, %c0_i32, %c0_i32_0 : i32, i32, i32
  }
}

</mosaic_0001>

<llo_original>
// kernel: fdm_expand_block_forward.1
$region0: #{fdm_expand_block_forward.1}
  #allocation0 [shape = 'u32[]', space=smem, size = 0x4, offset = 0x4, fixed_abs, tag = 'smem constant byte address 0x4 - core index']
  #allocation1 [shape = 'u32[72,128]{1,0:T(1,128)}', space=vmem, size = 0x9000, scoped, tag = 'internal scratch']
  #allocation2 [shape = 'f32[288,256]{1,0:T(8,128)}', space=vmem, size = 0x48000, scoped, tag = 'scratch operand']
  #allocation3 [shape = 'f32[32,256]{1,0:T(8,128)}', space=vmem, size = 0x8000, scoped, tag = 'scratch operand']
  #allocation4 [shape = 'f32[1,1]{1,0:T(1,128)S(1)}', space=vmem, size = 0x200, scoped, tag = 'scoped memory for fdm_expand_block_forward.1']
  %s0 = inlined_call_operand.vmem [shape: f32[2,1,512], index: 0, kind: input, shape index: {}]
  %s1 = inlined_call_operand.hbm [shape: f32[512,256], index: 1, kind: input, shape index: {}]
  %s2 = inlined_call_operand.vmem [shape: s32[2,256], index: 2, kind: input, shape index: {}]
  %s3 = inlined_call_operand.vmem [shape: f32[2,8,256], index: 3, kind: input, shape index: {}]
  %s4 = inlined_call_operand.vmem [shape: f32[8,9], index: 4, kind: input, shape index: {}]
  %s5 = inlined_call_operand.vmem [shape: f32[24,1], index: 5, kind: input, shape index: {}]
  %s6 = inlined_call_operand.vmem [shape: f32[8,72], index: 6, kind: input, shape index: {}]
  %s7 = inlined_call_operand.vmem [shape: f32[24,1], index: 7, kind: input, shape index: {}]
  %s8 = inlined_call_operand.vmem [shape: f32[8,72], index: 8, kind: input, shape index: {}]
  %s9 = inlined_call_operand.vmem [shape: f32[24,1], index: 9, kind: input, shape index: {}]
  %s10 = inlined_call_operand.vmem [shape: f32[8,72], index: 10, kind: input, shape index: {}]
  %s11 = inlined_call_operand.vmem [shape: f32[24,1], index: 11, kind: input, shape index: {}]
  %s12 = inlined_call_operand.vmem [shape: f32[8,72], index: 12, kind: input, shape index: {}]
  %s13 = inlined_call_operand.vmem [shape: f32[24,1], index: 13, kind: input, shape index: {}]
  %s14 = inlined_call_operand.vmem [shape: f32[8,288], index: 14, kind: input, shape index: {}]
  %s15 = inlined_call_operand.vmem [shape: f32[24,1], index: 15, kind: input, shape index: {}]
  %s16 = inlined_call_operand.vmem [shape: f32[8,72], index: 16, kind: input, shape index: {}]
  %s17 = inlined_call_operand.vmem [shape: f32[24,1], index: 17, kind: input, shape index: {}]
  %s18 = inlined_call_operand.vmem [shape: f32[8,144], index: 18, kind: input, shape index: {}]
  %s19 = inlined_call_operand.vmem [shape: f32[24,1], index: 19, kind: input, shape index: {}]
  %s20 = inlined_call_operand.vmem [shape: f32[8,1], index: 20, kind: input, shape index: {}]
  %s21 = inlined_call_operand.<no memory space> [shape: f32[1,1], index: 21, kind: input, shape index: {}]
  %s22 = inlined_call_operand.vmem [shape: f32[2,8,256], index: 22, kind: output, shape index: {0}]
  %s23 = inlined_call_operand.vmem [shape: f32[2,1,256], index: 23, kind: output, shape index: {1}]
  %24 = xla_tuple %s22, %s23
  %s25 = sld [smem:[#allocation0]]
  $region133: #{fdm_expand_block_forward.1} parent=0
    _
  %s27 = ssub.s32 1, %s25
  %s28 = scalar_select 0, %s27, %s25
  %v29 = vstv %s21
  %30 = vst [vmem:[#allocation4] sm:$0x1] %v29
  $region1: #{fdm_expand_block_forward.1} parent=0
    #allocation5 [shape = 'u8[524288]{0}', space=vmem, size = 0x80000, scoped, tag = 'input window, operand 1, single buffered']
    #allocation6 [shape = 's32[2]{0}', space=sflag, size = 0x8, scoped, tag = 'scoped memory for fdm_expand_block_forward.1']
    %31 = vsyncpa [#allocation6], 0
    loop: start=0, step=1, limit=4
    $region2: #{fdm_expand_block_forward.1} parent=1 // loop_pre_header
      _
    $region3: #{fdm_expand_block_forward.1} parent=1 // loop_header
      %s33 = sphi 0, %s37
      %p34 = scmp.ge.s32.totalorder %s33, 4
      %s43 = sphi 0, %s45
      %s46 = sphi 0, %s43
      %s47 = sphi 0, %s46
      %s63 = sphi 0, %s47
      %s67 = sphi 0, %s67
      %s69 = sphi 0, %s67
      %s70 = sphi 0, %s69
      %s84 = sphi 0, %s70
      %s88 = sphi 0, %s88
      %s90 = sphi 0, %s88
      %s91 = sphi 0, %s90
      %s105 = sphi 0, %s91
      %s111 = sphi 0, %s113
      %s114 = sphi 0, %s111
      %s115 = sphi 0, %s114
      %s131 = sphi 0, %s115
      %s135 = sphi 0, %s135
      %s137 = sphi 0, %s135
      %s138 = sphi 0, %s137
      %s152 = sphi 0, %s138
      %s156 = sphi 0, %s156
      %s158 = sphi 0, %s156
      %s159 = sphi 0, %s158
      %s173 = sphi 0, %s159
      %s177 = sphi 0, %s177
      %s179 = sphi 0, %s177
      %s180 = sphi 0, %s179
      %s194 = sphi 0, %s180
      %s198 = sphi 0, %s198
      %s200 = sphi 0, %s198
      %s201 = sphi 0, %s200
      %s215 = sphi 0, %s201
      %s219 = sphi 0, %s219
      %s221 = sphi 0, %s219
      %s222 = sphi 0, %s221
      %s236 = sphi 0, %s222
      %s240 = sphi 0, %s240
      %s242 = sphi 0, %s240
      %s243 = sphi 0, %s242
      %s257 = sphi 0, %s243
      %s261 = sphi 0, %s261
      %s263 = sphi 0, %s261
      %s264 = sphi 0, %s263
      %s278 = sphi 0, %s264
      %s282 = sphi 0, %s282
      %s284 = sphi 0, %s282
      %s285 = sphi 0, %s284
      %s299 = sphi 0, %s285
      %s303 = sphi 0, %s303
      %s305 = sphi 0, %s303
      %s306 = sphi 0, %s305
      %s320 = sphi 0, %s306
      %s324 = sphi 0, %s324
      %s326 = sphi 0, %s324
      %s327 = sphi 0, %s326
      %s341 = sphi 0, %s327
      %s345 = sphi 0, %s345
      %s347 = sphi 0, %s345
      %s348 = sphi 0, %s347
      %s362 = sphi 0, %s348
      %s366 = sphi 0, %s366
      %s368 = sphi 0, %s366
      %s369 = sphi 0, %s368
      %s383 = sphi 0, %s369
      %s387 = sphi 0, %s387
      %s389 = sphi 0, %s387
      %s390 = sphi 0, %s389
      %s404 = sphi 0, %s390
      %s408 = sphi 0, %s408
      %s410 = sphi 0, %s408
      %s411 = sphi 0, %s410
      %s425 = sphi 0, %s411
      %s429 = sphi 0, %s429
      %s431 = sphi 0, %s429
      %s432 = sphi 0, %s431
      %s446 = sphi 0, %s432
      %s450 = sphi 0, %s450
      %s452 = sphi 0, %s450
      %s453 = sphi 0, %s452
      %s467 = sphi 0, %s453
      %s471 = sphi 0, %s471
      %s473 = sphi 0, %s471
      %s474 = sphi 0, %s473
      %s488 = sphi 0, %s474
      %s492 = sphi 0, %s492
      %s494 = sphi 0, %s492
      %s495 = sphi 0, %s494
      %s509 = sphi 0, %s495
      %s515 = sphi 0, %s517
      %s518 = sphi 0, %s515
      %s519 = sphi 0, %s518
      %s535 = sphi 0, %s519
      %s541 = sphi 0, %s543
      %s544 = sphi 0, %s541
      %s545 = sphi 0, %s544
      %s561 = sphi 0, %s545
    $region4: #{fdm_expand_block_forward.1} parent=1 // loop_header_branch
      %36 = sbr.rel (%p34) target = $region8
    $region5: #{fdm_expand_block_forward.1} parent=1 // loop_body
      %s38 = ssub.s32 %s33, 1
      %s39 = ssub.s32 %s33, 2
      %s40 = sadd.s32 %s33, 1
      %s41 = ssub.s32 %s33, %s40
      %p42 = scmp.eq.s32.totalorder %s41, 0
      %s44 = sadd.s32 %s43, 1
      %s45 = scalar_select %p42, %s43, %s44
      %p48 = pneg %p42
      %p49 = scmp.eq.s32.totalorder %s33, 1
      %p50 = por %p48, %p49
      %p51 = scmp.ne.s32.totalorder %s43, %s46
      %p52 = scmp.eq.s32.totalorder %s33, 0
      %p53 = por %p51, %p52
      %p54 = scmp.ne.s32.totalorder %s43, %s46
      %p55 = scmp.eq.s32.totalorder %s38, 1
      %p56 = por %p54, %p55
      %p57 = scmp.ne.s32.totalorder %s46, %s47
      %p58 = scmp.eq.s32.totalorder %s38, 0
      %p59 = por %p57, %p58
      %p60 = scmp.ne.s32.totalorder %s46, %s47
      %p61 = scmp.eq.s32.totalorder %s39, 1
      %p62 = por %p60, %p61
      %p64 = scmp.ne.s32.totalorder %s47, %s63
      %p65 = scmp.eq.s32.totalorder %s39, 0
      %p66 = por %p64, %p65
      %s68 = sadd.s32 %s67, 1
      %p71 = scmp.eq.s32.totalorder %s33, 1
      %p72 = scmp.ne.s32.totalorder %s67, %s69
      %p73 = scmp.eq.s32.totalorder %s33, 0
      %p74 = por %p72, %p73
      %p75 = scmp.ne.s32.totalorder %s67, %s69
      %p76 = scmp.eq.s32.totalorder %s38, 1
      %p77 = por %p75, %p76
      %p78 = scmp.ne.s32.totalorder %s69, %s70
      %p79 = scmp.eq.s32.totalorder %s38, 0
      %p80 = por %p78, %p79
      %p81 = scmp.ne.s32.totalorder %s69, %s70
      %p82 = scmp.eq.s32.totalorder %s39, 1
      %p83 = por %p81, %p82
      %p85 = scmp.ne.s32.totalorder %s70, %s84
      %p86 = scmp.eq.s32.totalorder %s39, 0
      %p87 = por %p85, %p86
      %s89 = sadd.s32 %s88, 1
      %p92 = scmp.eq.s32.totalorder %s33, 1
      %p93 = scmp.ne.s32.totalorder %s88, %s90
      %p94 = scmp.eq.s32.totalorder %s33, 0
      %p95 = por %p93, %p94
      %p96 = scmp.ne.s32.totalorder %s88, %s90
      %p97 = scmp.eq.s32.totalorder %s38, 1
      %p98 = por %p96, %p97
      %p99 = scmp.ne.s32.totalorder %s90, %s91
      %p100 = scmp.eq.s32.totalorder %s38, 0
      %p101 = por %p99, %p100
      %p102 = scmp.ne.s32.totalorder %s90, %s91
      %p103 = scmp.eq.s32.totalorder %s39, 1
      %p104 = por %p102, %p103
      %p106 = scmp.ne.s32.totalorder %s91, %s105
      %p107 = scmp.eq.s32.totalorder %s39, 0
      %p108 = por %p106, %p107
      %s109 = ssub.s32 %s33, %s40
      %p110 = scmp.eq.s32.totalorder %s109, 0
      %s112 = sadd.s32 %s111, 1
      %s113 = scalar_select %p110, %s111, %s112
      %p116 = pneg %p110
      %p117 = scmp.eq.s32.totalorder %s33, 1
      %p118 = por %p116, %p117
      %p119 = scmp.ne.s32.totalorder %s111, %s114
      %p120 = scmp.eq.s32.totalorder %s33, 0
      %p121 = por %p119, %p120
      %p122 = scmp.ne.s32.totalorder %s111, %s114
      %p123 = scmp.eq.s32.totalorder %s38, 1
      %p124 = por %p122, %p123
      %p125 = scmp.ne.s32.totalorder %s114, %s115
      %p126 = scmp.eq.s32.totalorder %s38, 0
      %p127 = por %p125, %p126
      %p128 = scmp.ne.s32.totalorder %s114, %s115
      %p129 = scmp.eq.s32.totalorder %s39, 1
      %p130 = por %p128, %p129
      %p132 = scmp.ne.s32.totalorder %s115, %s131
      %p133 = scmp.eq.s32.totalorder %s39, 0
      %p134 = por %p132, %p133
      %s136 = sadd.s32 %s135, 1
      %p139 = scmp.eq.s32.totalorder %s33, 1
      %p140 = scmp.ne.s32.totalorder %s135, %s137
      %p141 = scmp.eq.s32.totalorder %s33, 0
      %p142 = por %p140, %p141
      %p143 = scmp.ne.s32.totalorder %s135, %s137
      %p144 = scmp.eq.s32.totalorder %s38, 1
      %p145 = por %p143, %p144
      %p146 = scmp.ne.s32.totalorder %s137, %s138
      %p147 = scmp.eq.s32.totalorder %s38, 0
      %p148 = por %p146, %p147
      %p149 = scmp.ne.s32.totalorder %s137, %s138
      %p150 = scmp.eq.s32.totalorder %s39, 1
      %p151 = por %p149, %p150
      %p153 = scmp.ne.s32.totalorder %s138, %s152
      %p154 = scmp.eq.s32.totalorder %s39, 0
      %p155 = por %p153, %p154
      %s157 = sadd.s32 %s156, 1
      %p160 = scmp.eq.s32.totalorder %s33, 1
      %p161 = scmp.ne.s32.totalorder %s156, %s158
      %p162 = scmp.eq.s32.totalorder %s33, 0
      %p163 = por %p161, %p162
      %p164 = scmp.ne.s32.totalorder %s156, %s158
      %p165 = scmp.eq.s32.totalorder %s38, 1
      %p166 = por %p164, %p165
      %p167 = scmp.ne.s32.totalorder %s158, %s159
      %p168 = scmp.eq.s32.totalorder %s38, 0
      %p169 = por %p167, %p168
      %p170 = scmp.ne.s32.totalorder %s158, %s159
      %p171 = scmp.eq.s32.totalorder %s39, 1
      %p172 = por %p170, %p171
      %p174 = scmp.ne.s32.totalorder %s159, %s173
      %p175 = scmp.eq.s32.totalorder %s39, 0
      %p176 = por %p174, %p175
      %s178 = sadd.s32 %s177, 1
      %p181 = scmp.eq.s32.totalorder %s33, 1
      %p182 = scmp.ne.s32.totalorder %s177, %s179
      %p183 = scmp.eq.s32.totalorder %s33, 0
      %p184 = por %p182, %p183
      %p185 = scmp.ne.s32.totalorder %s177, %s179
      %p186 = scmp.eq.s32.totalorder %s38, 1
      %p187 = por %p185, %p186
      %p188 = scmp.ne.s32.totalorder %s179, %s180
      %p189 = scmp.eq.s32.totalorder %s38, 0
      %p190 = por %p188, %p189
      %p191 = scmp.ne.s32.totalorder %s179, %s180
      %p192 = scmp.eq.s32.totalorder %s39, 1
      %p193 = por %p191, %p192
      %p195 = scmp.ne.s32.totalorder %s180, %s194
      %p196 = scmp.eq.s32.totalorder %s39, 0
      %p197 = por %p195, %p196
      %s199 = sadd.s32 %s198, 1
      %p202 = scmp.eq.s32.totalorder %s33, 1
      %p203 = scmp.ne.s32.totalorder %s198, %s200
      %p204 = scmp.eq.s32.totalorder %s33, 0
      %p205 = por %p203, %p204
      %p206 = scmp.ne.s32.totalorder %s198, %s200
      %p207 = scmp.eq.s32.totalorder %s38, 1
      %p208 = por %p206, %p207
      %p209 = scmp.ne.s32.totalorder %s200, %s201
      %p210 = scmp.eq.s32.totalorder %s38, 0
      %p211 = por %p209, %p210
      %p212 = scmp.ne.s32.totalorder %s200, %s201
      %p213 = scmp.eq.s32.totalorder %s39, 1
      %p214 = por %p212, %p213
      %p216 = scmp.ne.s32.totalorder %s201, %s215
      %p217 = scmp.eq.s32.totalorder %s39, 0
      %p218 = por %p216, %p217
      %s220 = sadd.s32 %s219, 1
      %p223 = scmp.eq.s32.totalorder %s33, 1
      %p224 = scmp.ne.s32.totalorder %s219, %s221
      %p225 = scmp.eq.s32.totalorder %s33, 0
      %p226 = por %p224, %p225
      %p227 = scmp.ne.s32.totalorder %s219, %s221
      %p228 = scmp.eq.s32.totalorder %s38, 1
      %p229 = por %p227, %p228
      %p230 = scmp.ne.s32.totalorder %s221, %s222
      %p231 = scmp.eq.s32.totalorder %s38, 0
      %p232 = por %p230, %p231
      %p233 = scmp.ne.s32.totalorder %s221, %s222
      %p234 = scmp.eq.s32.totalorder %s39, 1
      %p235 = por %p233, %p234
      %p237 = scmp.ne.s32.totalorder %s222, %s236
      %p238 = scmp.eq.s32.totalorder %s39, 0
      %p239 = por %p237, %p238
      %s241 = sadd.s32 %s240, 1
      %p244 = scmp.eq.s32.totalorder %s33, 1
      %p245 = scmp.ne.s32.totalorder %s240, %s242
      %p246 = scmp.eq.s32.totalorder %s33, 0
      %p247 = por %p245, %p246
      %p248 = scmp.ne.s32.totalorder %s240, %s242
      %p249 = scmp.eq.s32.totalorder %s38, 1
      %p250 = por %p248, %p249
      %p251 = scmp.ne.s32.totalorder %s242, %s243
      %p252 = scmp.eq.s32.totalorder %s38, 0
      %p253 = por %p251, %p252
      %p254 = scmp.ne.s32.totalorder %s242, %s243
      %p255 = scmp.eq.s32.totalorder %s39, 1
      %p256 = por %p254, %p255
      %p258 = scmp.ne.s32.totalorder %s243, %s257
      %p259 = scmp.eq.s32.totalorder %s39, 0
      %p260 = por %p258, %p259
      %s262 = sadd.s32 %s261, 1
      %p265 = scmp.eq.s32.totalorder %s33, 1
      %p266 = scmp.ne.s32.totalorder %s261, %s263
      %p267 = scmp.eq.s32.totalorder %s33, 0
      %p268 = por %p266, %p267
      %p269 = scmp.ne.s32.totalorder %s261, %s263
      %p270 = scmp.eq.s32.totalorder %s38, 1
      %p271 = por %p269, %p270
      %p272 = scmp.ne.s32.totalorder %s263, %s264
      %p273 = scmp.eq.s32.totalorder %s38, 0
      %p274 = por %p272, %p273
      %p275 = scmp.ne.s32.totalorder %s263, %s264
      %p276 = scmp.eq.s32.totalorder %s39, 1
      %p277 = por %p275, %p276
      %p279 = scmp.ne.s32.totalorder %s264, %s278
      %p280 = scmp.eq.s32.totalorder %s39, 0
      %p281 = por %p279, %p280
      %s283 = sadd.s32 %s282, 1
      %p286 = scmp.eq.s32.totalorder %s33, 1
      %p287 = scmp.ne.s32.totalorder %s282, %s284
      %p288 = scmp.eq.s32.totalorder %s33, 0
      %p289 = por %p287, %p288
      %p290 = scmp.ne.s32.totalorder %s282, %s284
      %p291 = scmp.eq.s32.totalorder %s38, 1
      %p292 = por %p290, %p291
      %p293 = scmp.ne.s32.totalorder %s284, %s285
      %p294 = scmp.eq.s32.totalorder %s38, 0
      %p295 = por %p293, %p294
      %p296 = scmp.ne.s32.totalorder %s284, %s285
      %p297 = scmp.eq.s32.totalorder %s39, 1
      %p298 = por %p296, %p297
      %p300 = scmp.ne.s32.totalorder %s285, %s299
      %p301 = scmp.eq.s32.totalorder %s39, 0
      %p302 = por %p300, %p301
      %s304 = sadd.s32 %s303, 1
      %p307 = scmp.eq.s32.totalorder %s33, 1
      %p308 = scmp.ne.s32.totalorder %s303, %s305
      %p309 = scmp.eq.s32.totalorder %s33, 0
      %p310 = por %p308, %p309
      %p311 = scmp.ne.s32.totalorder %s303, %s305
      %p312 = scmp.eq.s32.totalorder %s38, 1
      %p313 = por %p311, %p312
      %p314 = scmp.ne.s32.totalorder %s305, %s306
      %p315 = scmp.eq.s32.totalorder %s38, 0
      %p316 = por %p314, %p315
      %p317 = scmp.ne.s32.totalorder %s305, %s306
      %p318 = scmp.eq.s32.totalorder %s39, 1
      %p319 = por %p317, %p318
      %p321 = scmp.ne.s32.totalorder %s306, %s320
      %p322 = scmp.eq.s32.totalorder %s39, 0
      %p323 = por %p321, %p322
      %s325 = sadd.s32 %s324, 1
      %p328 = scmp.eq.s32.totalorder %s33, 1
      %p329 = scmp.ne.s32.totalorder %s324, %s326
      %p330 = scmp.eq.s32.totalorder %s33, 0
      %p331 = por %p329, %p330
      %p332 = scmp.ne.s32.totalorder %s324, %s326
      %p333 = scmp.eq.s32.totalorder %s38, 1
      %p334 = por %p332, %p333
      %p335 = scmp.ne.s32.totalorder %s326, %s327
      %p336 = scmp.eq.s32.totalorder %s38, 0
      %p337 = por %p335, %p336
      %p338 = scmp.ne.s32.totalorder %s326, %s327
      %p339 = scmp.eq.s32.totalorder %s39, 1
      %p340 = por %p338, %p339
      %p342 = scmp.ne.s32.totalorder %s327, %s341
      %p343 = scmp.eq.s32.totalorder %s39, 0
      %p344 = por %p342, %p343
      %s346 = sadd.s32 %s345, 1
      %p349 = scmp.eq.s32.totalorder %s33, 1
      %p350 = scmp.ne.s32.totalorder %s345, %s347
      %p351 = scmp.eq.s32.totalorder %s33, 0
      %p352 = por %p350, %p351
      %p353 = scmp.ne.s32.totalorder %s345, %s347
      %p354 = scmp.eq.s32.totalorder %s38, 1
      %p355 = por %p353, %p354
      %p356 = scmp.ne.s32.totalorder %s347, %s348
      %p357 = scmp.eq.s32.totalorder %s38, 0
      %p358 = por %p356, %p357
      %p359 = scmp.ne.s32.totalorder %s347, %s348
      %p360 = scmp.eq.s32.totalorder %s39, 1
      %p361 = por %p359, %p360
      %p363 = scmp.ne.s32.totalorder %s348, %s362
      %p364 = scmp.eq.s32.totalorder %s39, 0
      %p365 = por %p363, %p364
      %s367 = sadd.s32 %s366, 1
      %p370 = scmp.eq.s32.totalorder %s33, 1
      %p371 = scmp.ne.s32.totalorder %s366, %s368
      %p372 = scmp.eq.s32.totalorder %s33, 0
      %p373 = por %p371, %p372
      %p374 = scmp.ne.s32.totalorder %s366, %s368
      %p375 = scmp.eq.s32.totalorder %s38, 1
      %p376 = por %p374, %p375
      %p377 = scmp.ne.s32.totalorder %s368, %s369
      %p378 = scmp.eq.s32.totalorder %s38, 0
      %p379 = por %p377, %p378
      %p380 = scmp.ne.s32.totalorder %s368, %s369
      %p381 = scmp.eq.s32.totalorder %s39, 1
      %p382 = por %p380, %p381
      %p384 = scmp.ne.s32.totalorder %s369, %s383
      %p385 = scmp.eq.s32.totalorder %s39, 0
      %p386 = por %p384, %p385
      %s388 = sadd.s32 %s387, 1
      %p391 = scmp.eq.s32.totalorder %s33, 1
      %p392 = scmp.ne.s32.totalorder %s387, %s389
      %p393 = scmp.eq.s32.totalorder %s33, 0
      %p394 = por %p392, %p393
      %p395 = scmp.ne.s32.totalorder %s387, %s389
      %p396 = scmp.eq.s32.totalorder %s38, 1
      %p397 = por %p395, %p396
      %p398 = scmp.ne.s32.totalorder %s389, %s390
      %p399 = scmp.eq.s32.totalorder %s38, 0
      %p400 = por %p398, %p399
      %p401 = scmp.ne.s32.totalorder %s389, %s390
      %p402 = scmp.eq.s32.totalorder %s39, 1
      %p403 = por %p401, %p402
      %p405 = scmp.ne.s32.totalorder %s390, %s404
      %p406 = scmp.eq.s32.totalorder %s39, 0
      %p407 = por %p405, %p406
      %s409 = sadd.s32 %s408, 1
      %p412 = scmp.eq.s32.totalorder %s33, 1
      %p413 = scmp.ne.s32.totalorder %s408, %s410
      %p414 = scmp.eq.s32.totalorder %s33, 0
      %p415 = por %p413, %p414
      %p416 = scmp.ne.s32.totalorder %s408, %s410
      %p417 = scmp.eq.s32.totalorder %s38, 1
      %p418 = por %p416, %p417
      %p419 = scmp.ne.s32.totalorder %s410, %s411
      %p420 = scmp.eq.s32.totalorder %s38, 0
      %p421 = por %p419, %p420
      %p422 = scmp.ne.s32.totalorder %s410, %s411
      %p423 = scmp.eq.s32.totalorder %s39, 1
      %p424 = por %p422, %p423
      %p426 = scmp.ne.s32.totalorder %s411, %s425
      %p427 = scmp.eq.s32.totalorder %s39, 0
      %p428 = por %p426, %p427
      %s430 = sadd.s32 %s429, 1
      %p433 = scmp.eq.s32.totalorder %s33, 1
      %p434 = scmp.ne.s32.totalorder %s429, %s431
      %p435 = scmp.eq.s32.totalorder %s33, 0
      %p436 = por %p434, %p435
      %p437 = scmp.ne.s32.totalorder %s429, %s431
      %p438 = scmp.eq.s32.totalorder %s38, 1
      %p439 = por %p437, %p438
      %p440 = scmp.ne.s32.totalorder %s431, %s432
      %p441 = scmp.eq.s32.totalorder %s38, 0
      %p442 = por %p440, %p441
      %p443 = scmp.ne.s32.totalorder %s431, %s432
      %p444 = scmp.eq.s32.totalorder %s39, 1
      %p445 = por %p443, %p444
      %p447 = scmp.ne.s32.totalorder %s432, %s446
      %p448 = scmp.eq.s32.totalorder %s39, 0
      %p449 = por %p447, %p448
      %s451 = sadd.s32 %s450, 1
      %p454 = scmp.eq.s32.totalorder %s33, 1
      %p455 = scmp.ne.s32.totalorder %s450, %s452
      %p456 = scmp.eq.s32.totalorder %s33, 0
      %p457 = por %p455, %p456
      %p458 = scmp.ne.s32.totalorder %s450, %s452
      %p459 = scmp.eq.s32.totalorder %s38, 1
      %p460 = por %p458, %p459
      %p461 = scmp.ne.s32.totalorder %s452, %s453
      %p462 = scmp.eq.s32.totalorder %s38, 0
      %p463 = por %p461, %p462
      %p464 = scmp.ne.s32.totalorder %s452, %s453
      %p465 = scmp.eq.s32.totalorder %s39, 1
      %p466 = por %p464, %p465
      %p468 = scmp.ne.s32.totalorder %s453, %s467
      %p469 = scmp.eq.s32.totalorder %s39, 0
      %p470 = por %p468, %p469
      %s472 = sadd.s32 %s471, 1
      %p475 = scmp.eq.s32.totalorder %s33, 1
      %p476 = scmp.ne.s32.totalorder %s471, %s473
      %p477 = scmp.eq.s32.totalorder %s33, 0
      %p478 = por %p476, %p477
      %p479 = scmp.ne.s32.totalorder %s471, %s473
      %p480 = scmp.eq.s32.totalorder %s38, 1
      %p481 = por %p479, %p480
      %p482 = scmp.ne.s32.totalorder %s473, %s474
      %p483 = scmp.eq.s32.totalorder %s38, 0
      %p484 = por %p482, %p483
      %p485 = scmp.ne.s32.totalorder %s473, %s474
      %p486 = scmp.eq.s32.totalorder %s39, 1
      %p487 = por %p485, %p486
      %p489 = scmp.ne.s32.totalorder %s474, %s488
      %p490 = scmp.eq.s32.totalorder %s39, 0
      %p491 = por %p489, %p490
      %s493 = sadd.s32 %s492, 1
      %p496 = scmp.eq.s32.totalorder %s33, 1
      %p497 = scmp.ne.s32.totalorder %s492, %s494
      %p498 = scmp.eq.s32.totalorder %s33, 0
      %p499 = por %p497, %p498
      %p500 = scmp.ne.s32.totalorder %s492, %s494
      %p501 = scmp.eq.s32.totalorder %s38, 1
      %p502 = por %p500, %p501
      %p503 = scmp.ne.s32.totalorder %s494, %s495
      %p504 = scmp.eq.s32.totalorder %s38, 0
      %p505 = por %p503, %p504
      %p506 = scmp.ne.s32.totalorder %s494, %s495
      %p507 = scmp.eq.s32.totalorder %s39, 1
      %p508 = por %p506, %p507
      %p510 = scmp.ne.s32.totalorder %s495, %s509
      %p511 = scmp.eq.s32.totalorder %s39, 0
      %p512 = por %p510, %p511
      %s513 = ssub.s32 %s33, %s40
      %p514 = scmp.eq.s32.totalorder %s513, 0
      %s516 = sadd.s32 %s515, 1
      %s517 = scalar_select %p514, %s515, %s516
      %p520 = pneg %p514
      %p521 = scmp.eq.s32.totalorder %s33, 1
      %p522 = por %p520, %p521
      %p523 = scmp.ne.s32.totalorder %s515, %s518
      %p524 = scmp.eq.s32.totalorder %s33, 0
      %p525 = por %p523, %p524
      %p526 = scmp.ne.s32.totalorder %s515, %s518
      %p527 = scmp.eq.s32.totalorder %s38, 1
      %p528 = por %p526, %p527
      %p529 = scmp.ne.s32.totalorder %s518, %s519
      %p530 = scmp.eq.s32.totalorder %s38, 0
      %p531 = por %p529, %p530
      %p532 = scmp.ne.s32.totalorder %s518, %s519
      %p533 = scmp.eq.s32.totalorder %s39, 1
      %p534 = por %p532, %p533
      %p536 = scmp.ne.s32.totalorder %s519, %s535
      %p537 = scmp.eq.s32.totalorder %s39, 0
      %p538 = por %p536, %p537
      %s539 = ssub.s32 %s33, %s40
      %p540 = scmp.eq.s32.totalorder %s539, 0
      %s542 = sadd.s32 %s541, 1
      %s543 = scalar_select %p540, %s541, %s542
      %p546 = pneg %p540
      %p547 = scmp.eq.s32.totalorder %s33, 1
      %p548 = por %p546, %p547
      %p549 = scmp.ne.s32.totalorder %s541, %s544
      %p550 = scmp.eq.s32.totalorder %s33, 0
      %p551 = por %p549, %p550
      %p552 = scmp.ne.s32.totalorder %s541, %s544
      %p553 = scmp.eq.s32.totalorder %s38, 1
      %p554 = por %p552, %p553
      %p555 = scmp.ne.s32.totalorder %s544, %s545
      %p556 = scmp.eq.s32.totalorder %s38, 0
      %p557 = por %p555, %p556
      %p558 = scmp.ne.s32.totalorder %s544, %s545
      %p559 = scmp.eq.s32.totalorder %s39, 1
      %p560 = por %p558, %p559
      %p562 = scmp.ne.s32.totalorder %s545, %s561
      %p563 = scmp.eq.s32.totalorder %s39, 0
      %p564 = por %p562, %p563
      %p565 = scmp.le.s32.totalorder 1, %s33
      %p566 = scmp.lt.s32.totalorder %s33, 3
      %p567 = pnand %p565, %p566
      %p568 = pneg %p567
      // Predicated region
      $region9: #{fdm_expand_block_forward.1} parent=5 // pred_check
        _
      $region10: #{fdm_expand_block_forward.1} parent=5 // pred_check_branch
        %570 = sbr.rel (%p567) target = $region12
      $region11: #{fdm_expand_block_forward.1} parent=5 // pred_region
        %s571 = ssub.s32 %s33, 1
        // Predicated region
        $region13: #{fdm_expand_block_forward.1} parent=11 // pred_check
          %p572 = pneg %p80
        $region14: #{fdm_expand_block_forward.1} parent=11 // pred_check_branch
          %574 = sbr.rel (%p572) target = $region16
        $region15: #{fdm_expand_block_forward.1} parent=11 // pred_region
          %576 = vsyncadd [#allocation6], 0
          %s577 = sshll.u32 %s1, 4
          %s578 = int_to_ptr.hbm [resolvable:$true] %s577
          %s579 = sshll.u32 [#allocation5], 4
          %s580 = int_to_ptr.vmem [resolvable:$true] %s579
          %585 = dma.hbm_to_vmem [thread:$0]  %s578, 16384, %s580, [#allocation6], 256, 256, 16
        $region16: #{fdm_expand_block_forward.1} parent=11 // pred_fallthru
          _
        // Predicated region
        $region17: #{fdm_expand_block_forward.1} parent=11 // pred_check
          %p586 = pneg %p101
        $region18: #{fdm_expand_block_forward.1} parent=11 // pred_check_branch
          %588 = sbr.rel (%p586) target = $region20
        $region19: #{fdm_expand_block_forward.1} parent=11 // pred_region
          _
        $region20: #{fdm_expand_block_forward.1} parent=11 // pred_fallthru
          _
        // Predicated region
        $region21: #{fdm_expand_block_forward.1} parent=11 // pred_check
          %p589 = pneg %p148
        $region22: #{fdm_expand_block_forward.1} parent=11 // pred_check_branch
          %591 = sbr.rel (%p589) target = $region24
        $region23: #{fdm_expand_block_forward.1} parent=11 // pred_region
          _
        $region24: #{fdm_expand_block_forward.1} parent=11 // pred_fallthru
          _
        // Predicated region
        $region25: #{fdm_expand_block_forward.1} parent=11 // pred_check
          %p592 = pneg %p169
        $region26: #{fdm_expand_block_forward.1} parent=11 // pred_check_branch
          %594 = sbr.rel (%p592) target = $region28
        $region27: #{fdm_expand_block_forward.1} parent=11 // pred_region
          _
        $region28: #{fdm_expand_block_forward.1} parent=11 // pred_fallthru
          _
        // Predicated region
        $region29: #{fdm_expand_block_forward.1} parent=11 // pred_check
          %p595 = pneg %p190
        $region30: #{fdm_expand_block_forward.1} parent=11 // pred_check_branch
          %597 = sbr.rel (%p595) target = $region32
        $region31: #{fdm_expand_block_forward.1} parent=11 // pred_region
          _
        $region32: #{fdm_expand_block_forward.1} parent=11 // pred_fallthru
          _
        // Predicated region
        $region33: #{fdm_expand_block_forward.1} parent=11 // pred_check
          %p598 = pneg %p211
        $region34: #{fdm_expand_block_forward.1} parent=11 // pred_check_branch
          %600 = sbr.rel (%p598) target = $region36
        $region35: #{fdm_expand_block_forward.1} parent=11 // pred_region
          _
        $region36: #{fdm_expand_block_forward.1} parent=11 // pred_fallthru
          _
        // Predicated region
        $region37: #{fdm_expand_block_forward.1} parent=11 // pred_check
          %p601 = pneg %p232
        $region38: #{fdm_expand_block_forward.1} parent=11 // pred_check_branch
          %603 = sbr.rel (%p601) target = $region40
        $region39: #{fdm_expand_block_forward.1} parent=11 // pred_region
          _
        $region40: #{fdm_expand_block_forward.1} parent=11 // pred_fallthru
          _
        // Predicated region
        $region41: #{fdm_expand_block_forward.1} parent=11 // pred_check
          %p604 = pneg %p253
        $region42: #{fdm_expand_block_forward.1} parent=11 // pred_check_branch
          %606 = sbr.rel (%p604) target = $region44
        $region43: #{fdm_expand_block_forward.1} parent=11 // pred_region
          _
        $region44: #{fdm_expand_block_forward.1} parent=11 // pred_fallthru
          _
        // Predicated region
        $region45: #{fdm_expand_block_forward.1} parent=11 // pred_check
          %p607 = pneg %p274
        $region46: #{fdm_expand_block_forward.1} parent=11 // pred_check_branch
          %609 = sbr.rel (%p607) target = $region48
        $region47: #{fdm_expand_block_forward.1} parent=11 // pred_region
          _
        $region48: #{fdm_expand_block_forward.1} parent=11 // pred_fallthru
          _
        // Predicated region
        $region49: #{fdm_expand_block_forward.1} parent=11 // pred_check
          %p610 = pneg %p295
        $region50: #{fdm_expand_block_forward.1} parent=11 // pred_check_branch
          %612 = sbr.rel (%p610) target = $region52
        $region51: #{fdm_expand_block_forward.1} parent=11 // pred_region
          _
        $region52: #{fdm_expand_block_forward.1} parent=11 // pred_fallthru
          _
        // Predicated region
        $region53: #{fdm_expand_block_forward.1} parent=11 // pred_check
          %p613 = pneg %p316
        $region54: #{fdm_expand_block_forward.1} parent=11 // pred_check_branch
          %615 = sbr.rel (%p613) target = $region56
        $region55: #{fdm_expand_block_forward.1} parent=11 // pred_region
          _
        $region56: #{fdm_expand_block_forward.1} parent=11 // pred_fallthru
          _
        // Predicated region
        $region57: #{fdm_expand_block_forward.1} parent=11 // pred_check
          %p616 = pneg %p337
        $region58: #{fdm_expand_block_forward.1} parent=11 // pred_check_branch
          %618 = sbr.rel (%p616) target = $region60
        $region59: #{fdm_expand_block_forward.1} parent=11 // pred_region
          _
        $region60: #{fdm_expand_block_forward.1} parent=11 // pred_fallthru
          _
        // Predicated region
        $region61: #{fdm_expand_block_forward.1} parent=11 // pred_check
          %p619 = pneg %p358
        $region62: #{fdm_expand_block_forward.1} parent=11 // pred_check_branch
          %621 = sbr.rel (%p619) target = $region64
        $region63: #{fdm_expand_block_forward.1} parent=11 // pred_region
          _
        $region64: #{fdm_expand_block_forward.1} parent=11 // pred_fallthru
          _
        // Predicated region
        $region65: #{fdm_expand_block_forward.1} parent=11 // pred_check
          %p622 = pneg %p379
        $region66: #{fdm_expand_block_forward.1} parent=11 // pred_check_branch
          %624 = sbr.rel (%p622) target = $region68
        $region67: #{fdm_expand_block_forward.1} parent=11 // pred_region
          _
        $region68: #{fdm_expand_block_forward.1} parent=11 // pred_fallthru
          _
        // Predicated region
        $region69: #{fdm_expand_block_forward.1} parent=11 // pred_check
          %p625 = pneg %p400
        $region70: #{fdm_expand_block_forward.1} parent=11 // pred_check_branch
          %627 = sbr.rel (%p625) target = $region72
        $region71: #{fdm_expand_block_forward.1} parent=11 // pred_region
          _
        $region72: #{fdm_expand_block_forward.1} parent=11 // pred_fallthru
          _
        // Predicated region
        $region73: #{fdm_expand_block_forward.1} parent=11 // pred_check
          %p628 = pneg %p421
        $region74: #{fdm_expand_block_forward.1} parent=11 // pred_check_branch
          %630 = sbr.rel (%p628) target = $region76
        $region75: #{fdm_expand_block_forward.1} parent=11 // pred_region
          _
        $region76: #{fdm_expand_block_forward.1} parent=11 // pred_fallthru
          _
        // Predicated region
        $region77: #{fdm_expand_block_forward.1} parent=11 // pred_check
          %p631 = pneg %p442
        $region78: #{fdm_expand_block_forward.1} parent=11 // pred_check_branch
          %633 = sbr.rel (%p631) target = $region80
        $region79: #{fdm_expand_block_forward.1} parent=11 // pred_region
          _
        $region80: #{fdm_expand_block_forward.1} parent=11 // pred_fallthru
          _
        // Predicated region
        $region81: #{fdm_expand_block_forward.1} parent=11 // pred_check
          %p634 = pneg %p463
        $region82: #{fdm_expand_block_forward.1} parent=11 // pred_check_branch
          %636 = sbr.rel (%p634) target = $region84
        $region83: #{fdm_expand_block_forward.1} parent=11 // pred_region
          _
        $region84: #{fdm_expand_block_forward.1} parent=11 // pred_fallthru
          _
        // Predicated region
        $region85: #{fdm_expand_block_forward.1} parent=11 // pred_check
          %p637 = pneg %p484
        $region86: #{fdm_expand_block_forward.1} parent=11 // pred_check_branch
          %639 = sbr.rel (%p637) target = $region88
        $region87: #{fdm_expand_block_forward.1} parent=11 // pred_region
          _
        $region88: #{fdm_expand_block_forward.1} parent=11 // pred_fallthru
          _
        // Predicated region
        $region89: #{fdm_expand_block_forward.1} parent=11 // pred_check
          %p640 = pneg %p505
        $region90: #{fdm_expand_block_forward.1} parent=11 // pred_check_branch
          %642 = sbr.rel (%p640) target = $region92
        $region91: #{fdm_expand_block_forward.1} parent=11 // pred_region
          _
        $region92: #{fdm_expand_block_forward.1} parent=11 // pred_fallthru
          _
      $region12: #{fdm_expand_block_forward.1} parent=5 // pred_fallthru
        _
      %p643 = scmp.lt.s32.totalorder %s33, 2
      // Predicated region
      $region93: #{fdm_expand_block_forward.1} parent=5 // pred_check
        %p644 = pneg %p643
      $region94: #{fdm_expand_block_forward.1} parent=5 // pred_check_branch
        %646 = sbr.rel (%p644) target = $region96
      $region95: #{fdm_expand_block_forward.1} parent=5 // pred_region
        // Predicated region
        $region97: #{fdm_expand_block_forward.1} parent=95 // pred_check
          %p647 = pneg %p53
        $region98: #{fdm_expand_block_forward.1} parent=95 // pred_check_branch
          %649 = sbr.rel (%p647) target = $region100
        $region99: #{fdm_expand_block_forward.1} parent=95 // pred_region
          %p650 = scmp.lt.s32.totalorder %s33, 1
          %s651 = scalar_select %p650, %s33, 1
          %s652 = smul.addr %s651, 4
          %s653 = scalar_lea.vmem %s0, %s652
        $region100: #{fdm_expand_block_forward.1} parent=95 // pred_fallthru
          _
        // Predicated region
        $region101: #{fdm_expand_block_forward.1} parent=95 // pred_check
          %p654 = pneg %p121
        $region102: #{fdm_expand_block_forward.1} parent=95 // pred_check_branch
          %656 = sbr.rel (%p654) target = $region104
        $region103: #{fdm_expand_block_forward.1} parent=95 // pred_region
          %p657 = scmp.lt.s32.totalorder %s33, 1
          %s658 = scalar_select %p657, %s33, 1
          %s659 = smul.addr %s658, 2
          %s660 = smul.addr %s659, 8
          %s661 = scalar_lea.vmem %s3, %s660
        $region104: #{fdm_expand_block_forward.1} parent=95 // pred_fallthru
          _
      $region96: #{fdm_expand_block_forward.1} parent=5 // pred_fallthru
        _
      %p662 = scmp.le.s32.totalorder 1, %s33
      %p663 = scmp.lt.s32.totalorder %s33, 3
      %p664 = pnand %p662, %p663
      %p665 = pneg %p664
      // Predicated region
      $region105: #{fdm_expand_block_forward.1} parent=5 // pred_check
        _
      $region106: #{fdm_expand_block_forward.1} parent=5 // pred_check_branch
        %667 = sbr.rel (%p664) target = $region108
      $region107: #{fdm_expand_block_forward.1} parent=5 // pred_region
        %s668 = ssub.s32 %s33, 1
        // Predicated region
        $region109: #{fdm_expand_block_forward.1} parent=107 // pred_check
          %p669 = pneg %p80
        $region110: #{fdm_expand_block_forward.1} parent=107 // pred_check_branch
          %671 = sbr.rel (%p669) target = $region112
        $region111: #{fdm_expand_block_forward.1} parent=107 // pred_region
          %673 = dma.done [#allocation6], 16384
        $region112: #{fdm_expand_block_forward.1} parent=107 // pred_fallthru
          _
        %p674 = scmp.lt.s32.totalorder %s38, 1
        %s675 = scalar_select %p674, %s38, 1
        %s676 = smul.addr %s675, 4
        %s677 = scalar_lea.vmem %s0, %s676
        %p678 = pneg %p59
        %p679 = pneg %p56
        %p680 = pneg %p80
        %p681 = pneg %p77
        %p682 = pneg %p101
        %p683 = pneg %p98
        %p684 = scmp.lt.s32.totalorder %s38, 1
        %s685 = scalar_select %p684, %s38, 1
        %s686 = smul.addr %s685, 2
        %s687 = smul.addr %s686, 8
        %s688 = scalar_lea.vmem %s3, %s687
        %p689 = pneg %p127
        %p690 = pneg %p124
        %p691 = pneg %p148
        %p692 = pneg %p145
        %p693 = pneg %p169
        %p694 = pneg %p166
        %p695 = pneg %p190
        %p696 = pneg %p187
        %p697 = pneg %p211
        %p698 = pneg %p208
        %p699 = pneg %p232
        %p700 = pneg %p229
        %p701 = pneg %p253
        %p702 = pneg %p250
        %p703 = pneg %p274
        %p704 = pneg %p271
        %p705 = pneg %p295
        %p706 = pneg %p292
        %p707 = pneg %p316
        %p708 = pneg %p313
        %p709 = pneg %p337
        %p710 = pneg %p334
        %p711 = pneg %p358
        %p712 = pneg %p355
        %p713 = pneg %p379
        %p714 = pneg %p376
        %p715 = pneg %p400
        %p716 = pneg %p397
        %p717 = pneg %p421
        %p718 = pneg %p418
        %p719 = pneg %p442
        %p720 = pneg %p439
        %p721 = pneg %p463
        %p722 = pneg %p460
        %p723 = pneg %p484
        %p724 = pneg %p481
        %p725 = pneg %p505
        %p726 = pneg %p502
        %p727 = pneg %p531
        %p728 = pneg %p528
        %p729 = scmp.lt.s32.totalorder %s38, 1
        %s730 = scalar_select %p729, %s38, 1
        %s731 = smul.addr %s730, 2
        %s732 = smul.addr %s731, 8
        %s733 = scalar_lea.vmem %s22, %s732
        %p734 = pneg %p557
        %p735 = pneg %p554
        %p736 = scmp.lt.s32.totalorder %s38, 1
        %s737 = scalar_select %p736, %s38, 1
        %s738 = smul.addr %s737, 2
        %s739 = scalar_lea.vmem %s23, %s738
        %p740 = scmp.lt.s32.totalorder %s38, 1
        %s741 = scalar_select %p740, %s38, 1
        %s742 = smul.addr %s741, 4
        %s743 = scalar_lea.vmem %s0, %s742
        %p744 = scmp.lt.s32.totalorder %s38, 1
        %s745 = scalar_select %p744, %s38, 1
        %s746 = smul.addr %s745, 2
        %s747 = smul.addr %s746, 8
        %s748 = scalar_lea.vmem %s3, %s747
        %p749 = scmp.lt.s32.totalorder %s38, 1
        %s750 = scalar_select %p749, %s38, 1
        %s751 = smul.addr %s750, 2
        %s752 = smul.addr %s751, 8
        %s753 = scalar_lea.vmem %s22, %s752
        %p754 = scmp.lt.s32.totalorder %s38, 1
        %s755 = scalar_select %p754, %s38, 1
        %s756 = smul.addr %s755, 2
        %s757 = scalar_lea.vmem %s23, %s756
        %v758 = vld [vmem:[%s2] ss:$2 sm:$0x3]
        %s759 = scalar_lea.vmem %s2, 1
        %v760 = vld [vmem:[%s759] ss:$2 sm:$0x3]
        %v761 = vld [vmem:[%s743] sm:$0xf]
        %v763 = vperm.slane %v761, 0
        %v764 = vperm.slane %v761, 1
        %v765 = vperm.slane %v761, 2
        %v766 = vperm.slane %v761, 3
        %771 = vrot.lane.b32.xlu0 %v763, 108
        %v772 = vpop.permute.xlu0 %771
        %773 = vrot.lane.b32.xlu0 %v764, 108
        %v774 = vpop.permute.xlu0 %773
        %775 = vrot.lane.b32.xlu0 %v765, 108
        %v776 = vpop.permute.xlu0 %775
        %777 = vrot.lane.b32.xlu0 %v766, 108
        %v778 = vpop.permute.xlu0 %777
        %v779 = vlaneseq
        %v780 = vand.u32 %v779, 127
        %vm781 = vcmp.lt.s32.totalorder %v780, 108
        %v782 = vsel %vm781, %v776, %v778
        %v783 = vsel %vm781, %v774, %v776
        %v784 = vsel %vm781, %v772, %v774
        %v785 = vsel %vm781, %v778, %v772
        %v790 = vrot.slane %v783, 7
        %v791 = vrot.slane %v782, 6
        %v792 = vrot.slane %v785, 5
        %vm793 = vcmask 1040384
        %v794 = vsel %vm793, %v784, %v790
        %vm795 = vcmask 1042434
        %v796 = vsel %vm795, %v791, %v792
        %vm797 = vcmask 1041408
        %v798 = vsel %vm797, %v794, %v796
        %v800 = vmax.f32 %v761, %v798
        %801 = vrot.lane.b32.xlu0 %v763, 88
        %v802 = vpop.permute.xlu0 %801
        %803 = vrot.lane.b32.xlu0 %v764, 88
        %v804 = vpop.permute.xlu0 %803
        %805 = vrot.lane.b32.xlu0 %v765, 88
        %v806 = vpop.permute.xlu0 %805
        %807 = vrot.lane.b32.xlu0 %v766, 88
        %v808 = vpop.permute.xlu0 %807
        %vm809 = vcmp.lt.s32.totalorder %v780, 88
        %v810 = vsel %vm809, %v806, %v808
        %v811 = vsel %vm809, %v804, %v806
        %v812 = vsel %vm809, %v802, %v804
        %v813 = vsel %vm809, %v808, %v802
        %v818 = vrot.slane %v811, 7
        %v819 = vrot.slane %v810, 6
        %v820 = vrot.slane %v813, 5
        %v821 = vsel %vm793, %v812, %v818
        %v822 = vsel %vm795, %v819, %v820
        %v823 = vsel %vm797, %v821, %v822
        %v825 = vmax.f32 %v800, %v823
        %826 = vrot.lane.b32.xlu0 %v763, 68
        %v827 = vpop.permute.xlu0 %826
        %828 = vrot.lane.b32.xlu0 %v764, 68
        %v829 = vpop.permute.xlu0 %828
        %830 = vrot.lane.b32.xlu0 %v765, 68
        %v831 = vpop.permute.xlu0 %830
        %832 = vrot.lane.b32.xlu0 %v766, 68
        %v833 = vpop.permute.xlu0 %832
        %vm834 = vcmp.lt.s32.totalorder %v780, 68
        %v835 = vsel %vm834, %v831, %v833
        %v836 = vsel %vm834, %v829, %v831
        %v837 = vsel %vm834, %v827, %v829
        %v838 = vsel %vm834, %v833, %v827
        %v843 = vrot.slane %v836, 7
        %v844 = vrot.slane %v835, 6
        %v845 = vrot.slane %v838, 5
        %v846 = vsel %vm793, %v837, %v843
        %v847 = vsel %vm795, %v844, %v845
        %v848 = vsel %vm797, %v846, %v847
        %v850 = vmax.f32 %v825, %v848
        %851 = vrot.lane.b32.xlu0 %v763, 48
        %v852 = vpop.permute.xlu0 %851
        %853 = vrot.lane.b32.xlu0 %v764, 48
        %v854 = vpop.permute.xlu0 %853
        %855 = vrot.lane.b32.xlu0 %v765, 48
        %v856 = vpop.permute.xlu0 %855
        %857 = vrot.lane.b32.xlu0 %v766, 48
        %v858 = vpop.permute.xlu0 %857
        %vm859 = vcmp.lt.s32.totalorder %v780, 48
        %v860 = vsel %vm859, %v856, %v858
        %v861 = vsel %vm859, %v854, %v856
        %v862 = vsel %vm859, %v852, %v854
        %v863 = vsel %vm859, %v858, %v852
        %v868 = vrot.slane %v861, 7
        %v869 = vrot.slane %v860, 6
        %v870 = vrot.slane %v863, 5
        %v871 = vsel %vm793, %v862, %v868
        %v872 = vsel %vm795, %v869, %v870
        %v873 = vsel %vm797, %v871, %v872
        %v875 = vmax.f32 %v850, %v873
        %876 = vrot.lane.b32.xlu0 %v763, 28
        %v877 = vpop.permute.xlu0 %876
        %878 = vrot.lane.b32.xlu0 %v764, 28
        %v879 = vpop.permute.xlu0 %878
        %880 = vrot.lane.b32.xlu0 %v765, 28
        %v881 = vpop.permute.xlu0 %880
        %882 = vrot.lane.b32.xlu0 %v766, 28
        %v883 = vpop.permute.xlu0 %882
        %vm884 = vcmp.lt.s32.totalorder %v780, 28
        %v885 = vsel %vm884, %v881, %v883
        %v886 = vsel %vm884, %v879, %v881
        %v887 = vsel %vm884, %v877, %v879
        %v888 = vsel %vm884, %v883, %v877
        %v893 = vrot.slane %v886, 7
        %v894 = vrot.slane %v885, 6
        %v895 = vrot.slane %v888, 5
        %v896 = vsel %vm793, %v887, %v893
        %v897 = vsel %vm795, %v894, %v895
        %v898 = vsel %vm797, %v896, %v897
        %v900 = vmax.f32 %v875, %v898
        %901 = vrot.lane.b32.xlu0 %v763, 8
        %v902 = vpop.permute.xlu0 %901
        %903 = vrot.lane.b32.xlu0 %v764, 8
        %v904 = vpop.permute.xlu0 %903
        %905 = vrot.lane.b32.xlu0 %v765, 8
        %v906 = vpop.permute.xlu0 %905
        %907 = vrot.lane.b32.xlu0 %v766, 8
        %v908 = vpop.permute.xlu0 %907
        %vm909 = vcmp.lt.s32.totalorder %v780, 8
        %v910 = vsel %vm909, %v906, %v908
        %v911 = vsel %vm909, %v904, %v906
        %v912 = vsel %vm909, %v902, %v904
        %v913 = vsel %vm909, %v908, %v902
        %v918 = vrot.slane %v911, 7
        %v919 = vrot.slane %v910, 6
        %v920 = vrot.slane %v913, 5
        %v921 = vsel %vm793, %v912, %v918
        %v922 = vsel %vm795, %v919, %v920
        %v923 = vsel %vm797, %v921, %v922
        %v925 = vmax.f32 %v900, %v923
        %926 = vrot.lane.b32.xlu0 %v763, 116
        %v927 = vpop.permute.xlu0 %926
        %928 = vrot.lane.b32.xlu0 %v764, 116
        %v929 = vpop.permute.xlu0 %928
        %930 = vrot.lane.b32.xlu0 %v765, 116
        %v931 = vpop.permute.xlu0 %930
        %932 = vrot.lane.b32.xlu0 %v766, 116
        %v933 = vpop.permute.xlu0 %932
        %vm934 = vcmp.lt.s32.totalorder %v780, 116
        %v935 = vsel %vm934, %v931, %v933
        %v936 = vsel %vm934, %v929, %v931
        %v937 = vsel %vm934, %v927, %v929
        %v938 = vsel %vm934, %v933, %v927
        %v943 = vrot.slane %v935, 7
        %v944 = vrot.slane %v938, 6
        %v945 = vrot.slane %v937, 5
        %v946 = vsel %vm793, %v936, %v943
        %v947 = vsel %vm795, %v944, %v945
        %v948 = vsel %vm797, %v946, %v947
        %v950 = vmax.f32 %v925, %v948
        %951 = vrot.lane.b32.xlu0 %v763, 96
        %v952 = vpop.permute.xlu0 %951
        %953 = vrot.lane.b32.xlu0 %v764, 96
        %v954 = vpop.permute.xlu0 %953
        %955 = vrot.lane.b32.xlu0 %v765, 96
        %v956 = vpop.permute.xlu0 %955
        %957 = vrot.lane.b32.xlu0 %v766, 96
        %v958 = vpop.permute.xlu0 %957
        %vm959 = vcmp.lt.s32.totalorder %v780, 96
        %v960 = vsel %vm959, %v956, %v958
        %v961 = vsel %vm959, %v954, %v956
        %v962 = vsel %vm959, %v952, %v954
        %v963 = vsel %vm959, %v958, %v952
        %v968 = vrot.slane %v960, 7
        %v969 = vrot.slane %v963, 6
        %v970 = vrot.slane %v962, 5
        %v971 = vsel %vm793, %v961, %v968
        %v972 = vsel %vm795, %v969, %v970
        %v973 = vsel %vm797, %v971, %v972
        %v975 = vmax.f32 %v950, %v973
        %976 = vrot.lane.b32.xlu0 %v763, 76
        %v977 = vpop.permute.xlu0 %976
        %978 = vrot.lane.b32.xlu0 %v764, 76
        %v979 = vpop.permute.xlu0 %978
        %980 = vrot.lane.b32.xlu0 %v765, 76
        %v981 = vpop.permute.xlu0 %980
        %982 = vrot.lane.b32.xlu0 %v766, 76
        %v983 = vpop.permute.xlu0 %982
        %vm984 = vcmp.lt.s32.totalorder %v780, 76
        %v985 = vsel %vm984, %v981, %v983
        %v986 = vsel %vm984, %v979, %v981
        %v987 = vsel %vm984, %v977, %v979
        %v988 = vsel %vm984, %v983, %v977
        %v993 = vrot.slane %v985, 7
        %v994 = vrot.slane %v988, 6
        %v995 = vrot.slane %v987, 5
        %v996 = vsel %vm793, %v986, %v993
        %v997 = vsel %vm795, %v994, %v995
        %v998 = vsel %vm797, %v996, %v997
        %v1000 = vmax.f32 %v975, %v998
        %1001 = vrot.lane.b32.xlu0 %v763, 56
        %v1002 = vpop.permute.xlu0 %1001
        %1003 = vrot.lane.b32.xlu0 %v764, 56
        %v1004 = vpop.permute.xlu0 %1003
        %1005 = vrot.lane.b32.xlu0 %v765, 56
        %v1006 = vpop.permute.xlu0 %1005
        %1007 = vrot.lane.b32.xlu0 %v766, 56
        %v1008 = vpop.permute.xlu0 %1007
        %vm1009 = vcmp.lt.s32.totalorder %v780, 56
        %v1010 = vsel %vm1009, %v1006, %v1008
        %v1011 = vsel %vm1009, %v1004, %v1006
        %v1012 = vsel %vm1009, %v1002, %v1004
        %v1013 = vsel %vm1009, %v1008, %v1002
        %v1018 = vrot.slane %v1010, 7
        %v1019 = vrot.slane %v1013, 6
        %v1020 = vrot.slane %v1012, 5
        %v1021 = vsel %vm793, %v1011, %v1018
        %v1022 = vsel %vm795, %v1019, %v1020
        %v1023 = vsel %vm797, %v1021, %v1022
        %v1025 = vmax.f32 %v1000, %v1023
        %1026 = vrot.lane.b32.xlu0 %v763, 36
        %v1027 = vpop.permute.xlu0 %1026
        %1028 = vrot.lane.b32.xlu0 %v764, 36
        %v1029 = vpop.permute.xlu0 %1028
        %1030 = vrot.lane.b32.xlu0 %v765, 36
        %v1031 = vpop.permute.xlu0 %1030
        %1032 = vrot.lane.b32.xlu0 %v766, 36
        %v1033 = vpop.permute.xlu0 %1032
        %vm1034 = vcmp.lt.s32.totalorder %v780, 36
        %v1035 = vsel %vm1034, %v1031, %v1033
        %v1036 = vsel %vm1034, %v1029, %v1031
        %v1037 = vsel %vm1034, %v1027, %v1029
        %v1038 = vsel %vm1034, %v1033, %v1027
        %v1043 = vrot.slane %v1035, 7
        %v1044 = vrot.slane %v1038, 6
        %v1045 = vrot.slane %v1037, 5
        %v1046 = vsel %vm793, %v1036, %v1043
        %v1047 = vsel %vm795, %v1044, %v1045
        %v1048 = vsel %vm797, %v1046, %v1047
        %v1050 = vmax.f32 %v1025, %v1048
        %1051 = vrot.lane.b32.xlu0 %v763, 16
        %v1052 = vpop.permute.xlu0 %1051
        %1053 = vrot.lane.b32.xlu0 %v764, 16
        %v1054 = vpop.permute.xlu0 %1053
        %1055 = vrot.lane.b32.xlu0 %v765, 16
        %v1056 = vpop.permute.xlu0 %1055
        %1057 = vrot.lane.b32.xlu0 %v766, 16
        %v1058 = vpop.permute.xlu0 %1057
        %vm1059 = vcmp.lt.s32.totalorder %v780, 16
        %v1060 = vsel %vm1059, %v1056, %v1058
        %v1061 = vsel %vm1059, %v1054, %v1056
        %v1062 = vsel %vm1059, %v1052, %v1054
        %v1063 = vsel %vm1059, %v1058, %v1052
        %v1068 = vrot.slane %v1060, 7
        %v1069 = vrot.slane %v1063, 6
        %v1070 = vrot.slane %v1062, 5
        %v1071 = vsel %vm793, %v1061, %v1068
        %v1072 = vsel %vm795, %v1069, %v1070
        %v1073 = vsel %vm797, %v1071, %v1072
        %v1075 = vmax.f32 %v1050, %v1073
        %v1077 = vperm.slane %v1075, 0
        %v1078 = vperm.slane %v1075, 1
        %v1079 = vperm.slane %v1075, 2
        %v1080 = vperm.slane %v1075, 3
        %1085 = vrot.lane.b32.xlu0 %v1077, 127
        %v1086 = vpop.permute.xlu0 %1085
        %1087 = vrot.lane.b32.xlu0 %v1078, 127
        %v1088 = vpop.permute.xlu0 %1087
        %1089 = vrot.lane.b32.xlu0 %v1079, 127
        %v1090 = vpop.permute.xlu0 %1089
        %1091 = vrot.lane.b32.xlu0 %v1080, 127
        %v1092 = vpop.permute.xlu0 %1091
        %vm1093 = vcmp.lt.s32.totalorder %v780, 127
        %v1094 = vsel %vm1093, %v1090, %v1092
        %v1095 = vsel %vm1093, %v1088, %v1090
        %v1096 = vsel %vm1093, %v1086, %v1088
        %v1097 = vsel %vm1093, %v1092, %v1086
        %v1102 = vrot.slane %v1095, 7
        %v1103 = vrot.slane %v1094, 6
        %v1104 = vrot.slane %v1097, 5
        %v1105 = vsel %vm793, %v1096, %v1102
        %v1106 = vsel %vm795, %v1103, %v1104
        %v1107 = vsel %vm797, %v1105, %v1106
        %v1109 = vmax.f32 %v1075, %v1107
        %1110 = vrot.lane.b32.xlu0 %v1077, 126
        %v1111 = vpop.permute.xlu0 %1110
        %1112 = vrot.lane.b32.xlu0 %v1078, 126
        %v1113 = vpop.permute.xlu0 %1112
        %1114 = vrot.lane.b32.xlu0 %v1079, 126
        %v1115 = vpop.permute.xlu0 %1114
        %1116 = vrot.lane.b32.xlu0 %v1080, 126
        %v1117 = vpop.permute.xlu0 %1116
        %vm1118 = vcmp.lt.s32.totalorder %v780, 126
        %v1119 = vsel %vm1118, %v1115, %v1117
        %v1120 = vsel %vm1118, %v1113, %v1115
        %v1121 = vsel %vm1118, %v1111, %v1113
        %v1122 = vsel %vm1118, %v1117, %v1111
        %v1127 = vrot.slane %v1120, 7
        %v1128 = vrot.slane %v1119, 6
        %v1129 = vrot.slane %v1122, 5
        %v1130 = vsel %vm793, %v1121, %v1127
        %v1131 = vsel %vm795, %v1128, %v1129
        %v1132 = vsel %vm797, %v1130, %v1131
        %v1134 = vmax.f32 %v1109, %v1132
        %1135 = vrot.lane.b32.xlu0 %v1077, 125
        %v1136 = vpop.permute.xlu0 %1135
        %1137 = vrot.lane.b32.xlu0 %v1078, 125
        %v1138 = vpop.permute.xlu0 %1137
        %1139 = vrot.lane.b32.xlu0 %v1079, 125
        %v1140 = vpop.permute.xlu0 %1139
        %1141 = vrot.lane.b32.xlu0 %v1080, 125
        %v1142 = vpop.permute.xlu0 %1141
        %vm1143 = vcmp.lt.s32.totalorder %v780, 125
        %v1144 = vsel %vm1143, %v1140, %v1142
        %v1145 = vsel %vm1143, %v1138, %v1140
        %v1146 = vsel %vm1143, %v1136, %v1138
        %v1147 = vsel %vm1143, %v1142, %v1136
        %v1152 = vrot.slane %v1145, 7
        %v1153 = vrot.slane %v1144, 6
        %v1154 = vrot.slane %v1147, 5
        %v1155 = vsel %vm793, %v1146, %v1152
        %v1156 = vsel %vm795, %v1153, %v1154
        %v1157 = vsel %vm797, %v1155, %v1156
        %v1159 = vmax.f32 %v1134, %v1157
        %1160 = vrot.lane.b32.xlu0 %v1077, 124
        %v1161 = vpop.permute.xlu0 %1160
        %1162 = vrot.lane.b32.xlu0 %v1078, 124
        %v1163 = vpop.permute.xlu0 %1162
        %1164 = vrot.lane.b32.xlu0 %v1079, 124
        %v1165 = vpop.permute.xlu0 %1164
        %1166 = vrot.lane.b32.xlu0 %v1080, 124
        %v1167 = vpop.permute.xlu0 %1166
        %vm1168 = vcmp.lt.s32.totalorder %v780, 124
        %v1169 = vsel %vm1168, %v1165, %v1167
        %v1170 = vsel %vm1168, %v1163, %v1165
        %v1171 = vsel %vm1168, %v1161, %v1163
        %v1172 = vsel %vm1168, %v1167, %v1161
        %v1177 = vrot.slane %v1170, 7
        %v1178 = vrot.slane %v1169, 6
        %v1179 = vrot.slane %v1172, 5
        %v1180 = vsel %vm793, %v1171, %v1177
        %v1181 = vsel %vm795, %v1178, %v1179
        %v1182 = vsel %vm797, %v1180, %v1181
        %v1184 = vmax.f32 %v1159, %v1182
        %1185 = vrot.lane.b32.xlu0 %v1077, 123
        %v1186 = vpop.permute.xlu0 %1185
        %1187 = vrot.lane.b32.xlu0 %v1078, 123
        %v1188 = vpop.permute.xlu0 %1187
        %1189 = vrot.lane.b32.xlu0 %v1079, 123
        %v1190 = vpop.permute.xlu0 %1189
        %1191 = vrot.lane.b32.xlu0 %v1080, 123
        %v1192 = vpop.permute.xlu0 %1191
        %vm1193 = vcmp.lt.s32.totalorder %v780, 123
        %v1194 = vsel %vm1193, %v1190, %v1192
        %v1195 = vsel %vm1193, %v1188, %v1190
        %v1196 = vsel %vm1193, %v1186, %v1188
        %v1197 = vsel %vm1193, %v1192, %v1186
        %v1202 = vrot.slane %v1195, 7
        %v1203 = vrot.slane %v1194, 6
        %v1204 = vrot.slane %v1197, 5
        %v1205 = vsel %vm793, %v1196, %v1202
        %v1206 = vsel %vm795, %v1203, %v1204
        %v1207 = vsel %vm797, %v1205, %v1206
        %v1209 = vmax.f32 %v1184, %v1207
        %1210 = vrot.lane.b32.xlu0 %v1077, 122
        %v1211 = vpop.permute.xlu0 %1210
        %1212 = vrot.lane.b32.xlu0 %v1078, 122
        %v1213 = vpop.permute.xlu0 %1212
        %1214 = vrot.lane.b32.xlu0 %v1079, 122
        %v1215 = vpop.permute.xlu0 %1214
        %1216 = vrot.lane.b32.xlu0 %v1080, 122
        %v1217 = vpop.permute.xlu0 %1216
        %vm1218 = vcmp.lt.s32.totalorder %v780, 122
        %v1219 = vsel %vm1218, %v1215, %v1217
        %v1220 = vsel %vm1218, %v1213, %v1215
        %v1221 = vsel %vm1218, %v1211, %v1213
        %v1222 = vsel %vm1218, %v1217, %v1211
        %v1227 = vrot.slane %v1220, 7
        %v1228 = vrot.slane %v1219, 6
        %v1229 = vrot.slane %v1222, 5
        %v1230 = vsel %vm793, %v1221, %v1227
        %v1231 = vsel %vm795, %v1228, %v1229
        %v1232 = vsel %vm797, %v1230, %v1231
        %v1234 = vmax.f32 %v1209, %v1232
        %1235 = vrot.lane.b32.xlu0 %v1077, 121
        %v1236 = vpop.permute.xlu0 %1235
        %1237 = vrot.lane.b32.xlu0 %v1078, 121
        %v1238 = vpop.permute.xlu0 %1237
        %1239 = vrot.lane.b32.xlu0 %v1079, 121
        %v1240 = vpop.permute.xlu0 %1239
        %1241 = vrot.lane.b32.xlu0 %v1080, 121
        %v1242 = vpop.permute.xlu0 %1241
        %vm1243 = vcmp.lt.s32.totalorder %v780, 121
        %v1244 = vsel %vm1243, %v1240, %v1242
        %v1245 = vsel %vm1243, %v1238, %v1240
        %v1246 = vsel %vm1243, %v1236, %v1238
        %v1247 = vsel %vm1243, %v1242, %v1236
        %v1252 = vrot.slane %v1245, 7
        %v1253 = vrot.slane %v1244, 6
        %v1254 = vrot.slane %v1247, 5
        %v1255 = vsel %vm793, %v1246, %v1252
        %v1256 = vsel %vm795, %v1253, %v1254
        %v1257 = vsel %vm797, %v1255, %v1256
        %v1259 = vmax.f32 %v1234, %v1257
        %1260 = vrot.lane.b32.xlu0 %v1077, 120
        %v1261 = vpop.permute.xlu0 %1260
        %1262 = vrot.lane.b32.xlu0 %v1078, 120
        %v1263 = vpop.permute.xlu0 %1262
        %1264 = vrot.lane.b32.xlu0 %v1079, 120
        %v1265 = vpop.permute.xlu0 %1264
        %1266 = vrot.lane.b32.xlu0 %v1080, 120
        %v1267 = vpop.permute.xlu0 %1266
        %vm1268 = vcmp.lt.s32.totalorder %v780, 120
        %v1269 = vsel %vm1268, %v1265, %v1267
        %v1270 = vsel %vm1268, %v1263, %v1265
        %v1271 = vsel %vm1268, %v1261, %v1263
        %v1272 = vsel %vm1268, %v1267, %v1261
        %v1277 = vrot.slane %v1270, 7
        %v1278 = vrot.slane %v1269, 6
        %v1279 = vrot.slane %v1272, 5
        %v1280 = vsel %vm793, %v1271, %v1277
        %v1281 = vsel %vm795, %v1278, %v1279
        %v1282 = vsel %vm797, %v1280, %v1281
        %v1284 = vmax.f32 %v1259, %v1282
        %1285 = vrot.lane.b32.xlu0 %v1077, 119
        %v1286 = vpop.permute.xlu0 %1285
        %1287 = vrot.lane.b32.xlu0 %v1078, 119
        %v1288 = vpop.permute.xlu0 %1287
        %1289 = vrot.lane.b32.xlu0 %v1079, 119
        %v1290 = vpop.permute.xlu0 %1289
        %1291 = vrot.lane.b32.xlu0 %v1080, 119
        %v1292 = vpop.permute.xlu0 %1291
        %vm1293 = vcmp.lt.s32.totalorder %v780, 119
        %v1294 = vsel %vm1293, %v1290, %v1292
        %v1295 = vsel %vm1293, %v1288, %v1290
        %v1296 = vsel %vm1293, %v1286, %v1288
        %v1297 = vsel %vm1293, %v1292, %v1286
        %v1302 = vrot.slane %v1295, 7
        %v1303 = vrot.slane %v1294, 6
        %v1304 = vrot.slane %v1297, 5
        %v1305 = vsel %vm793, %v1296, %v1302
        %v1306 = vsel %vm795, %v1303, %v1304
        %v1307 = vsel %vm797, %v1305, %v1306
        %v1309 = vmax.f32 %v1284, %v1307
        %1310 = vrot.lane.b32.xlu0 %v1077, 118
        %v1311 = vpop.permute.xlu0 %1310
        %1312 = vrot.lane.b32.xlu0 %v1078, 118
        %v1313 = vpop.permute.xlu0 %1312
        %1314 = vrot.lane.b32.xlu0 %v1079, 118
        %v1315 = vpop.permute.xlu0 %1314
        %1316 = vrot.lane.b32.xlu0 %v1080, 118
        %v1317 = vpop.permute.xlu0 %1316
        %vm1318 = vcmp.lt.s32.totalorder %v780, 118
        %v1319 = vsel %vm1318, %v1315, %v1317
        %v1320 = vsel %vm1318, %v1313, %v1315
        %v1321 = vsel %vm1318, %v1311, %v1313
        %v1322 = vsel %vm1318, %v1317, %v1311
        %v1327 = vrot.slane %v1320, 7
        %v1328 = vrot.slane %v1319, 6
        %v1329 = vrot.slane %v1322, 5
        %v1330 = vsel %vm793, %v1321, %v1327
        %v1331 = vsel %vm795, %v1328, %v1329
        %v1332 = vsel %vm797, %v1330, %v1331
        %v1334 = vmax.f32 %v1309, %v1332
        %1335 = vrot.lane.b32.xlu0 %v1077, 117
        %v1336 = vpop.permute.xlu0 %1335
        %1337 = vrot.lane.b32.xlu0 %v1078, 117
        %v1338 = vpop.permute.xlu0 %1337
        %1339 = vrot.lane.b32.xlu0 %v1079, 117
        %v1340 = vpop.permute.xlu0 %1339
        %1341 = vrot.lane.b32.xlu0 %v1080, 117
        %v1342 = vpop.permute.xlu0 %1341
        %vm1343 = vcmp.lt.s32.totalorder %v780, 117
        %v1344 = vsel %vm1343, %v1340, %v1342
        %v1345 = vsel %vm1343, %v1338, %v1340
        %v1346 = vsel %vm1343, %v1336, %v1338
        %v1347 = vsel %vm1343, %v1342, %v1336
        %v1352 = vrot.slane %v1345, 7
        %v1353 = vrot.slane %v1344, 6
        %v1354 = vrot.slane %v1347, 5
        %v1355 = vsel %vm793, %v1346, %v1352
        %v1356 = vsel %vm795, %v1353, %v1354
        %v1357 = vsel %vm797, %v1355, %v1356
        %v1359 = vmax.f32 %v1334, %v1357
        %1360 = vrot.lane.b32.xlu0 %v1077, 116
        %v1361 = vpop.permute.xlu0 %1360
        %1362 = vrot.lane.b32.xlu0 %v1078, 116
        %v1363 = vpop.permute.xlu0 %1362
        %1364 = vrot.lane.b32.xlu0 %v1079, 116
        %v1365 = vpop.permute.xlu0 %1364
        %1366 = vrot.lane.b32.xlu0 %v1080, 116
        %v1367 = vpop.permute.xlu0 %1366
        %v1368 = vsel %vm934, %v1365, %v1367
        %v1369 = vsel %vm934, %v1363, %v1365
        %v1370 = vsel %vm934, %v1361, %v1363
        %v1371 = vsel %vm934, %v1367, %v1361
        %v1376 = vrot.slane %v1369, 7
        %v1377 = vrot.slane %v1368, 6
        %v1378 = vrot.slane %v1371, 5
        %v1379 = vsel %vm793, %v1370, %v1376
        %v1380 = vsel %vm795, %v1377, %v1378
        %v1381 = vsel %vm797, %v1379, %v1380
        %v1383 = vmax.f32 %v1359, %v1381
        %v1384 = vld [vmem:[#allocation5] sm:$0xff]
        %v1385 = vld [vmem:[#allocation5 + $0x8] sm:$0xff]
        %v1386 = vld [vmem:[#allocation5 + $0x10] sm:$0xff]
        %v1387 = vld [vmem:[#allocation5 + $0x18] sm:$0xff]
        %v1388 = vld [vmem:[#allocation5 + $0x20] sm:$0xff]
        %v1389 = vld [vmem:[#allocation5 + $0x28] sm:$0xff]
        %v1390 = vld [vmem:[#allocation5 + $0x30] sm:$0xff]
        %v1391 = vld [vmem:[#allocation5 + $0x38] sm:$0xff]
        %v1392 = vld [vmem:[#allocation5 + $0x40] sm:$0xff]
        %v1393 = vld [vmem:[#allocation5 + $0x48] sm:$0xff]
        %v1394 = vld [vmem:[#allocation5 + $0x50] sm:$0xff]
        %v1395 = vld [vmem:[#allocation5 + $0x58] sm:$0xff]
        %v1396 = vld [vmem:[#allocation5 + $0x60] sm:$0xff]
        %v1397 = vld [vmem:[#allocation5 + $0x68] sm:$0xff]
        %v1398 = vld [vmem:[#allocation5 + $0x70] sm:$0xff]
        %v1399 = vld [vmem:[#allocation5 + $0x78] sm:$0xff]
        %v1400 = vld [vmem:[#allocation5 + $0x80] sm:$0xff]
        %v1401 = vld [vmem:[#allocation5 + $0x88] sm:$0xff]
        %v1402 = vld [vmem:[#allocation5 + $0x90] sm:$0xff]
        %v1403 = vld [vmem:[#allocation5 + $0x98] sm:$0xff]
        %v1404 = vld [vmem:[#allocation5 + $0xa0] sm:$0xff]
        %v1405 = vld [vmem:[#allocation5 + $0xa8] sm:$0xff]
        %v1406 = vld [vmem:[#allocation5 + $0xb0] sm:$0xff]
        %v1407 = vld [vmem:[#allocation5 + $0xb8] sm:$0xff]
        %v1408 = vld [vmem:[#allocation5 + $0xc0] sm:$0xff]
        %v1409 = vld [vmem:[#allocation5 + $0xc8] sm:$0xff]
        %v1410 = vld [vmem:[#allocation5 + $0xd0] sm:$0xff]
        %v1411 = vld [vmem:[#allocation5 + $0xd8] sm:$0xff]
        %v1412 = vld [vmem:[#allocation5 + $0xe0] sm:$0xff]
        %v1413 = vld [vmem:[#allocation5 + $0xe8] sm:$0xff]
        %v1414 = vld [vmem:[#allocation5 + $0xf0] sm:$0xff]
        %v1415 = vld [vmem:[#allocation5 + $0xf8] sm:$0xff]
        %v1416 = vld [vmem:[#allocation5 + $0x100] sm:$0xff]
        %v1417 = vld [vmem:[#allocation5 + $0x108] sm:$0xff]
        %v1418 = vld [vmem:[#allocation5 + $0x110] sm:$0xff]
        %v1419 = vld [vmem:[#allocation5 + $0x118] sm:$0xff]
        %v1420 = vld [vmem:[#allocation5 + $0x120] sm:$0xff]
        %v1421 = vld [vmem:[#allocation5 + $0x128] sm:$0xff]
        %v1422 = vld [vmem:[#allocation5 + $0x130] sm:$0xff]
        %v1423 = vld [vmem:[#allocation5 + $0x138] sm:$0xff]
        %v1424 = vld [vmem:[#allocation5 + $0x140] sm:$0xff]
        %v1425 = vld [vmem:[#allocation5 + $0x148] sm:$0xff]
        %v1426 = vld [vmem:[#allocation5 + $0x150] sm:$0xff]
        %v1427 = vld [vmem:[#allocation5 + $0x158] sm:$0xff]
        %v1428 = vld [vmem:[#allocation5 + $0x160] sm:$0xff]
        %v1429 = vld [vmem:[#allocation5 + $0x168] sm:$0xff]
        %v1430 = vld [vmem:[#allocation5 + $0x170] sm:$0xff]
        %v1431 = vld [vmem:[#allocation5 + $0x178] sm:$0xff]
        %v1432 = vld [vmem:[#allocation5 + $0x180] sm:$0xff]
        %v1433 = vld [vmem:[#allocation5 + $0x188] sm:$0xff]
        %v1434 = vld [vmem:[#allocation5 + $0x190] sm:$0xff]
        %v1435 = vld [vmem:[#allocation5 + $0x198] sm:$0xff]
        %v1436 = vld [vmem:[#allocation5 + $0x1a0] sm:$0xff]
        %v1437 = vld [vmem:[#allocation5 + $0x1a8] sm:$0xff]
        %v1438 = vld [vmem:[#allocation5 + $0x1b0] sm:$0xff]
        %v1439 = vld [vmem:[#allocation5 + $0x1b8] sm:$0xff]
        %v1440 = vld [vmem:[#allocation5 + $0x1c0] sm:$0xff]
        %v1441 = vld [vmem:[#allocation5 + $0x1c8] sm:$0xff]
        %v1442 = vld [vmem:[#allocation5 + $0x1d0] sm:$0xff]
        %v1443 = vld [vmem:[#allocation5 + $0x1d8] sm:$0xff]
        %v1444 = vld [vmem:[#allocation5 + $0x1e0] sm:$0xff]
        %v1445 = vld [vmem:[#allocation5 + $0x1e8] sm:$0xff]
        %v1446 = vld [vmem:[#allocation5 + $0x1f0] sm:$0xff]
        %v1447 = vld [vmem:[#allocation5 + $0x1f8] sm:$0xff]
        %v1449 = vperm.slane %v1383, 1
        %1451 = vmatpush.msra.mxu0 %v1446
        %1452 = vmatpush.msra.mxu0 %v1444
        %1453 = vmatpush.msra.mxu0 %v1442
        %1454 = vmatpush.msra.mxu0 %v1440
        %1455 = vmatpush.msra.mxu0 %v1438
        %1456 = vmatpush.msra.mxu0 %v1436
        %1457 = vmatpush.msra.mxu0 %v1434
        %1458 = vmatpush.msra.mxu0 %v1432
        %1459 = vmatpush.msra.mxu0 %v1430
        %1460 = vmatpush.msra.mxu0 %v1428
        %1461 = vmatpush.msra.mxu0 %v1426
        %1462 = vmatpush.msra.mxu0 %v1424
        %1463 = vmatpush.msra.mxu0 %v1422
        %1464 = vmatpush.msra.mxu0 %v1420
        %1465 = vmatpush.msra.mxu0 %v1418
        %1466 = vmatpush.msra.mxu0 %v1416
        %1467 = vmatmul.f32.gmra.mxu0 %v1449
        %v1468 = vpop.f32.mrf.mxu0
        %v1469 = vadd.f32 0.0, %v1468
        %1470 = vdwg.mxu0
        %1471 = vmatpush.msra.mxu0 %v1447
        %1472 = vmatpush.msra.mxu0 %v1445
        %1473 = vmatpush.msra.mxu0 %v1443
        %1474 = vmatpush.msra.mxu0 %v1441
        %1475 = vmatpush.msra.mxu0 %v1439
        %1476 = vmatpush.msra.mxu0 %v1437
        %1477 = vmatpush.msra.mxu0 %v1435
        %1478 = vmatpush.msra.mxu0 %v1433
        %1479 = vmatpush.msra.mxu0 %v1431
        %1480 = vmatpush.msra.mxu0 %v1429
        %1481 = vmatpush.msra.mxu0 %v1427
        %1482 = vmatpush.msra.mxu0 %v1425
        %1483 = vmatpush.msra.mxu0 %v1423
        %1484 = vmatpush.msra.mxu0 %v1421
        %1485 = vmatpush.msra.mxu0 %v1419
        %1486 = vmatpush.msra.mxu0 %v1417
        %1487 = vmatmul.f32.gmra.mxu0 %v1449
        %v1488 = vpop.f32.mrf.mxu0
        %v1489 = vadd.f32 0.0, %v1488
        %1490 = vdwg.mxu0
        %1491 = vmatpush.msra.mxu0 %v1414
        %1492 = vmatpush.msra.mxu0 %v1412
        %1493 = vmatpush.msra.mxu0 %v1410
        %1494 = vmatpush.msra.mxu0 %v1408
        %1495 = vmatpush.msra.mxu0 %v1406
        %1496 = vmatpush.msra.mxu0 %v1404
        %1497 = vmatpush.msra.mxu0 %v1402
        %1498 = vmatpush.msra.mxu0 %v1400
        %1499 = vmatpush.msra.mxu0 %v1398
        %1500 = vmatpush.msra.mxu0 %v1396
        %1501 = vmatpush.msra.mxu0 %v1394
        %1502 = vmatpush.msra.mxu0 %v1392
        %1503 = vmatpush.msra.mxu0 %v1390
        %1504 = vmatpush.msra.mxu0 %v1388
        %1505 = vmatpush.msra.mxu0 %v1386
        %1506 = vmatpush.msra.mxu0 %v1384
        %1507 = vmatmul.f32.gmra.mxu0 %v1383
        %v1508 = vpop.f32.mrf.mxu0
        %v1509 = vadd.f32 %v1469, %v1508
        %1510 = vdwg.mxu0
        %1511 = vmatpush.msra.mxu0 %v1415
        %1512 = vmatpush.msra.mxu0 %v1413
        %1513 = vmatpush.msra.mxu0 %v1411
        %1514 = vmatpush.msra.mxu0 %v1409
        %1515 = vmatpush.msra.mxu0 %v1407
        %1516 = vmatpush.msra.mxu0 %v1405
        %1517 = vmatpush.msra.mxu0 %v1403
        %1518 = vmatpush.msra.mxu0 %v1401
        %1519 = vmatpush.msra.mxu0 %v1399
        %1520 = vmatpush.msra.mxu0 %v1397
        %1521 = vmatpush.msra.mxu0 %v1395
        %1522 = vmatpush.msra.mxu0 %v1393
        %1523 = vmatpush.msra.mxu0 %v1391
        %1524 = vmatpush.msra.mxu0 %v1389
        %1525 = vmatpush.msra.mxu0 %v1387
        %1526 = vmatpush.msra.mxu0 %v1385
        %1527 = vmatmul.f32.gmra.mxu0 %v1383
        %v1528 = vpop.f32.mrf.mxu0
        %v1529 = vadd.f32 %v1489, %v1528
        %1530 = vdwg.mxu0
        %v1531 = vld [vmem:[#allocation5 + $0x200] sm:$0xff]
        %v1532 = vld [vmem:[#allocation5 + $0x208] sm:$0xff]
        %v1533 = vld [vmem:[#allocation5 + $0x210] sm:$0xff]
        %v1534 = vld [vmem:[#allocation5 + $0x218] sm:$0xff]
        %v1535 = vld [vmem:[#allocation5 + $0x220] sm:$0xff]
        %v1536 = vld [vmem:[#allocation5 + $0x228] sm:$0xff]
        %v1537 = vld [vmem:[#allocation5 + $0x230] sm:$0xff]
        %v1538 = vld [vmem:[#allocation5 + $0x238] sm:$0xff]
        %v1539 = vld [vmem:[#allocation5 + $0x240] sm:$0xff]
        %v1540 = vld [vmem:[#allocation5 + $0x248] sm:$0xff]
        %v1541 = vld [vmem:[#allocation5 + $0x250] sm:$0xff]
        %v1542 = vld [vmem:[#allocation5 + $0x258] sm:$0xff]
        %v1543 = vld [vmem:[#allocation5 + $0x260] sm:$0xff]
        %v1544 = vld [vmem:[#allocation5 + $0x268] sm:$0xff]
        %v1545 = vld [vmem:[#allocation5 + $0x270] sm:$0xff]
        %v1546 = vld [vmem:[#allocation5 + $0x278] sm:$0xff]
        %v1547 = vld [vmem:[#allocation5 + $0x280] sm:$0xff]
        %v1548 = vld [vmem:[#allocation5 + $0x288] sm:$0xff]
        %v1549 = vld [vmem:[#allocation5 + $0x290] sm:$0xff]
        %v1550 = vld [vmem:[#allocation5 + $0x298] sm:$0xff]
        %v1551 = vld [vmem:[#allocation5 + $0x2a0] sm:$0xff]
        %v1552 = vld [vmem:[#allocation5 + $0x2a8] sm:$0xff]
        %v1553 = vld [vmem:[#allocation5 + $0x2b0] sm:$0xff]
        %v1554 = vld [vmem:[#allocation5 + $0x2b8] sm:$0xff]
        %v1555 = vld [vmem:[#allocation5 + $0x2c0] sm:$0xff]
        %v1556 = vld [vmem:[#allocation5 + $0x2c8] sm:$0xff]
        %v1557 = vld [vmem:[#allocation5 + $0x2d0] sm:$0xff]
        %v1558 = vld [vmem:[#allocation5 + $0x2d8] sm:$0xff]
        %v1559 = vld [vmem:[#allocation5 + $0x2e0] sm:$0xff]
        %v1560 = vld [vmem:[#allocation5 + $0x2e8] sm:$0xff]
        %v1561 = vld [vmem:[#allocation5 + $0x2f0] sm:$0xff]
        %v1562 = vld [vmem:[#allocation5 + $0x2f8] sm:$0xff]
        %v1563 = vperm.slane %v1383, 2
        %1565 = vmatpush.msra.mxu0 %v1561
        %1566 = vmatpush.msra.mxu0 %v1559
        %1567 = vmatpush.msra.mxu0 %v1557
        %1568 = vmatpush.msra.mxu0 %v1555
        %1569 = vmatpush.msra.mxu0 %v1553
        %1570 = vmatpush.msra.mxu0 %v1551
        %1571 = vmatpush.msra.mxu0 %v1549
        %1572 = vmatpush.msra.mxu0 %v1547
        %1573 = vmatpush.msra.mxu0 %v1545
        %1574 = vmatpush.msra.mxu0 %v1543
        %1575 = vmatpush.msra.mxu0 %v1541
        %1576 = vmatpush.msra.mxu0 %v1539
        %1577 = vmatpush.msra.mxu0 %v1537
        %1578 = vmatpush.msra.mxu0 %v1535
        %1579 = vmatpush.msra.mxu0 %v1533
        %1580 = vmatpush.msra.mxu0 %v1531
        %1581 = vmatmul.f32.gmra.mxu0 %v1563
        %v1582 = vpop.f32.mrf.mxu0
        %v1583 = vadd.f32 0.0, %v1582
        %1584 = vdwg.mxu0
        %1585 = vmatpush.msra.mxu0 %v1562
        %1586 = vmatpush.msra.mxu0 %v1560
        %1587 = vmatpush.msra.mxu0 %v1558
        %1588 = vmatpush.msra.mxu0 %v1556
        %1589 = vmatpush.msra.mxu0 %v1554
        %1590 = vmatpush.msra.mxu0 %v1552
        %1591 = vmatpush.msra.mxu0 %v1550
        %1592 = vmatpush.msra.mxu0 %v1548
        %1593 = vmatpush.msra.mxu0 %v1546
        %1594 = vmatpush.msra.mxu0 %v1544
        %1595 = vmatpush.msra.mxu0 %v1542
        %1596 = vmatpush.msra.mxu0 %v1540
        %1597 = vmatpush.msra.mxu0 %v1538
        %1598 = vmatpush.msra.mxu0 %v1536
        %1599 = vmatpush.msra.mxu0 %v1534
        %1600 = vmatpush.msra.mxu0 %v1532
        %1601 = vmatmul.f32.gmra.mxu0 %v1563
        %v1602 = vpop.f32.mrf.mxu0
        %v1603 = vadd.f32 0.0, %v1602
        %1604 = vdwg.mxu0
        %v1605 = vadd.f32 %v1509, %v1583
        %v1606 = vadd.f32 %v1529, %v1603
        %v1607 = vld [vmem:[#allocation5 + $0x300] sm:$0xff]
        %v1608 = vld [vmem:[#allocation5 + $0x308] sm:$0xff]
        %v1609 = vld [vmem:[#allocation5 + $0x310] sm:$0xff]
        %v1610 = vld [vmem:[#allocation5 + $0x318] sm:$0xff]
        %v1611 = vld [vmem:[#allocation5 + $0x320] sm:$0xff]
        %v1612 = vld [vmem:[#allocation5 + $0x328] sm:$0xff]
        %v1613 = vld [vmem:[#allocation5 + $0x330] sm:$0xff]
        %v1614 = vld [vmem:[#allocation5 + $0x338] sm:$0xff]
        %v1615 = vld [vmem:[#allocation5 + $0x340] sm:$0xff]
        %v1616 = vld [vmem:[#allocation5 + $0x348] sm:$0xff]
        %v1617 = vld [vmem:[#allocation5 + $0x350] sm:$0xff]
        %v1618 = vld [vmem:[#allocation5 + $0x358] sm:$0xff]
        %v1619 = vld [vmem:[#allocation5 + $0x360] sm:$0xff]
        %v1620 = vld [vmem:[#allocation5 + $0x368] sm:$0xff]
        %v1621 = vld [vmem:[#allocation5 + $0x370] sm:$0xff]
        %v1622 = vld [vmem:[#allocation5 + $0x378] sm:$0xff]
        %v1623 = vld [vmem:[#allocation5 + $0x380] sm:$0xff]
        %v1624 = vld [vmem:[#allocation5 + $0x388] sm:$0xff]
        %v1625 = vld [vmem:[#allocation5 + $0x390] sm:$0xff]
        %v1626 = vld [vmem:[#allocation5 + $0x398] sm:$0xff]
        %v1627 = vld [vmem:[#allocation5 + $0x3a0] sm:$0xff]
        %v1628 = vld [vmem:[#allocation5 + $0x3a8] sm:$0xff]
        %v1629 = vld [vmem:[#allocation5 + $0x3b0] sm:$0xff]
        %v1630 = vld [vmem:[#allocation5 + $0x3b8] sm:$0xff]
        %v1631 = vld [vmem:[#allocation5 + $0x3c0] sm:$0xff]
        %v1632 = vld [vmem:[#allocation5 + $0x3c8] sm:$0xff]
        %v1633 = vld [vmem:[#allocation5 + $0x3d0] sm:$0xff]
        %v1634 = vld [vmem:[#allocation5 + $0x3d8] sm:$0xff]
        %v1635 = vld [vmem:[#allocation5 + $0x3e0] sm:$0xff]
        %v1636 = vld [vmem:[#allocation5 + $0x3e8] sm:$0xff]
        %v1637 = vld [vmem:[#allocation5 + $0x3f0] sm:$0xff]
        %v1638 = vld [vmem:[#allocation5 + $0x3f8] sm:$0xff]
        %v1639 = vperm.slane %v1383, 3
        %1641 = vmatpush.msra.mxu0 %v1637
        %1642 = vmatpush.msra.mxu0 %v1635
        %1643 = vmatpush.msra.mxu0 %v1633
        %1644 = vmatpush.msra.mxu0 %v1631
        %1645 = vmatpush.msra.mxu0 %v1629
        %1646 = vmatpush.msra.mxu0 %v1627
        %1647 = vmatpush.msra.mxu0 %v1625
        %1648 = vmatpush.msra.mxu0 %v1623
        %1649 = vmatpush.msra.mxu0 %v1621
        %1650 = vmatpush.msra.mxu0 %v1619
        %1651 = vmatpush.msra.mxu0 %v1617
        %1652 = vmatpush.msra.mxu0 %v1615
        %1653 = vmatpush.msra.mxu0 %v1613
        %1654 = vmatpush.msra.mxu0 %v1611
        %1655 = vmatpush.msra.mxu0 %v1609
        %1656 = vmatpush.msra.mxu0 %v1607
        %1657 = vmatmul.f32.gmra.mxu0 %v1639
        %v1658 = vpop.f32.mrf.mxu0
        %v1659 = vadd.f32 0.0, %v1658
        %1660 = vdwg.mxu0
        %1661 = vmatpush.msra.mxu0 %v1638
        %1662 = vmatpush.msra.mxu0 %v1636
        %1663 = vmatpush.msra.mxu0 %v1634
        %1664 = vmatpush.msra.mxu0 %v1632
        %1665 = vmatpush.msra.mxu0 %v1630
        %1666 = vmatpush.msra.mxu0 %v1628
        %1667 = vmatpush.msra.mxu0 %v1626
        %1668 = vmatpush.msra.mxu0 %v1624
        %1669 = vmatpush.msra.mxu0 %v1622
        %1670 = vmatpush.msra.mxu0 %v1620
        %1671 = vmatpush.msra.mxu0 %v1618
        %1672 = vmatpush.msra.mxu0 %v1616
        %1673 = vmatpush.msra.mxu0 %v1614
        %1674 = vmatpush.msra.mxu0 %v1612
        %1675 = vmatpush.msra.mxu0 %v1610
        %1676 = vmatpush.msra.mxu0 %v1608
        %1677 = vmatmul.f32.gmra.mxu0 %v1639
        %v1678 = vpop.f32.mrf.mxu0
        %v1679 = vadd.f32 0.0, %v1678
        %1680 = vdwg.mxu0
        %v1681 = vadd.f32 %v1605, %v1659
        %v1682 = vadd.f32 %v1606, %v1679
        %1683 = vrot.lane.b32.xlu0 %v1681, 17
        %v1684 = vpop.permute.xlu0 %1683
        %1685 = vrot.lane.b32.xlu0 %v1682, 17
        %v1686 = vpop.permute.xlu0 %1685
        %vm1687 = vcmp.lt.s32.totalorder %v780, 17
        %v1688 = vsel %vm1687, %v1684, %v1686
        %v1689 = vsel %vm1687, %v1686, %v1684
        %v1690 = vadd.s32 %v758, 4294967295
        %vm1691 = vcmp.ge.s32.totalorder %v1690, 0
        %vm1692 = vcmp.lt.s32.totalorder %v1690, 16
        %vm1693 = vmand %vm1691, %vm1692
        %v1694 = vadd.s32 %v760, 4294967295
        %vm1695 = vcmp.ge.s32.totalorder %v1694, 0
        %vm1696 = vmand %vm1693, %vm1695
        %vm1697 = vcmp.lt.s32.totalorder %v1694, 16
        %vm1698 = vmand %vm1696, %vm1697
        %v1701 = vrot.slane %v1688, 7
        %v1702 = vsel %vm793, %v1689, %v1701
        %v1704 = vsel %vm1698, %v1702, 0.0
        %v1705 = vlaneseq
        %vm1706 = vcmp.ge.s32.totalorder %v1705, 0
        %vm1707 = vcmp.lt.s32.totalorder %v1705, 256
        %vm1708 = vmand %vm1706, %vm1707
        %1709 = vst.msk [vmem:[#allocation2] ss:$8 sm:$0x3] %vm1708, %v1704
        %1710 = vst.msk [vmem:[#allocation2] ss:$8 sm:$0x0] %vm1708, %v1704
        %1711 = vrot.lane.b32.xlu0 %v1681, 16
        %v1712 = vpop.permute.xlu0 %1711
        %1713 = vrot.lane.b32.xlu0 %v1682, 16
        %v1714 = vpop.permute.xlu0 %1713
        %v1715 = vsel %vm1059, %v1712, %v1714
        %v1716 = vsel %vm1059, %v1714, %v1712
        %vm1717 = vcmp.ge.s32.totalorder %v758, 0
        %vm1718 = vcmp.lt.s32.totalorder %v758, 16
        %vm1719 = vmand %vm1717, %vm1718
        %vm1720 = vmand %vm1719, %vm1695
        %vm1721 = vmand %vm1720, %vm1697
        %v1724 = vrot.slane %v1715, 7
        %v1725 = vsel %vm793, %v1716, %v1724
        %v1727 = vsel %vm1721, %v1725, 0.0
        %s1728 = scalar_lea.vmem [#allocation2], 1
        %1729 = vst.msk [vmem:[%s1728] ss:$8 sm:$0x3] %vm1708, %v1727
        %1730 = vst.msk [vmem:[%s1728] ss:$8 sm:$0x0] %vm1708, %v1727
        %1731 = vrot.lane.b32.xlu0 %v1681, 15
        %v1732 = vpop.permute.xlu0 %1731
        %1733 = vrot.lane.b32.xlu0 %v1682, 15
        %v1734 = vpop.permute.xlu0 %1733
        %vm1735 = vcmp.lt.s32.totalorder %v780, 15
        %v1736 = vsel %vm1735, %v1732, %v1734
        %v1737 = vsel %vm1735, %v1734, %v1732
        %v1738 = vadd.s32 %v758, 1
        %vm1739 = vcmp.ge.s32.totalorder %v1738, 0
        %vm1740 = vcmp.lt.s32.totalorder %v1738, 16
        %vm1741 = vmand %vm1739, %vm1740
        %vm1742 = vmand %vm1741, %vm1695
        %vm1743 = vmand %vm1742, %vm1697
        %v1746 = vrot.slane %v1736, 7
        %v1747 = vsel %vm793, %v1737, %v1746
        %v1749 = vsel %vm1743, %v1747, 0.0
        %s1750 = scalar_lea.vmem [#allocation2], 2
        %1751 = vst.msk [vmem:[%s1750] ss:$8 sm:$0x3] %vm1708, %v1749
        %1752 = vst.msk [vmem:[%s1750] ss:$8 sm:$0x0] %vm1708, %v1749
        %1753 = vrot.lane.b32.xlu0 %v1681, 1
        %v1754 = vpop.permute.xlu0 %1753
        %1755 = vrot.lane.b32.xlu0 %v1682, 1
        %v1756 = vpop.permute.xlu0 %1755
        %vm1757 = vcmp.lt.s32.totalorder %v780, 1
        %v1758 = vsel %vm1757, %v1754, %v1756
        %v1759 = vsel %vm1757, %v1756, %v1754
        %vm1760 = vcmp.ge.s32.totalorder %v760, 0
        %vm1761 = vmand %vm1693, %vm1760
        %vm1762 = vcmp.lt.s32.totalorder %v760, 16
        %vm1763 = vmand %vm1761, %vm1762
        %v1766 = vrot.slane %v1758, 7
        %v1767 = vsel %vm793, %v1759, %v1766
        %v1769 = vsel %vm1763, %v1767, 0.0
        %s1770 = scalar_lea.vmem [#allocation2], 3
        %1771 = vst.msk [vmem:[%s1770] ss:$8 sm:$0x3] %vm1708, %v1769
        %1772 = vst.msk [vmem:[%s1770] ss:$8 sm:$0x0] %vm1708, %v1769
        %v1775 = vrot.slane %v1682, 7
        %v1776 = vsel %vm793, %v1681, %v1775
        %s1778 = scalar_lea.vmem [#allocation2], 4
        %1779 = vst.msk [vmem:[%s1778] ss:$8 sm:$0x3] %vm1708, %v1776
        %1780 = vst.msk [vmem:[%s1778] ss:$8 sm:$0x0] %vm1708, %v1776
        %1781 = vrot.lane.b32.xlu0 %v1681, 127
        %v1782 = vpop.permute.xlu0 %1781
        %1783 = vrot.lane.b32.xlu0 %v1682, 127
        %v1784 = vpop.permute.xlu0 %1783
        %v1785 = vsel %vm1093, %v1782, %v1784
        %v1786 = vsel %vm1093, %v1784, %v1782
        %vm1787 = vmand %vm1741, %vm1760
        %vm1788 = vmand %vm1787, %vm1762
        %v1791 = vrot.slane %v1786, 7
        %v1792 = vsel %vm793, %v1785, %v1791
        %v1794 = vsel %vm1788, %v1792, 0.0
        %s1795 = scalar_lea.vmem [#allocation2], 5
        %1796 = vst.msk [vmem:[%s1795] ss:$8 sm:$0x3] %vm1708, %v1794
        %1797 = vst.msk [vmem:[%s1795] ss:$8 sm:$0x0] %vm1708, %v1794
        %1798 = vrot.lane.b32.xlu0 %v1681, 113
        %v1799 = vpop.permute.xlu0 %1798
        %1800 = vrot.lane.b32.xlu0 %v1682, 113
        %v1801 = vpop.permute.xlu0 %1800
        %vm1802 = vcmp.lt.s32.totalorder %v780, 113
        %v1803 = vsel %vm1802, %v1799, %v1801
        %v1804 = vsel %vm1802, %v1801, %v1799
        %v1805 = vadd.s32 %v760, 1
        %vm1806 = vcmp.ge.s32.totalorder %v1805, 0
        %vm1807 = vmand %vm1693, %vm1806
        %vm1808 = vcmp.lt.s32.totalorder %v1805, 16
        %vm1809 = vmand %vm1807, %vm1808
        %v1812 = vrot.slane %v1804, 7
        %v1813 = vsel %vm793, %v1803, %v1812
        %v1815 = vsel %vm1809, %v1813, 0.0
        %s1816 = scalar_lea.vmem [#allocation2], 6
        %1817 = vst.msk [vmem:[%s1816] ss:$8 sm:$0x3] %vm1708, %v1815
        %1818 = vst.msk [vmem:[%s1816] ss:$8 sm:$0x0] %vm1708, %v1815
        %1819 = vrot.lane.b32.xlu0 %v1681, 112
        %v1820 = vpop.permute.xlu0 %1819
        %1821 = vrot.lane.b32.xlu0 %v1682, 112
        %v1822 = vpop.permute.xlu0 %1821
        %vm1823 = vcmp.lt.s32.totalorder %v780, 112
        %v1824 = vsel %vm1823, %v1820, %v1822
        %v1825 = vsel %vm1823, %v1822, %v1820
        %vm1826 = vmand %vm1719, %vm1806
        %vm1827 = vmand %vm1826, %vm1808
        %v1830 = vrot.slane %v1825, 7
        %v1831 = vsel %vm793, %v1824, %v1830
        %v1833 = vsel %vm1827, %v1831, 0.0
        %s1834 = scalar_lea.vmem [#allocation2], 7
        %1835 = vst.msk [vmem:[%s1834] ss:$8 sm:$0x3] %vm1708, %v1833
        %1836 = vst.msk [vmem:[%s1834] ss:$8 sm:$0x0] %vm1708, %v1833
        %1837 = vrot.lane.b32.xlu0 %v1681, 111
        %v1838 = vpop.permute.xlu0 %1837
        %1839 = vrot.lane.b32.xlu0 %v1682, 111
        %v1840 = vpop.permute.xlu0 %1839
        %vm1841 = vcmp.lt.s32.totalorder %v780, 111
        %v1842 = vsel %vm1841, %v1838, %v1840
        %v1843 = vsel %vm1841, %v1840, %v1838
        %vm1844 = vmand %vm1741, %vm1806
        %vm1845 = vmand %vm1844, %vm1808
        %v1848 = vrot.slane %v1843, 7
        %v1849 = vsel %vm793, %v1842, %v1848
        %v1851 = vsel %vm1845, %v1849, 0.0
        %s1852 = scalar_lea.vmem [#allocation2], 16
        %1853 = vst.msk [vmem:[%s1852] ss:$8 sm:$0x3] %vm1708, %v1851
        %1854 = vst.msk [vmem:[%s1852] ss:$8 sm:$0x0] %vm1708, %v1851
        %v1855 = vld [vmem:[%s4] sm:$0xff]
        %v1856 = vld [vmem:[#allocation2] sm:$0xff]
        %v1857 = vld [vmem:[#allocation2 + $0x8] sm:$0xff]
        %v1858 = vld [vmem:[#allocation2 + $0x10] sm:$0x1]
        %v1859 = vld [vmem:[#allocation2 + $0x18] sm:$0x1]
        %v1860 = vld [vmem:[%s5] sm:$0xff]
        %v1861 = vld [vmem:[%s5 + $0x8] sm:$0xff]
        %v1862 = vld [vmem:[%s5 + $0x10] sm:$0xff]
        %1864 = vset.pattern.permute.xlu0 0
        %1865 = vperm.xlu0 %1864, %v1860
        %v1866 = vpop.permute.xlu0 %1865
        %vm1868 = vcmask 72704
        %v1870 = vsel %vm1868, %v1855, 0
        %v1873 = vsel %vm793, %v1858, 0
        %v1876 = vsel %vm793, %v1859, 0
        %1878 = vmatpush.msra.mxu0 0.0
        %1879 = vmatpush.msra.mxu0 0.0
        %1880 = vmatpush.msra.mxu0 0.0
        %1881 = vmatpush.msra.mxu0 0.0
        %1882 = vmatpush.msra.mxu0 0.0
        %1883 = vmatpush.msra.mxu0 0.0
        %1884 = vmatpush.msra.mxu0 0.0
        %1885 = vmatpush.msra.mxu0 0.0
        %1886 = vmatpush.msra.mxu0 0.0
        %1887 = vmatpush.msra.mxu0 0.0
        %1888 = vmatpush.msra.mxu0 0.0
        %1889 = vmatpush.msra.mxu0 0.0
        %1890 = vmatpush.msra.mxu0 0.0
        %1891 = vmatpush.msra.mxu0 0.0
        %1892 = vmatpush.msra.mxu0 %v1873
        %1893 = vmatpush.msra.mxu0 %v1856
        %1894 = vmatmul.f32.gmra.mxu0 %v1870
        %v1895 = vpop.f32.mrf.mxu0
        %v1896 = vadd.f32 %v1866, %v1895
        %1897 = vdwg.mxu0
        %1898 = vmatpush.msra.mxu0 0.0
        %1899 = vmatpush.msra.mxu0 0.0
        %1900 = vmatpush.msra.mxu0 0.0
        %1901 = vmatpush.msra.mxu0 0.0
        %1902 = vmatpush.msra.mxu0 0.0
        %1903 = vmatpush.msra.mxu0 0.0
        %1904 = vmatpush.msra.mxu0 0.0
        %1905 = vmatpush.msra.mxu0 0.0
        %1906 = vmatpush.msra.mxu0 0.0
        %1907 = vmatpush.msra.mxu0 0.0
        %1908 = vmatpush.msra.mxu0 0.0
        %1909 = vmatpush.msra.mxu0 0.0
        %1910 = vmatpush.msra.mxu0 0.0
        %1911 = vmatpush.msra.mxu0 0.0
        %1912 = vmatpush.msra.mxu0 %v1876
        %1913 = vmatpush.msra.mxu0 %v1857
        %1914 = vmatmul.f32.gmra.mxu0 %v1870
        %v1915 = vpop.f32.mrf.mxu0
        %v1916 = vadd.f32 %v1866, %v1915
        %1917 = vdwg.mxu0
        %v1918 = vadd.f32 %v1896, %v1916
        %1919 = vadd.xlane.f32.xlu0 %v1918
        %v1920 = vpop.xlane.xlu0 %1919
        %v1921 = vrot.slane %v1920, 4
        %v1922 = vadd.f32 %v1920, %v1921
        %v1923 = vrot.slane %v1922, 2
        %v1924 = vadd.f32 %v1922, %v1923
        %v1925 = vrot.slane %v1924, 1
        %v1926 = vadd.f32 %v1924, %v1925
        %s1927 = vtos %v1926
        %v1928 = vstv %s1927
        %v1929 = vmul.f32 %v1896, %v1896
        %v1930 = vmul.f32 %v1916, %v1916
        %v1931 = vadd.f32 %v1929, %v1930
        %1932 = vadd.xlane.f32.xlu0 %v1931
        %v1933 = vpop.xlane.xlu0 %1932
        %v1934 = vrot.slane %v1933, 4
        %v1935 = vadd.f32 %v1933, %v1934
        %v1936 = vrot.slane %v1935, 2
        %v1937 = vadd.f32 %v1935, %v1936
        %v1938 = vrot.slane %v1937, 1
        %v1939 = vadd.f32 %v1937, %v1938
        %s1940 = vtos %v1939
        %v1941 = vstv %s1940
        %v1942 = vrcp.pop 2048.0
        %v1943 = vmul.f32 2048.0, %v1942
        %v1944 = vsub.f32 1.0, %v1943
        %v1945 = vmul.f32 %v1942, %v1944
        %v1946 = vadd.f32 %v1942, %v1945
        %vm1947 = vweird.f32 %v1942
        %v1948 = vsel %vm1947, %v1942, %v1946
        %v1949 = vmul.f32 %v1928, %v1948
        %v1950 = vmul.f32 %v1941, %v1948
        %v1951 = vmul.f32 %v1949, %v1949
        %v1952 = vsub.f32 %v1950, %v1951
        %v1953 = vsub.f32 %v1896, %v1949
        %v1954 = vsub.f32 %v1916, %v1949
        %v1955 = vadd.f32 %v1952, 1e-05
        %v1956 = vrsqrt.pop %v1955
        %v1957 = vmul.f32 %v1956, %v1955
        %v1958 = vmul.f32 %v1957, %v1956
        %v1959 = vmul.f32 0.5, %v1958
        %v1960 = vsub.f32 1.5, %v1959
        %v1961 = vmul.f32 %v1956, %v1960
        %vm1962 = vweird.f32 %v1955
        %vm1963 = vweird.f32 %v1956
        %vm1964 = vmor %vm1962, %vm1963
        %v1965 = vsel %vm1964, %v1956, %v1961
        %v1966 = vmul.f32 %v1953, %v1965
        %v1967 = vmul.f32 %v1954, %v1965
        %1969 = vset.pattern.permute.xlu0 0
        %1970 = vperm.xlu0 %1969, %v1861
        %v1971 = vpop.permute.xlu0 %1970
        %v1973 = vmul.f32 %v1966, %v1971
        %v1974 = vmul.f32 %v1967, %v1971
        %1976 = vset.pattern.permute.xlu0 0
        %1977 = vperm.xlu0 %1976, %v1862
        %v1978 = vpop.permute.xlu0 %1977
        %v1980 = vadd.f32 %v1973, %v1978
        %v1981 = vadd.f32 %v1974, %v1978
        %v1982 = vmax.f32 %v1980, 0.0
        %v1983 = vmax.f32 %v1981, 0.0
        %1984 = vrot.lane.b32.xlu0 %v1982, 119
        %v1985 = vpop.permute.xlu0 %1984
        %1986 = vrot.lane.b32.xlu0 %v1983, 119
        %v1987 = vpop.permute.xlu0 %1986
        %v1988 = vsel %vm1293, %v1985, %v1987
        %v1989 = vsel %vm1293, %v1987, %v1985
        %v1990 = vadd.s32 %v758, 4294967289
        %vm1991 = vcmp.ge.s32.totalorder %v1990, 0
        %vm1992 = vcmp.lt.s32.totalorder %v1990, 16
        %vm1993 = vmand %vm1991, %vm1992
        %v1994 = vadd.s32 %v760, 4294967289
        %vm1995 = vcmp.ge.s32.totalorder %v1994, 0
        %vm1996 = vmand %vm1993, %vm1995
        %vm1997 = vcmp.lt.s32.totalorder %v1994, 16
        %vm1998 = vmand %vm1996, %vm1997
        %v1999 = vsel %vm1998, 1, 0
        %v2000 = vperm.slane %v1999, 0
        %v2001 = vperm.slane %v1999, 1
        %vm2002 = vcmp.eq.s32.totalorder %v2000, 1
        %vm2003 = vcmp.eq.s32.totalorder %v2001, 1
        %v2004 = vsel %vm2002, %v1989, 0.0
        %v2005 = vsel %vm2003, %v1988, 0.0
        %2006 = vst [vmem:[#allocation2] sm:$0xff] %v2004
        %2007 = vst [vmem:[#allocation2 + $0x8] sm:$0xff] %v2005
        %2008 = vrot.lane.b32.xlu0 %v1982, 112
        %v2009 = vpop.permute.xlu0 %2008
        %2010 = vrot.lane.b32.xlu0 %v1983, 112
        %v2011 = vpop.permute.xlu0 %2010
        %v2012 = vsel %vm1823, %v2009, %v2011
        %v2013 = vsel %vm1823, %v2011, %v2009
        %vm2014 = vmand %vm1719, %vm1995
        %vm2015 = vmand %vm2014, %vm1997
        %v2016 = vsel %vm2015, 1, 0
        %v2017 = vperm.slane %v2016, 0
        %v2018 = vperm.slane %v2016, 1
        %vm2019 = vcmp.eq.s32.totalorder %v2017, 1
        %vm2020 = vcmp.eq.s32.totalorder %v2018, 1
        %v2021 = vsel %vm2019, %v2013, 0.0
        %v2022 = vsel %vm2020, %v2012, 0.0
        %2023 = vst [vmem:[#allocation2 + $0x10] sm:$0xff] %v2021
        %2024 = vst [vmem:[#allocation2 + $0x18] sm:$0xff] %v2022
        %2025 = vrot.lane.b32.xlu0 %v1982, 105
        %v2026 = vpop.permute.xlu0 %2025
        %2027 = vrot.lane.b32.xlu0 %v1983, 105
        %v2028 = vpop.permute.xlu0 %2027
        %vm2029 = vcmp.lt.s32.totalorder %v780, 105
        %v2030 = vsel %vm2029, %v2026, %v2028
        %v2031 = vsel %vm2029, %v2028, %v2026
        %v2032 = vadd.s32 %v758, 7
        %vm2033 = vcmp.ge.s32.totalorder %v2032, 0
        %vm2034 = vcmp.lt.s32.totalorder %v2032, 16
        %vm2035 = vmand %vm2033, %vm2034
        %vm2036 = vmand %vm2035, %vm1995
        %vm2037 = vmand %vm2036, %vm1997
        %v2038 = vsel %vm2037, 1, 0
        %v2039 = vperm.slane %v2038, 0
        %v2040 = vperm.slane %v2038, 1
        %vm2041 = vcmp.eq.s32.totalorder %v2039, 1
        %vm2042 = vcmp.eq.s32.totalorder %v2040, 1
        %v2043 = vsel %vm2041, %v2031, 0.0
        %v2044 = vsel %vm2042, %v2030, 0.0
        %2045 = vst [vmem:[#allocation2 + $0x20] sm:$0xff] %v2043
        %2046 = vst [vmem:[#allocation2 + $0x28] sm:$0xff] %v2044
        %2047 = vrot.lane.b32.xlu0 %v1982, 7
        %v2048 = vpop.permute.xlu0 %2047
        %2049 = vrot.lane.b32.xlu0 %v1983, 7
        %v2050 = vpop.permute.xlu0 %2049
        %vm2051 = vcmp.lt.s32.totalorder %v780, 7
        %v2052 = vsel %vm2051, %v2048, %v2050
        %v2053 = vsel %vm2051, %v2050, %v2048
        %vm2054 = vmand %vm1993, %vm1760
        %vm2055 = vmand %vm2054, %vm1762
        %v2056 = vsel %vm2055, 1, 0
        %v2057 = vperm.slane %v2056, 0
        %v2058 = vperm.slane %v2056, 1
        %vm2059 = vcmp.eq.s32.totalorder %v2057, 1
        %vm2060 = vcmp.eq.s32.totalorder %v2058, 1
        %v2061 = vsel %vm2059, %v2053, 0.0
        %v2062 = vsel %vm2060, %v2052, 0.0
        %2063 = vst [vmem:[#allocation2 + $0x30] sm:$0xff] %v2061
        %2064 = vst [vmem:[#allocation2 + $0x38] sm:$0xff] %v2062
        %2065 = vst [vmem:[#allocation2 + $0x40] sm:$0xff] %v1982
        %2066 = vst [vmem:[#allocation2 + $0x48] sm:$0xff] %v1983
        %2067 = vrot.lane.b32.xlu0 %v1982, 121
        %v2068 = vpop.permute.xlu0 %2067
        %2069 = vrot.lane.b32.xlu0 %v1983, 121
        %v2070 = vpop.permute.xlu0 %2069
        %v2071 = vsel %vm1243, %v2068, %v2070
        %v2072 = vsel %vm1243, %v2070, %v2068
        %vm2073 = vmand %vm2035, %vm1760
        %vm2074 = vmand %vm2073, %vm1762
        %v2075 = vsel %vm2074, 1, 0
        %v2076 = vperm.slane %v2075, 0
        %v2077 = vperm.slane %v2075, 1
        %vm2078 = vcmp.eq.s32.totalorder %v2076, 1
        %vm2079 = vcmp.eq.s32.totalorder %v2077, 1
        %v2080 = vsel %vm2078, %v2071, 0.0
        %v2081 = vsel %vm2079, %v2072, 0.0
        %2082 = vst [vmem:[#allocation2 + $0x50] sm:$0xff] %v2080
        %2083 = vst [vmem:[#allocation2 + $0x58] sm:$0xff] %v2081
        %2084 = vrot.lane.b32.xlu0 %v1982, 23
        %v2085 = vpop.permute.xlu0 %2084
        %2086 = vrot.lane.b32.xlu0 %v1983, 23
        %v2087 = vpop.permute.xlu0 %2086
        %vm2088 = vcmp.lt.s32.totalorder %v780, 23
        %v2089 = vsel %vm2088, %v2085, %v2087
        %v2090 = vsel %vm2088, %v2087, %v2085
        %v2091 = vadd.s32 %v760, 7
        %vm2092 = vcmp.ge.s32.totalorder %v2091, 0
        %vm2093 = vmand %vm1993, %vm2092
        %vm2094 = vcmp.lt.s32.totalorder %v2091, 16
        %vm2095 = vmand %vm2093, %vm2094
        %v2096 = vsel %vm2095, 1, 0
        %v2097 = vperm.slane %v2096, 0
        %v2098 = vperm.slane %v2096, 1
        %vm2099 = vcmp.eq.s32.totalorder %v2097, 1
        %vm2100 = vcmp.eq.s32.totalorder %v2098, 1
        %v2101 = vsel %vm2099, %v2089, 0.0
        %v2102 = vsel %vm2100, %v2090, 0.0
        %2103 = vst [vmem:[#allocation2 + $0x60] sm:$0xff] %v2101
        %2104 = vst [vmem:[#allocation2 + $0x68] sm:$0xff] %v2102
        %2105 = vrot.lane.b32.xlu0 %v1982, 16
        %v2106 = vpop.permute.xlu0 %2105
        %2107 = vrot.lane.b32.xlu0 %v1983, 16
        %v2108 = vpop.permute.xlu0 %2107
        %v2109 = vsel %vm1059, %v2106, %v2108
        %v2110 = vsel %vm1059, %v2108, %v2106
        %vm2111 = vmand %vm1719, %vm2092
        %vm2112 = vmand %vm2111, %vm2094
        %v2113 = vsel %vm2112, 1, 0
        %v2114 = vperm.slane %v2113, 0
        %v2115 = vperm.slane %v2113, 1
        %vm2116 = vcmp.eq.s32.totalorder %v2114, 1
        %vm2117 = vcmp.eq.s32.totalorder %v2115, 1
        %v2118 = vsel %vm2116, %v2109, 0.0
        %v2119 = vsel %vm2117, %v2110, 0.0
        %2120 = vst [vmem:[#allocation2 + $0x70] sm:$0xff] %v2118
        %2121 = vst [vmem:[#allocation2 + $0x78] sm:$0xff] %v2119
        %2122 = vrot.lane.b32.xlu0 %v1982, 9
        %v2123 = vpop.permute.xlu0 %2122
        %2124 = vrot.lane.b32.xlu0 %v1983, 9
        %v2125 = vpop.permute.xlu0 %2124
        %vm2126 = vcmp.lt.s32.totalorder %v780, 9
        %v2127 = vsel %vm2126, %v2123, %v2125
        %v2128 = vsel %vm2126, %v2125, %v2123
        %vm2129 = vmand %vm2035, %vm2092
        %vm2130 = vmand %vm2129, %vm2094
        %v2131 = vsel %vm2130, 1, 0
        %v2132 = vperm.slane %v2131, 0
        %v2133 = vperm.slane %v2131, 1
        %vm2134 = vcmp.eq.s32.totalorder %v2132, 1
        %vm2135 = vcmp.eq.s32.totalorder %v2133, 1
        %v2136 = vsel %vm2134, %v2127, 0.0
        %v2137 = vsel %vm2135, %v2128, 0.0
        %2138 = vst [vmem:[#allocation2 + $0x80] sm:$0xff] %v2136
        %2139 = vst [vmem:[#allocation2 + $0x88] sm:$0xff] %v2137
        %v2140 = vld [vmem:[%s6] sm:$0xff]
        %v2141 = vld [vmem:[#allocation2] sm:$0xff]
        %v2142 = vld [vmem:[#allocation2 + $0x8] sm:$0xff]
        %v2143 = vld [vmem:[#allocation2 + $0x10] sm:$0xff]
        %v2144 = vld [vmem:[#allocation2 + $0x18] sm:$0xff]
        %v2145 = vld [vmem:[#allocation2 + $0x20] sm:$0xff]
        %v2146 = vld [vmem:[#allocation2 + $0x28] sm:$0xff]
        %v2147 = vld [vmem:[#allocation2 + $0x30] sm:$0xff]
        %v2148 = vld [vmem:[#allocation2 + $0x38] sm:$0xff]
        %v2149 = vld [vmem:[#allocation2 + $0x40] sm:$0xff]
        %v2150 = vld [vmem:[#allocation2 + $0x48] sm:$0xff]
        %v2151 = vld [vmem:[#allocation2 + $0x50] sm:$0xff]
        %v2152 = vld [vmem:[#allocation2 + $0x58] sm:$0xff]
        %v2153 = vld [vmem:[#allocation2 + $0x60] sm:$0xff]
        %v2154 = vld [vmem:[#allocation2 + $0x68] sm:$0xff]
        %v2155 = vld [vmem:[#allocation2 + $0x70] sm:$0xff]
        %v2156 = vld [vmem:[#allocation2 + $0x78] sm:$0xff]
        %v2157 = vld [vmem:[#allocation2 + $0x80] sm:$0xff]
        %v2158 = vld [vmem:[#allocation2 + $0x88] sm:$0xff]
        %v2159 = vld [vmem:[%s7] sm:$0xff]
        %v2160 = vld [vmem:[%s7 + $0x8] sm:$0xff]
        %v2161 = vld [vmem:[%s7 + $0x10] sm:$0xff]
        %2163 = vset.pattern.permute.xlu0 0
        %2164 = vperm.xlu0 %2163, %v2159
        %v2165 = vpop.permute.xlu0 %2164
        %vm2167 = vcmask 588800
        %v2169 = vsel %vm2167, %v2140, 0
        %2171 = vmatpush.msra.mxu0 0.0
        %2172 = vmatpush.msra.mxu0 0.0
        %2173 = vmatpush.msra.mxu0 0.0
        %2174 = vmatpush.msra.mxu0 0.0
        %2175 = vmatpush.msra.mxu0 0.0
        %2176 = vmatpush.msra.mxu0 0.0
        %2177 = vmatpush.msra.mxu0 0.0
        %2178 = vmatpush.msra.mxu0 %v2157
        %2179 = vmatpush.msra.mxu0 %v2155
        %2180 = vmatpush.msra.mxu0 %v2153
        %2181 = vmatpush.msra.mxu0 %v2151
        %2182 = vmatpush.msra.mxu0 %v2149
        %2183 = vmatpush.msra.mxu0 %v2147
        %2184 = vmatpush.msra.mxu0 %v2145
        %2185 = vmatpush.msra.mxu0 %v2143
        %2186 = vmatpush.msra.mxu0 %v2141
        %2187 = vmatmul.f32.gmra.mxu0 %v2169
        %v2188 = vpop.f32.mrf.mxu0
        %v2189 = vadd.f32 %v2165, %v2188
        %2190 = vdwg.mxu0
        %2191 = vmatpush.msra.mxu0 0.0
        %2192 = vmatpush.msra.mxu0 0.0
        %2193 = vmatpush.msra.mxu0 0.0
        %2194 = vmatpush.msra.mxu0 0.0
        %2195 = vmatpush.msra.mxu0 0.0
        %2196 = vmatpush.msra.mxu0 0.0
        %2197 = vmatpush.msra.mxu0 0.0
        %2198 = vmatpush.msra.mxu0 %v2158
        %2199 = vmatpush.msra.mxu0 %v2156
        %2200 = vmatpush.msra.mxu0 %v2154
        %2201 = vmatpush.msra.mxu0 %v2152
        %2202 = vmatpush.msra.mxu0 %v2150
        %2203 = vmatpush.msra.mxu0 %v2148
        %2204 = vmatpush.msra.mxu0 %v2146
        %2205 = vmatpush.msra.mxu0 %v2144
        %2206 = vmatpush.msra.mxu0 %v2142
        %2207 = vmatmul.f32.gmra.mxu0 %v2169
        %v2208 = vpop.f32.mrf.mxu0
        %v2209 = vadd.f32 %v2165, %v2208
        %2210 = vdwg.mxu0
        %v2211 = vadd.f32 %v2189, %v2209
        %2212 = vadd.xlane.f32.xlu0 %v2211
        %v2213 = vpop.xlane.xlu0 %2212
        %v2214 = vrot.slane %v2213, 4
        %v2215 = vadd.f32 %v2213, %v2214
        %v2216 = vrot.slane %v2215, 2
        %v2217 = vadd.f32 %v2215, %v2216
        %v2218 = vrot.slane %v2217, 1
        %v2219 = vadd.f32 %v2217, %v2218
        %s2220 = vtos %v2219
        %v2221 = vstv %s2220
        %v2222 = vmul.f32 %v2189, %v2189
        %v2223 = vmul.f32 %v2209, %v2209
        %v2224 = vadd.f32 %v2222, %v2223
        %2225 = vadd.xlane.f32.xlu0 %v2224
        %v2226 = vpop.xlane.xlu0 %2225
        %v2227 = vrot.slane %v2226, 4
        %v2228 = vadd.f32 %v2226, %v2227
        %v2229 = vrot.slane %v2228, 2
        %v2230 = vadd.f32 %v2228, %v2229
        %v2231 = vrot.slane %v2230, 1
        %v2232 = vadd.f32 %v2230, %v2231
        %s2233 = vtos %v2232
        %v2234 = vstv %s2233
        %v2235 = vmul.f32 %v2221, %v1948
        %v2236 = vmul.f32 %v2234, %v1948
        %v2237 = vmul.f32 %v2235, %v2235
        %v2238 = vsub.f32 %v2236, %v2237
        %v2239 = vsub.f32 %v2189, %v2235
        %v2240 = vsub.f32 %v2209, %v2235
        %v2241 = vadd.f32 %v2238, 1e-05
        %v2242 = vrsqrt.pop %v2241
        %v2243 = vmul.f32 %v2242, %v2241
        %v2244 = vmul.f32 %v2243, %v2242
        %v2245 = vmul.f32 0.5, %v2244
        %v2246 = vsub.f32 1.5, %v2245
        %v2247 = vmul.f32 %v2242, %v2246
        %vm2248 = vweird.f32 %v2241
        %vm2249 = vweird.f32 %v2242
        %vm2250 = vmor %vm2248, %vm2249
        %v2251 = vsel %vm2250, %v2242, %v2247
        %v2252 = vmul.f32 %v2239, %v2251
        %v2253 = vmul.f32 %v2240, %v2251
        %2255 = vset.pattern.permute.xlu0 0
        %2256 = vperm.xlu0 %2255, %v2160
        %v2257 = vpop.permute.xlu0 %2256
        %v2259 = vmul.f32 %v2252, %v2257
        %v2260 = vmul.f32 %v2253, %v2257
        %2262 = vset.pattern.permute.xlu0 0
        %2263 = vperm.xlu0 %2262, %v2161
        %v2264 = vpop.permute.xlu0 %2263
        %v2266 = vadd.f32 %v2259, %v2264
        %v2267 = vadd.f32 %v2260, %v2264
        %v2268 = vmax.f32 %v2266, 0.0
        %v2269 = vmax.f32 %v2267, 0.0
        %2270 = vst [vmem:[#allocation3] sm:$0xff] %v2268
        %2271 = vst [vmem:[#allocation3 + $0x8] sm:$0xff] %v2269
        %2272 = vrot.lane.b32.xlu0 %v1982, 85
        %v2273 = vpop.permute.xlu0 %2272
        %2274 = vrot.lane.b32.xlu0 %v1983, 85
        %v2275 = vpop.permute.xlu0 %2274
        %vm2276 = vcmp.lt.s32.totalorder %v780, 85
        %v2277 = vsel %vm2276, %v2273, %v2275
        %v2278 = vsel %vm2276, %v2275, %v2273
        %v2279 = vadd.s32 %v758, 4294967291
        %vm2280 = vcmp.ge.s32.totalorder %v2279, 0
        %vm2281 = vcmp.lt.s32.totalorder %v2279, 16
        %vm2282 = vmand %vm2280, %vm2281
        %v2283 = vadd.s32 %v760, 4294967291
        %vm2284 = vcmp.ge.s32.totalorder %v2283, 0
        %vm2285 = vmand %vm2282, %vm2284
        %vm2286 = vcmp.lt.s32.totalorder %v2283, 16
        %vm2287 = vmand %vm2285, %vm2286
        %v2288 = vsel %vm2287, 1, 0
        %v2289 = vperm.slane %v2288, 0
        %v2290 = vperm.slane %v2288, 1
        %vm2291 = vcmp.eq.s32.totalorder %v2289, 1
        %vm2292 = vcmp.eq.s32.totalorder %v2290, 1
        %v2293 = vsel %vm2291, %v2278, 0.0
        %v2294 = vsel %vm2292, %v2277, 0.0
        %2295 = vst [vmem:[#allocation2] sm:$0xff] %v2293
        %2296 = vst [vmem:[#allocation2 + $0x8] sm:$0xff] %v2294
        %2297 = vrot.lane.b32.xlu0 %v1982, 80
        %v2298 = vpop.permute.xlu0 %2297
        %2299 = vrot.lane.b32.xlu0 %v1983, 80
        %v2300 = vpop.permute.xlu0 %2299
        %vm2301 = vcmp.lt.s32.totalorder %v780, 80
        %v2302 = vsel %vm2301, %v2298, %v2300
        %v2303 = vsel %vm2301, %v2300, %v2298
        %vm2304 = vmand %vm1719, %vm2284
        %vm2305 = vmand %vm2304, %vm2286
        %v2306 = vsel %vm2305, 1, 0
        %v2307 = vperm.slane %v2306, 0
        %v2308 = vperm.slane %v2306, 1
        %vm2309 = vcmp.eq.s32.totalorder %v2307, 1
        %vm2310 = vcmp.eq.s32.totalorder %v2308, 1
        %v2311 = vsel %vm2309, %v2303, 0.0
        %v2312 = vsel %vm2310, %v2302, 0.0
        %2313 = vst [vmem:[#allocation2 + $0x10] sm:$0xff] %v2311
        %2314 = vst [vmem:[#allocation2 + $0x18] sm:$0xff] %v2312
        %2315 = vrot.lane.b32.xlu0 %v1982, 75
        %v2316 = vpop.permute.xlu0 %2315
        %2317 = vrot.lane.b32.xlu0 %v1983, 75
        %v2318 = vpop.permute.xlu0 %2317
        %vm2319 = vcmp.lt.s32.totalorder %v780, 75
        %v2320 = vsel %vm2319, %v2316, %v2318
        %v2321 = vsel %vm2319, %v2318, %v2316
        %v2322 = vadd.s32 %v758, 5
        %vm2323 = vcmp.ge.s32.totalorder %v2322, 0
        %vm2324 = vcmp.lt.s32.totalorder %v2322, 16
        %vm2325 = vmand %vm2323, %vm2324
        %vm2326 = vmand %vm2325, %vm2284
        %vm2327 = vmand %vm2326, %vm2286
        %v2328 = vsel %vm2327, 1, 0
        %v2329 = vperm.slane %v2328, 0
        %v2330 = vperm.slane %v2328, 1
        %vm2331 = vcmp.eq.s32.totalorder %v2329, 1
        %vm2332 = vcmp.eq.s32.totalorder %v2330, 1
        %v2333 = vsel %vm2331, %v2321, 0.0
        %v2334 = vsel %vm2332, %v2320, 0.0
        %2335 = vst [vmem:[#allocation2 + $0x20] sm:$0xff] %v2333
        %2336 = vst [vmem:[#allocation2 + $0x28] sm:$0xff] %v2334
        %2337 = vrot.lane.b32.xlu0 %v1982, 5
        %v2338 = vpop.permute.xlu0 %2337
        %2339 = vrot.lane.b32.xlu0 %v1983, 5
        %v2340 = vpop.permute.xlu0 %2339
        %vm2341 = vcmp.lt.s32.totalorder %v780, 5
        %v2342 = vsel %vm2341, %v2338, %v2340
        %v2343 = vsel %vm2341, %v2340, %v2338
        %vm2344 = vmand %vm2282, %vm1760
        %vm2345 = vmand %vm2344, %vm1762
        %v2346 = vsel %vm2345, 1, 0
        %v2347 = vperm.slane %v2346, 0
        %v2348 = vperm.slane %v2346, 1
        %vm2349 = vcmp.eq.s32.totalorder %v2347, 1
        %vm2350 = vcmp.eq.s32.totalorder %v2348, 1
        %v2351 = vsel %vm2349, %v2343, 0.0
        %v2352 = vsel %vm2350, %v2342, 0.0
        %2353 = vst [vmem:[#allocation2 + $0x30] sm:$0xff] %v2351
        %2354 = vst [vmem:[#allocation2 + $0x38] sm:$0xff] %v2352
        %2355 = vst [vmem:[#allocation2 + $0x40] sm:$0xff] %v1982
        %2356 = vst [vmem:[#allocation2 + $0x48] sm:$0xff] %v1983
        %2357 = vrot.lane.b32.xlu0 %v1982, 123
        %v2358 = vpop.permute.xlu0 %2357
        %2359 = vrot.lane.b32.xlu0 %v1983, 123
        %v2360 = vpop.permute.xlu0 %2359
        %v2361 = vsel %vm1193, %v2358, %v2360
        %v2362 = vsel %vm1193, %v2360, %v2358
        %vm2363 = vmand %vm2325, %vm1760
        %vm2364 = vmand %vm2363, %vm1762
        %v2365 = vsel %vm2364, 1, 0
        %v2366 = vperm.slane %v2365, 0
        %v2367 = vperm.slane %v2365, 1
        %vm2368 = vcmp.eq.s32.totalorder %v2366, 1
        %vm2369 = vcmp.eq.s32.totalorder %v2367, 1
        %v2370 = vsel %vm2368, %v2361, 0.0
        %v2371 = vsel %vm2369, %v2362, 0.0
        %2372 = vst [vmem:[#allocation2 + $0x50] sm:$0xff] %v2370
        %2373 = vst [vmem:[#allocation2 + $0x58] sm:$0xff] %v2371
        %2374 = vrot.lane.b32.xlu0 %v1982, 53
        %v2375 = vpop.permute.xlu0 %2374
        %2376 = vrot.lane.b32.xlu0 %v1983, 53
        %v2377 = vpop.permute.xlu0 %2376
        %vm2378 = vcmp.lt.s32.totalorder %v780, 53
        %v2379 = vsel %vm2378, %v2375, %v2377
        %v2380 = vsel %vm2378, %v2377, %v2375
        %v2381 = vadd.s32 %v760, 5
        %vm2382 = vcmp.ge.s32.totalorder %v2381, 0
        %vm2383 = vmand %vm2282, %vm2382
        %vm2384 = vcmp.lt.s32.totalorder %v2381, 16
        %vm2385 = vmand %vm2383, %vm2384
        %v2386 = vsel %vm2385, 1, 0
        %v2387 = vperm.slane %v2386, 0
        %v2388 = vperm.slane %v2386, 1
        %vm2389 = vcmp.eq.s32.totalorder %v2387, 1
        %vm2390 = vcmp.eq.s32.totalorder %v2388, 1
        %v2391 = vsel %vm2389, %v2379, 0.0
        %v2392 = vsel %vm2390, %v2380, 0.0
        %2393 = vst [vmem:[#allocation2 + $0x60] sm:$0xff] %v2391
        %2394 = vst [vmem:[#allocation2 + $0x68] sm:$0xff] %v2392
        %2395 = vrot.lane.b32.xlu0 %v1982, 48
        %v2396 = vpop.permute.xlu0 %2395
        %2397 = vrot.lane.b32.xlu0 %v1983, 48
        %v2398 = vpop.permute.xlu0 %2397
        %v2399 = vsel %vm859, %v2396, %v2398
        %v2400 = vsel %vm859, %v2398, %v2396
        %vm2401 = vmand %vm1719, %vm2382
        %vm2402 = vmand %vm2401, %vm2384
        %v2403 = vsel %vm2402, 1, 0
        %v2404 = vperm.slane %v2403, 0
        %v2405 = vperm.slane %v2403, 1
        %vm2406 = vcmp.eq.s32.totalorder %v2404, 1
        %vm2407 = vcmp.eq.s32.totalorder %v2405, 1
        %v2408 = vsel %vm2406, %v2399, 0.0
        %v2409 = vsel %vm2407, %v2400, 0.0
        %2410 = vst [vmem:[#allocation2 + $0x70] sm:$0xff] %v2408
        %2411 = vst [vmem:[#allocation2 + $0x78] sm:$0xff] %v2409
        %2412 = vrot.lane.b32.xlu0 %v1982, 43
        %v2413 = vpop.permute.xlu0 %2412
        %2414 = vrot.lane.b32.xlu0 %v1983, 43
        %v2415 = vpop.permute.xlu0 %2414
        %vm2416 = vcmp.lt.s32.totalorder %v780, 43
        %v2417 = vsel %vm2416, %v2413, %v2415
        %v2418 = vsel %vm2416, %v2415, %v2413
        %vm2419 = vmand %vm2325, %vm2382
        %vm2420 = vmand %vm2419, %vm2384
        %v2421 = vsel %vm2420, 1, 0
        %v2422 = vperm.slane %v2421, 0
        %v2423 = vperm.slane %v2421, 1
        %vm2424 = vcmp.eq.s32.totalorder %v2422, 1
        %vm2425 = vcmp.eq.s32.totalorder %v2423, 1
        %v2426 = vsel %vm2424, %v2417, 0.0
        %v2427 = vsel %vm2425, %v2418, 0.0
        %2428 = vst [vmem:[#allocation2 + $0x80] sm:$0xff] %v2426
        %2429 = vst [vmem:[#allocation2 + $0x88] sm:$0xff] %v2427
        %v2430 = vld [vmem:[%s8] sm:$0xff]
        %v2431 = vld [vmem:[#allocation2] sm:$0xff]
        %v2432 = vld [vmem:[#allocation2 + $0x8] sm:$0xff]
        %v2433 = vld [vmem:[#allocation2 + $0x10] sm:$0xff]
        %v2434 = vld [vmem:[#allocation2 + $0x18] sm:$0xff]
        %v2435 = vld [vmem:[#allocation2 + $0x20] sm:$0xff]
        %v2436 = vld [vmem:[#allocation2 + $0x28] sm:$0xff]
        %v2437 = vld [vmem:[#allocation2 + $0x30] sm:$0xff]
        %v2438 = vld [vmem:[#allocation2 + $0x38] sm:$0xff]
        %v2439 = vld [vmem:[#allocation2 + $0x40] sm:$0xff]
        %v2440 = vld [vmem:[#allocation2 + $0x48] sm:$0xff]
        %v2441 = vld [vmem:[#allocation2 + $0x50] sm:$0xff]
        %v2442 = vld [vmem:[#allocation2 + $0x58] sm:$0xff]
        %v2443 = vld [vmem:[#allocation2 + $0x60] sm:$0xff]
        %v2444 = vld [vmem:[#allocation2 + $0x68] sm:$0xff]
        %v2445 = vld [vmem:[#allocation2 + $0x70] sm:$0xff]
        %v2446 = vld [vmem:[#allocation2 + $0x78] sm:$0xff]
        %v2447 = vld [vmem:[#allocation2 + $0x80] sm:$0xff]
        %v2448 = vld [vmem:[#allocation2 + $0x88] sm:$0xff]
        %v2449 = vld [vmem:[%s9] sm:$0xff]
        %v2450 = vld [vmem:[%s9 + $0x8] sm:$0xff]
        %v2451 = vld [vmem:[%s9 + $0x10] sm:$0xff]
        %2453 = vset.pattern.permute.xlu0 0
        %2454 = vperm.xlu0 %2453, %v2449
        %v2455 = vpop.permute.xlu0 %2454
        %v2458 = vsel %vm2167, %v2430, 0
        %2460 = vmatpush.msra.mxu0 0.0
        %2461 = vmatpush.msra.mxu0 0.0
        %2462 = vmatpush.msra.mxu0 0.0
        %2463 = vmatpush.msra.mxu0 0.0
        %2464 = vmatpush.msra.mxu0 0.0
        %2465 = vmatpush.msra.mxu0 0.0
        %2466 = vmatpush.msra.mxu0 0.0
        %2467 = vmatpush.msra.mxu0 %v2447
        %2468 = vmatpush.msra.mxu0 %v2445
        %2469 = vmatpush.msra.mxu0 %v2443
        %2470 = vmatpush.msra.mxu0 %v2441
        %2471 = vmatpush.msra.mxu0 %v2439
        %2472 = vmatpush.msra.mxu0 %v2437
        %2473 = vmatpush.msra.mxu0 %v2435
        %2474 = vmatpush.msra.mxu0 %v2433
        %2475 = vmatpush.msra.mxu0 %v2431
        %2476 = vmatmul.f32.gmra.mxu0 %v2458
        %v2477 = vpop.f32.mrf.mxu0
        %v2478 = vadd.f32 %v2455, %v2477
        %2479 = vdwg.mxu0
        %2480 = vmatpush.msra.mxu0 0.0
        %2481 = vmatpush.msra.mxu0 0.0
        %2482 = vmatpush.msra.mxu0 0.0
        %2483 = vmatpush.msra.mxu0 0.0
        %2484 = vmatpush.msra.mxu0 0.0
        %2485 = vmatpush.msra.mxu0 0.0
        %2486 = vmatpush.msra.mxu0 0.0
        %2487 = vmatpush.msra.mxu0 %v2448
        %2488 = vmatpush.msra.mxu0 %v2446
        %2489 = vmatpush.msra.mxu0 %v2444
        %2490 = vmatpush.msra.mxu0 %v2442
        %2491 = vmatpush.msra.mxu0 %v2440
        %2492 = vmatpush.msra.mxu0 %v2438
        %2493 = vmatpush.msra.mxu0 %v2436
        %2494 = vmatpush.msra.mxu0 %v2434
        %2495 = vmatpush.msra.mxu0 %v2432
        %2496 = vmatmul.f32.gmra.mxu0 %v2458
        %v2497 = vpop.f32.mrf.mxu0
        %v2498 = vadd.f32 %v2455, %v2497
        %2499 = vdwg.mxu0
        %v2500 = vadd.f32 %v2478, %v2498
        %2501 = vadd.xlane.f32.xlu0 %v2500
        %v2502 = vpop.xlane.xlu0 %2501
        %v2503 = vrot.slane %v2502, 4
        %v2504 = vadd.f32 %v2502, %v2503
        %v2505 = vrot.slane %v2504, 2
        %v2506 = vadd.f32 %v2504, %v2505
        %v2507 = vrot.slane %v2506, 1
        %v2508 = vadd.f32 %v2506, %v2507
        %s2509 = vtos %v2508
        %v2510 = vstv %s2509
        %v2511 = vmul.f32 %v2478, %v2478
        %v2512 = vmul.f32 %v2498, %v2498
        %v2513 = vadd.f32 %v2511, %v2512
        %2514 = vadd.xlane.f32.xlu0 %v2513
        %v2515 = vpop.xlane.xlu0 %2514
        %v2516 = vrot.slane %v2515, 4
        %v2517 = vadd.f32 %v2515, %v2516
        %v2518 = vrot.slane %v2517, 2
        %v2519 = vadd.f32 %v2517, %v2518
        %v2520 = vrot.slane %v2519, 1
        %v2521 = vadd.f32 %v2519, %v2520
        %s2522 = vtos %v2521
        %v2523 = vstv %s2522
        %v2524 = vmul.f32 %v2510, %v1948
        %v2525 = vmul.f32 %v2523, %v1948
        %v2526 = vmul.f32 %v2524, %v2524
        %v2527 = vsub.f32 %v2525, %v2526
        %v2528 = vsub.f32 %v2478, %v2524
        %v2529 = vsub.f32 %v2498, %v2524
        %v2530 = vadd.f32 %v2527, 1e-05
        %v2531 = vrsqrt.pop %v2530
        %v2532 = vmul.f32 %v2531, %v2530
        %v2533 = vmul.f32 %v2532, %v2531
        %v2534 = vmul.f32 0.5, %v2533
        %v2535 = vsub.f32 1.5, %v2534
        %v2536 = vmul.f32 %v2531, %v2535
        %vm2537 = vweird.f32 %v2530
        %vm2538 = vweird.f32 %v2531
        %vm2539 = vmor %vm2537, %vm2538
        %v2540 = vsel %vm2539, %v2531, %v2536
        %v2541 = vmul.f32 %v2528, %v2540
        %v2542 = vmul.f32 %v2529, %v2540
        %2544 = vset.pattern.permute.xlu0 0
        %2545 = vperm.xlu0 %2544, %v2450
        %v2546 = vpop.permute.xlu0 %2545
        %v2548 = vmul.f32 %v2541, %v2546
        %v2549 = vmul.f32 %v2542, %v2546
        %2551 = vset.pattern.permute.xlu0 0
        %2552 = vperm.xlu0 %2551, %v2451
        %v2553 = vpop.permute.xlu0 %2552
        %v2555 = vadd.f32 %v2548, %v2553
        %v2556 = vadd.f32 %v2549, %v2553
        %v2557 = vmax.f32 %v2555, 0.0
        %v2558 = vmax.f32 %v2556, 0.0
        %2559 = vst [vmem:[#allocation3 + $0x10] sm:$0xff] %v2557
        %2560 = vst [vmem:[#allocation3 + $0x18] sm:$0xff] %v2558
        %2561 = vrot.lane.b32.xlu0 %v1982, 51
        %v2562 = vpop.permute.xlu0 %2561
        %2563 = vrot.lane.b32.xlu0 %v1983, 51
        %v2564 = vpop.permute.xlu0 %2563
        %vm2565 = vcmp.lt.s32.totalorder %v780, 51
        %v2566 = vsel %vm2565, %v2562, %v2564
        %v2567 = vsel %vm2565, %v2564, %v2562
        %v2568 = vadd.s32 %v758, 4294967293
        %vm2569 = vcmp.ge.s32.totalorder %v2568, 0
        %vm2570 = vcmp.lt.s32.totalorder %v2568, 16
        %vm2571 = vmand %vm2569, %vm2570
        %v2572 = vadd.s32 %v760, 4294967293
        %vm2573 = vcmp.ge.s32.totalorder %v2572, 0
        %vm2574 = vmand %vm2571, %vm2573
        %vm2575 = vcmp.lt.s32.totalorder %v2572, 16
        %vm2576 = vmand %vm2574, %vm2575
        %v2577 = vsel %vm2576, 1, 0
        %v2578 = vperm.slane %v2577, 0
        %v2579 = vperm.slane %v2577, 1
        %vm2580 = vcmp.eq.s32.totalorder %v2578, 1
        %vm2581 = vcmp.eq.s32.totalorder %v2579, 1
        %v2582 = vsel %vm2580, %v2567, 0.0
        %v2583 = vsel %vm2581, %v2566, 0.0
        %2584 = vst [vmem:[#allocation2] sm:$0xff] %v2582
        %2585 = vst [vmem:[#allocation2 + $0x8] sm:$0xff] %v2583
        %vm2586 = vmand %vm1719, %vm2573
        %vm2587 = vmand %vm2586, %vm2575
        %v2588 = vsel %vm2587, 1, 0
        %v2589 = vperm.slane %v2588, 0
        %v2590 = vperm.slane %v2588, 1
        %vm2591 = vcmp.eq.s32.totalorder %v2589, 1
        %vm2592 = vcmp.eq.s32.totalorder %v2590, 1
        %v2593 = vsel %vm2591, %v2400, 0.0
        %v2594 = vsel %vm2592, %v2399, 0.0
        %2595 = vst [vmem:[#allocation2 + $0x10] sm:$0xff] %v2593
        %2596 = vst [vmem:[#allocation2 + $0x18] sm:$0xff] %v2594
        %2597 = vrot.lane.b32.xlu0 %v1982, 45
        %v2598 = vpop.permute.xlu0 %2597
        %2599 = vrot.lane.b32.xlu0 %v1983, 45
        %v2600 = vpop.permute.xlu0 %2599
        %vm2601 = vcmp.lt.s32.totalorder %v780, 45
        %v2602 = vsel %vm2601, %v2598, %v2600
        %v2603 = vsel %vm2601, %v2600, %v2598
        %v2604 = vadd.s32 %v758, 3
        %vm2605 = vcmp.ge.s32.totalorder %v2604, 0
        %vm2606 = vcmp.lt.s32.totalorder %v2604, 16
        %vm2607 = vmand %vm2605, %vm2606
        %vm2608 = vmand %vm2607, %vm2573
        %vm2609 = vmand %vm2608, %vm2575
        %v2610 = vsel %vm2609, 1, 0
        %v2611 = vperm.slane %v2610, 0
        %v2612 = vperm.slane %v2610, 1
        %vm2613 = vcmp.eq.s32.totalorder %v2611, 1
        %vm2614 = vcmp.eq.s32.totalorder %v2612, 1
        %v2615 = vsel %vm2613, %v2603, 0.0
        %v2616 = vsel %vm2614, %v2602, 0.0
        %2617 = vst [vmem:[#allocation2 + $0x20] sm:$0xff] %v2615
        %2618 = vst [vmem:[#allocation2 + $0x28] sm:$0xff] %v2616
        %2619 = vrot.lane.b32.xlu0 %v1982, 3
        %v2620 = vpop.permute.xlu0 %2619
        %2621 = vrot.lane.b32.xlu0 %v1983, 3
        %v2622 = vpop.permute.xlu0 %2621
        %vm2623 = vcmp.lt.s32.totalorder %v780, 3
        %v2624 = vsel %vm2623, %v2620, %v2622
        %v2625 = vsel %vm2623, %v2622, %v2620
        %vm2626 = vmand %vm2571, %vm1760
        %vm2627 = vmand %vm2626, %vm1762
        %v2628 = vsel %vm2627, 1, 0
        %v2629 = vperm.slane %v2628, 0
        %v2630 = vperm.slane %v2628, 1
        %vm2631 = vcmp.eq.s32.totalorder %v2629, 1
        %vm2632 = vcmp.eq.s32.totalorder %v2630, 1
        %v2633 = vsel %vm2631, %v2625, 0.0
        %v2634 = vsel %vm2632, %v2624, 0.0
        %2635 = vst [vmem:[#allocation2 + $0x30] sm:$0xff] %v2633
        %2636 = vst [vmem:[#allocation2 + $0x38] sm:$0xff] %v2634
        %2637 = vst [vmem:[#allocation2 + $0x40] sm:$0xff] %v1982
        %2638 = vst [vmem:[#allocation2 + $0x48] sm:$0xff] %v1983
        %2639 = vrot.lane.b32.xlu0 %v1982, 125
        %v2640 = vpop.permute.xlu0 %2639
        %2641 = vrot.lane.b32.xlu0 %v1983, 125
        %v2642 = vpop.permute.xlu0 %2641
        %v2643 = vsel %vm1143, %v2640, %v2642
        %v2644 = vsel %vm1143, %v2642, %v2640
        %vm2645 = vmand %vm2607, %vm1760
        %vm2646 = vmand %vm2645, %vm1762
        %v2647 = vsel %vm2646, 1, 0
        %v2648 = vperm.slane %v2647, 0
        %v2649 = vperm.slane %v2647, 1
        %vm2650 = vcmp.eq.s32.totalorder %v2648, 1
        %vm2651 = vcmp.eq.s32.totalorder %v2649, 1
        %v2652 = vsel %vm2650, %v2643, 0.0
        %v2653 = vsel %vm2651, %v2644, 0.0
        %2654 = vst [vmem:[#allocation2 + $0x50] sm:$0xff] %v2652
        %2655 = vst [vmem:[#allocation2 + $0x58] sm:$0xff] %v2653
        %2656 = vrot.lane.b32.xlu0 %v1982, 83
        %v2657 = vpop.permute.xlu0 %2656
        %2658 = vrot.lane.b32.xlu0 %v1983, 83
        %v2659 = vpop.permute.xlu0 %2658
        %vm2660 = vcmp.lt.s32.totalorder %v780, 83
        %v2661 = vsel %vm2660, %v2657, %v2659
        %v2662 = vsel %vm2660, %v2659, %v2657
        %v2663 = vadd.s32 %v760, 3
        %vm2664 = vcmp.ge.s32.totalorder %v2663, 0
        %vm2665 = vmand %vm2571, %vm2664
        %vm2666 = vcmp.lt.s32.totalorder %v2663, 16
        %vm2667 = vmand %vm2665, %vm2666
        %v2668 = vsel %vm2667, 1, 0
        %v2669 = vperm.slane %v2668, 0
        %v2670 = vperm.slane %v2668, 1
        %vm2671 = vcmp.eq.s32.totalorder %v2669, 1
        %vm2672 = vcmp.eq.s32.totalorder %v2670, 1
        %v2673 = vsel %vm2671, %v2661, 0.0
        %v2674 = vsel %vm2672, %v2662, 0.0
        %2675 = vst [vmem:[#allocation2 + $0x60] sm:$0xff] %v2673
        %2676 = vst [vmem:[#allocation2 + $0x68] sm:$0xff] %v2674
        %vm2677 = vmand %vm1719, %vm2664
        %vm2678 = vmand %vm2677, %vm2666
        %v2679 = vsel %vm2678, 1, 0
        %v2680 = vperm.slane %v2679, 0
        %v2681 = vperm.slane %v2679, 1
        %vm2682 = vcmp.eq.s32.totalorder %v2680, 1
        %vm2683 = vcmp.eq.s32.totalorder %v2681, 1
        %v2684 = vsel %vm2682, %v2302, 0.0
        %v2685 = vsel %vm2683, %v2303, 0.0
        %2686 = vst [vmem:[#allocation2 + $0x70] sm:$0xff] %v2684
        %2687 = vst [vmem:[#allocation2 + $0x78] sm:$0xff] %v2685
        %2688 = vrot.lane.b32.xlu0 %v1982, 77
        %v2689 = vpop.permute.xlu0 %2688
        %2690 = vrot.lane.b32.xlu0 %v1983, 77
        %v2691 = vpop.permute.xlu0 %2690
        %vm2692 = vcmp.lt.s32.totalorder %v780, 77
        %v2693 = vsel %vm2692, %v2689, %v2691
        %v2694 = vsel %vm2692, %v2691, %v2689
        %vm2695 = vmand %vm2607, %vm2664
        %vm2696 = vmand %vm2695, %vm2666
        %v2697 = vsel %vm2696, 1, 0
        %v2698 = vperm.slane %v2697, 0
        %v2699 = vperm.slane %v2697, 1
        %vm2700 = vcmp.eq.s32.totalorder %v2698, 1
        %vm2701 = vcmp.eq.s32.totalorder %v2699, 1
        %v2702 = vsel %vm2700, %v2693, 0.0
        %v2703 = vsel %vm2701, %v2694, 0.0
        %2704 = vst [vmem:[#allocation2 + $0x80] sm:$0xff] %v2702
        %2705 = vst [vmem:[#allocation2 + $0x88] sm:$0xff] %v2703
        %v2706 = vld [vmem:[%s10] sm:$0xff]
        %v2707 = vld [vmem:[#allocation2] sm:$0xff]
        %v2708 = vld [vmem:[#allocation2 + $0x8] sm:$0xff]
        %v2709 = vld [vmem:[#allocation2 + $0x10] sm:$0xff]
        %v2710 = vld [vmem:[#allocation2 + $0x18] sm:$0xff]
        %v2711 = vld [vmem:[#allocation2 + $0x20] sm:$0xff]
        %v2712 = vld [vmem:[#allocation2 + $0x28] sm:$0xff]
        %v2713 = vld [vmem:[#allocation2 + $0x30] sm:$0xff]
        %v2714 = vld [vmem:[#allocation2 + $0x38] sm:$0xff]
        %v2715 = vld [vmem:[#allocation2 + $0x40] sm:$0xff]
        %v2716 = vld [vmem:[#allocation2 + $0x48] sm:$0xff]
        %v2717 = vld [vmem:[#allocation2 + $0x50] sm:$0xff]
        %v2718 = vld [vmem:[#allocation2 + $0x58] sm:$0xff]
        %v2719 = vld [vmem:[#allocation2 + $0x60] sm:$0xff]
        %v2720 = vld [vmem:[#allocation2 + $0x68] sm:$0xff]
        %v2721 = vld [vmem:[#allocation2 + $0x70] sm:$0xff]
        %v2722 = vld [vmem:[#allocation2 + $0x78] sm:$0xff]
        %v2723 = vld [vmem:[#allocation2 + $0x80] sm:$0xff]
        %v2724 = vld [vmem:[#allocation2 + $0x88] sm:$0xff]
        %v2725 = vld [vmem:[%s11] sm:$0xff]
        %v2726 = vld [vmem:[%s11 + $0x8] sm:$0xff]
        %v2727 = vld [vmem:[%s11 + $0x10] sm:$0xff]
        %2729 = vset.pattern.permute.xlu0 0
        %2730 = vperm.xlu0 %2729, %v2725
        %v2731 = vpop.permute.xlu0 %2730
        %v2734 = vsel %vm2167, %v2706, 0
        %2736 = vmatpush.msra.mxu0 0.0
        %2737 = vmatpush.msra.mxu0 0.0
        %2738 = vmatpush.msra.mxu0 0.0
        %2739 = vmatpush.msra.mxu0 0.0
        %2740 = vmatpush.msra.mxu0 0.0
        %2741 = vmatpush.msra.mxu0 0.0
        %2742 = vmatpush.msra.mxu0 0.0
        %2743 = vmatpush.msra.mxu0 %v2723
        %2744 = vmatpush.msra.mxu0 %v2721
        %2745 = vmatpush.msra.mxu0 %v2719
        %2746 = vmatpush.msra.mxu0 %v2717
        %2747 = vmatpush.msra.mxu0 %v2715
        %2748 = vmatpush.msra.mxu0 %v2713
        %2749 = vmatpush.msra.mxu0 %v2711
        %2750 = vmatpush.msra.mxu0 %v2709
        %2751 = vmatpush.msra.mxu0 %v2707
        %2752 = vmatmul.f32.gmra.mxu0 %v2734
        %v2753 = vpop.f32.mrf.mxu0
        %v2754 = vadd.f32 %v2731, %v2753
        %2755 = vdwg.mxu0
        %2756 = vmatpush.msra.mxu0 0.0
        %2757 = vmatpush.msra.mxu0 0.0
        %2758 = vmatpush.msra.mxu0 0.0
        %2759 = vmatpush.msra.mxu0 0.0
        %2760 = vmatpush.msra.mxu0 0.0
        %2761 = vmatpush.msra.mxu0 0.0
        %2762 = vmatpush.msra.mxu0 0.0
        %2763 = vmatpush.msra.mxu0 %v2724
        %2764 = vmatpush.msra.mxu0 %v2722
        %2765 = vmatpush.msra.mxu0 %v2720
        %2766 = vmatpush.msra.mxu0 %v2718
        %2767 = vmatpush.msra.mxu0 %v2716
        %2768 = vmatpush.msra.mxu0 %v2714
        %2769 = vmatpush.msra.mxu0 %v2712
        %2770 = vmatpush.msra.mxu0 %v2710
        %2771 = vmatpush.msra.mxu0 %v2708
        %2772 = vmatmul.f32.gmra.mxu0 %v2734
        %v2773 = vpop.f32.mrf.mxu0
        %v2774 = vadd.f32 %v2731, %v2773
        %2775 = vdwg.mxu0
        %v2776 = vadd.f32 %v2754, %v2774
        %2777 = vadd.xlane.f32.xlu0 %v2776
        %v2778 = vpop.xlane.xlu0 %2777
        %v2779 = vrot.slane %v2778, 4
        %v2780 = vadd.f32 %v2778, %v2779
        %v2781 = vrot.slane %v2780, 2
        %v2782 = vadd.f32 %v2780, %v2781
        %v2783 = vrot.slane %v2782, 1
        %v2784 = vadd.f32 %v2782, %v2783
        %s2785 = vtos %v2784
        %v2786 = vstv %s2785
        %v2787 = vmul.f32 %v2754, %v2754
        %v2788 = vmul.f32 %v2774, %v2774
        %v2789 = vadd.f32 %v2787, %v2788
        %2790 = vadd.xlane.f32.xlu0 %v2789
        %v2791 = vpop.xlane.xlu0 %2790
        %v2792 = vrot.slane %v2791, 4
        %v2793 = vadd.f32 %v2791, %v2792
        %v2794 = vrot.slane %v2793, 2
        %v2795 = vadd.f32 %v2793, %v2794
        %v2796 = vrot.slane %v2795, 1
        %v2797 = vadd.f32 %v2795, %v2796
        %s2798 = vtos %v2797
        %v2799 = vstv %s2798
        %v2800 = vmul.f32 %v2786, %v1948
        %v2801 = vmul.f32 %v2799, %v1948
        %v2802 = vmul.f32 %v2800, %v2800
        %v2803 = vsub.f32 %v2801, %v2802
        %v2804 = vsub.f32 %v2754, %v2800
        %v2805 = vsub.f32 %v2774, %v2800
        %v2806 = vadd.f32 %v2803, 1e-05
        %v2807 = vrsqrt.pop %v2806
        %v2808 = vmul.f32 %v2807, %v2806
        %v2809 = vmul.f32 %v2808, %v2807
        %v2810 = vmul.f32 0.5, %v2809
        %v2811 = vsub.f32 1.5, %v2810
        %v2812 = vmul.f32 %v2807, %v2811
        %vm2813 = vweird.f32 %v2806
        %vm2814 = vweird.f32 %v2807
        %vm2815 = vmor %vm2813, %vm2814
        %v2816 = vsel %vm2815, %v2807, %v2812
        %v2817 = vmul.f32 %v2804, %v2816
        %v2818 = vmul.f32 %v2805, %v2816
        %2820 = vset.pattern.permute.xlu0 0
        %2821 = vperm.xlu0 %2820, %v2726
        %v2822 = vpop.permute.xlu0 %2821
        %v2824 = vmul.f32 %v2817, %v2822
        %v2825 = vmul.f32 %v2818, %v2822
        %2827 = vset.pattern.permute.xlu0 0
        %2828 = vperm.xlu0 %2827, %v2727
        %v2829 = vpop.permute.xlu0 %2828
        %v2831 = vadd.f32 %v2824, %v2829
        %v2832 = vadd.f32 %v2825, %v2829
        %v2833 = vmax.f32 %v2831, 0.0
        %v2834 = vmax.f32 %v2832, 0.0
        %2835 = vst [vmem:[#allocation3 + $0x20] sm:$0xff] %v2833
        %2836 = vst [vmem:[#allocation3 + $0x28] sm:$0xff] %v2834
        %2837 = vrot.lane.b32.xlu0 %v1982, 17
        %v2838 = vpop.permute.xlu0 %2837
        %2839 = vrot.lane.b32.xlu0 %v1983, 17
        %v2840 = vpop.permute.xlu0 %2839
        %v2841 = vsel %vm1687, %v2838, %v2840
        %v2842 = vsel %vm1687, %v2840, %v2838
        %v2843 = vsel %vm1698, 1, 0
        %v2844 = vperm.slane %v2843, 0
        %v2845 = vperm.slane %v2843, 1
        %vm2846 = vcmp.eq.s32.totalorder %v2844, 1
        %vm2847 = vcmp.eq.s32.totalorder %v2845, 1
        %v2848 = vsel %vm2846, %v2842, 0.0
        %v2849 = vsel %vm2847, %v2841, 0.0
        %2850 = vst [vmem:[#allocation2] sm:$0xff] %v2848
        %2851 = vst [vmem:[#allocation2 + $0x8] sm:$0xff] %v2849
        %v2852 = vsel %vm1721, 1, 0
        %v2853 = vperm.slane %v2852, 0
        %v2854 = vperm.slane %v2852, 1
        %vm2855 = vcmp.eq.s32.totalorder %v2853, 1
        %vm2856 = vcmp.eq.s32.totalorder %v2854, 1
        %v2857 = vsel %vm2855, %v2110, 0.0
        %v2858 = vsel %vm2856, %v2109, 0.0
        %2859 = vst [vmem:[#allocation2 + $0x10] sm:$0xff] %v2857
        %2860 = vst [vmem:[#allocation2 + $0x18] sm:$0xff] %v2858
        %2861 = vrot.lane.b32.xlu0 %v1982, 15
        %v2862 = vpop.permute.xlu0 %2861
        %2863 = vrot.lane.b32.xlu0 %v1983, 15
        %v2864 = vpop.permute.xlu0 %2863
        %v2865 = vsel %vm1735, %v2862, %v2864
        %v2866 = vsel %vm1735, %v2864, %v2862
        %v2867 = vsel %vm1743, 1, 0
        %v2868 = vperm.slane %v2867, 0
        %v2869 = vperm.slane %v2867, 1
        %vm2870 = vcmp.eq.s32.totalorder %v2868, 1
        %vm2871 = vcmp.eq.s32.totalorder %v2869, 1
        %v2872 = vsel %vm2870, %v2866, 0.0
        %v2873 = vsel %vm2871, %v2865, 0.0
        %2874 = vst [vmem:[#allocation2 + $0x20] sm:$0xff] %v2872
        %2875 = vst [vmem:[#allocation2 + $0x28] sm:$0xff] %v2873
        %2876 = vrot.lane.b32.xlu0 %v1982, 1
        %v2877 = vpop.permute.xlu0 %2876
        %2878 = vrot.lane.b32.xlu0 %v1983, 1
        %v2879 = vpop.permute.xlu0 %2878
        %v2880 = vsel %vm1757, %v2877, %v2879
        %v2881 = vsel %vm1757, %v2879, %v2877
        %v2882 = vsel %vm1763, 1, 0
        %v2883 = vperm.slane %v2882, 0
        %v2884 = vperm.slane %v2882, 1
        %vm2885 = vcmp.eq.s32.totalorder %v2883, 1
        %vm2886 = vcmp.eq.s32.totalorder %v2884, 1
        %v2887 = vsel %vm2885, %v2881, 0.0
        %v2888 = vsel %vm2886, %v2880, 0.0
        %2889 = vst [vmem:[#allocation2 + $0x30] sm:$0xff] %v2887
        %2890 = vst [vmem:[#allocation2 + $0x38] sm:$0xff] %v2888
        %2891 = vst [vmem:[#allocation2 + $0x40] sm:$0xff] %v1982
        %2892 = vst [vmem:[#allocation2 + $0x48] sm:$0xff] %v1983
        %2893 = vrot.lane.b32.xlu0 %v1982, 127
        %v2894 = vpop.permute.xlu0 %2893
        %2895 = vrot.lane.b32.xlu0 %v1983, 127
        %v2896 = vpop.permute.xlu0 %2895
        %v2897 = vsel %vm1093, %v2894, %v2896
        %v2898 = vsel %vm1093, %v2896, %v2894
        %v2899 = vsel %vm1788, 1, 0
        %v2900 = vperm.slane %v2899, 0
        %v2901 = vperm.slane %v2899, 1
        %vm2902 = vcmp.eq.s32.totalorder %v2900, 1
        %vm2903 = vcmp.eq.s32.totalorder %v2901, 1
        %v2904 = vsel %vm2902, %v2897, 0.0
        %v2905 = vsel %vm2903, %v2898, 0.0
        %2906 = vst [vmem:[#allocation2 + $0x50] sm:$0xff] %v2904
        %2907 = vst [vmem:[#allocation2 + $0x58] sm:$0xff] %v2905
        %2908 = vrot.lane.b32.xlu0 %v1982, 113
        %v2909 = vpop.permute.xlu0 %2908
        %2910 = vrot.lane.b32.xlu0 %v1983, 113
        %v2911 = vpop.permute.xlu0 %2910
        %v2912 = vsel %vm1802, %v2909, %v2911
        %v2913 = vsel %vm1802, %v2911, %v2909
        %v2914 = vsel %vm1809, 1, 0
        %v2915 = vperm.slane %v2914, 0
        %v2916 = vperm.slane %v2914, 1
        %vm2917 = vcmp.eq.s32.totalorder %v2915, 1
        %vm2918 = vcmp.eq.s32.totalorder %v2916, 1
        %v2919 = vsel %vm2917, %v2912, 0.0
        %v2920 = vsel %vm2918, %v2913, 0.0
        %2921 = vst [vmem:[#allocation2 + $0x60] sm:$0xff] %v2919
        %2922 = vst [vmem:[#allocation2 + $0x68] sm:$0xff] %v2920
        %v2923 = vsel %vm1827, 1, 0
        %v2924 = vperm.slane %v2923, 0
        %v2925 = vperm.slane %v2923, 1
        %vm2926 = vcmp.eq.s32.totalorder %v2924, 1
        %vm2927 = vcmp.eq.s32.totalorder %v2925, 1
        %v2928 = vsel %vm2926, %v2012, 0.0
        %v2929 = vsel %vm2927, %v2013, 0.0
        %2930 = vst [vmem:[#allocation2 + $0x70] sm:$0xff] %v2928
        %2931 = vst [vmem:[#allocation2 + $0x78] sm:$0xff] %v2929
        %2932 = vrot.lane.b32.xlu0 %v1982, 111
        %v2933 = vpop.permute.xlu0 %2932
        %2934 = vrot.lane.b32.xlu0 %v1983, 111
        %v2935 = vpop.permute.xlu0 %2934
        %v2936 = vsel %vm1841, %v2933, %v2935
        %v2937 = vsel %vm1841, %v2935, %v2933
        %v2938 = vsel %vm1845, 1, 0
        %v2939 = vperm.slane %v2938, 0
        %v2940 = vperm.slane %v2938, 1
        %vm2941 = vcmp.eq.s32.totalorder %v2939, 1
        %vm2942 = vcmp.eq.s32.totalorder %v2940, 1
        %v2943 = vsel %vm2941, %v2936, 0.0
        %v2944 = vsel %vm2942, %v2937, 0.0
        %2945 = vst [vmem:[#allocation2 + $0x80] sm:$0xff] %v2943
        %2946 = vst [vmem:[#allocation2 + $0x88] sm:$0xff] %v2944
        %v2947 = vld [vmem:[%s12] sm:$0xff]
        %v2948 = vld [vmem:[#allocation2] sm:$0xff]
        %v2949 = vld [vmem:[#allocation2 + $0x8] sm:$0xff]
        %v2950 = vld [vmem:[#allocation2 + $0x10] sm:$0xff]
        %v2951 = vld [vmem:[#allocation2 + $0x18] sm:$0xff]
        %v2952 = vld [vmem:[#allocation2 + $0x20] sm:$0xff]
        %v2953 = vld [vmem:[#allocation2 + $0x28] sm:$0xff]
        %v2954 = vld [vmem:[#allocation2 + $0x30] sm:$0xff]
        %v2955 = vld [vmem:[#allocation2 + $0x38] sm:$0xff]
        %v2956 = vld [vmem:[#allocation2 + $0x40] sm:$0xff]
        %v2957 = vld [vmem:[#allocation2 + $0x48] sm:$0xff]
        %v2958 = vld [vmem:[#allocation2 + $0x50] sm:$0xff]
        %v2959 = vld [vmem:[#allocation2 + $0x58] sm:$0xff]
        %v2960 = vld [vmem:[#allocation2 + $0x60] sm:$0xff]
        %v2961 = vld [vmem:[#allocation2 + $0x68] sm:$0xff]
        %v2962 = vld [vmem:[#allocation2 + $0x70] sm:$0xff]
        %v2963 = vld [vmem:[#allocation2 + $0x78] sm:$0xff]
        %v2964 = vld [vmem:[#allocation2 + $0x80] sm:$0xff]
        %v2965 = vld [vmem:[#allocation2 + $0x88] sm:$0xff]
        %v2966 = vld [vmem:[%s13] sm:$0xff]
        %v2967 = vld [vmem:[%s13 + $0x8] sm:$0xff]
        %v2968 = vld [vmem:[%s13 + $0x10] sm:$0xff]
        %2970 = vset.pattern.permute.xlu0 0
        %2971 = vperm.xlu0 %2970, %v2966
        %v2972 = vpop.permute.xlu0 %2971
        %v2975 = vsel %vm2167, %v2947, 0
        %2977 = vmatpush.msra.mxu0 0.0
        %2978 = vmatpush.msra.mxu0 0.0
        %2979 = vmatpush.msra.mxu0 0.0
        %2980 = vmatpush.msra.mxu0 0.0
        %2981 = vmatpush.msra.mxu0 0.0
        %2982 = vmatpush.msra.mxu0 0.0
        %2983 = vmatpush.msra.mxu0 0.0
        %2984 = vmatpush.msra.mxu0 %v2964
        %2985 = vmatpush.msra.mxu0 %v2962
        %2986 = vmatpush.msra.mxu0 %v2960
        %2987 = vmatpush.msra.mxu0 %v2958
        %2988 = vmatpush.msra.mxu0 %v2956
        %2989 = vmatpush.msra.mxu0 %v2954
        %2990 = vmatpush.msra.mxu0 %v2952
        %2991 = vmatpush.msra.mxu0 %v2950
        %2992 = vmatpush.msra.mxu0 %v2948
        %2993 = vmatmul.f32.gmra.mxu0 %v2975
        %v2994 = vpop.f32.mrf.mxu0
        %v2995 = vadd.f32 %v2972, %v2994
        %2996 = vdwg.mxu0
        %2997 = vmatpush.msra.mxu0 0.0
        %2998 = vmatpush.msra.mxu0 0.0
        %2999 = vmatpush.msra.mxu0 0.0
        %3000 = vmatpush.msra.mxu0 0.0
        %3001 = vmatpush.msra.mxu0 0.0
        %3002 = vmatpush.msra.mxu0 0.0
        %3003 = vmatpush.msra.mxu0 0.0
        %3004 = vmatpush.msra.mxu0 %v2965
        %3005 = vmatpush.msra.mxu0 %v2963
        %3006 = vmatpush.msra.mxu0 %v2961
        %3007 = vmatpush.msra.mxu0 %v2959
        %3008 = vmatpush.msra.mxu0 %v2957
        %3009 = vmatpush.msra.mxu0 %v2955
        %3010 = vmatpush.msra.mxu0 %v2953
        %3011 = vmatpush.msra.mxu0 %v2951
        %3012 = vmatpush.msra.mxu0 %v2949
        %3013 = vmatmul.f32.gmra.mxu0 %v2975
        %v3014 = vpop.f32.mrf.mxu0
        %v3015 = vadd.f32 %v2972, %v3014
        %3016 = vdwg.mxu0
        %v3017 = vadd.f32 %v2995, %v3015
        %3018 = vadd.xlane.f32.xlu0 %v3017
        %v3019 = vpop.xlane.xlu0 %3018
        %v3020 = vrot.slane %v3019, 4
        %v3021 = vadd.f32 %v3019, %v3020
        %v3022 = vrot.slane %v3021, 2
        %v3023 = vadd.f32 %v3021, %v3022
        %v3024 = vrot.slane %v3023, 1
        %v3025 = vadd.f32 %v3023, %v3024
        %s3026 = vtos %v3025
        %v3027 = vstv %s3026
        %v3028 = vmul.f32 %v2995, %v2995
        %v3029 = vmul.f32 %v3015, %v3015
        %v3030 = vadd.f32 %v3028, %v3029
        %3031 = vadd.xlane.f32.xlu0 %v3030
        %v3032 = vpop.xlane.xlu0 %3031
        %v3033 = vrot.slane %v3032, 4
        %v3034 = vadd.f32 %v3032, %v3033
        %v3035 = vrot.slane %v3034, 2
        %v3036 = vadd.f32 %v3034, %v3035
        %v3037 = vrot.slane %v3036, 1
        %v3038 = vadd.f32 %v3036, %v3037
        %s3039 = vtos %v3038
        %v3040 = vstv %s3039
        %v3041 = vmul.f32 %v3027, %v1948
        %v3042 = vmul.f32 %v3040, %v1948
        %v3043 = vmul.f32 %v3041, %v3041
        %v3044 = vsub.f32 %v3042, %v3043
        %v3045 = vsub.f32 %v2995, %v3041
        %v3046 = vsub.f32 %v3015, %v3041
        %v3047 = vadd.f32 %v3044, 1e-05
        %v3048 = vrsqrt.pop %v3047
        %v3049 = vmul.f32 %v3048, %v3047
        %v3050 = vmul.f32 %v3049, %v3048
        %v3051 = vmul.f32 0.5, %v3050
        %v3052 = vsub.f32 1.5, %v3051
        %v3053 = vmul.f32 %v3048, %v3052
        %vm3054 = vweird.f32 %v3047
        %vm3055 = vweird.f32 %v3048
        %vm3056 = vmor %vm3054, %vm3055
        %v3057 = vsel %vm3056, %v3048, %v3053
        %v3058 = vmul.f32 %v3045, %v3057
        %v3059 = vmul.f32 %v3046, %v3057
        %3061 = vset.pattern.permute.xlu0 0
        %3062 = vperm.xlu0 %3061, %v2967
        %v3063 = vpop.permute.xlu0 %3062
        %v3065 = vmul.f32 %v3058, %v3063
        %v3066 = vmul.f32 %v3059, %v3063
        %3068 = vset.pattern.permute.xlu0 0
        %3069 = vperm.xlu0 %3068, %v2968
        %v3070 = vpop.permute.xlu0 %3069
        %v3072 = vadd.f32 %v3065, %v3070
        %v3073 = vadd.f32 %v3066, %v3070
        %v3074 = vmax.f32 %v3072, 0.0
        %v3075 = vmax.f32 %v3073, 0.0
        %3076 = vst [vmem:[#allocation3 + $0x30] sm:$0xff] %v3074
        %3077 = vst [vmem:[#allocation3 + $0x38] sm:$0xff] %v3075
        %v3078 = vld [vmem:[#allocation3] sm:$0xff]
        %v3079 = vld [vmem:[#allocation3 + $0x8] sm:$0xff]
        %v3080 = vld [vmem:[#allocation3 + $0x10] sm:$0xff]
        %v3081 = vld [vmem:[#allocation3 + $0x18] sm:$0xff]
        %v3082 = vld [vmem:[#allocation3 + $0x20] sm:$0xff]
        %v3083 = vld [vmem:[#allocation3 + $0x28] sm:$0xff]
        %v3084 = vld [vmem:[#allocation3 + $0x30] sm:$0xff]
        %v3085 = vld [vmem:[#allocation3 + $0x38] sm:$0xff]
        %3086 = vrot.lane.b32.xlu0 %v3078, 17
        %v3087 = vpop.permute.xlu0 %3086
        %3088 = vrot.lane.b32.xlu0 %v3080, 17
        %v3089 = vpop.permute.xlu0 %3088
        %3090 = vrot.lane.b32.xlu0 %v3082, 17
        %v3091 = vpop.permute.xlu0 %3090
        %3092 = vrot.lane.b32.xlu0 %v3084, 17
        %v3093 = vpop.permute.xlu0 %3092
        %3094 = vrot.lane.b32.xlu0 %v3079, 17
        %v3095 = vpop.permute.xlu0 %3094
        %3096 = vrot.lane.b32.xlu0 %v3081, 17
        %v3097 = vpop.permute.xlu0 %3096
        %3098 = vrot.lane.b32.xlu0 %v3083, 17
        %v3099 = vpop.permute.xlu0 %3098
        %3100 = vrot.lane.b32.xlu0 %v3085, 17
        %v3101 = vpop.permute.xlu0 %3100
        %v3102 = vsel %vm1687, %v3087, %v3095
        %v3103 = vsel %vm1687, %v3089, %v3097
        %v3104 = vsel %vm1687, %v3091, %v3099
        %v3105 = vsel %vm1687, %v3093, %v3101
        %v3106 = vsel %vm1687, %v3095, %v3087
        %v3107 = vsel %vm1687, %v3097, %v3089
        %v3108 = vsel %vm1687, %v3099, %v3091
        %v3109 = vsel %vm1687, %v3101, %v3093
        %v3110 = vsel %vm2846, %v3106, 0.0
        %v3111 = vsel %vm2847, %v3102, 0.0
        %v3112 = vsel %vm2846, %v3107, 0.0
        %v3113 = vsel %vm2847, %v3103, 0.0
        %v3114 = vsel %vm2846, %v3108, 0.0
        %v3115 = vsel %vm2847, %v3104, 0.0
        %v3116 = vsel %vm2846, %v3109, 0.0
        %v3117 = vsel %vm2847, %v3105, 0.0
        %3118 = vst [vmem:[#allocation2] sm:$0xff] %v3110
        %3119 = vst [vmem:[#allocation2 + $0x8] sm:$0xff] %v3111
        %3120 = vst [vmem:[#allocation2 + $0x10] sm:$0xff] %v3112
        %3121 = vst [vmem:[#allocation2 + $0x18] sm:$0xff] %v3113
        %3122 = vst [vmem:[#allocation2 + $0x20] sm:$0xff] %v3114
        %3123 = vst [vmem:[#allocation2 + $0x28] sm:$0xff] %v3115
        %3124 = vst [vmem:[#allocation2 + $0x30] sm:$0xff] %v3116
        %3125 = vst [vmem:[#allocation2 + $0x38] sm:$0xff] %v3117
        %3126 = vrot.lane.b32.xlu0 %v3078, 16
        %v3127 = vpop.permute.xlu0 %3126
        %3128 = vrot.lane.b32.xlu0 %v3080, 16
        %v3129 = vpop.permute.xlu0 %3128
        %3130 = vrot.lane.b32.xlu0 %v3082, 16
        %v3131 = vpop.permute.xlu0 %3130
        %3132 = vrot.lane.b32.xlu0 %v3084, 16
        %v3133 = vpop.permute.xlu0 %3132
        %3134 = vrot.lane.b32.xlu0 %v3079, 16
        %v3135 = vpop.permute.xlu0 %3134
        %3136 = vrot.lane.b32.xlu0 %v3081, 16
        %v3137 = vpop.permute.xlu0 %3136
        %3138 = vrot.lane.b32.xlu0 %v3083, 16
        %v3139 = vpop.permute.xlu0 %3138
        %3140 = vrot.lane.b32.xlu0 %v3085, 16
        %v3141 = vpop.permute.xlu0 %3140
        %v3142 = vsel %vm1059, %v3127, %v3135
        %v3143 = vsel %vm1059, %v3129, %v3137
        %v3144 = vsel %vm1059, %v3131, %v3139
        %v3145 = vsel %vm1059, %v3133, %v3141
        %v3146 = vsel %vm1059, %v3135, %v3127
        %v3147 = vsel %vm1059, %v3137, %v3129
        %v3148 = vsel %vm1059, %v3139, %v3131
        %v3149 = vsel %vm1059, %v3141, %v3133
        %v3150 = vsel %vm2855, %v3146, 0.0
        %v3151 = vsel %vm2856, %v3142, 0.0
        %v3152 = vsel %vm2855, %v3147, 0.0
        %v3153 = vsel %vm2856, %v3143, 0.0
        %v3154 = vsel %vm2855, %v3148, 0.0
        %v3155 = vsel %vm2856, %v3144, 0.0
        %v3156 = vsel %vm2855, %v3149, 0.0
        %v3157 = vsel %vm2856, %v3145, 0.0
        %3158 = vst [vmem:[#allocation2 + $0x40] sm:$0xff] %v3150
        %3159 = vst [vmem:[#allocation2 + $0x48] sm:$0xff] %v3151
        %3160 = vst [vmem:[#allocation2 + $0x50] sm:$0xff] %v3152
        %3161 = vst [vmem:[#allocation2 + $0x58] sm:$0xff] %v3153
        %3162 = vst [vmem:[#allocation2 + $0x60] sm:$0xff] %v3154
        %3163 = vst [vmem:[#allocation2 + $0x68] sm:$0xff] %v3155
        %3164 = vst [vmem:[#allocation2 + $0x70] sm:$0xff] %v3156
        %3165 = vst [vmem:[#allocation2 + $0x78] sm:$0xff] %v3157
        %3166 = vrot.lane.b32.xlu0 %v3078, 15
        %v3167 = vpop.permute.xlu0 %3166
        %3168 = vrot.lane.b32.xlu0 %v3080, 15
        %v3169 = vpop.permute.xlu0 %3168
        %3170 = vrot.lane.b32.xlu0 %v3082, 15
        %v3171 = vpop.permute.xlu0 %3170
        %3172 = vrot.lane.b32.xlu0 %v3084, 15
        %v3173 = vpop.permute.xlu0 %3172
        %3174 = vrot.lane.b32.xlu0 %v3079, 15
        %v3175 = vpop.permute.xlu0 %3174
        %3176 = vrot.lane.b32.xlu0 %v3081, 15
        %v3177 = vpop.permute.xlu0 %3176
        %3178 = vrot.lane.b32.xlu0 %v3083, 15
        %v3179 = vpop.permute.xlu0 %3178
        %3180 = vrot.lane.b32.xlu0 %v3085, 15
        %v3181 = vpop.permute.xlu0 %3180
        %v3182 = vsel %vm1735, %v3167, %v3175
        %v3183 = vsel %vm1735, %v3169, %v3177
        %v3184 = vsel %vm1735, %v3171, %v3179
        %v3185 = vsel %vm1735, %v3173, %v3181
        %v3186 = vsel %vm1735, %v3175, %v3167
        %v3187 = vsel %vm1735, %v3177, %v3169
        %v3188 = vsel %vm1735, %v3179, %v3171
        %v3189 = vsel %vm1735, %v3181, %v3173
        %v3190 = vsel %vm2870, %v3186, 0.0
        %v3191 = vsel %vm2871, %v3182, 0.0
        %v3192 = vsel %vm2870, %v3187, 0.0
        %v3193 = vsel %vm2871, %v3183, 0.0
        %v3194 = vsel %vm2870, %v3188, 0.0
        %v3195 = vsel %vm2871, %v3184, 0.0
        %v3196 = vsel %vm2870, %v3189, 0.0
        %v3197 = vsel %vm2871, %v3185, 0.0
        %3198 = vst [vmem:[#allocation2 + $0x80] sm:$0xff] %v3190
        %3199 = vst [vmem:[#allocation2 + $0x88] sm:$0xff] %v3191
        %3200 = vst [vmem:[#allocation2 + $0x90] sm:$0xff] %v3192
        %3201 = vst [vmem:[#allocation2 + $0x98] sm:$0xff] %v3193
        %3202 = vst [vmem:[#allocation2 + $0xa0] sm:$0xff] %v3194
        %3203 = vst [vmem:[#allocation2 + $0xa8] sm:$0xff] %v3195
        %3204 = vst [vmem:[#allocation2 + $0xb0] sm:$0xff] %v3196
        %3205 = vst [vmem:[#allocation2 + $0xb8] sm:$0xff] %v3197
        %3206 = vrot.lane.b32.xlu0 %v3078, 1
        %v3207 = vpop.permute.xlu0 %3206
        %3208 = vrot.lane.b32.xlu0 %v3080, 1
        %v3209 = vpop.permute.xlu0 %3208
        %3210 = vrot.lane.b32.xlu0 %v3082, 1
        %v3211 = vpop.permute.xlu0 %3210
        %3212 = vrot.lane.b32.xlu0 %v3084, 1
        %v3213 = vpop.permute.xlu0 %3212
        %3214 = vrot.lane.b32.xlu0 %v3079, 1
        %v3215 = vpop.permute.xlu0 %3214
        %3216 = vrot.lane.b32.xlu0 %v3081, 1
        %v3217 = vpop.permute.xlu0 %3216
        %3218 = vrot.lane.b32.xlu0 %v3083, 1
        %v3219 = vpop.permute.xlu0 %3218
        %3220 = vrot.lane.b32.xlu0 %v3085, 1
        %v3221 = vpop.permute.xlu0 %3220
        %v3222 = vsel %vm1757, %v3207, %v3215
        %v3223 = vsel %vm1757, %v3209, %v3217
        %v3224 = vsel %vm1757, %v3211, %v3219
        %v3225 = vsel %vm1757, %v3213, %v3221
        %v3226 = vsel %vm1757, %v3215, %v3207
        %v3227 = vsel %vm1757, %v3217, %v3209
        %v3228 = vsel %vm1757, %v3219, %v3211
        %v3229 = vsel %vm1757, %v3221, %v3213
        %v3230 = vsel %vm2885, %v3226, 0.0
        %v3231 = vsel %vm2886, %v3222, 0.0
        %v3232 = vsel %vm2885, %v3227, 0.0
        %v3233 = vsel %vm2886, %v3223, 0.0
        %v3234 = vsel %vm2885, %v3228, 0.0
        %v3235 = vsel %vm2886, %v3224, 0.0
        %v3236 = vsel %vm2885, %v3229, 0.0
        %v3237 = vsel %vm2886, %v3225, 0.0
        %3238 = vst [vmem:[#allocation2 + $0xc0] sm:$0xff] %v3230
        %3239 = vst [vmem:[#allocation2 + $0xc8] sm:$0xff] %v3231
        %3240 = vst [vmem:[#allocation2 + $0xd0] sm:$0xff] %v3232
        %3241 = vst [vmem:[#allocation2 + $0xd8] sm:$0xff] %v3233
        %3242 = vst [vmem:[#allocation2 + $0xe0] sm:$0xff] %v3234
        %3243 = vst [vmem:[#allocation2 + $0xe8] sm:$0xff] %v3235
        %3244 = vst [vmem:[#allocation2 + $0xf0] sm:$0xff] %v3236
        %3245 = vst [vmem:[#allocation2 + $0xf8] sm:$0xff] %v3237
        %3246 = vst [vmem:[#allocation2 + $0x100] sm:$0xff] %v3078
        %3247 = vst [vmem:[#allocation2 + $0x108] sm:$0xff] %v3079
        %3248 = vst [vmem:[#allocation2 + $0x110] sm:$0xff] %v3080
        %3249 = vst [vmem:[#allocation2 + $0x118] sm:$0xff] %v3081
        %3250 = vst [vmem:[#allocation2 + $0x120] sm:$0xff] %v3082
        %3251 = vst [vmem:[#allocation2 + $0x128] sm:$0xff] %v3083
        %3252 = vst [vmem:[#allocation2 + $0x130] sm:$0xff] %v3084
        %3253 = vst [vmem:[#allocation2 + $0x138] sm:$0xff] %v3085
        %3254 = vrot.lane.b32.xlu0 %v3078, 127
        %v3255 = vpop.permute.xlu0 %3254
        %3256 = vrot.lane.b32.xlu0 %v3080, 127
        %v3257 = vpop.permute.xlu0 %3256
        %3258 = vrot.lane.b32.xlu0 %v3082, 127
        %v3259 = vpop.permute.xlu0 %3258
        %3260 = vrot.lane.b32.xlu0 %v3084, 127
        %v3261 = vpop.permute.xlu0 %3260
        %3262 = vrot.lane.b32.xlu0 %v3079, 127
        %v3263 = vpop.permute.xlu0 %3262
        %3264 = vrot.lane.b32.xlu0 %v3081, 127
        %v3265 = vpop.permute.xlu0 %3264
        %3266 = vrot.lane.b32.xlu0 %v3083, 127
        %v3267 = vpop.permute.xlu0 %3266
        %3268 = vrot.lane.b32.xlu0 %v3085, 127
        %v3269 = vpop.permute.xlu0 %3268
        %v3270 = vsel %vm1093, %v3255, %v3263
        %v3271 = vsel %vm1093, %v3257, %v3265
        %v3272 = vsel %vm1093, %v3259, %v3267
        %v3273 = vsel %vm1093, %v3261, %v3269
        %v3274 = vsel %vm1093, %v3263, %v3255
        %v3275 = vsel %vm1093, %v3265, %v3257
        %v3276 = vsel %vm1093, %v3267, %v3259
        %v3277 = vsel %vm1093, %v3269, %v3261
        %v3278 = vsel %vm2902, %v3270, 0.0
        %v3279 = vsel %vm2903, %v3274, 0.0
        %v3280 = vsel %vm2902, %v3271, 0.0
        %v3281 = vsel %vm2903, %v3275, 0.0
        %v3282 = vsel %vm2902, %v3272, 0.0
        %v3283 = vsel %vm2903, %v3276, 0.0
        %v3284 = vsel %vm2902, %v3273, 0.0
        %v3285 = vsel %vm2903, %v3277, 0.0
        %3286 = vst [vmem:[#allocation2 + $0x140] sm:$0xff] %v3278
        %3287 = vst [vmem:[#allocation2 + $0x148] sm:$0xff] %v3279
        %3288 = vst [vmem:[#allocation2 + $0x150] sm:$0xff] %v3280
        %3289 = vst [vmem:[#allocation2 + $0x158] sm:$0xff] %v3281
        %3290 = vst [vmem:[#allocation2 + $0x160] sm:$0xff] %v3282
        %3291 = vst [vmem:[#allocation2 + $0x168] sm:$0xff] %v3283
        %3292 = vst [vmem:[#allocation2 + $0x170] sm:$0xff] %v3284
        %3293 = vst [vmem:[#allocation2 + $0x178] sm:$0xff] %v3285
        %3294 = vrot.lane.b32.xlu0 %v3078, 113
        %v3295 = vpop.permute.xlu0 %3294
        %3296 = vrot.lane.b32.xlu0 %v3080, 113
        %v3297 = vpop.permute.xlu0 %3296
        %3298 = vrot.lane.b32.xlu0 %v3082, 113
        %v3299 = vpop.permute.xlu0 %3298
        %3300 = vrot.lane.b32.xlu0 %v3084, 113
        %v3301 = vpop.permute.xlu0 %3300
        %3302 = vrot.lane.b32.xlu0 %v3079, 113
        %v3303 = vpop.permute.xlu0 %3302
        %3304 = vrot.lane.b32.xlu0 %v3081, 113
        %v3305 = vpop.permute.xlu0 %3304
        %3306 = vrot.lane.b32.xlu0 %v3083, 113
        %v3307 = vpop.permute.xlu0 %3306
        %3308 = vrot.lane.b32.xlu0 %v3085, 113
        %v3309 = vpop.permute.xlu0 %3308
        %v3310 = vsel %vm1802, %v3295, %v3303
        %v3311 = vsel %vm1802, %v3297, %v3305
        %v3312 = vsel %vm1802, %v3299, %v3307
        %v3313 = vsel %vm1802, %v3301, %v3309
        %v3314 = vsel %vm1802, %v3303, %v3295
        %v3315 = vsel %vm1802, %v3305, %v3297
        %v3316 = vsel %vm1802, %v3307, %v3299
        %v3317 = vsel %vm1802, %v3309, %v3301
        %v3318 = vsel %vm2917, %v3310, 0.0
        %v3319 = vsel %vm2918, %v3314, 0.0
        %v3320 = vsel %vm2917, %v3311, 0.0
        %v3321 = vsel %vm2918, %v3315, 0.0
        %v3322 = vsel %vm2917, %v3312, 0.0
        %v3323 = vsel %vm2918, %v3316, 0.0
        %v3324 = vsel %vm2917, %v3313, 0.0
        %v3325 = vsel %vm2918, %v3317, 0.0
        %3326 = vst [vmem:[#allocation2 + $0x180] sm:$0xff] %v3318
        %3327 = vst [vmem:[#allocation2 + $0x188] sm:$0xff] %v3319
        %3328 = vst [vmem:[#allocation2 + $0x190] sm:$0xff] %v3320
        %3329 = vst [vmem:[#allocation2 + $0x198] sm:$0xff] %v3321
        %3330 = vst [vmem:[#allocation2 + $0x1a0] sm:$0xff] %v3322
        %3331 = vst [vmem:[#allocation2 + $0x1a8] sm:$0xff] %v3323
        %3332 = vst [vmem:[#allocation2 + $0x1b0] sm:$0xff] %v3324
        %3333 = vst [vmem:[#allocation2 + $0x1b8] sm:$0xff] %v3325
        %3334 = vrot.lane.b32.xlu0 %v3078, 112
        %v3335 = vpop.permute.xlu0 %3334
        %3336 = vrot.lane.b32.xlu0 %v3080, 112
        %v3337 = vpop.permute.xlu0 %3336
        %3338 = vrot.lane.b32.xlu0 %v3082, 112
        %v3339 = vpop.permute.xlu0 %3338
        %3340 = vrot.lane.b32.xlu0 %v3084, 112
        %v3341 = vpop.permute.xlu0 %3340
        %3342 = vrot.lane.b32.xlu0 %v3079, 112
        %v3343 = vpop.permute.xlu0 %3342
        %3344 = vrot.lane.b32.xlu0 %v3081, 112
        %v3345 = vpop.permute.xlu0 %3344
        %3346 = vrot.lane.b32.xlu0 %v3083, 112
        %v3347 = vpop.permute.xlu0 %3346
        %3348 = vrot.lane.b32.xlu0 %v3085, 112
        %v3349 = vpop.permute.xlu0 %3348
        %v3350 = vsel %vm1823, %v3335, %v3343
        %v3351 = vsel %vm1823, %v3337, %v3345
        %v3352 = vsel %vm1823, %v3339, %v3347
        %v3353 = vsel %vm1823, %v3341, %v3349
        %v3354 = vsel %vm1823, %v3343, %v3335
        %v3355 = vsel %vm1823, %v3345, %v3337
        %v3356 = vsel %vm1823, %v3347, %v3339
        %v3357 = vsel %vm1823, %v3349, %v3341
        %v3358 = vsel %vm2926, %v3350, 0.0
        %v3359 = vsel %vm2927, %v3354, 0.0
        %v3360 = vsel %vm2926, %v3351, 0.0
        %v3361 = vsel %vm2927, %v3355, 0.0
        %v3362 = vsel %vm2926, %v3352, 0.0
        %v3363 = vsel %vm2927, %v3356, 0.0
        %v3364 = vsel %vm2926, %v3353, 0.0
        %v3365 = vsel %vm2927, %v3357, 0.0
        %3366 = vst [vmem:[#allocation2 + $0x1c0] sm:$0xff] %v3358
        %3367 = vst [vmem:[#allocation2 + $0x1c8] sm:$0xff] %v3359
        %3368 = vst [vmem:[#allocation2 + $0x1d0] sm:$0xff] %v3360
        %3369 = vst [vmem:[#allocation2 + $0x1d8] sm:$0xff] %v3361
        %3370 = vst [vmem:[#allocation2 + $0x1e0] sm:$0xff] %v3362
        %3371 = vst [vmem:[#allocation2 + $0x1e8] sm:$0xff] %v3363
        %3372 = vst [vmem:[#allocation2 + $0x1f0] sm:$0xff] %v3364
        %3373 = vst [vmem:[#allocation2 + $0x1f8] sm:$0xff] %v3365
        %3374 = vrot.lane.b32.xlu0 %v3078, 111
        %v3375 = vpop.permute.xlu0 %3374
        %3376 = vrot.lane.b32.xlu0 %v3080, 111
        %v3377 = vpop.permute.xlu0 %3376
        %3378 = vrot.lane.b32.xlu0 %v3082, 111
        %v3379 = vpop.permute.xlu0 %3378
        %3380 = vrot.lane.b32.xlu0 %v3084, 111
        %v3381 = vpop.permute.xlu0 %3380
        %3382 = vrot.lane.b32.xlu0 %v3079, 111
        %v3383 = vpop.permute.xlu0 %3382
        %3384 = vrot.lane.b32.xlu0 %v3081, 111
        %v3385 = vpop.permute.xlu0 %3384
        %3386 = vrot.lane.b32.xlu0 %v3083, 111
        %v3387 = vpop.permute.xlu0 %3386
        %3388 = vrot.lane.b32.xlu0 %v3085, 111
        %v3389 = vpop.permute.xlu0 %3388
        %v3390 = vsel %vm1841, %v3375, %v3383
        %v3391 = vsel %vm1841, %v3377, %v3385
        %v3392 = vsel %vm1841, %v3379, %v3387
        %v3393 = vsel %vm1841, %v3381, %v3389
        %v3394 = vsel %vm1841, %v3383, %v3375
        %v3395 = vsel %vm1841, %v3385, %v3377
        %v3396 = vsel %vm1841, %v3387, %v3379
        %v3397 = vsel %vm1841, %v3389, %v3381
        %v3398 = vsel %vm2941, %v3390, 0.0
        %v3399 = vsel %vm2942, %v3394, 0.0
        %v3400 = vsel %vm2941, %v3391, 0.0
        %v3401 = vsel %vm2942, %v3395, 0.0
        %v3402 = vsel %vm2941, %v3392, 0.0
        %v3403 = vsel %vm2942, %v3396, 0.0
        %v3404 = vsel %vm2941, %v3393, 0.0
        %v3405 = vsel %vm2942, %v3397, 0.0
        %3406 = vst [vmem:[#allocation2 + $0x200] sm:$0xff] %v3398
        %3407 = vst [vmem:[#allocation2 + $0x208] sm:$0xff] %v3399
        %3408 = vst [vmem:[#allocation2 + $0x210] sm:$0xff] %v3400
        %3409 = vst [vmem:[#allocation2 + $0x218] sm:$0xff] %v3401
        %3410 = vst [vmem:[#allocation2 + $0x220] sm:$0xff] %v3402
        %3411 = vst [vmem:[#allocation2 + $0x228] sm:$0xff] %v3403
        %3412 = vst [vmem:[#allocation2 + $0x230] sm:$0xff] %v3404
        %3413 = vst [vmem:[#allocation2 + $0x238] sm:$0xff] %v3405
        %v3414 = vld [vmem:[%s14] sm:$0xff]
        %v3415 = vld [vmem:[#allocation2] sm:$0xff]
        %v3416 = vld [vmem:[#allocation2 + $0x8] sm:$0xff]
        %v3417 = vld [vmem:[#allocation2 + $0x10] sm:$0xff]
        %v3418 = vld [vmem:[#allocation2 + $0x18] sm:$0xff]
        %v3419 = vld [vmem:[#allocation2 + $0x20] sm:$0xff]
        %v3420 = vld [vmem:[#allocation2 + $0x28] sm:$0xff]
        %v3421 = vld [vmem:[#allocation2 + $0x30] sm:$0xff]
        %v3422 = vld [vmem:[#allocation2 + $0x38] sm:$0xff]
        %v3423 = vld [vmem:[#allocation2 + $0x40] sm:$0xff]
        %v3424 = vld [vmem:[#allocation2 + $0x48] sm:$0xff]
        %v3425 = vld [vmem:[#allocation2 + $0x50] sm:$0xff]
        %v3426 = vld [vmem:[#allocation2 + $0x58] sm:$0xff]
        %v3427 = vld [vmem:[#allocation2 + $0x60] sm:$0xff]
        %v3428 = vld [vmem:[#allocation2 + $0x68] sm:$0xff]
        %v3429 = vld [vmem:[#allocation2 + $0x70] sm:$0xff]
        %v3430 = vld [vmem:[#allocation2 + $0x78] sm:$0xff]
        %v3431 = vld [vmem:[#allocation2 + $0x80] sm:$0xff]
        %v3432 = vld [vmem:[#allocation2 + $0x88] sm:$0xff]
        %v3433 = vld [vmem:[#allocation2 + $0x90] sm:$0xff]
        %v3434 = vld [vmem:[#allocation2 + $0x98] sm:$0xff]
        %v3435 = vld [vmem:[#allocation2 + $0xa0] sm:$0xff]
        %v3436 = vld [vmem:[#allocation2 + $0xa8] sm:$0xff]
        %v3437 = vld [vmem:[#allocation2 + $0xb0] sm:$0xff]
        %v3438 = vld [vmem:[#allocation2 + $0xb8] sm:$0xff]
        %v3439 = vld [vmem:[#allocation2 + $0xc0] sm:$0xff]
        %v3440 = vld [vmem:[#allocation2 + $0xc8] sm:$0xff]
        %v3441 = vld [vmem:[#allocation2 + $0xd0] sm:$0xff]
        %v3442 = vld [vmem:[#allocation2 + $0xd8] sm:$0xff]
        %v3443 = vld [vmem:[#allocation2 + $0xe0] sm:$0xff]
        %v3444 = vld [vmem:[#allocation2 + $0xe8] sm:$0xff]
        %v3445 = vld [vmem:[#allocation2 + $0xf0] sm:$0xff]
        %v3446 = vld [vmem:[#allocation2 + $0xf8] sm:$0xff]
        %v3447 = vld [vmem:[%s14 + $0x8] sm:$0xff]
        %v3448 = vld [vmem:[#allocation2 + $0x100] sm:$0xff]
        %v3449 = vld [vmem:[#allocation2 + $0x108] sm:$0xff]
        %v3450 = vld [vmem:[#allocation2 + $0x110] sm:$0xff]
        %v3451 = vld [vmem:[#allocation2 + $0x118] sm:$0xff]
        %v3452 = vld [vmem:[#allocation2 + $0x120] sm:$0xff]
        %v3453 = vld [vmem:[#allocation2 + $0x128] sm:$0xff]
        %v3454 = vld [vmem:[#allocation2 + $0x130] sm:$0xff]
        %v3455 = vld [vmem:[#allocation2 + $0x138] sm:$0xff]
        %v3456 = vld [vmem:[#allocation2 + $0x140] sm:$0xff]
        %v3457 = vld [vmem:[#allocation2 + $0x148] sm:$0xff]
        %v3458 = vld [vmem:[#allocation2 + $0x150] sm:$0xff]
        %v3459 = vld [vmem:[#allocation2 + $0x158] sm:$0xff]
        %v3460 = vld [vmem:[#allocation2 + $0x160] sm:$0xff]
        %v3461 = vld [vmem:[#allocation2 + $0x168] sm:$0xff]
        %v3462 = vld [vmem:[#allocation2 + $0x170] sm:$0xff]
        %v3463 = vld [vmem:[#allocation2 + $0x178] sm:$0xff]
        %v3464 = vld [vmem:[#allocation2 + $0x180] sm:$0xff]
        %v3465 = vld [vmem:[#allocation2 + $0x188] sm:$0xff]
        %v3466 = vld [vmem:[#allocation2 + $0x190] sm:$0xff]
        %v3467 = vld [vmem:[#allocation2 + $0x198] sm:$0xff]
        %v3468 = vld [vmem:[#allocation2 + $0x1a0] sm:$0xff]
        %v3469 = vld [vmem:[#allocation2 + $0x1a8] sm:$0xff]
        %v3470 = vld [vmem:[#allocation2 + $0x1b0] sm:$0xff]
        %v3471 = vld [vmem:[#allocation2 + $0x1b8] sm:$0xff]
        %v3472 = vld [vmem:[#allocation2 + $0x1c0] sm:$0xff]
        %v3473 = vld [vmem:[#allocation2 + $0x1c8] sm:$0xff]
        %v3474 = vld [vmem:[#allocation2 + $0x1d0] sm:$0xff]
        %v3475 = vld [vmem:[#allocation2 + $0x1d8] sm:$0xff]
        %v3476 = vld [vmem:[#allocation2 + $0x1e0] sm:$0xff]
        %v3477 = vld [vmem:[#allocation2 + $0x1e8] sm:$0xff]
        %v3478 = vld [vmem:[#allocation2 + $0x1f0] sm:$0xff]
        %v3479 = vld [vmem:[#allocation2 + $0x1f8] sm:$0xff]
        %3480 = vmatpush.msra.mxu0 %v3478
        %3481 = vmatpush.msra.mxu0 %v3476
        %3482 = vmatpush.msra.mxu0 %v3474
        %3483 = vmatpush.msra.mxu0 %v3472
        %3484 = vmatpush.msra.mxu0 %v3470
        %3485 = vmatpush.msra.mxu0 %v3468
        %3486 = vmatpush.msra.mxu0 %v3466
        %3487 = vmatpush.msra.mxu0 %v3464
        %3488 = vmatpush.msra.mxu0 %v3462
        %3489 = vmatpush.msra.mxu0 %v3460
        %3490 = vmatpush.msra.mxu0 %v3458
        %3491 = vmatpush.msra.mxu0 %v3456
        %3492 = vmatpush.msra.mxu0 %v3454
        %3493 = vmatpush.msra.mxu0 %v3452
        %3494 = vmatpush.msra.mxu0 %v3450
        %3495 = vmatpush.msra.mxu0 %v3448
        %3496 = vmatmul.f32.gmra.mxu0 %v3447
        %v3497 = vpop.f32.mrf.mxu0
        %v3498 = vadd.f32 0.0, %v3497
        %3499 = vdwg.mxu0
        %3500 = vmatpush.msra.mxu0 %v3479
        %3501 = vmatpush.msra.mxu0 %v3477
        %3502 = vmatpush.msra.mxu0 %v3475
        %3503 = vmatpush.msra.mxu0 %v3473
        %3504 = vmatpush.msra.mxu0 %v3471
        %3505 = vmatpush.msra.mxu0 %v3469
        %3506 = vmatpush.msra.mxu0 %v3467
        %3507 = vmatpush.msra.mxu0 %v3465
        %3508 = vmatpush.msra.mxu0 %v3463
        %3509 = vmatpush.msra.mxu0 %v3461
        %3510 = vmatpush.msra.mxu0 %v3459
        %3511 = vmatpush.msra.mxu0 %v3457
        %3512 = vmatpush.msra.mxu0 %v3455
        %3513 = vmatpush.msra.mxu0 %v3453
        %3514 = vmatpush.msra.mxu0 %v3451
        %3515 = vmatpush.msra.mxu0 %v3449
        %3516 = vmatmul.f32.gmra.mxu0 %v3447
        %v3517 = vpop.f32.mrf.mxu0
        %v3518 = vadd.f32 0.0, %v3517
        %3519 = vdwg.mxu0
        %3520 = vmatpush.msra.mxu0 %v3445
        %3521 = vmatpush.msra.mxu0 %v3443
        %3522 = vmatpush.msra.mxu0 %v3441
        %3523 = vmatpush.msra.mxu0 %v3439
        %3524 = vmatpush.msra.mxu0 %v3437
        %3525 = vmatpush.msra.mxu0 %v3435
        %3526 = vmatpush.msra.mxu0 %v3433
        %3527 = vmatpush.msra.mxu0 %v3431
        %3528 = vmatpush.msra.mxu0 %v3429
        %3529 = vmatpush.msra.mxu0 %v3427
        %3530 = vmatpush.msra.mxu0 %v3425
        %3531 = vmatpush.msra.mxu0 %v3423
        %3532 = vmatpush.msra.mxu0 %v3421
        %3533 = vmatpush.msra.mxu0 %v3419
        %3534 = vmatpush.msra.mxu0 %v3417
        %3535 = vmatpush.msra.mxu0 %v3415
        %3536 = vmatmul.f32.gmra.mxu0 %v3414
        %v3537 = vpop.f32.mrf.mxu0
        %v3538 = vadd.f32 %v3498, %v3537
        %3539 = vdwg.mxu0
        %3540 = vmatpush.msra.mxu0 %v3446
        %3541 = vmatpush.msra.mxu0 %v3444
        %3542 = vmatpush.msra.mxu0 %v3442
        %3543 = vmatpush.msra.mxu0 %v3440
        %3544 = vmatpush.msra.mxu0 %v3438
        %3545 = vmatpush.msra.mxu0 %v3436
        %3546 = vmatpush.msra.mxu0 %v3434
        %3547 = vmatpush.msra.mxu0 %v3432
        %3548 = vmatpush.msra.mxu0 %v3430
        %3549 = vmatpush.msra.mxu0 %v3428
        %3550 = vmatpush.msra.mxu0 %v3426
        %3551 = vmatpush.msra.mxu0 %v3424
        %3552 = vmatpush.msra.mxu0 %v3422
        %3553 = vmatpush.msra.mxu0 %v3420
        %3554 = vmatpush.msra.mxu0 %v3418
        %3555 = vmatpush.msra.mxu0 %v3416
        %3556 = vmatmul.f32.gmra.mxu0 %v3414
        %v3557 = vpop.f32.mrf.mxu0
        %v3558 = vadd.f32 %v3518, %v3557
        %3559 = vdwg.mxu0
        %v3560 = vld [vmem:[%s14 + $0x10] sm:$0xff]
        %v3561 = vld [vmem:[#allocation2 + $0x200] sm:$0xff]
        %v3562 = vld [vmem:[#allocation2 + $0x208] sm:$0xff]
        %v3563 = vld [vmem:[#allocation2 + $0x210] sm:$0xff]
        %v3564 = vld [vmem:[#allocation2 + $0x218] sm:$0xff]
        %v3565 = vld [vmem:[#allocation2 + $0x220] sm:$0xff]
        %v3566 = vld [vmem:[#allocation2 + $0x228] sm:$0xff]
        %v3567 = vld [vmem:[#allocation2 + $0x230] sm:$0xff]
        %v3568 = vld [vmem:[#allocation2 + $0x238] sm:$0xff]
        %vm3569 = vcmask 261120
        %v3571 = vsel %vm3569, %v3560, 0
        %3573 = vmatpush.msra.mxu0 0.0
        %3574 = vmatpush.msra.mxu0 0.0
        %3575 = vmatpush.msra.mxu0 0.0
        %3576 = vmatpush.msra.mxu0 0.0
        %3577 = vmatpush.msra.mxu0 0.0
        %3578 = vmatpush.msra.mxu0 0.0
        %3579 = vmatpush.msra.mxu0 0.0
        %3580 = vmatpush.msra.mxu0 0.0
        %3581 = vmatpush.msra.mxu0 0.0
        %3582 = vmatpush.msra.mxu0 0.0
        %3583 = vmatpush.msra.mxu0 0.0
        %3584 = vmatpush.msra.mxu0 0.0
        %3585 = vmatpush.msra.mxu0 %v3567
        %3586 = vmatpush.msra.mxu0 %v3565
        %3587 = vmatpush.msra.mxu0 %v3563
        %3588 = vmatpush.msra.mxu0 %v3561
        %3589 = vmatmul.f32.gmra.mxu0 %v3571
        %v3590 = vpop.f32.mrf.mxu0
        %v3591 = vadd.f32 0.0, %v3590
        %3592 = vdwg.mxu0
        %3593 = vmatpush.msra.mxu0 0.0
        %3594 = vmatpush.msra.mxu0 0.0
        %3595 = vmatpush.msra.mxu0 0.0
        %3596 = vmatpush.msra.mxu0 0.0
        %3597 = vmatpush.msra.mxu0 0.0
        %3598 = vmatpush.msra.mxu0 0.0
        %3599 = vmatpush.msra.mxu0 0.0
        %3600 = vmatpush.msra.mxu0 0.0
        %3601 = vmatpush.msra.mxu0 0.0
        %3602 = vmatpush.msra.mxu0 0.0
        %3603 = vmatpush.msra.mxu0 0.0
        %3604 = vmatpush.msra.mxu0 0.0
        %3605 = vmatpush.msra.mxu0 %v3568
        %3606 = vmatpush.msra.mxu0 %v3566
        %3607 = vmatpush.msra.mxu0 %v3564
        %3608 = vmatpush.msra.mxu0 %v3562
        %3609 = vmatmul.f32.gmra.mxu0 %v3571
        %v3610 = vpop.f32.mrf.mxu0
        %v3611 = vadd.f32 0.0, %v3610
        %3612 = vdwg.mxu0
        %v3613 = vadd.f32 %v3538, %v3591
        %v3614 = vadd.f32 %v3558, %v3611
        %v3615 = vld [vmem:[%s15] sm:$0xff]
        %v3616 = vld [vmem:[%s15 + $0x8] sm:$0xff]
        %v3617 = vld [vmem:[%s15 + $0x10] sm:$0xff]
        %3619 = vset.pattern.permute.xlu0 0
        %3620 = vperm.xlu0 %3619, %v3615
        %v3621 = vpop.permute.xlu0 %3620
        %v3623 = vadd.f32 %v3613, %v3621
        %v3624 = vadd.f32 %v3614, %v3621
        %v3625 = vadd.f32 %v3623, %v3624
        %3626 = vadd.xlane.f32.xlu0 %v3625
        %v3627 = vpop.xlane.xlu0 %3626
        %v3628 = vrot.slane %v3627, 4
        %v3629 = vadd.f32 %v3627, %v3628
        %v3630 = vrot.slane %v3629, 2
        %v3631 = vadd.f32 %v3629, %v3630
        %v3632 = vrot.slane %v3631, 1
        %v3633 = vadd.f32 %v3631, %v3632
        %s3634 = vtos %v3633
        %v3635 = vstv %s3634
        %v3636 = vmul.f32 %v3623, %v3623
        %v3637 = vmul.f32 %v3624, %v3624
        %v3638 = vadd.f32 %v3636, %v3637
        %3639 = vadd.xlane.f32.xlu0 %v3638
        %v3640 = vpop.xlane.xlu0 %3639
        %v3641 = vrot.slane %v3640, 4
        %v3642 = vadd.f32 %v3640, %v3641
        %v3643 = vrot.slane %v3642, 2
        %v3644 = vadd.f32 %v3642, %v3643
        %v3645 = vrot.slane %v3644, 1
        %v3646 = vadd.f32 %v3644, %v3645
        %s3647 = vtos %v3646
        %v3648 = vstv %s3647
        %v3649 = vmul.f32 %v3635, %v1948
        %v3650 = vmul.f32 %v3648, %v1948
        %v3651 = vmul.f32 %v3649, %v3649
        %v3652 = vsub.f32 %v3650, %v3651
        %v3653 = vsub.f32 %v3623, %v3649
        %v3654 = vsub.f32 %v3624, %v3649
        %v3655 = vadd.f32 %v3652, 1e-05
        %v3656 = vrsqrt.pop %v3655
        %v3657 = vmul.f32 %v3656, %v3655
        %v3658 = vmul.f32 %v3657, %v3656
        %v3659 = vmul.f32 0.5, %v3658
        %v3660 = vsub.f32 1.5, %v3659
        %v3661 = vmul.f32 %v3656, %v3660
        %vm3662 = vweird.f32 %v3655
        %vm3663 = vweird.f32 %v3656
        %vm3664 = vmor %vm3662, %vm3663
        %v3665 = vsel %vm3664, %v3656, %v3661
        %v3666 = vmul.f32 %v3653, %v3665
        %v3667 = vmul.f32 %v3654, %v3665
        %3669 = vset.pattern.permute.xlu0 0
        %3670 = vperm.xlu0 %3669, %v3616
        %v3671 = vpop.permute.xlu0 %3670
        %v3673 = vmul.f32 %v3666, %v3671
        %v3674 = vmul.f32 %v3667, %v3671
        %3676 = vset.pattern.permute.xlu0 0
        %3677 = vperm.xlu0 %3676, %v3617
        %v3678 = vpop.permute.xlu0 %3677
        %v3680 = vadd.f32 %v3673, %v3678
        %v3681 = vadd.f32 %v3674, %v3678
        %v3682 = vmax.f32 %v3680, 0.0
        %v3683 = vmax.f32 %v3681, 0.0
        %3684 = vrot.lane.b32.xlu0 %v3682, 17
        %v3685 = vpop.permute.xlu0 %3684
        %3686 = vrot.lane.b32.xlu0 %v3683, 17
        %v3687 = vpop.permute.xlu0 %3686
        %v3688 = vsel %vm1687, %v3685, %v3687
        %v3689 = vsel %vm1687, %v3687, %v3685
        %v3690 = vsel %vm2846, %v3689, 0.0
        %v3691 = vsel %vm2847, %v3688, 0.0
        %3692 = vst [vmem:[#allocation2] sm:$0xff] %v3690
        %3693 = vst [vmem:[#allocation2 + $0x8] sm:$0xff] %v3691
        %3694 = vrot.lane.b32.xlu0 %v3682, 16
        %v3695 = vpop.permute.xlu0 %3694
        %3696 = vrot.lane.b32.xlu0 %v3683, 16
        %v3697 = vpop.permute.xlu0 %3696
        %v3698 = vsel %vm1059, %v3695, %v3697
        %v3699 = vsel %vm1059, %v3697, %v3695
        %v3700 = vsel %vm2855, %v3699, 0.0
        %v3701 = vsel %vm2856, %v3698, 0.0
        %3702 = vst [vmem:[#allocation2 + $0x10] sm:$0xff] %v3700
        %3703 = vst [vmem:[#allocation2 + $0x18] sm:$0xff] %v3701
        %3704 = vrot.lane.b32.xlu0 %v3682, 15
        %v3705 = vpop.permute.xlu0 %3704
        %3706 = vrot.lane.b32.xlu0 %v3683, 15
        %v3707 = vpop.permute.xlu0 %3706
        %v3708 = vsel %vm1735, %v3705, %v3707
        %v3709 = vsel %vm1735, %v3707, %v3705
        %v3710 = vsel %vm2870, %v3709, 0.0
        %v3711 = vsel %vm2871, %v3708, 0.0
        %3712 = vst [vmem:[#allocation2 + $0x20] sm:$0xff] %v3710
        %3713 = vst [vmem:[#allocation2 + $0x28] sm:$0xff] %v3711
        %3714 = vrot.lane.b32.xlu0 %v3682, 1
        %v3715 = vpop.permute.xlu0 %3714
        %3716 = vrot.lane.b32.xlu0 %v3683, 1
        %v3717 = vpop.permute.xlu0 %3716
        %v3718 = vsel %vm1757, %v3715, %v3717
        %v3719 = vsel %vm1757, %v3717, %v3715
        %v3720 = vsel %vm2885, %v3719, 0.0
        %v3721 = vsel %vm2886, %v3718, 0.0
        %3722 = vst [vmem:[#allocation2 + $0x30] sm:$0xff] %v3720
        %3723 = vst [vmem:[#allocation2 + $0x38] sm:$0xff] %v3721
        %3724 = vst [vmem:[#allocation2 + $0x40] sm:$0xff] %v3682
        %3725 = vst [vmem:[#allocation2 + $0x48] sm:$0xff] %v3683
        %3726 = vrot.lane.b32.xlu0 %v3682, 127
        %v3727 = vpop.permute.xlu0 %3726
        %3728 = vrot.lane.b32.xlu0 %v3683, 127
        %v3729 = vpop.permute.xlu0 %3728
        %v3730 = vsel %vm1093, %v3727, %v3729
        %v3731 = vsel %vm1093, %v3729, %v3727
        %v3732 = vsel %vm2902, %v3730, 0.0
        %v3733 = vsel %vm2903, %v3731, 0.0
        %3734 = vst [vmem:[#allocation2 + $0x50] sm:$0xff] %v3732
        %3735 = vst [vmem:[#allocation2 + $0x58] sm:$0xff] %v3733
        %3736 = vrot.lane.b32.xlu0 %v3682, 113
        %v3737 = vpop.permute.xlu0 %3736
        %3738 = vrot.lane.b32.xlu0 %v3683, 113
        %v3739 = vpop.permute.xlu0 %3738
        %v3740 = vsel %vm1802, %v3737, %v3739
        %v3741 = vsel %vm1802, %v3739, %v3737
        %v3742 = vsel %vm2917, %v3740, 0.0
        %v3743 = vsel %vm2918, %v3741, 0.0
        %3744 = vst [vmem:[#allocation2 + $0x60] sm:$0xff] %v3742
        %3745 = vst [vmem:[#allocation2 + $0x68] sm:$0xff] %v3743
        %3746 = vrot.lane.b32.xlu0 %v3682, 112
        %v3747 = vpop.permute.xlu0 %3746
        %3748 = vrot.lane.b32.xlu0 %v3683, 112
        %v3749 = vpop.permute.xlu0 %3748
        %v3750 = vsel %vm1823, %v3747, %v3749
        %v3751 = vsel %vm1823, %v3749, %v3747
        %v3752 = vsel %vm2926, %v3750, 0.0
        %v3753 = vsel %vm2927, %v3751, 0.0
        %3754 = vst [vmem:[#allocation2 + $0x70] sm:$0xff] %v3752
        %3755 = vst [vmem:[#allocation2 + $0x78] sm:$0xff] %v3753
        %3756 = vrot.lane.b32.xlu0 %v3682, 111
        %v3757 = vpop.permute.xlu0 %3756
        %3758 = vrot.lane.b32.xlu0 %v3683, 111
        %v3759 = vpop.permute.xlu0 %3758
        %v3760 = vsel %vm1841, %v3757, %v3759
        %v3761 = vsel %vm1841, %v3759, %v3757
        %v3762 = vsel %vm2941, %v3760, 0.0
        %v3763 = vsel %vm2942, %v3761, 0.0
        %3764 = vst [vmem:[#allocation2 + $0x80] sm:$0xff] %v3762
        %3765 = vst [vmem:[#allocation2 + $0x88] sm:$0xff] %v3763
        %v3766 = vld [vmem:[%s16] sm:$0xff]
        %v3767 = vld [vmem:[#allocation2] sm:$0xff]
        %v3768 = vld [vmem:[#allocation2 + $0x8] sm:$0xff]
        %v3769 = vld [vmem:[#allocation2 + $0x10] sm:$0xff]
        %v3770 = vld [vmem:[#allocation2 + $0x18] sm:$0xff]
        %v3771 = vld [vmem:[#allocation2 + $0x20] sm:$0xff]
        %v3772 = vld [vmem:[#allocation2 + $0x28] sm:$0xff]
        %v3773 = vld [vmem:[#allocation2 + $0x30] sm:$0xff]
        %v3774 = vld [vmem:[#allocation2 + $0x38] sm:$0xff]
        %v3775 = vld [vmem:[#allocation2 + $0x40] sm:$0xff]
        %v3776 = vld [vmem:[#allocation2 + $0x48] sm:$0xff]
        %v3777 = vld [vmem:[#allocation2 + $0x50] sm:$0xff]
        %v3778 = vld [vmem:[#allocation2 + $0x58] sm:$0xff]
        %v3779 = vld [vmem:[#allocation2 + $0x60] sm:$0xff]
        %v3780 = vld [vmem:[#allocation2 + $0x68] sm:$0xff]
        %v3781 = vld [vmem:[#allocation2 + $0x70] sm:$0xff]
        %v3782 = vld [vmem:[#allocation2 + $0x78] sm:$0xff]
        %v3783 = vld [vmem:[#allocation2 + $0x80] sm:$0xff]
        %v3784 = vld [vmem:[#allocation2 + $0x88] sm:$0xff]
        %v3785 = vld [vmem:[%s17] sm:$0xff]
        %v3786 = vld [vmem:[%s17 + $0x8] sm:$0xff]
        %v3787 = vld [vmem:[%s17 + $0x10] sm:$0xff]
        %3789 = vset.pattern.permute.xlu0 0
        %3790 = vperm.xlu0 %3789, %v3785
        %v3791 = vpop.permute.xlu0 %3790
        %v3794 = vsel %vm2167, %v3766, 0
        %3796 = vmatpush.msra.mxu0 0.0
        %3797 = vmatpush.msra.mxu0 0.0
        %3798 = vmatpush.msra.mxu0 0.0
        %3799 = vmatpush.msra.mxu0 0.0
        %3800 = vmatpush.msra.mxu0 0.0
        %3801 = vmatpush.msra.mxu0 0.0
        %3802 = vmatpush.msra.mxu0 0.0
        %3803 = vmatpush.msra.mxu0 %v3783
        %3804 = vmatpush.msra.mxu0 %v3781
        %3805 = vmatpush.msra.mxu0 %v3779
        %3806 = vmatpush.msra.mxu0 %v3777
        %3807 = vmatpush.msra.mxu0 %v3775
        %3808 = vmatpush.msra.mxu0 %v3773
        %3809 = vmatpush.msra.mxu0 %v3771
        %3810 = vmatpush.msra.mxu0 %v3769
        %3811 = vmatpush.msra.mxu0 %v3767
        %3812 = vmatmul.f32.gmra.mxu0 %v3794
        %v3813 = vpop.f32.mrf.mxu0
        %v3814 = vadd.f32 %v3791, %v3813
        %3815 = vdwg.mxu0
        %3816 = vmatpush.msra.mxu0 0.0
        %3817 = vmatpush.msra.mxu0 0.0
        %3818 = vmatpush.msra.mxu0 0.0
        %3819 = vmatpush.msra.mxu0 0.0
        %3820 = vmatpush.msra.mxu0 0.0
        %3821 = vmatpush.msra.mxu0 0.0
        %3822 = vmatpush.msra.mxu0 0.0
        %3823 = vmatpush.msra.mxu0 %v3784
        %3824 = vmatpush.msra.mxu0 %v3782
        %3825 = vmatpush.msra.mxu0 %v3780
        %3826 = vmatpush.msra.mxu0 %v3778
        %3827 = vmatpush.msra.mxu0 %v3776
        %3828 = vmatpush.msra.mxu0 %v3774
        %3829 = vmatpush.msra.mxu0 %v3772
        %3830 = vmatpush.msra.mxu0 %v3770
        %3831 = vmatpush.msra.mxu0 %v3768
        %3832 = vmatmul.f32.gmra.mxu0 %v3794
        %v3833 = vpop.f32.mrf.mxu0
        %v3834 = vadd.f32 %v3791, %v3833
        %3835 = vdwg.mxu0
        %v3836 = vadd.f32 %v3814, %v3834
        %3837 = vadd.xlane.f32.xlu0 %v3836
        %v3838 = vpop.xlane.xlu0 %3837
        %v3839 = vrot.slane %v3838, 4
        %v3840 = vadd.f32 %v3838, %v3839
        %v3841 = vrot.slane %v3840, 2
        %v3842 = vadd.f32 %v3840, %v3841
        %v3843 = vrot.slane %v3842, 1
        %v3844 = vadd.f32 %v3842, %v3843
        %s3845 = vtos %v3844
        %v3846 = vstv %s3845
        %v3847 = vmul.f32 %v3814, %v3814
        %v3848 = vmul.f32 %v3834, %v3834
        %v3849 = vadd.f32 %v3847, %v3848
        %3850 = vadd.xlane.f32.xlu0 %v3849
        %v3851 = vpop.xlane.xlu0 %3850
        %v3852 = vrot.slane %v3851, 4
        %v3853 = vadd.f32 %v3851, %v3852
        %v3854 = vrot.slane %v3853, 2
        %v3855 = vadd.f32 %v3853, %v3854
        %v3856 = vrot.slane %v3855, 1
        %v3857 = vadd.f32 %v3855, %v3856
        %s3858 = vtos %v3857
        %v3859 = vstv %s3858
        %v3860 = vmul.f32 %v3846, %v1948
        %v3861 = vmul.f32 %v3859, %v1948
        %v3862 = vmul.f32 %v3860, %v3860
        %v3863 = vsub.f32 %v3861, %v3862
        %v3864 = vsub.f32 %v3814, %v3860
        %v3865 = vsub.f32 %v3834, %v3860
        %v3866 = vadd.f32 %v3863, 1e-05
        %v3867 = vrsqrt.pop %v3866
        %v3868 = vmul.f32 %v3867, %v3866
        %v3869 = vmul.f32 %v3868, %v3867
        %v3870 = vmul.f32 0.5, %v3869
        %v3871 = vsub.f32 1.5, %v3870
        %v3872 = vmul.f32 %v3867, %v3871
        %vm3873 = vweird.f32 %v3866
        %vm3874 = vweird.f32 %v3867
        %vm3875 = vmor %vm3873, %vm3874
        %v3876 = vsel %vm3875, %v3867, %v3872
        %v3877 = vmul.f32 %v3864, %v3876
        %v3878 = vmul.f32 %v3865, %v3876
        %3880 = vset.pattern.permute.xlu0 0
        %3881 = vperm.xlu0 %3880, %v3786
        %v3882 = vpop.permute.xlu0 %3881
        %v3884 = vmul.f32 %v3877, %v3882
        %v3885 = vmul.f32 %v3878, %v3882
        %3887 = vset.pattern.permute.xlu0 0
        %3888 = vperm.xlu0 %3887, %v3787
        %v3889 = vpop.permute.xlu0 %3888
        %v3891 = vadd.f32 %v3884, %v3889
        %v3892 = vadd.f32 %v3885, %v3889
        %v3893 = vmax.f32 %v3891, 0.0
        %v3894 = vmax.f32 %v3892, 0.0
        %v3895 = vld [vmem:[%s20] sm:$0xff]
        %3897 = vset.pattern.permute.xlu0 0
        %3898 = vperm.xlu0 %3897, %v3895
        %v3899 = vpop.permute.xlu0 %3898
        %v3901 = vmul.f32 %v3893, %v3899
        %v3902 = vmul.f32 %v3894, %v3899
        %v3903 = vrot.slane %v3901, 4
        %v3904 = vadd.f32 %v3901, %v3903
        %v3905 = vrot.slane %v3904, 2
        %v3906 = vadd.f32 %v3904, %v3905
        %v3907 = vrot.slane %v3906, 1
        %v3908 = vadd.f32 %v3906, %v3907
        %v3909 = vrot.slane %v3902, 4
        %v3910 = vadd.f32 %v3902, %v3909
        %v3911 = vrot.slane %v3910, 2
        %v3912 = vadd.f32 %v3910, %v3911
        %v3913 = vrot.slane %v3912, 1
        %v3914 = vadd.f32 %v3912, %v3913
        %v3915 = vld [vmem:[#allocation4] sm:$0x1]
        %3917 = vset.pattern.permute.xlu0 0
        %3918 = vperm.xlu0 %3917, %v3915
        %v3919 = vpop.permute.xlu0 %3918
        %v3921 = vperm.slane %v3919, 0
        %v3922 = vadd.f32 %v3908, %v3921
        %v3923 = vadd.f32 %v3914, %v3921
        %v3926 = vrot.slane %v3923, 7
        %v3927 = vsel %vm793, %v3922, %v3926
        %3929 = vst.msk [vmem:[%s757] sm:$0x3] %vm1708, %v3927
        %v3930 = vld [vmem:[%s748] sm:$0xff]
        %v3931 = vld [vmem:[%s748 + $0x8] sm:$0xff]
        %v3932 = vmul.f32 %v3893, %v3930
        %v3933 = vmul.f32 %v3894, %v3931
        %3934 = vst [vmem:[#allocation3] sm:$0xff] %v3932
        %3935 = vst [vmem:[#allocation3 + $0x8] sm:$0xff] %v3933
        %3936 = vst [vmem:[#allocation3 + $0x10] sm:$0xff] %v3930
        %3937 = vst [vmem:[#allocation3 + $0x18] sm:$0xff] %v3931
        %v3938 = vld [vmem:[#allocation3] sm:$0xff]
        %v3939 = vld [vmem:[#allocation3 + $0x8] sm:$0xff]
        %v3940 = vld [vmem:[#allocation3 + $0x10] sm:$0xff]
        %v3941 = vld [vmem:[#allocation3 + $0x18] sm:$0xff]
        %3942 = vrot.lane.b32.xlu0 %v3938, 17
        %v3943 = vpop.permute.xlu0 %3942
        %3944 = vrot.lane.b32.xlu0 %v3940, 17
        %v3945 = vpop.permute.xlu0 %3944
        %3946 = vrot.lane.b32.xlu0 %v3939, 17
        %v3947 = vpop.permute.xlu0 %3946
        %3948 = vrot.lane.b32.xlu0 %v3941, 17
        %v3949 = vpop.permute.xlu0 %3948
        %v3950 = vsel %vm1687, %v3943, %v3947
        %v3951 = vsel %vm1687, %v3945, %v3949
        %v3952 = vsel %vm1687, %v3947, %v3943
        %v3953 = vsel %vm1687, %v3949, %v3945
        %v3954 = vsel %vm2846, %v3952, 0.0
        %v3955 = vsel %vm2847, %v3950, 0.0
        %v3956 = vsel %vm2846, %v3953, 0.0
        %v3957 = vsel %vm2847, %v3951, 0.0
        %3958 = vst [vmem:[#allocation2] sm:$0xff] %v3954
        %3959 = vst [vmem:[#allocation2 + $0x8] sm:$0xff] %v3955
        %3960 = vst [vmem:[#allocation2 + $0x10] sm:$0xff] %v3956
        %3961 = vst [vmem:[#allocation2 + $0x18] sm:$0xff] %v3957
        %3962 = vrot.lane.b32.xlu0 %v3938, 16
        %v3963 = vpop.permute.xlu0 %3962
        %3964 = vrot.lane.b32.xlu0 %v3940, 16
        %v3965 = vpop.permute.xlu0 %3964
        %3966 = vrot.lane.b32.xlu0 %v3939, 16
        %v3967 = vpop.permute.xlu0 %3966
        %3968 = vrot.lane.b32.xlu0 %v3941, 16
        %v3969 = vpop.permute.xlu0 %3968
        %v3970 = vsel %vm1059, %v3963, %v3967
        %v3971 = vsel %vm1059, %v3965, %v3969
        %v3972 = vsel %vm1059, %v3967, %v3963
        %v3973 = vsel %vm1059, %v3969, %v3965
        %v3974 = vsel %vm2855, %v3972, 0.0
        %v3975 = vsel %vm2856, %v3970, 0.0
        %v3976 = vsel %vm2855, %v3973, 0.0
        %v3977 = vsel %vm2856, %v3971, 0.0
        %3978 = vst [vmem:[#allocation2 + $0x20] sm:$0xff] %v3974
        %3979 = vst [vmem:[#allocation2 + $0x28] sm:$0xff] %v3975
        %3980 = vst [vmem:[#allocation2 + $0x30] sm:$0xff] %v3976
        %3981 = vst [vmem:[#allocation2 + $0x38] sm:$0xff] %v3977
        %3982 = vrot.lane.b32.xlu0 %v3938, 15
        %v3983 = vpop.permute.xlu0 %3982
        %3984 = vrot.lane.b32.xlu0 %v3940, 15
        %v3985 = vpop.permute.xlu0 %3984
        %3986 = vrot.lane.b32.xlu0 %v3939, 15
        %v3987 = vpop.permute.xlu0 %3986
        %3988 = vrot.lane.b32.xlu0 %v3941, 15
        %v3989 = vpop.permute.xlu0 %3988
        %v3990 = vsel %vm1735, %v3983, %v3987
        %v3991 = vsel %vm1735, %v3985, %v3989
        %v3992 = vsel %vm1735, %v3987, %v3983
        %v3993 = vsel %vm1735, %v3989, %v3985
        %v3994 = vsel %vm2870, %v3992, 0.0
        %v3995 = vsel %vm2871, %v3990, 0.0
        %v3996 = vsel %vm2870, %v3993, 0.0
        %v3997 = vsel %vm2871, %v3991, 0.0
        %3998 = vst [vmem:[#allocation2 + $0x40] sm:$0xff] %v3994
        %3999 = vst [vmem:[#allocation2 + $0x48] sm:$0xff] %v3995
        %4000 = vst [vmem:[#allocation2 + $0x50] sm:$0xff] %v3996
        %4001 = vst [vmem:[#allocation2 + $0x58] sm:$0xff] %v3997
        %4002 = vrot.lane.b32.xlu0 %v3938, 1
        %v4003 = vpop.permute.xlu0 %4002
        %4004 = vrot.lane.b32.xlu0 %v3940, 1
        %v4005 = vpop.permute.xlu0 %4004
        %4006 = vrot.lane.b32.xlu0 %v3939, 1
        %v4007 = vpop.permute.xlu0 %4006
        %4008 = vrot.lane.b32.xlu0 %v3941, 1
        %v4009 = vpop.permute.xlu0 %4008
        %v4010 = vsel %vm1757, %v4003, %v4007
        %v4011 = vsel %vm1757, %v4005, %v4009
        %v4012 = vsel %vm1757, %v4007, %v4003
        %v4013 = vsel %vm1757, %v4009, %v4005
        %v4014 = vsel %vm2885, %v4012, 0.0
        %v4015 = vsel %vm2886, %v4010, 0.0
        %v4016 = vsel %vm2885, %v4013, 0.0
        %v4017 = vsel %vm2886, %v4011, 0.0
        %4018 = vst [vmem:[#allocation2 + $0x60] sm:$0xff] %v4014
        %4019 = vst [vmem:[#allocation2 + $0x68] sm:$0xff] %v4015
        %4020 = vst [vmem:[#allocation2 + $0x70] sm:$0xff] %v4016
        %4021 = vst [vmem:[#allocation2 + $0x78] sm:$0xff] %v4017
        %4022 = vst [vmem:[#allocation2 + $0x80] sm:$0xff] %v3938
        %4023 = vst [vmem:[#allocation2 + $0x88] sm:$0xff] %v3939
        %4024 = vst [vmem:[#allocation2 + $0x90] sm:$0xff] %v3940
        %4025 = vst [vmem:[#allocation2 + $0x98] sm:$0xff] %v3941
        %4026 = vrot.lane.b32.xlu0 %v3938, 127
        %v4027 = vpop.permute.xlu0 %4026
        %4028 = vrot.lane.b32.xlu0 %v3940, 127
        %v4029 = vpop.permute.xlu0 %4028
        %4030 = vrot.lane.b32.xlu0 %v3939, 127
        %v4031 = vpop.permute.xlu0 %4030
        %4032 = vrot.lane.b32.xlu0 %v3941, 127
        %v4033 = vpop.permute.xlu0 %4032
        %v4034 = vsel %vm1093, %v4027, %v4031
        %v4035 = vsel %vm1093, %v4029, %v4033
        %v4036 = vsel %vm1093, %v4031, %v4027
        %v4037 = vsel %vm1093, %v4033, %v4029
        %v4038 = vsel %vm2902, %v4034, 0.0
        %v4039 = vsel %vm2903, %v4036, 0.0
        %v4040 = vsel %vm2902, %v4035, 0.0
        %v4041 = vsel %vm2903, %v4037, 0.0
        %4042 = vst [vmem:[#allocation2 + $0xa0] sm:$0xff] %v4038
        %4043 = vst [vmem:[#allocation2 + $0xa8] sm:$0xff] %v4039
        %4044 = vst [vmem:[#allocation2 + $0xb0] sm:$0xff] %v4040
        %4045 = vst [vmem:[#allocation2 + $0xb8] sm:$0xff] %v4041
        %4046 = vrot.lane.b32.xlu0 %v3938, 113
        %v4047 = vpop.permute.xlu0 %4046
        %4048 = vrot.lane.b32.xlu0 %v3940, 113
        %v4049 = vpop.permute.xlu0 %4048
        %4050 = vrot.lane.b32.xlu0 %v3939, 113
        %v4051 = vpop.permute.xlu0 %4050
        %4052 = vrot.lane.b32.xlu0 %v3941, 113
        %v4053 = vpop.permute.xlu0 %4052
        %v4054 = vsel %vm1802, %v4047, %v4051
        %v4055 = vsel %vm1802, %v4049, %v4053
        %v4056 = vsel %vm1802, %v4051, %v4047
        %v4057 = vsel %vm1802, %v4053, %v4049
        %v4058 = vsel %vm2917, %v4054, 0.0
        %v4059 = vsel %vm2918, %v4056, 0.0
        %v4060 = vsel %vm2917, %v4055, 0.0
        %v4061 = vsel %vm2918, %v4057, 0.0
        %4062 = vst [vmem:[#allocation2 + $0xc0] sm:$0xff] %v4058
        %4063 = vst [vmem:[#allocation2 + $0xc8] sm:$0xff] %v4059
        %4064 = vst [vmem:[#allocation2 + $0xd0] sm:$0xff] %v4060
        %4065 = vst [vmem:[#allocation2 + $0xd8] sm:$0xff] %v4061
        %4066 = vrot.lane.b32.xlu0 %v3938, 112
        %v4067 = vpop.permute.xlu0 %4066
        %4068 = vrot.lane.b32.xlu0 %v3940, 112
        %v4069 = vpop.permute.xlu0 %4068
        %4070 = vrot.lane.b32.xlu0 %v3939, 112
        %v4071 = vpop.permute.xlu0 %4070
        %4072 = vrot.lane.b32.xlu0 %v3941, 112
        %v4073 = vpop.permute.xlu0 %4072
        %v4074 = vsel %vm1823, %v4067, %v4071
        %v4075 = vsel %vm1823, %v4069, %v4073
        %v4076 = vsel %vm1823, %v4071, %v4067
        %v4077 = vsel %vm1823, %v4073, %v4069
        %v4078 = vsel %vm2926, %v4074, 0.0
        %v4079 = vsel %vm2927, %v4076, 0.0
        %v4080 = vsel %vm2926, %v4075, 0.0
        %v4081 = vsel %vm2927, %v4077, 0.0
        %4082 = vst [vmem:[#allocation2 + $0xe0] sm:$0xff] %v4078
        %4083 = vst [vmem:[#allocation2 + $0xe8] sm:$0xff] %v4079
        %4084 = vst [vmem:[#allocation2 + $0xf0] sm:$0xff] %v4080
        %4085 = vst [vmem:[#allocation2 + $0xf8] sm:$0xff] %v4081
        %4086 = vrot.lane.b32.xlu0 %v3938, 111
        %v4087 = vpop.permute.xlu0 %4086
        %4088 = vrot.lane.b32.xlu0 %v3940, 111
        %v4089 = vpop.permute.xlu0 %4088
        %4090 = vrot.lane.b32.xlu0 %v3939, 111
        %v4091 = vpop.permute.xlu0 %4090
        %4092 = vrot.lane.b32.xlu0 %v3941, 111
        %v4093 = vpop.permute.xlu0 %4092
        %v4094 = vsel %vm1841, %v4087, %v4091
        %v4095 = vsel %vm1841, %v4089, %v4093
        %v4096 = vsel %vm1841, %v4091, %v4087
        %v4097 = vsel %vm1841, %v4093, %v4089
        %v4098 = vsel %vm2941, %v4094, 0.0
        %v4099 = vsel %vm2942, %v4096, 0.0
        %v4100 = vsel %vm2941, %v4095, 0.0
        %v4101 = vsel %vm2942, %v4097, 0.0
        %4102 = vst [vmem:[#allocation2 + $0x100] sm:$0xff] %v4098
        %4103 = vst [vmem:[#allocation2 + $0x108] sm:$0xff] %v4099
        %4104 = vst [vmem:[#allocation2 + $0x110] sm:$0xff] %v4100
        %4105 = vst [vmem:[#allocation2 + $0x118] sm:$0xff] %v4101
        %v4106 = vld [vmem:[%s18] sm:$0xff]
        %v4107 = vld [vmem:[#allocation2] sm:$0xff]
        %v4108 = vld [vmem:[#allocation2 + $0x8] sm:$0xff]
        %v4109 = vld [vmem:[#allocation2 + $0x10] sm:$0xff]
        %v4110 = vld [vmem:[#allocation2 + $0x18] sm:$0xff]
        %v4111 = vld [vmem:[#allocation2 + $0x20] sm:$0xff]
        %v4112 = vld [vmem:[#allocation2 + $0x28] sm:$0xff]
        %v4113 = vld [vmem:[#allocation2 + $0x30] sm:$0xff]
        %v4114 = vld [vmem:[#allocation2 + $0x38] sm:$0xff]
        %v4115 = vld [vmem:[#allocation2 + $0x40] sm:$0xff]
        %v4116 = vld [vmem:[#allocation2 + $0x48] sm:$0xff]
        %v4117 = vld [vmem:[#allocation2 + $0x50] sm:$0xff]
        %v4118 = vld [vmem:[#allocation2 + $0x58] sm:$0xff]
        %v4119 = vld [vmem:[#allocation2 + $0x60] sm:$0xff]
        %v4120 = vld [vmem:[#allocation2 + $0x68] sm:$0xff]
        %v4121 = vld [vmem:[#allocation2 + $0x70] sm:$0xff]
        %v4122 = vld [vmem:[#allocation2 + $0x78] sm:$0xff]
        %v4123 = vld [vmem:[#allocation2 + $0x80] sm:$0xff]
        %v4124 = vld [vmem:[#allocation2 + $0x88] sm:$0xff]
        %v4125 = vld [vmem:[#allocation2 + $0x90] sm:$0xff]
        %v4126 = vld [vmem:[#allocation2 + $0x98] sm:$0xff]
        %v4127 = vld [vmem:[#allocation2 + $0xa0] sm:$0xff]
        %v4128 = vld [vmem:[#allocation2 + $0xa8] sm:$0xff]
        %v4129 = vld [vmem:[#allocation2 + $0xb0] sm:$0xff]
        %v4130 = vld [vmem:[#allocation2 + $0xb8] sm:$0xff]
        %v4131 = vld [vmem:[#allocation2 + $0xc0] sm:$0xff]
        %v4132 = vld [vmem:[#allocation2 + $0xc8] sm:$0xff]
        %v4133 = vld [vmem:[#allocation2 + $0xd0] sm:$0xff]
        %v4134 = vld [vmem:[#allocation2 + $0xd8] sm:$0xff]
        %v4135 = vld [vmem:[#allocation2 + $0xe0] sm:$0xff]
        %v4136 = vld [vmem:[#allocation2 + $0xe8] sm:$0xff]
        %v4137 = vld [vmem:[#allocation2 + $0xf0] sm:$0xff]
        %v4138 = vld [vmem:[#allocation2 + $0xf8] sm:$0xff]
        %v4139 = vld [vmem:[%s18 + $0x8] sm:$0xff]
        %v4140 = vld [vmem:[#allocation2 + $0x100] sm:$0xff]
        %v4141 = vld [vmem:[#allocation2 + $0x108] sm:$0xff]
        %v4142 = vld [vmem:[#allocation2 + $0x110] sm:$0xff]
        %v4143 = vld [vmem:[#allocation2 + $0x118] sm:$0xff]
        %vm4144 = vcmask 130048
        %v4146 = vsel %vm4144, %v4139, 0
        %4148 = vmatpush.msra.mxu0 0.0
        %4149 = vmatpush.msra.mxu0 0.0
        %4150 = vmatpush.msra.mxu0 0.0
        %4151 = vmatpush.msra.mxu0 0.0
        %4152 = vmatpush.msra.mxu0 0.0
        %4153 = vmatpush.msra.mxu0 0.0
        %4154 = vmatpush.msra.mxu0 0.0
        %4155 = vmatpush.msra.mxu0 0.0
        %4156 = vmatpush.msra.mxu0 0.0
        %4157 = vmatpush.msra.mxu0 0.0
        %4158 = vmatpush.msra.mxu0 0.0
        %4159 = vmatpush.msra.mxu0 0.0
        %4160 = vmatpush.msra.mxu0 0.0
        %4161 = vmatpush.msra.mxu0 0.0
        %4162 = vmatpush.msra.mxu0 %v4142
        %4163 = vmatpush.msra.mxu0 %v4140
        %4164 = vmatmul.f32.gmra.mxu0 %v4146
        %v4165 = vpop.f32.mrf.mxu0
        %v4166 = vadd.f32 0.0, %v4165
        %4167 = vdwg.mxu0
        %4168 = vmatpush.msra.mxu0 0.0
        %4169 = vmatpush.msra.mxu0 0.0
        %4170 = vmatpush.msra.mxu0 0.0
        %4171 = vmatpush.msra.mxu0 0.0
        %4172 = vmatpush.msra.mxu0 0.0
        %4173 = vmatpush.msra.mxu0 0.0
        %4174 = vmatpush.msra.mxu0 0.0
        %4175 = vmatpush.msra.mxu0 0.0
        %4176 = vmatpush.msra.mxu0 0.0
        %4177 = vmatpush.msra.mxu0 0.0
        %4178 = vmatpush.msra.mxu0 0.0
        %4179 = vmatpush.msra.mxu0 0.0
        %4180 = vmatpush.msra.mxu0 0.0
        %4181 = vmatpush.msra.mxu0 0.0
        %4182 = vmatpush.msra.mxu0 %v4143
        %4183 = vmatpush.msra.mxu0 %v4141
        %4184 = vmatmul.f32.gmra.mxu0 %v4146
        %v4185 = vpop.f32.mrf.mxu0
        %v4186 = vadd.f32 0.0, %v4185
        %4187 = vdwg.mxu0
        %4188 = vmatpush.msra.mxu0 %v4137
        %4189 = vmatpush.msra.mxu0 %v4135
        %4190 = vmatpush.msra.mxu0 %v4133
        %4191 = vmatpush.msra.mxu0 %v4131
        %4192 = vmatpush.msra.mxu0 %v4129
        %4193 = vmatpush.msra.mxu0 %v4127
        %4194 = vmatpush.msra.mxu0 %v4125
        %4195 = vmatpush.msra.mxu0 %v4123
        %4196 = vmatpush.msra.mxu0 %v4121
        %4197 = vmatpush.msra.mxu0 %v4119
        %4198 = vmatpush.msra.mxu0 %v4117
        %4199 = vmatpush.msra.mxu0 %v4115
        %4200 = vmatpush.msra.mxu0 %v4113
        %4201 = vmatpush.msra.mxu0 %v4111
        %4202 = vmatpush.msra.mxu0 %v4109
        %4203 = vmatpush.msra.mxu0 %v4107
        %4204 = vmatmul.f32.gmra.mxu0 %v4106
        %v4205 = vpop.f32.mrf.mxu0
        %v4206 = vadd.f32 %v4166, %v4205
        %4207 = vdwg.mxu0
        %4208 = vmatpush.msra.mxu0 %v4138
        %4209 = vmatpush.msra.mxu0 %v4136
        %4210 = vmatpush.msra.mxu0 %v4134
        %4211 = vmatpush.msra.mxu0 %v4132
        %4212 = vmatpush.msra.mxu0 %v4130
        %4213 = vmatpush.msra.mxu0 %v4128
        %4214 = vmatpush.msra.mxu0 %v4126
        %4215 = vmatpush.msra.mxu0 %v4124
        %4216 = vmatpush.msra.mxu0 %v4122
        %4217 = vmatpush.msra.mxu0 %v4120
        %4218 = vmatpush.msra.mxu0 %v4118
        %4219 = vmatpush.msra.mxu0 %v4116
        %4220 = vmatpush.msra.mxu0 %v4114
        %4221 = vmatpush.msra.mxu0 %v4112
        %4222 = vmatpush.msra.mxu0 %v4110
        %4223 = vmatpush.msra.mxu0 %v4108
        %4224 = vmatmul.f32.gmra.mxu0 %v4106
        %v4225 = vpop.f32.mrf.mxu0
        %v4226 = vadd.f32 %v4186, %v4225
        %4227 = vdwg.mxu0
        %v4228 = vld [vmem:[%s19] sm:$0xff]
        %v4229 = vld [vmem:[%s19 + $0x8] sm:$0xff]
        %v4230 = vld [vmem:[%s19 + $0x10] sm:$0xff]
        %4232 = vset.pattern.permute.xlu0 0
        %4233 = vperm.xlu0 %4232, %v4228
        %v4234 = vpop.permute.xlu0 %4233
        %v4236 = vadd.f32 %v4206, %v4234
        %v4237 = vadd.f32 %v4226, %v4234
        %v4238 = vadd.f32 %v4236, %v4237
        %4239 = vadd.xlane.f32.xlu0 %v4238
        %v4240 = vpop.xlane.xlu0 %4239
        %v4241 = vrot.slane %v4240, 4
        %v4242 = vadd.f32 %v4240, %v4241
        %v4243 = vrot.slane %v4242, 2
        %v4244 = vadd.f32 %v4242, %v4243
        %v4245 = vrot.slane %v4244, 1
        %v4246 = vadd.f32 %v4244, %v4245
        %s4247 = vtos %v4246
        %v4248 = vstv %s4247
        %v4249 = vmul.f32 %v4236, %v4236
        %v4250 = vmul.f32 %v4237, %v4237
        %v4251 = vadd.f32 %v4249, %v4250
        %4252 = vadd.xlane.f32.xlu0 %v4251
        %v4253 = vpop.xlane.xlu0 %4252
        %v4254 = vrot.slane %v4253, 4
        %v4255 = vadd.f32 %v4253, %v4254
        %v4256 = vrot.slane %v4255, 2
        %v4257 = vadd.f32 %v4255, %v4256
        %v4258 = vrot.slane %v4257, 1
        %v4259 = vadd.f32 %v4257, %v4258
        %s4260 = vtos %v4259
        %v4261 = vstv %s4260
        %v4262 = vmul.f32 %v4248, %v1948
        %v4263 = vmul.f32 %v4261, %v1948
        %v4264 = vmul.f32 %v4262, %v4262
        %v4265 = vsub.f32 %v4263, %v4264
        %v4266 = vsub.f32 %v4236, %v4262
        %v4267 = vsub.f32 %v4237, %v4262
        %v4268 = vadd.f32 %v4265, 1e-05
        %v4269 = vrsqrt.pop %v4268
        %v4270 = vmul.f32 %v4269, %v4268
        %v4271 = vmul.f32 %v4270, %v4269
        %v4272 = vmul.f32 0.5, %v4271
        %v4273 = vsub.f32 1.5, %v4272
        %v4274 = vmul.f32 %v4269, %v4273
        %vm4275 = vweird.f32 %v4268
        %vm4276 = vweird.f32 %v4269
        %vm4277 = vmor %vm4275, %vm4276
        %v4278 = vsel %vm4277, %v4269, %v4274
        %v4279 = vmul.f32 %v4266, %v4278
        %v4280 = vmul.f32 %v4267, %v4278
        %4282 = vset.pattern.permute.xlu0 0
        %4283 = vperm.xlu0 %4282, %v4229
        %v4284 = vpop.permute.xlu0 %4283
        %v4286 = vmul.f32 %v4279, %v4284
        %v4287 = vmul.f32 %v4280, %v4284
        %4289 = vset.pattern.permute.xlu0 0
        %4290 = vperm.xlu0 %4289, %v4230
        %v4291 = vpop.permute.xlu0 %4290
        %v4293 = vadd.f32 %v4286, %v4291
        %v4294 = vadd.f32 %v4287, %v4291
        %v4295 = vmax.f32 %v4293, 0.0
        %v4296 = vmax.f32 %v4294, 0.0
        %4297 = vst [vmem:[%s753] sm:$0xff] %v4295
        %4298 = vst [vmem:[%s753 + $0x8] sm:$0xff] %v4296
        %p4299 = scmp.lt.s32.totalorder %s38, 1
        %s4300 = scalar_select %p4299, %s38, 1
        %s4301 = smul.addr %s4300, 2
        %s4302 = smul.addr %s4301, 8
        %s4303 = scalar_lea.vmem %s22, %s4302
        %p4304 = scmp.lt.s32.totalorder %s38, 1
        %s4305 = scalar_select %p4304, %s38, 1
        %s4306 = smul.addr %s4305, 2
        %s4307 = scalar_lea.vmem %s23, %s4306
        // Predicated region
        $region113: #{fdm_expand_block_forward.1} parent=107 // pred_check
          %p4308 = pneg %p528
        $region114: #{fdm_expand_block_forward.1} parent=107 // pred_check_branch
          %4310 = sbr.rel (%p4308) target = $region116
        $region115: #{fdm_expand_block_forward.1} parent=107 // pred_region
          _
        $region116: #{fdm_expand_block_forward.1} parent=107 // pred_fallthru
          _
        // Predicated region
        $region117: #{fdm_expand_block_forward.1} parent=107 // pred_check
          %p4311 = pneg %p554
        $region118: #{fdm_expand_block_forward.1} parent=107 // pred_check_branch
          %4313 = sbr.rel (%p4311) target = $region120
        $region119: #{fdm_expand_block_forward.1} parent=107 // pred_region
          _
        $region120: #{fdm_expand_block_forward.1} parent=107 // pred_fallthru
          _
      $region108: #{fdm_expand_block_forward.1} parent=5 // pred_fallthru
        _
      %p4314 = scmp.le.s32.totalorder 2, %s33
      // Predicated region
      $region121: #{fdm_expand_block_forward.1} parent=5 // pred_check
        %p4315 = pneg %p4314
      $region122: #{fdm_expand_block_forward.1} parent=5 // pred_check_branch
        %4317 = sbr.rel (%p4315) target = $region124
      $region123: #{fdm_expand_block_forward.1} parent=5 // pred_region
        %s4318 = ssub.s32 %s33, 2
        // Predicated region
        $region125: #{fdm_expand_block_forward.1} parent=123 // pred_check
          %p4319 = pneg %p534
        $region126: #{fdm_expand_block_forward.1} parent=123 // pred_check_branch
          %4321 = sbr.rel (%p4319) target = $region128
        $region127: #{fdm_expand_block_forward.1} parent=123 // pred_region
          %p4322 = scmp.lt.s32.totalorder %s39, 1
          %s4323 = scalar_select %p4322, %s39, 1
          %s4324 = smul.addr %s4323, 2
          %s4325 = smul.addr %s4324, 8
          %s4326 = scalar_lea.vmem %s22, %s4325
        $region128: #{fdm_expand_block_forward.1} parent=123 // pred_fallthru
          _
        // Predicated region
        $region129: #{fdm_expand_block_forward.1} parent=123 // pred_check
          %p4327 = pneg %p560
        $region130: #{fdm_expand_block_forward.1} parent=123 // pred_check_branch
          %4329 = sbr.rel (%p4327) target = $region132
        $region131: #{fdm_expand_block_forward.1} parent=123 // pred_region
          %p4330 = scmp.lt.s32.totalorder %s39, 1
          %s4331 = scalar_select %p4330, %s39, 1
          %s4332 = smul.addr %s4331, 2
          %s4333 = scalar_lea.vmem %s23, %s4332
        $region132: #{fdm_expand_block_forward.1} parent=123 // pred_fallthru
          _
      $region124: #{fdm_expand_block_forward.1} parent=5 // pred_fallthru
        _
    $region6: #{fdm_expand_block_forward.1} parent=1 // loop_footer
      %s37 = sadd.s32 1, %s33
    $region7: #{fdm_expand_block_forward.1} parent=1 // loop_footer_branch
      %32 = sbr.rel target = $region3
    $region8: #{fdm_expand_block_forward.1} parent=1 // loop_exit
      _
    %4334 = vsyncpa [#allocation6], 1
    %s4335 = scalar_lea.sflag [#allocation6], 1
    %4336 = vsyncpa %s4335, 1

</llo_original>
